<compile_context>
chip_gen: v6e
topology: v6e:2x2x1
jax: 0.10.0
libtpu: 0.0.40
codegen_flags: <defaults>
</compile_context>

<pallas_src>
import numpy as np

import jax
import jax.numpy as jnp
from jax.experimental import pallas as pl
from jax.experimental.pallas import tpu as pltpu


# ----------------------------- static geometry -----------------------------

TILE_B = 8                # samples per grid step
_ROWS = 32 * TILE_B       # rows per tile; each sample owns 32 consecutive rows

# Shrinking valid-row counts per stage so no slice ever reads rows an earlier
# stage did not write (row shifts: conv1 <=4, pool1 <=1, conv2 <=8, pool2 <=2,
# fc1 <=16).
_R1 = _ROWS - 4           # conv1 output rows
_R1P = _R1 - 1            # pool1 output rows
_R2 = _R1P - 8            # conv2 output rows
_R2P = _R2 - 2            # pool2 output rows
_R3 = _R2P - 16           # fc1 output rows   (sample b lives at row b*32 < _R3)

_W1_K, _W1_N = 32 * 3, 6 * 28        # conv1: K = W*Cin = 96,  N = Cout*OW = 168
_W2_K, _W2_N = _W1_N - 1, 16 * 10    # conv2: K = 167,         N = 160
_F1_K, _F1_N = _W2_N - 1, 128        # fc1:   K = 159,         N = 128 (120 padded)


# ----------------------------- fused Pallas kernel -----------------------------

def _lenet_kernel(x_ref, w1_ref, b1_ref, w2_ref, b2_ref,
                  wf1_ref, bf1_ref, wf2_ref, bf2_ref, wf3_ref, bf3_ref,
                  o_ref,
                  s1, s2, s3, s4, s5):
    f32 = jnp.float32

    # ---- conv1 (5x5, 3->6): 5 row-shifted banded matmuls, bias folded into init.
    for kh in range(5):
        contrib = jnp.dot(x_ref[pl.ds(kh, _R1), :], w1_ref[kh],
                          preferred_element_type=f32)
        if kh == 0:
            s1[pl.ds(0, _R1), :] = contrib + b1_ref[...]
        else:
            s1[pl.ds(0, _R1), :] += contrib

    # ---- ReLU + 2x2/2 max-pool (rows r,r+1 ; lanes c,c+1), store bf16.
    p = jnp.maximum(
        jnp.maximum(s1[pl.ds(0, _R1P), pl.ds(0, _W2_K)],
                    s1[pl.ds(1, _R1P), pl.ds(0, _W2_K)]),
        jnp.maximum(s1[pl.ds(0, _R1P), pl.ds(1, _W2_K)],
                    s1[pl.ds(1, _R1P), pl.ds(1, _W2_K)]))
    s2[pl.ds(0, _R1P), :] = jnp.maximum(p, 0.0).astype(s2.dtype)

    # ---- conv2 (5x5, 6->16): row shift is 2*kh (pool kept row stride 2).
    for kh in range(5):
        contrib = jnp.dot(s2[pl.ds(2 * kh, _R2), :], w2_ref[kh],
                          preferred_element_type=f32)
        if kh == 0:
            s3[pl.ds(0, _R2), :] = contrib + b2_ref[...]
        else:
            s3[pl.ds(0, _R2), :] += contrib

    # ---- ReLU + 2x2/2 max-pool (rows r,r+2 ; lanes c,c+1), store bf16.
    p = jnp.maximum(
        jnp.maximum(s3[pl.ds(0, _R2P), pl.ds(0, _F1_K)],
                    s3[pl.ds(2, _R2P), pl.ds(0, _F1_K)]),
        jnp.maximum(s3[pl.ds(0, _R2P), pl.ds(1, _F1_K)],
                    s3[pl.ds(2, _R2P), pl.ds(1, _F1_K)]))
    s4[pl.ds(0, _R2P), :] = jnp.maximum(p, 0.0).astype(s4.dtype)

    # ---- fc1 folded over the 5 pooled rows of each sample (row shift 4*h).
    for h in range(5):
        contrib = jnp.dot(s4[pl.ds(4 * h, _R3), :], wf1_ref[h],
                          preferred_element_type=f32)
        if h == 0:
            s5[pl.ds(0, _R3), :] = contrib + bf1_ref[...]
        else:
            s5[pl.ds(0, _R3), :] += contrib

    # ---- gather one row per sample (row b*32), then fc2/fc3 on a (TILE_B,128) tile.
    h1 = jnp.concatenate([s5[pl.ds(b * 32, 1), :] for b in range(TILE_B)], axis=0)
    h1 = jnp.maximum(h1, 0.0).astype(jnp.bfloat16)
    h2 = jnp.dot(h1, wf2_ref[...], preferred_element_type=f32) + bf2_ref[...]
    h2 = jnp.maximum(h2, 0.0).astype(jnp.bfloat16)
    out = jnp.dot(h2, wf3_ref[...], preferred_element_type=f32) + bf3_ref[...]
    o_ref[...] = out


# ----------------------------- one-time weight prep -----------------------------

def prepare_params(params):
    """Build banded conv matrices + padded FC matrices once (not per forward)."""
    f32 = np.float32
    w1 = np.asarray(jax.device_get(params["conv1_w"]), f32)   # (6, 3, 5, 5)
    b1 = np.asarray(jax.device_get(params["conv1_b"]), f32)
    w2 = np.asarray(jax.device_get(params["conv2_w"]), f32)   # (16, 6, 5, 5)
    b2 = np.asarray(jax.device_get(params["conv2_b"]), f32)
    f1w = np.asarray(jax.device_get(params["fc1_w"]), f32)    # (120, 400)
    f1b = np.asarray(jax.device_get(params["fc1_b"]), f32)
    f2w = np.asarray(jax.device_get(params["fc2_w"]), f32)    # (84, 120)
    f2b = np.asarray(jax.device_get(params["fc2_b"]), f32)
    f3w = np.asarray(jax.device_get(params["fc3_w"]), f32)    # (10, 84)
    f3b = np.asarray(jax.device_get(params["fc3_b"]), f32)

    # conv1: W1[kh, w*3+ci, co*28+ow] = w1[co, ci, kh, w-ow]
    W1 = np.zeros((5, _W1_K, _W1_N), f32)
    for kh in range(5):
        for kw in range(5):
            for ow in range(28):
                w = ow + kw
                W1[kh, w * 3:w * 3 + 3, ow::28] = w1[:, :, kh, kw].T  # (ci, co)
    b1r = np.zeros((1, _W1_N), f32)
    b1r[0] = np.repeat(b1, 28)

    # conv2 reads pooled lanes ci*28 + 2*pw:  W2[kh, ci*28+2*pw, co*10+ow] = w2[co,ci,kh,pw-ow]
    W2 = np.zeros((5, _W2_K, _W2_N), f32)
    for kh in range(5):
        for kw in range(5):
            for ow in range(10):
                pw = ow + kw
                W2[kh, 2 * pw::28, ow::10] = w2[:, :, kh, kw].T       # (ci, co)
    b2r = np.zeros((1, _W2_N), f32)
    b2r[0] = np.repeat(b2, 10)

    # fc1 reads pooled lanes co*10 + 2*pw:  Wf1[h, co*10+2*pw, j] = f1w[j, co*25+h*5+pw]
    Wf1 = np.zeros((5, _F1_K, _F1_N), f32)
    for h in range(5):
        for pw in range(5):
            cols = np.arange(16) * 25 + h * 5 + pw
            Wf1[h, 2 * pw::10, 0:120] = f1w[:, cols].T                # (co, j)
    bf1 = np.zeros((1, 128), f32)
    bf1[0, :120] = f1b

    Wf2 = np.zeros((128, 128), f32)
    Wf2[:120, :84] = f2w.T
    bf2 = np.zeros((1, 128), f32)
    bf2[0, :84] = f2b

    Wf3 = np.zeros((128, 128), f32)
    Wf3[:84, :10] = f3w.T
    bf3 = np.zeros((1, 128), f32)
    bf3[0, :10] = f3b

    bf16 = jnp.bfloat16
    return {
        "W1": jnp.asarray(W1, bf16), "b1": jnp.asarray(b1r),
        "W2": jnp.asarray(W2, bf16), "b2": jnp.asarray(b2r),
        "Wf1": jnp.asarray(Wf1, bf16), "bf1": jnp.asarray(bf1),
        "Wf2": jnp.asarray(Wf2, bf16), "bf2": jnp.asarray(bf2),
        "Wf3": jnp.asarray(Wf3, bf16), "bf3": jnp.asarray(bf3),
    }


# ----------------------------- forward wrapper -----------------------------

def net_forward(prepped, x_nchw):
    B = x_nchw.shape[0]
    num_tiles = -(-B // TILE_B)
    Bp = num_tiles * TILE_B

    # NCHW -> NHWC -> (rows=(b,h), lanes=(w,ci)); cast to bf16 at the kernel boundary.
    x = jnp.transpose(x_nchw.astype(jnp.float32), (0, 2, 3, 1)).reshape(B, 32, 96)
    if Bp != B:
        x = jnp.concatenate([x, jnp.zeros((Bp - B, 32, 96), x.dtype)], axis=0)
    x2d = x.reshape(Bp * 32, 96).astype(jnp.bfloat16)

    def const_map(rank):
        return lambda i: (0,) * rank

    out = pl.pallas_call(
        _lenet_kernel,
        out_shape=jax.ShapeDtypeStruct((Bp, 128), jnp.float32),
        grid=(num_tiles,),
        in_specs=[
            pl.BlockSpec((_ROWS, 96), lambda i: (i, 0)),
            pl.BlockSpec((5, _W1_K, _W1_N), const_map(3)),
            pl.BlockSpec((1, _W1_N), const_map(2)),
            pl.BlockSpec((5, _W2_K, _W2_N), const_map(3)),
            pl.BlockSpec((1, _W2_N), const_map(2)),
            pl.BlockSpec((5, _F1_K, _F1_N), const_map(3)),
            pl.BlockSpec((1, 128), const_map(2)),
            pl.BlockSpec((128, 128), const_map(2)),
            pl.BlockSpec((1, 128), const_map(2)),
            pl.BlockSpec((128, 128), const_map(2)),
            pl.BlockSpec((1, 128), const_map(2)),
        ],
        out_specs=pl.BlockSpec((TILE_B, 128), lambda i: (i, 0)),
        scratch_shapes=[
            pltpu.VMEM((_ROWS, _W1_N), jnp.float32),   # conv1 accumulator
            pltpu.VMEM((_ROWS, _W2_K), jnp.bfloat16),  # pooled conv1 activations
            pltpu.VMEM((_ROWS, _W2_N), jnp.float32),   # conv2 accumulator
            pltpu.VMEM((_ROWS, _F1_K), jnp.bfloat16),  # pooled conv2 activations
            pltpu.VMEM((_ROWS, 128), jnp.float32),     # fc1 accumulator
        ],
        compiler_params=pltpu.CompilerParams(
            dimension_semantics=("parallel",)),
    )(x2d,
      prepped["W1"], prepped["b1"],
      prepped["W2"], prepped["b2"],
      prepped["Wf1"], prepped["bf1"],
      prepped["Wf2"], prepped["bf2"],
      prepped["Wf3"], prepped["bf3"])

    return out[:B, :10]


# ----------------------------- synthetic params -----------------------------

def init_params(key):
    """Deterministic synthetic params matching the nn.Module shapes."""
    def uniform(k, shape, fan_in):
        bound = 1.0 / jnp.sqrt(jnp.float32(fan_in))
        return jax.random.uniform(k, shape, jnp.float32, -bound, bound)

    keys = jax.random.split(key, 10)
    return {
        "conv1_w": uniform(keys[0], (6, 3, 5, 5), 3 * 5 * 5),
        "conv1_b": uniform(keys[1], (6,), 3 * 5 * 5),
        "conv2_w": uniform(keys[2], (16, 6, 5, 5), 6 * 5 * 5),
        "conv2_b": uniform(keys[3], (16,), 6 * 5 * 5),
        "fc1_w": uniform(keys[4], (120, 400), 400),
        "fc1_b": uniform(keys[5], (120,), 400),
        "fc2_w": uniform(keys[6], (84, 120), 120),
        "fc2_b": uniform(keys[7], (84,), 120),
        "fc3_w": uniform(keys[8], (10, 84), 84),
        "fc3_b": uniform(keys[9], (10,), 84),
    }


if __name__ == "__main__":
    key = jax.random.PRNGKey(0)
    pkey, xkey = jax.random.split(key)
    params = init_params(pkey)
    prepped = prepare_params(params)   # one-time weight transform (host side)

    # CIFAR-10 style input: fixed 3x32x32 (required by the 16*5*5 flatten).
    x = jax.random.normal(xkey, (2, 3, 32, 32), dtype=jnp.float32)

    out = jax.jit(net_forward)(prepped, x)
    out = jax.block_until_ready(out)

    assert out.shape == (2, 10), out.shape
    assert bool(jnp.all(jnp.isfinite(out)))
    print("KERNEL_OK")
</pallas_src>

<mosaic_0001>
module attributes {stable_mosaic.version = 11 : i64} {
  func.func @_lenet_kernel(%arg0: i32, %arg1: memref<256x96xbf16, #tpu.memory_space<vmem>>, %arg2: memref<5x96x168xbf16, #tpu.memory_space<vmem>>, %arg3: memref<1x168xf32, #tpu.memory_space<vmem>>, %arg4: memref<5x167x160xbf16, #tpu.memory_space<vmem>>, %arg5: memref<1x160xf32, #tpu.memory_space<vmem>>, %arg6: memref<5x159x128xbf16, #tpu.memory_space<vmem>>, %arg7: memref<1x128xf32, #tpu.memory_space<vmem>>, %arg8: memref<128x128xbf16, #tpu.memory_space<vmem>>, %arg9: memref<1x128xf32, #tpu.memory_space<vmem>>, %arg10: memref<128x128xbf16, #tpu.memory_space<vmem>>, %arg11: memref<1x128xf32, #tpu.memory_space<vmem>>, %arg12: memref<8x128xf32, #tpu.memory_space<vmem>>, %arg13: memref<256x168xf32, #tpu.memory_space<vmem>>, %arg14: memref<256x167xbf16, #tpu.memory_space<vmem>>, %arg15: memref<256x160xf32, #tpu.memory_space<vmem>>, %arg16: memref<256x159xbf16, #tpu.memory_space<vmem>>, %arg17: memref<256x128xf32, #tpu.memory_space<vmem>>) attributes {dimension_semantics = [#tpu.dimension_semantics<parallel>], iteration_bounds = array<i64: 1>, scalar_prefetch = 0 : i64, scratch_operands = 5 : i64, tpu.core_type = #tpu.core_type<tc>, window_params = [{transform_indices = @transform_0, window_bounds = array<i64: 256, 96>}, {pipeline_mode = #tpu.pipeline_mode<synchronous>, transform_indices = @transform_1, window_bounds = array<i64: 5, 96, 168>}, {pipeline_mode = #tpu.pipeline_mode<synchronous>, transform_indices = @transform_2, window_bounds = array<i64: 1, 168>}, {pipeline_mode = #tpu.pipeline_mode<synchronous>, transform_indices = @transform_3, window_bounds = array<i64: 5, 167, 160>}, {pipeline_mode = #tpu.pipeline_mode<synchronous>, transform_indices = @transform_4, window_bounds = array<i64: 1, 160>}, {pipeline_mode = #tpu.pipeline_mode<synchronous>, transform_indices = @transform_5, window_bounds = array<i64: 5, 159, 128>}, {pipeline_mode = #tpu.pipeline_mode<synchronous>, transform_indices = @transform_6, window_bounds = array<i64: 1, 128>}, {pipeline_mode = #tpu.pipeline_mode<synchronous>, transform_indices = @transform_7, window_bounds = array<i64: 128, 128>}, {pipeline_mode = #tpu.pipeline_mode<synchronous>, transform_indices = @transform_8, window_bounds = array<i64: 1, 128>}, {pipeline_mode = #tpu.pipeline_mode<synchronous>, transform_indices = @transform_9, window_bounds = array<i64: 128, 128>}, {pipeline_mode = #tpu.pipeline_mode<synchronous>, transform_indices = @transform_10, window_bounds = array<i64: 1, 128>}, {transform_indices = @transform_11, window_bounds = array<i64: 8, 128>}]} {
    %c0 = arith.constant 0 : index
    %c0_0 = arith.constant 0 : index
    %0 = vector.load %arg1[%c0, %c0_0] : memref<256x96xbf16, #tpu.memory_space<vmem>>, vector<252x96xbf16>
    %c0_1 = arith.constant 0 : index
    %c0_2 = arith.constant 0 : index
    %c0_3 = arith.constant 0 : index
    %1 = vector.load %arg2[%c0_1, %c0_2, %c0_3] : memref<5x96x168xbf16, #tpu.memory_space<vmem>>, vector<1x96x168xbf16>
    %2 = vector.shape_cast %1 : vector<1x96x168xbf16> to vector<96x168xbf16>
    %cst = arith.constant dense<0.000000e+00> : vector<252x168xf32>
    %3 = tpu.matmul %0, %2, %cst {dimension_numbers = #tpu.dot_dimension_numbers<[1], [0], [0], [1], [0, 0, 1, 1], [], []>} : vector<252x96xbf16>, vector<96x168xbf16>, vector<252x168xf32> -> vector<252x168xf32>
    %c0_4 = arith.constant 0 : index
    %c0_5 = arith.constant 0 : index
    %4 = vector.load %arg3[%c0_4, %c0_5] : memref<1x168xf32, #tpu.memory_space<vmem>>, vector<1x168xf32>
    %5 = vector.broadcast %4 : vector<1x168xf32> to vector<252x168xf32>
    %6 = arith.addf %3, %5 : vector<252x168xf32>
    %c0_6 = arith.constant 0 : index
    %c0_7 = arith.constant 0 : index
    %7 = vector.load %arg13[%c0_6, %c0_7] : memref<256x168xf32, #tpu.memory_space<vmem>>, vector<252x168xf32>
    tpu.vector_store %arg13[%c0_6, %c0_7], %6 {strides = array<i32>} : memref<256x168xf32, #tpu.memory_space<vmem>>, vector<252x168xf32>,
    %c1 = arith.constant 1 : index
    %c0_8 = arith.constant 0 : index
    %8 = vector.load %arg1[%c1, %c0_8] : memref<256x96xbf16, #tpu.memory_space<vmem>>, vector<252x96xbf16>
    %c1_9 = arith.constant 1 : index
    %c0_10 = arith.constant 0 : index
    %c0_11 = arith.constant 0 : index
    %9 = vector.load %arg2[%c1_9, %c0_10, %c0_11] : memref<5x96x168xbf16, #tpu.memory_space<vmem>>, vector<1x96x168xbf16>
    %10 = vector.shape_cast %9 : vector<1x96x168xbf16> to vector<96x168xbf16>
    %cst_12 = arith.constant dense<0.000000e+00> : vector<252x168xf32>
    %11 = tpu.matmul %8, %10, %cst_12 {dimension_numbers = #tpu.dot_dimension_numbers<[1], [0], [0], [1], [0, 0, 1, 1], [], []>} : vector<252x96xbf16>, vector<96x168xbf16>, vector<252x168xf32> -> vector<252x168xf32>
    %c0_13 = arith.constant 0 : index
    %c0_14 = arith.constant 0 : index
    %12 = vector.load %arg13[%c0_13, %c0_14] : memref<256x168xf32, #tpu.memory_space<vmem>>, vector<252x168xf32>
    %13 = arith.addf %12, %11 : vector<252x168xf32>
    %c0_15 = arith.constant 0 : index
    %c0_16 = arith.constant 0 : index
    %14 = vector.load %arg13[%c0_15, %c0_16] : memref<256x168xf32, #tpu.memory_space<vmem>>, vector<252x168xf32>
    tpu.vector_store %arg13[%c0_15, %c0_16], %13 {strides = array<i32>} : memref<256x168xf32, #tpu.memory_space<vmem>>, vector<252x168xf32>,
    %c2 = arith.constant 2 : index
    %c0_17 = arith.constant 0 : index
    %15 = vector.load %arg1[%c2, %c0_17] : memref<256x96xbf16, #tpu.memory_space<vmem>>, vector<252x96xbf16>
    %c2_18 = arith.constant 2 : index
    %c0_19 = arith.constant 0 : index
    %c0_20 = arith.constant 0 : index
    %16 = vector.load %arg2[%c2_18, %c0_19, %c0_20] : memref<5x96x168xbf16, #tpu.memory_space<vmem>>, vector<1x96x168xbf16>
    %17 = vector.shape_cast %16 : vector<1x96x168xbf16> to vector<96x168xbf16>
    %cst_21 = arith.constant dense<0.000000e+00> : vector<252x168xf32>
    %18 = tpu.matmul %15, %17, %cst_21 {dimension_numbers = #tpu.dot_dimension_numbers<[1], [0], [0], [1], [0, 0, 1, 1], [], []>} : vector<252x96xbf16>, vector<96x168xbf16>, vector<252x168xf32> -> vector<252x168xf32>
    %c0_22 = arith.constant 0 : index
    %c0_23 = arith.constant 0 : index
    %19 = vector.load %arg13[%c0_22, %c0_23] : memref<256x168xf32, #tpu.memory_space<vmem>>, vector<252x168xf32>
    %20 = arith.addf %19, %18 : vector<252x168xf32>
    %c0_24 = arith.constant 0 : index
    %c0_25 = arith.constant 0 : index
    %21 = vector.load %arg13[%c0_24, %c0_25] : memref<256x168xf32, #tpu.memory_space<vmem>>, vector<252x168xf32>
    tpu.vector_store %arg13[%c0_24, %c0_25], %20 {strides = array<i32>} : memref<256x168xf32, #tpu.memory_space<vmem>>, vector<252x168xf32>,
    %c3 = arith.constant 3 : index
    %c0_26 = arith.constant 0 : index
    %22 = vector.load %arg1[%c3, %c0_26] : memref<256x96xbf16, #tpu.memory_space<vmem>>, vector<252x96xbf16>
    %c3_27 = arith.constant 3 : index
    %c0_28 = arith.constant 0 : index
    %c0_29 = arith.constant 0 : index
    %23 = vector.load %arg2[%c3_27, %c0_28, %c0_29] : memref<5x96x168xbf16, #tpu.memory_space<vmem>>, vector<1x96x168xbf16>
    %24 = vector.shape_cast %23 : vector<1x96x168xbf16> to vector<96x168xbf16>
    %cst_30 = arith.constant dense<0.000000e+00> : vector<252x168xf32>
    %25 = tpu.matmul %22, %24, %cst_30 {dimension_numbers = #tpu.dot_dimension_numbers<[1], [0], [0], [1], [0, 0, 1, 1], [], []>} : vector<252x96xbf16>, vector<96x168xbf16>, vector<252x168xf32> -> vector<252x168xf32>
    %c0_31 = arith.constant 0 : index
    %c0_32 = arith.constant 0 : index
    %26 = vector.load %arg13[%c0_31, %c0_32] : memref<256x168xf32, #tpu.memory_space<vmem>>, vector<252x168xf32>
    %27 = arith.addf %26, %25 : vector<252x168xf32>
    %c0_33 = arith.constant 0 : index
    %c0_34 = arith.constant 0 : index
    %28 = vector.load %arg13[%c0_33, %c0_34] : memref<256x168xf32, #tpu.memory_space<vmem>>, vector<252x168xf32>
    tpu.vector_store %arg13[%c0_33, %c0_34], %27 {strides = array<i32>} : memref<256x168xf32, #tpu.memory_space<vmem>>, vector<252x168xf32>,
    %c4 = arith.constant 4 : index
    %c0_35 = arith.constant 0 : index
    %29 = vector.load %arg1[%c4, %c0_35] : memref<256x96xbf16, #tpu.memory_space<vmem>>, vector<252x96xbf16>
    %c4_36 = arith.constant 4 : index
    %c0_37 = arith.constant 0 : index
    %c0_38 = arith.constant 0 : index
    %30 = vector.load %arg2[%c4_36, %c0_37, %c0_38] : memref<5x96x168xbf16, #tpu.memory_space<vmem>>, vector<1x96x168xbf16>
    %31 = vector.shape_cast %30 : vector<1x96x168xbf16> to vector<96x168xbf16>
    %cst_39 = arith.constant dense<0.000000e+00> : vector<252x168xf32>
    %32 = tpu.matmul %29, %31, %cst_39 {dimension_numbers = #tpu.dot_dimension_numbers<[1], [0], [0], [1], [0, 0, 1, 1], [], []>} : vector<252x96xbf16>, vector<96x168xbf16>, vector<252x168xf32> -> vector<252x168xf32>
    %c0_40 = arith.constant 0 : index
    %c0_41 = arith.constant 0 : index
    %33 = vector.load %arg13[%c0_40, %c0_41] : memref<256x168xf32, #tpu.memory_space<vmem>>, vector<252x168xf32>
    %34 = arith.addf %33, %32 : vector<252x168xf32>
    %c0_42 = arith.constant 0 : index
    %c0_43 = arith.constant 0 : index
    %35 = vector.load %arg13[%c0_42, %c0_43] : memref<256x168xf32, #tpu.memory_space<vmem>>, vector<252x168xf32>
    tpu.vector_store %arg13[%c0_42, %c0_43], %34 {strides = array<i32>} : memref<256x168xf32, #tpu.memory_space<vmem>>, vector<252x168xf32>,
    %c0_44 = arith.constant 0 : index
    %c0_45 = arith.constant 0 : index
    %36 = vector.load %arg13[%c0_44, %c0_45] : memref<256x168xf32, #tpu.memory_space<vmem>>, vector<251x167xf32>
    %c1_46 = arith.constant 1 : index
    %c0_47 = arith.constant 0 : index
    %37 = vector.load %arg13[%c1_46, %c0_47] : memref<256x168xf32, #tpu.memory_space<vmem>>, vector<251x167xf32>
    %38 = arith.maximumf %36, %37 : vector<251x167xf32>
    %c0_48 = arith.constant 0 : index
    %c1_49 = arith.constant 1 : index
    %39 = vector.load %arg13[%c0_48, %c1_49] : memref<256x168xf32, #tpu.memory_space<vmem>>, vector<251x167xf32>
    %c1_50 = arith.constant 1 : index
    %c1_51 = arith.constant 1 : index
    %40 = vector.load %arg13[%c1_50, %c1_51] : memref<256x168xf32, #tpu.memory_space<vmem>>, vector<251x167xf32>
    %41 = arith.maximumf %39, %40 : vector<251x167xf32>
    %42 = arith.maximumf %38, %41 : vector<251x167xf32>
    %cst_52 = arith.constant 0.000000e+00 : f32
    %43 = vector.broadcast %cst_52 : f32 to vector<251x167xf32>
    %44 = arith.maximumf %42, %43 : vector<251x167xf32>
    %45 = arith.truncf %44 : vector<251x167xf32> to vector<251x167xbf16>
    %c0_53 = arith.constant 0 : index
    %c0_54 = arith.constant 0 : index
    %46 = vector.load %arg14[%c0_53, %c0_54] : memref<256x167xbf16, #tpu.memory_space<vmem>>, vector<251x167xbf16>
    tpu.vector_store %arg14[%c0_53, %c0_54], %45 {strides = array<i32>} : memref<256x167xbf16, #tpu.memory_space<vmem>>, vector<251x167xbf16>,
    %c0_55 = arith.constant 0 : index
    %c0_56 = arith.constant 0 : index
    %47 = vector.load %arg14[%c0_55, %c0_56] : memref<256x167xbf16, #tpu.memory_space<vmem>>, vector<243x167xbf16>
    %c0_57 = arith.constant 0 : index
    %c0_58 = arith.constant 0 : index
    %c0_59 = arith.constant 0 : index
    %48 = vector.load %arg4[%c0_57, %c0_58, %c0_59] : memref<5x167x160xbf16, #tpu.memory_space<vmem>>, vector<1x167x160xbf16>
    %49 = vector.shape_cast %48 : vector<1x167x160xbf16> to vector<167x160xbf16>
    %cst_60 = arith.constant dense<0.000000e+00> : vector<243x160xf32>
    %50 = tpu.matmul %47, %49, %cst_60 {dimension_numbers = #tpu.dot_dimension_numbers<[1], [0], [0], [1], [0, 0, 1, 1], [], []>} : vector<243x167xbf16>, vector<167x160xbf16>, vector<243x160xf32> -> vector<243x160xf32>
    %c0_61 = arith.constant 0 : index
    %c0_62 = arith.constant 0 : index
    %51 = vector.load %arg5[%c0_61, %c0_62] : memref<1x160xf32, #tpu.memory_space<vmem>>, vector<1x160xf32>
    %52 = vector.broadcast %51 : vector<1x160xf32> to vector<243x160xf32>
    %53 = arith.addf %50, %52 : vector<243x160xf32>
    %c0_63 = arith.constant 0 : index
    %c0_64 = arith.constant 0 : index
    %54 = vector.load %arg15[%c0_63, %c0_64] : memref<256x160xf32, #tpu.memory_space<vmem>>, vector<243x160xf32>
    tpu.vector_store %arg15[%c0_63, %c0_64], %53 {strides = array<i32>} : memref<256x160xf32, #tpu.memory_space<vmem>>, vector<243x160xf32>,
    %c2_65 = arith.constant 2 : index
    %c0_66 = arith.constant 0 : index
    %55 = vector.load %arg14[%c2_65, %c0_66] : memref<256x167xbf16, #tpu.memory_space<vmem>>, vector<243x167xbf16>
    %c1_67 = arith.constant 1 : index
    %c0_68 = arith.constant 0 : index
    %c0_69 = arith.constant 0 : index
    %56 = vector.load %arg4[%c1_67, %c0_68, %c0_69] : memref<5x167x160xbf16, #tpu.memory_space<vmem>>, vector<1x167x160xbf16>
    %57 = vector.shape_cast %56 : vector<1x167x160xbf16> to vector<167x160xbf16>
    %cst_70 = arith.constant dense<0.000000e+00> : vector<243x160xf32>
    %58 = tpu.matmul %55, %57, %cst_70 {dimension_numbers = #tpu.dot_dimension_numbers<[1], [0], [0], [1], [0, 0, 1, 1], [], []>} : vector<243x167xbf16>, vector<167x160xbf16>, vector<243x160xf32> -> vector<243x160xf32>
    %c0_71 = arith.constant 0 : index
    %c0_72 = arith.constant 0 : index
    %59 = vector.load %arg15[%c0_71, %c0_72] : memref<256x160xf32, #tpu.memory_space<vmem>>, vector<243x160xf32>
    %60 = arith.addf %59, %58 : vector<243x160xf32>
    %c0_73 = arith.constant 0 : index
    %c0_74 = arith.constant 0 : index
    %61 = vector.load %arg15[%c0_73, %c0_74] : memref<256x160xf32, #tpu.memory_space<vmem>>, vector<243x160xf32>
    tpu.vector_store %arg15[%c0_73, %c0_74], %60 {strides = array<i32>} : memref<256x160xf32, #tpu.memory_space<vmem>>, vector<243x160xf32>,
    %c4_75 = arith.constant 4 : index
    %c0_76 = arith.constant 0 : index
    %62 = vector.load %arg14[%c4_75, %c0_76] : memref<256x167xbf16, #tpu.memory_space<vmem>>, vector<243x167xbf16>
    %c2_77 = arith.constant 2 : index
    %c0_78 = arith.constant 0 : index
    %c0_79 = arith.constant 0 : index
    %63 = vector.load %arg4[%c2_77, %c0_78, %c0_79] : memref<5x167x160xbf16, #tpu.memory_space<vmem>>, vector<1x167x160xbf16>
    %64 = vector.shape_cast %63 : vector<1x167x160xbf16> to vector<167x160xbf16>
    %cst_80 = arith.constant dense<0.000000e+00> : vector<243x160xf32>
    %65 = tpu.matmul %62, %64, %cst_80 {dimension_numbers = #tpu.dot_dimension_numbers<[1], [0], [0], [1], [0, 0, 1, 1], [], []>} : vector<243x167xbf16>, vector<167x160xbf16>, vector<243x160xf32> -> vector<243x160xf32>
    %c0_81 = arith.constant 0 : index
    %c0_82 = arith.constant 0 : index
    %66 = vector.load %arg15[%c0_81, %c0_82] : memref<256x160xf32, #tpu.memory_space<vmem>>, vector<243x160xf32>
    %67 = arith.addf %66, %65 : vector<243x160xf32>
    %c0_83 = arith.constant 0 : index
    %c0_84 = arith.constant 0 : index
    %68 = vector.load %arg15[%c0_83, %c0_84] : memref<256x160xf32, #tpu.memory_space<vmem>>, vector<243x160xf32>
    tpu.vector_store %arg15[%c0_83, %c0_84], %67 {strides = array<i32>} : memref<256x160xf32, #tpu.memory_space<vmem>>, vector<243x160xf32>,
    %c6 = arith.constant 6 : index
    %c0_85 = arith.constant 0 : index
    %69 = vector.load %arg14[%c6, %c0_85] : memref<256x167xbf16, #tpu.memory_space<vmem>>, vector<243x167xbf16>
    %c3_86 = arith.constant 3 : index
    %c0_87 = arith.constant 0 : index
    %c0_88 = arith.constant 0 : index
    %70 = vector.load %arg4[%c3_86, %c0_87, %c0_88] : memref<5x167x160xbf16, #tpu.memory_space<vmem>>, vector<1x167x160xbf16>
    %71 = vector.shape_cast %70 : vector<1x167x160xbf16> to vector<167x160xbf16>
    %cst_89 = arith.constant dense<0.000000e+00> : vector<243x160xf32>
    %72 = tpu.matmul %69, %71, %cst_89 {dimension_numbers = #tpu.dot_dimension_numbers<[1], [0], [0], [1], [0, 0, 1, 1], [], []>} : vector<243x167xbf16>, vector<167x160xbf16>, vector<243x160xf32> -> vector<243x160xf32>
    %c0_90 = arith.constant 0 : index
    %c0_91 = arith.constant 0 : index
    %73 = vector.load %arg15[%c0_90, %c0_91] : memref<256x160xf32, #tpu.memory_space<vmem>>, vector<243x160xf32>
    %74 = arith.addf %73, %72 : vector<243x160xf32>
    %c0_92 = arith.constant 0 : index
    %c0_93 = arith.constant 0 : index
    %75 = vector.load %arg15[%c0_92, %c0_93] : memref<256x160xf32, #tpu.memory_space<vmem>>, vector<243x160xf32>
    tpu.vector_store %arg15[%c0_92, %c0_93], %74 {strides = array<i32>} : memref<256x160xf32, #tpu.memory_space<vmem>>, vector<243x160xf32>,
    %c8 = arith.constant 8 : index
    %c0_94 = arith.constant 0 : index
    %76 = vector.load %arg14[%c8, %c0_94] : memref<256x167xbf16, #tpu.memory_space<vmem>>, vector<243x167xbf16>
    %c4_95 = arith.constant 4 : index
    %c0_96 = arith.constant 0 : index
    %c0_97 = arith.constant 0 : index
    %77 = vector.load %arg4[%c4_95, %c0_96, %c0_97] : memref<5x167x160xbf16, #tpu.memory_space<vmem>>, vector<1x167x160xbf16>
    %78 = vector.shape_cast %77 : vector<1x167x160xbf16> to vector<167x160xbf16>
    %cst_98 = arith.constant dense<0.000000e+00> : vector<243x160xf32>
    %79 = tpu.matmul %76, %78, %cst_98 {dimension_numbers = #tpu.dot_dimension_numbers<[1], [0], [0], [1], [0, 0, 1, 1], [], []>} : vector<243x167xbf16>, vector<167x160xbf16>, vector<243x160xf32> -> vector<243x160xf32>
    %c0_99 = arith.constant 0 : index
    %c0_100 = arith.constant 0 : index
    %80 = vector.load %arg15[%c0_99, %c0_100] : memref<256x160xf32, #tpu.memory_space<vmem>>, vector<243x160xf32>
    %81 = arith.addf %80, %79 : vector<243x160xf32>
    %c0_101 = arith.constant 0 : index
    %c0_102 = arith.constant 0 : index
    %82 = vector.load %arg15[%c0_101, %c0_102] : memref<256x160xf32, #tpu.memory_space<vmem>>, vector<243x160xf32>
    tpu.vector_store %arg15[%c0_101, %c0_102], %81 {strides = array<i32>} : memref<256x160xf32, #tpu.memory_space<vmem>>, vector<243x160xf32>,
    %c0_103 = arith.constant 0 : index
    %c0_104 = arith.constant 0 : index
    %83 = vector.load %arg15[%c0_103, %c0_104] : memref<256x160xf32, #tpu.memory_space<vmem>>, vector<241x159xf32>
    %c2_105 = arith.constant 2 : index
    %c0_106 = arith.constant 0 : index
    %84 = vector.load %arg15[%c2_105, %c0_106] : memref<256x160xf32, #tpu.memory_space<vmem>>, vector<241x159xf32>
    %85 = arith.maximumf %83, %84 : vector<241x159xf32>
    %c0_107 = arith.constant 0 : index
    %c1_108 = arith.constant 1 : index
    %86 = vector.load %arg15[%c0_107, %c1_108] : memref<256x160xf32, #tpu.memory_space<vmem>>, vector<241x159xf32>
    %c2_109 = arith.constant 2 : index
    %c1_110 = arith.constant 1 : index
    %87 = vector.load %arg15[%c2_109, %c1_110] : memref<256x160xf32, #tpu.memory_space<vmem>>, vector<241x159xf32>
    %88 = arith.maximumf %86, %87 : vector<241x159xf32>
    %89 = arith.maximumf %85, %88 : vector<241x159xf32>
    %cst_111 = arith.constant 0.000000e+00 : f32
    %90 = vector.broadcast %cst_111 : f32 to vector<241x159xf32>
    %91 = arith.maximumf %89, %90 : vector<241x159xf32>
    %92 = arith.truncf %91 : vector<241x159xf32> to vector<241x159xbf16>
    %c0_112 = arith.constant 0 : index
    %c0_113 = arith.constant 0 : index
    %93 = vector.load %arg16[%c0_112, %c0_113] : memref<256x159xbf16, #tpu.memory_space<vmem>>, vector<241x159xbf16>
    tpu.vector_store %arg16[%c0_112, %c0_113], %92 {strides = array<i32>} : memref<256x159xbf16, #tpu.memory_space<vmem>>, vector<241x159xbf16>,
    %c0_114 = arith.constant 0 : index
    %c0_115 = arith.constant 0 : index
    %94 = vector.load %arg16[%c0_114, %c0_115] : memref<256x159xbf16, #tpu.memory_space<vmem>>, vector<225x159xbf16>
    %c0_116 = arith.constant 0 : index
    %c0_117 = arith.constant 0 : index
    %c0_118 = arith.constant 0 : index
    %95 = vector.load %arg6[%c0_116, %c0_117, %c0_118] : memref<5x159x128xbf16, #tpu.memory_space<vmem>>, vector<1x159x128xbf16>
    %96 = vector.shape_cast %95 : vector<1x159x128xbf16> to vector<159x128xbf16>
    %cst_119 = arith.constant dense<0.000000e+00> : vector<225x128xf32>
    %97 = tpu.matmul %94, %96, %cst_119 {dimension_numbers = #tpu.dot_dimension_numbers<[1], [0], [0], [1], [0, 0, 1, 1], [], []>} : vector<225x159xbf16>, vector<159x128xbf16>, vector<225x128xf32> -> vector<225x128xf32>
    %c0_120 = arith.constant 0 : index
    %c0_121 = arith.constant 0 : index
    %98 = vector.load %arg7[%c0_120, %c0_121] : memref<1x128xf32, #tpu.memory_space<vmem>>, vector<1x128xf32>
    %99 = vector.broadcast %98 : vector<1x128xf32> to vector<225x128xf32>
    %100 = arith.addf %97, %99 : vector<225x128xf32>
    %c0_122 = arith.constant 0 : index
    %c0_123 = arith.constant 0 : index
    %101 = vector.load %arg17[%c0_122, %c0_123] : memref<256x128xf32, #tpu.memory_space<vmem>>, vector<225x128xf32>
    tpu.vector_store %arg17[%c0_122, %c0_123], %100 {strides = array<i32>} : memref<256x128xf32, #tpu.memory_space<vmem>>, vector<225x128xf32>,
    %c4_124 = arith.constant 4 : index
    %c0_125 = arith.constant 0 : index
    %102 = vector.load %arg16[%c4_124, %c0_125] : memref<256x159xbf16, #tpu.memory_space<vmem>>, vector<225x159xbf16>
    %c1_126 = arith.constant 1 : index
    %c0_127 = arith.constant 0 : index
    %c0_128 = arith.constant 0 : index
    %103 = vector.load %arg6[%c1_126, %c0_127, %c0_128] : memref<5x159x128xbf16, #tpu.memory_space<vmem>>, vector<1x159x128xbf16>
    %104 = vector.shape_cast %103 : vector<1x159x128xbf16> to vector<159x128xbf16>
    %cst_129 = arith.constant dense<0.000000e+00> : vector<225x128xf32>
    %105 = tpu.matmul %102, %104, %cst_129 {dimension_numbers = #tpu.dot_dimension_numbers<[1], [0], [0], [1], [0, 0, 1, 1], [], []>} : vector<225x159xbf16>, vector<159x128xbf16>, vector<225x128xf32> -> vector<225x128xf32>
    %c0_130 = arith.constant 0 : index
    %c0_131 = arith.constant 0 : index
    %106 = vector.load %arg17[%c0_130, %c0_131] : memref<256x128xf32, #tpu.memory_space<vmem>>, vector<225x128xf32>
    %107 = arith.addf %106, %105 : vector<225x128xf32>
    %c0_132 = arith.constant 0 : index
    %c0_133 = arith.constant 0 : index
    %108 = vector.load %arg17[%c0_132, %c0_133] : memref<256x128xf32, #tpu.memory_space<vmem>>, vector<225x128xf32>
    tpu.vector_store %arg17[%c0_132, %c0_133], %107 {strides = array<i32>} : memref<256x128xf32, #tpu.memory_space<vmem>>, vector<225x128xf32>,
    %c8_134 = arith.constant 8 : index
    %c0_135 = arith.constant 0 : index
    %109 = vector.load %arg16[%c8_134, %c0_135] : memref<256x159xbf16, #tpu.memory_space<vmem>>, vector<225x159xbf16>
    %c2_136 = arith.constant 2 : index
    %c0_137 = arith.constant 0 : index
    %c0_138 = arith.constant 0 : index
    %110 = vector.load %arg6[%c2_136, %c0_137, %c0_138] : memref<5x159x128xbf16, #tpu.memory_space<vmem>>, vector<1x159x128xbf16>
    %111 = vector.shape_cast %110 : vector<1x159x128xbf16> to vector<159x128xbf16>
    %cst_139 = arith.constant dense<0.000000e+00> : vector<225x128xf32>
    %112 = tpu.matmul %109, %111, %cst_139 {dimension_numbers = #tpu.dot_dimension_numbers<[1], [0], [0], [1], [0, 0, 1, 1], [], []>} : vector<225x159xbf16>, vector<159x128xbf16>, vector<225x128xf32> -> vector<225x128xf32>
    %c0_140 = arith.constant 0 : index
    %c0_141 = arith.constant 0 : index
    %113 = vector.load %arg17[%c0_140, %c0_141] : memref<256x128xf32, #tpu.memory_space<vmem>>, vector<225x128xf32>
    %114 = arith.addf %113, %112 : vector<225x128xf32>
    %c0_142 = arith.constant 0 : index
    %c0_143 = arith.constant 0 : index
    %115 = vector.load %arg17[%c0_142, %c0_143] : memref<256x128xf32, #tpu.memory_space<vmem>>, vector<225x128xf32>
    tpu.vector_store %arg17[%c0_142, %c0_143], %114 {strides = array<i32>} : memref<256x128xf32, #tpu.memory_space<vmem>>, vector<225x128xf32>,
    %c12 = arith.constant 12 : index
    %c0_144 = arith.constant 0 : index
    %116 = vector.load %arg16[%c12, %c0_144] : memref<256x159xbf16, #tpu.memory_space<vmem>>, vector<225x159xbf16>
    %c3_145 = arith.constant 3 : index
    %c0_146 = arith.constant 0 : index
    %c0_147 = arith.constant 0 : index
    %117 = vector.load %arg6[%c3_145, %c0_146, %c0_147] : memref<5x159x128xbf16, #tpu.memory_space<vmem>>, vector<1x159x128xbf16>
    %118 = vector.shape_cast %117 : vector<1x159x128xbf16> to vector<159x128xbf16>
    %cst_148 = arith.constant dense<0.000000e+00> : vector<225x128xf32>
    %119 = tpu.matmul %116, %118, %cst_148 {dimension_numbers = #tpu.dot_dimension_numbers<[1], [0], [0], [1], [0, 0, 1, 1], [], []>} : vector<225x159xbf16>, vector<159x128xbf16>, vector<225x128xf32> -> vector<225x128xf32>
    %c0_149 = arith.constant 0 : index
    %c0_150 = arith.constant 0 : index
    %120 = vector.load %arg17[%c0_149, %c0_150] : memref<256x128xf32, #tpu.memory_space<vmem>>, vector<225x128xf32>
    %121 = arith.addf %120, %119 : vector<225x128xf32>
    %c0_151 = arith.constant 0 : index
    %c0_152 = arith.constant 0 : index
    %122 = vector.load %arg17[%c0_151, %c0_152] : memref<256x128xf32, #tpu.memory_space<vmem>>, vector<225x128xf32>
    tpu.vector_store %arg17[%c0_151, %c0_152], %121 {strides = array<i32>} : memref<256x128xf32, #tpu.memory_space<vmem>>, vector<225x128xf32>,
    %c16 = arith.constant 16 : index
    %c0_153 = arith.constant 0 : index
    %123 = vector.load %arg16[%c16, %c0_153] : memref<256x159xbf16, #tpu.memory_space<vmem>>, vector<225x159xbf16>
    %c4_154 = arith.constant 4 : index
    %c0_155 = arith.constant 0 : index
    %c0_156 = arith.constant 0 : index
    %124 = vector.load %arg6[%c4_154, %c0_155, %c0_156] : memref<5x159x128xbf16, #tpu.memory_space<vmem>>, vector<1x159x128xbf16>
    %125 = vector.shape_cast %124 : vector<1x159x128xbf16> to vector<159x128xbf16>
    %cst_157 = arith.constant dense<0.000000e+00> : vector<225x128xf32>
    %126 = tpu.matmul %123, %125, %cst_157 {dimension_numbers = #tpu.dot_dimension_numbers<[1], [0], [0], [1], [0, 0, 1, 1], [], []>} : vector<225x159xbf16>, vector<159x128xbf16>, vector<225x128xf32> -> vector<225x128xf32>
    %c0_158 = arith.constant 0 : index
    %c0_159 = arith.constant 0 : index
    %127 = vector.load %arg17[%c0_158, %c0_159] : memref<256x128xf32, #tpu.memory_space<vmem>>, vector<225x128xf32>
    %128 = arith.addf %127, %126 : vector<225x128xf32>
    %c0_160 = arith.constant 0 : index
    %c0_161 = arith.constant 0 : index
    %129 = vector.load %arg17[%c0_160, %c0_161] : memref<256x128xf32, #tpu.memory_space<vmem>>, vector<225x128xf32>
    tpu.vector_store %arg17[%c0_160, %c0_161], %128 {strides = array<i32>} : memref<256x128xf32, #tpu.memory_space<vmem>>, vector<225x128xf32>,
    %c0_162 = arith.constant 0 : index
    %c0_163 = arith.constant 0 : index
    %130 = vector.load %arg17[%c0_162, %c0_163] : memref<256x128xf32, #tpu.memory_space<vmem>>, vector<1x128xf32>
    %c32 = arith.constant 32 : index
    %c0_164 = arith.constant 0 : index
    %131 = vector.load %arg17[%c32, %c0_164] : memref<256x128xf32, #tpu.memory_space<vmem>>, vector<1x128xf32>
    %c64 = arith.constant 64 : index
    %c0_165 = arith.constant 0 : index
    %132 = vector.load %arg17[%c64, %c0_165] : memref<256x128xf32, #tpu.memory_space<vmem>>, vector<1x128xf32>
    %c96 = arith.constant 96 : index
    %c0_166 = arith.constant 0 : index
    %133 = vector.load %arg17[%c96, %c0_166] : memref<256x128xf32, #tpu.memory_space<vmem>>, vector<1x128xf32>
    %c128 = arith.constant 128 : index
    %c0_167 = arith.constant 0 : index
    %134 = vector.load %arg17[%c128, %c0_167] : memref<256x128xf32, #tpu.memory_space<vmem>>, vector<1x128xf32>
    %c160 = arith.constant 160 : index
    %c0_168 = arith.constant 0 : index
    %135 = vector.load %arg17[%c160, %c0_168] : memref<256x128xf32, #tpu.memory_space<vmem>>, vector<1x128xf32>
    %c192 = arith.constant 192 : index
    %c0_169 = arith.constant 0 : index
    %136 = vector.load %arg17[%c192, %c0_169] : memref<256x128xf32, #tpu.memory_space<vmem>>, vector<1x128xf32>
    %c224 = arith.constant 224 : index
    %c0_170 = arith.constant 0 : index
    %137 = vector.load %arg17[%c224, %c0_170] : memref<256x128xf32, #tpu.memory_space<vmem>>, vector<1x128xf32>
    %138 = tpu.concatenate %130, %131, %132, %133, %134, %135, %136, %137 in 0 : vector<1x128xf32>, vector<1x128xf32>, vector<1x128xf32>, vector<1x128xf32>, vector<1x128xf32>, vector<1x128xf32>, vector<1x128xf32>, vector<1x128xf32> -> vector<8x128xf32>
    %cst_171 = arith.constant 0.000000e+00 : f32
    %139 = vector.broadcast %cst_171 : f32 to vector<8x128xf32>
    %140 = arith.maximumf %138, %139 : vector<8x128xf32>
    %141 = arith.truncf %140 : vector<8x128xf32> to vector<8x128xbf16>
    %c0_172 = arith.constant 0 : index
    %c0_173 = arith.constant 0 : index
    %142 = vector.load %arg8[%c0_172, %c0_173] : memref<128x128xbf16, #tpu.memory_space<vmem>>, vector<128x128xbf16>
    %cst_174 = arith.constant dense<0.000000e+00> : vector<8x128xf32>
    %143 = tpu.matmul %141, %142, %cst_174 {dimension_numbers = #tpu.dot_dimension_numbers<[1], [0], [0], [1], [0, 0, 1, 1], [], []>} : vector<8x128xbf16>, vector<128x128xbf16>, vector<8x128xf32> -> vector<8x128xf32>
    %c0_175 = arith.constant 0 : index
    %c0_176 = arith.constant 0 : index
    %144 = vector.load %arg9[%c0_175, %c0_176] : memref<1x128xf32, #tpu.memory_space<vmem>>, vector<1x128xf32>
    %145 = vector.broadcast %144 : vector<1x128xf32> to vector<8x128xf32>
    %146 = arith.addf %143, %145 : vector<8x128xf32>
    %cst_177 = arith.constant 0.000000e+00 : f32
    %147 = vector.broadcast %cst_177 : f32 to vector<8x128xf32>
    %148 = arith.maximumf %146, %147 : vector<8x128xf32>
    %149 = arith.truncf %148 : vector<8x128xf32> to vector<8x128xbf16>
    %c0_178 = arith.constant 0 : index
    %c0_179 = arith.constant 0 : index
    %150 = vector.load %arg10[%c0_178, %c0_179] : memref<128x128xbf16, #tpu.memory_space<vmem>>, vector<128x128xbf16>
    %cst_180 = arith.constant dense<0.000000e+00> : vector<8x128xf32>
    %151 = tpu.matmul %149, %150, %cst_180 {dimension_numbers = #tpu.dot_dimension_numbers<[1], [0], [0], [1], [0, 0, 1, 1], [], []>} : vector<8x128xbf16>, vector<128x128xbf16>, vector<8x128xf32> -> vector<8x128xf32>
    %c0_181 = arith.constant 0 : index
    %c0_182 = arith.constant 0 : index
    %152 = vector.load %arg11[%c0_181, %c0_182] : memref<1x128xf32, #tpu.memory_space<vmem>>, vector<1x128xf32>
    %153 = vector.broadcast %152 : vector<1x128xf32> to vector<8x128xf32>
    %154 = arith.addf %151, %153 : vector<8x128xf32>
    %c0_183 = arith.constant 0 : index
    %c0_184 = arith.constant 0 : index
    %155 = vector.load %arg12[%c0_183, %c0_184] : memref<8x128xf32, #tpu.memory_space<vmem>>, vector<8x128xf32>
    tpu.vector_store %arg12[%c0_183, %c0_184], %154 {strides = array<i32>} : memref<8x128xf32, #tpu.memory_space<vmem>>, vector<8x128xf32>,
    return
  }
  func.func @transform_0(%arg0: i32) -> (i32, i32) {
    %c0_i32 = arith.constant 0 : i32
    %c0_i32_0 = arith.constant 0 : i32
    return %arg0, %c0_i32 : i32, i32
  }
  func.func @transform_1(%arg0: i32) -> (i32, i32, i32) {
    %c0_i32 = arith.constant 0 : i32
    %c0_i32_0 = arith.constant 0 : i32
    %c0_i32_1 = arith.constant 0 : i32
    %c0_i32_2 = arith.constant 0 : i32
    return %c0_i32, %c0_i32_0, %c0_i32_1 : i32, i32, i32
  }
  func.func @transform_2(%arg0: i32) -> (i32, i32) {
    %c0_i32 = arith.constant 0 : i32
    %c0_i32_0 = arith.constant 0 : i32
    %c0_i32_1 = arith.constant 0 : i32
    return %c0_i32, %c0_i32_0 : i32, i32
  }
  func.func @transform_3(%arg0: i32) -> (i32, i32, i32) {
    %c0_i32 = arith.constant 0 : i32
    %c0_i32_0 = arith.constant 0 : i32
    %c0_i32_1 = arith.constant 0 : i32
    %c0_i32_2 = arith.constant 0 : i32
    return %c0_i32, %c0_i32_0, %c0_i32_1 : i32, i32, i32
  }
  func.func @transform_4(%arg0: i32) -> (i32, i32) {
    %c0_i32 = arith.constant 0 : i32
    %c0_i32_0 = arith.constant 0 : i32
    %c0_i32_1 = arith.constant 0 : i32
    return %c0_i32, %c0_i32_0 : i32, i32
  }
  func.func @transform_5(%arg0: i32) -> (i32, i32, i32) {
    %c0_i32 = arith.constant 0 : i32
    %c0_i32_0 = arith.constant 0 : i32
    %c0_i32_1 = arith.constant 0 : i32
    %c0_i32_2 = arith.constant 0 : i32
    return %c0_i32, %c0_i32_0, %c0_i32_1 : i32, i32, i32
  }
  func.func @transform_6(%arg0: i32) -> (i32, i32) {
    %c0_i32 = arith.constant 0 : i32
    %c0_i32_0 = arith.constant 0 : i32
    %c0_i32_1 = arith.constant 0 : i32
    return %c0_i32, %c0_i32_0 : i32, i32
  }
  func.func @transform_7(%arg0: i32) -> (i32, i32) {
    %c0_i32 = arith.constant 0 : i32
    %c0_i32_0 = arith.constant 0 : i32
    %c0_i32_1 = arith.constant 0 : i32
    return %c0_i32, %c0_i32_0 : i32, i32
  }
  func.func @transform_8(%arg0: i32) -> (i32, i32) {
    %c0_i32 = arith.constant 0 : i32
    %c0_i32_0 = arith.constant 0 : i32
    %c0_i32_1 = arith.constant 0 : i32
    return %c0_i32, %c0_i32_0 : i32, i32
  }
  func.func @transform_9(%arg0: i32) -> (i32, i32) {
    %c0_i32 = arith.constant 0 : i32
    %c0_i32_0 = arith.constant 0 : i32
    %c0_i32_1 = arith.constant 0 : i32
    return %c0_i32, %c0_i32_0 : i32, i32
  }
  func.func @transform_10(%arg0: i32) -> (i32, i32) {
    %c0_i32 = arith.constant 0 : i32
    %c0_i32_0 = arith.constant 0 : i32
    %c0_i32_1 = arith.constant 0 : i32
    return %c0_i32, %c0_i32_0 : i32, i32
  }
  func.func @transform_11(%arg0: i32) -> (i32, i32) {
    %c0_i32 = arith.constant 0 : i32
    %c0_i32_0 = arith.constant 0 : i32
    return %arg0, %c0_i32 : i32, i32
  }
}

</mosaic_0001>

<llo_original>
// kernel: net_forward.1
$region0: #{net_forward.1}
  #allocation0 [shape = 'u32[]', space=smem, size = 0x4, offset = 0x4, fixed_abs, tag = 'smem constant byte address 0x4 - core index']
  #allocation1 [shape = 'u32[144,128]{1,0:T(1,128)}', space=vmem, size = 0x12000, scoped, tag = 'internal scratch']
  #allocation2 [shape = 'f32[256,168]{1,0:T(8,128)}', space=vmem, size = 0x40000, scoped, tag = 'scratch operand']
  #allocation3 [shape = 'bf16[256,167]{1,0:T(8,128)(2,1)}', space=vmem, size = 0x20000, scoped, tag = 'scratch operand']
  #allocation4 [shape = 'f32[256,160]{1,0:T(8,128)}', space=vmem, size = 0x40000, scoped, tag = 'scratch operand']
  #allocation5 [shape = 'bf16[256,159]{1,0:T(8,128)(2,1)}', space=vmem, size = 0x20000, scoped, tag = 'scratch operand']
  #allocation6 [shape = 'f32[256,128]{1,0:T(8,128)}', space=vmem, size = 0x20000, scoped, tag = 'scratch operand']
  %s0 = inlined_call_operand.vmem [shape: bf16[256,96], index: 0, kind: input, shape index: {}]
  %s1 = inlined_call_operand.vmem [shape: bf16[5,96,168], index: 1, kind: input, shape index: {}]
  %s2 = inlined_call_operand.vmem [shape: f32[1,168], index: 2, kind: input, shape index: {}]
  %s3 = inlined_call_operand.vmem [shape: bf16[5,167,160], index: 3, kind: input, shape index: {}]
  %s4 = inlined_call_operand.vmem [shape: f32[1,160], index: 4, kind: input, shape index: {}]
  %s5 = inlined_call_operand.vmem [shape: bf16[5,159,128], index: 5, kind: input, shape index: {}]
  %s6 = inlined_call_operand.vmem [shape: f32[1,128], index: 6, kind: input, shape index: {}]
  %s7 = inlined_call_operand.vmem [shape: bf16[128,128], index: 7, kind: input, shape index: {}]
  %s8 = inlined_call_operand.vmem [shape: f32[1,128], index: 8, kind: input, shape index: {}]
  %s9 = inlined_call_operand.vmem [shape: bf16[128,128], index: 9, kind: input, shape index: {}]
  %s10 = inlined_call_operand.vmem [shape: f32[1,128], index: 10, kind: input, shape index: {}]
  %s11 = inlined_call_operand.vmem [shape: f32[8,128], index: 11, kind: output, shape index: {}]
  %s12 = sld [smem:[#allocation0]]
  $region54: #{net_forward.1} parent=0
    _
  %s14 = ssub.s32 1, %s12
  %s15 = scalar_select 0, %s14, %s12
  // Predicated region
  $region2: #{net_forward.1} parent=0 // pred_check
    _
  $region3: #{net_forward.1} parent=0 // pred_check_branch
    %17 = sbr.rel (0) target = $region5
  $region4: #{net_forward.1} parent=0 // pred_region
    _
  $region5: #{net_forward.1} parent=0 // pred_fallthru
    _
  // Predicated region
  $region6: #{net_forward.1} parent=0 // pred_check
    _
  $region7: #{net_forward.1} parent=0 // pred_check_branch
    %19 = sbr.rel (0) target = $region9
  $region8: #{net_forward.1} parent=0 // pred_region
    _
  $region9: #{net_forward.1} parent=0 // pred_fallthru
    _
  // Predicated region
  $region10: #{net_forward.1} parent=0 // pred_check
    _
  $region11: #{net_forward.1} parent=0 // pred_check_branch
    %21 = sbr.rel (0) target = $region13
  $region12: #{net_forward.1} parent=0 // pred_region
    _
  $region13: #{net_forward.1} parent=0 // pred_fallthru
    _
  // Predicated region
  $region14: #{net_forward.1} parent=0 // pred_check
    _
  $region15: #{net_forward.1} parent=0 // pred_check_branch
    %23 = sbr.rel (0) target = $region17
  $region16: #{net_forward.1} parent=0 // pred_region
    _
  $region17: #{net_forward.1} parent=0 // pred_fallthru
    _
  // Predicated region
  $region18: #{net_forward.1} parent=0 // pred_check
    _
  $region19: #{net_forward.1} parent=0 // pred_check_branch
    %25 = sbr.rel (0) target = $region21
  $region20: #{net_forward.1} parent=0 // pred_region
    _
  $region21: #{net_forward.1} parent=0 // pred_fallthru
    _
  // Predicated region
  $region22: #{net_forward.1} parent=0 // pred_check
    _
  $region23: #{net_forward.1} parent=0 // pred_check_branch
    %27 = sbr.rel (0) target = $region25
  $region24: #{net_forward.1} parent=0 // pred_region
    _
  $region25: #{net_forward.1} parent=0 // pred_fallthru
    _
  // Predicated region
  $region26: #{net_forward.1} parent=0 // pred_check
    _
  $region27: #{net_forward.1} parent=0 // pred_check_branch
    %29 = sbr.rel (0) target = $region29
  $region28: #{net_forward.1} parent=0 // pred_region
    _
  $region29: #{net_forward.1} parent=0 // pred_fallthru
    _
  // Predicated region
  $region30: #{net_forward.1} parent=0 // pred_check
    _
  $region31: #{net_forward.1} parent=0 // pred_check_branch
    %31 = sbr.rel (0) target = $region33
  $region32: #{net_forward.1} parent=0 // pred_region
    _
  $region33: #{net_forward.1} parent=0 // pred_fallthru
    _
  // Predicated region
  $region34: #{net_forward.1} parent=0 // pred_check
    _
  $region35: #{net_forward.1} parent=0 // pred_check_branch
    %33 = sbr.rel (0) target = $region37
  $region36: #{net_forward.1} parent=0 // pred_region
    _
  $region37: #{net_forward.1} parent=0 // pred_fallthru
    _
  // Predicated region
  $region38: #{net_forward.1} parent=0 // pred_check
    _
  $region39: #{net_forward.1} parent=0 // pred_check_branch
    %35 = sbr.rel (0) target = $region41
  $region40: #{net_forward.1} parent=0 // pred_region
    _
  $region41: #{net_forward.1} parent=0 // pred_fallthru
    _
  // Predicated region
  $region42: #{net_forward.1} parent=0 // pred_check
    _
  $region43: #{net_forward.1} parent=0 // pred_check_branch
    %37 = sbr.rel (0) target = $region45
  $region44: #{net_forward.1} parent=0 // pred_region
    _
  $region45: #{net_forward.1} parent=0 // pred_fallthru
    _
  %v39 = vld [vmem:[%s0] sm:$0xf]
  %v40 = vld [vmem:[%s0 + $0x4] sm:$0xf]
  %v41 = vld [vmem:[%s0 + $0x8] sm:$0xf]
  %v42 = vld [vmem:[%s0 + $0xc] sm:$0xf]
  %v43 = vld [vmem:[%s0 + $0x10] sm:$0xf]
  %v44 = vld [vmem:[%s0 + $0x14] sm:$0xf]
  %v45 = vld [vmem:[%s0 + $0x18] sm:$0xf]
  %v46 = vld [vmem:[%s0 + $0x1c] sm:$0xf]
  %v47 = vld [vmem:[%s0 + $0x20] sm:$0xf]
  %v48 = vld [vmem:[%s0 + $0x24] sm:$0xf]
  %v49 = vld [vmem:[%s0 + $0x28] sm:$0xf]
  %v50 = vld [vmem:[%s0 + $0x2c] sm:$0xf]
  %v51 = vld [vmem:[%s0 + $0x30] sm:$0xf]
  %v52 = vld [vmem:[%s0 + $0x34] sm:$0xf]
  %v53 = vld [vmem:[%s0 + $0x38] sm:$0xf]
  %v54 = vld [vmem:[%s0 + $0x3c] sm:$0xf]
  %v55 = vld [vmem:[%s0 + $0x40] sm:$0xf]
  %v56 = vld [vmem:[%s0 + $0x44] sm:$0xf]
  %v57 = vld [vmem:[%s0 + $0x48] sm:$0xf]
  %v58 = vld [vmem:[%s0 + $0x4c] sm:$0xf]
  %v59 = vld [vmem:[%s0 + $0x50] sm:$0xf]
  %v60 = vld [vmem:[%s0 + $0x54] sm:$0xf]
  %v61 = vld [vmem:[%s0 + $0x58] sm:$0xf]
  %v62 = vld [vmem:[%s0 + $0x5c] sm:$0xf]
  %v63 = vld [vmem:[%s0 + $0x60] sm:$0xf]
  %v64 = vld [vmem:[%s0 + $0x64] sm:$0xf]
  %v65 = vld [vmem:[%s0 + $0x68] sm:$0xf]
  %v66 = vld [vmem:[%s0 + $0x6c] sm:$0xf]
  %v67 = vld [vmem:[%s0 + $0x70] sm:$0xf]
  %v68 = vld [vmem:[%s0 + $0x74] sm:$0xf]
  %v69 = vld [vmem:[%s0 + $0x78] sm:$0xf]
  %v70 = vld [vmem:[%s0 + $0x7c] sm:$0x3]
  %v71 = vld [vmem:[%s1] sm:$0xff]
  %v72 = vld [vmem:[%s1 + $0x8] sm:$0xff]
  %v73 = vld [vmem:[%s1 + $0x10] sm:$0xff]
  %v74 = vld [vmem:[%s1 + $0x18] sm:$0xff]
  %v75 = vld [vmem:[%s1 + $0x20] sm:$0xff]
  %v76 = vld [vmem:[%s1 + $0x28] sm:$0xff]
  %v77 = vld [vmem:[%s1 + $0x30] sm:$0xff]
  %v78 = vld [vmem:[%s1 + $0x38] sm:$0xff]
  %v79 = vld [vmem:[%s1 + $0x40] sm:$0xff]
  %v80 = vld [vmem:[%s1 + $0x48] sm:$0xff]
  %v81 = vld [vmem:[%s1 + $0x50] sm:$0xff]
  %v82 = vld [vmem:[%s1 + $0x58] sm:$0xff]
  %v83 = vld [vmem:[%s2] sm:$0x3]
  %v85 = vlaneseq
  %v86 = vshrl.u32 %v85, 7
  %v87 = vsub.s32 0, %v86
  %v88 = vrot.slane %v83, %v87
  %v89 = vlaneseq
  %v90 = vshrl.u32 %v89, 7
  %v91 = vsub.s32 1, %v90
  %v92 = vrot.slane %v83, %v91
  %v127 = vunpack.c.l.b16 %v39
  %v128 = vunpack.c.l.b16 %v40
  %v129 = vunpack.c.l.b16 %v41
  %v130 = vunpack.c.l.b16 %v42
  %v131 = vunpack.c.l.b16 %v43
  %v132 = vunpack.c.l.b16 %v44
  %v133 = vunpack.c.l.b16 %v45
  %v134 = vunpack.c.l.b16 %v46
  %v135 = vunpack.c.l.b16 %v47
  %v136 = vunpack.c.l.b16 %v48
  %v137 = vunpack.c.l.b16 %v49
  %v138 = vunpack.c.l.b16 %v50
  %v139 = vunpack.c.l.b16 %v51
  %v140 = vunpack.c.l.b16 %v52
  %v141 = vunpack.c.l.b16 %v53
  %v142 = vunpack.c.l.b16 %v54
  %v143 = vunpack.c.l.b16 %v55
  %v144 = vunpack.c.l.b16 %v56
  %v145 = vunpack.c.l.b16 %v57
  %v146 = vunpack.c.l.b16 %v58
  %v147 = vunpack.c.l.b16 %v59
  %v148 = vunpack.c.l.b16 %v60
  %v149 = vunpack.c.l.b16 %v61
  %v150 = vunpack.c.l.b16 %v62
  %v151 = vunpack.c.l.b16 %v63
  %v152 = vunpack.c.l.b16 %v64
  %v153 = vunpack.c.l.b16 %v65
  %v154 = vunpack.c.l.b16 %v66
  %v155 = vunpack.c.l.b16 %v67
  %v156 = vunpack.c.l.b16 %v68
  %v157 = vunpack.c.l.b16 %v69
  %v158 = vunpack.c.l.b16 %v70
  %v159 = vpack.c.b16 %v128, %v127
  %v160 = vpack.c.b16 %v130, %v129
  %v161 = vpack.c.b16 %v132, %v131
  %v162 = vpack.c.b16 %v134, %v133
  %v163 = vpack.c.b16 %v136, %v135
  %v164 = vpack.c.b16 %v138, %v137
  %v165 = vpack.c.b16 %v140, %v139
  %v166 = vpack.c.b16 %v142, %v141
  %v167 = vpack.c.b16 %v144, %v143
  %v168 = vpack.c.b16 %v146, %v145
  %v169 = vpack.c.b16 %v148, %v147
  %v170 = vpack.c.b16 %v150, %v149
  %v171 = vpack.c.b16 %v152, %v151
  %v172 = vpack.c.b16 %v154, %v153
  %v173 = vpack.c.b16 %v156, %v155
  %v174 = vpack.c.b16 %v158, %v157
  %v187 = vunpack.c.l.b16 %v71
  %v188 = vunpack.c.h.b16 %v71
  %v189 = vunpack.c.l.b16 %v72
  %v190 = vunpack.c.h.b16 %v72
  %v191 = vunpack.c.l.b16 %v73
  %v192 = vunpack.c.h.b16 %v73
  %v193 = vunpack.c.l.b16 %v74
  %v194 = vunpack.c.h.b16 %v74
  %v195 = vunpack.c.l.b16 %v75
  %v196 = vunpack.c.h.b16 %v75
  %v197 = vunpack.c.l.b16 %v76
  %v198 = vunpack.c.h.b16 %v76
  %v199 = vunpack.c.l.b16 %v77
  %v200 = vunpack.c.h.b16 %v77
  %v201 = vunpack.c.l.b16 %v78
  %v202 = vunpack.c.h.b16 %v78
  %v203 = vunpack.c.l.b16 %v79
  %v204 = vunpack.c.h.b16 %v79
  %v205 = vunpack.c.l.b16 %v80
  %v206 = vunpack.c.h.b16 %v80
  %v207 = vunpack.c.l.b16 %v81
  %v208 = vunpack.c.h.b16 %v81
  %v209 = vunpack.c.l.b16 %v82
  %v210 = vunpack.c.h.b16 %v82
  %v211 = vpack.c.b16 %v189, %v187
  %v212 = vpack.c.b16 %v190, %v188
  %v213 = vpack.c.b16 %v193, %v191
  %v214 = vpack.c.b16 %v194, %v192
  %v215 = vpack.c.b16 %v197, %v195
  %v216 = vpack.c.b16 %v198, %v196
  %v217 = vpack.c.b16 %v201, %v199
  %v218 = vpack.c.b16 %v202, %v200
  %v219 = vpack.c.b16 %v205, %v203
  %v220 = vpack.c.b16 %v206, %v204
  %v221 = vpack.c.b16 %v209, %v207
  %v222 = vpack.c.b16 %v210, %v208
  %vm235 = vcmask 785408
  %v237 = vsel %vm235, %v159, 0
  %v240 = vsel %vm235, %v160, 0
  %v243 = vsel %vm235, %v161, 0
  %v246 = vsel %vm235, %v162, 0
  %v249 = vsel %vm235, %v163, 0
  %v252 = vsel %vm235, %v164, 0
  %v255 = vsel %vm235, %v165, 0
  %v258 = vsel %vm235, %v166, 0
  %v261 = vsel %vm235, %v167, 0
  %v264 = vsel %vm235, %v168, 0
  %v267 = vsel %vm235, %v169, 0
  %v270 = vsel %vm235, %v170, 0
  %v273 = vsel %vm235, %v171, 0
  %v276 = vsel %vm235, %v172, 0
  %v279 = vsel %vm235, %v173, 0
  %v282 = vsel %vm235, %v174, 0
  %284 = vmatprep.subr.bf16.mxu0 0
  %285 = vmatpush1.bf16.msra.mxu0 0
  %286 = vmatprep.subr.bf16.mxu0 0
  %287 = vmatpush1.bf16.msra.mxu0 0
  %288 = vmatprep.subr.bf16.mxu0 %v222
  %289 = vmatpush1.bf16.msra.mxu0 %v221
  %290 = vmatprep.subr.bf16.mxu0 %v220
  %291 = vmatpush1.bf16.msra.mxu0 %v219
  %292 = vmatprep.subr.bf16.mxu0 %v218
  %293 = vmatpush1.bf16.msra.mxu0 %v217
  %294 = vmatprep.subr.bf16.mxu0 %v216
  %295 = vmatpush1.bf16.msra.mxu0 %v215
  %296 = vmatprep.subr.bf16.mxu0 %v214
  %297 = vmatpush1.bf16.msra.mxu0 %v213
  %298 = vmatprep.subr.bf16.mxu0 %v212
  %299 = vmatpush1.bf16.msra.mxu0 %v211
  %300 = vmatprep.subr.bf16.mxu0 0
  %301 = vmatpush2.bf16.msra.mxu0 0
  %302 = vmatprep.subr.bf16.mxu0 0
  %303 = vmatpush2.bf16.msra.mxu0 0
  %304 = vmatprep.subr.bf16.mxu0 0
  %305 = vmatpush2.bf16.msra.mxu0 0
  %306 = vmatprep.subr.bf16.mxu0 0
  %307 = vmatpush2.bf16.msra.mxu0 0
  %308 = vmatprep.subr.bf16.mxu0 0
  %309 = vmatpush2.bf16.msra.mxu0 0
  %310 = vmatprep.subr.bf16.mxu0 0
  %311 = vmatpush2.bf16.msra.mxu0 0
  %312 = vmatprep.subr.bf16.mxu0 0
  %313 = vmatpush2.bf16.msra.mxu0 0
  %314 = vmatprep.subr.bf16.mxu0 0
  %315 = vmatpush2.bf16.msra.mxu0 0
  %316 = vmatprep.mubr.bf16.mxu0 0
  %317 = vmatmul.mubr.bf16.gmra.mxu0 %v237
  %v318 = vpop.f32.mrf.mxu0
  %v319 = vadd.f32 %v88, %v318
  %v320 = vpop.f32.mrf.mxu0
  %v321 = vadd.f32 %v92, %v320
  %v322 = vpop.f32.mrf.mxu0
  %v323 = vadd.f32 %v88, %v322
  %v324 = vpop.f32.mrf.mxu0
  %v325 = vadd.f32 %v92, %v324
  %326 = vmatprep.mubr.bf16.mxu0 0
  %327 = vmatmul.mubr.bf16.gmra.mxu0 %v240
  %v328 = vpop.f32.mrf.mxu0
  %v329 = vadd.f32 %v88, %v328
  %v330 = vpop.f32.mrf.mxu0
  %v331 = vadd.f32 %v92, %v330
  %v332 = vpop.f32.mrf.mxu0
  %v333 = vadd.f32 %v88, %v332
  %v334 = vpop.f32.mrf.mxu0
  %v335 = vadd.f32 %v92, %v334
  %336 = vmatprep.mubr.bf16.mxu0 0
  %337 = vmatmul.mubr.bf16.gmra.mxu0 %v243
  %v338 = vpop.f32.mrf.mxu0
  %v339 = vadd.f32 %v88, %v338
  %v340 = vpop.f32.mrf.mxu0
  %v341 = vadd.f32 %v92, %v340
  %v342 = vpop.f32.mrf.mxu0
  %v343 = vadd.f32 %v88, %v342
  %v344 = vpop.f32.mrf.mxu0
  %v345 = vadd.f32 %v92, %v344
  %346 = vmatprep.mubr.bf16.mxu0 0
  %347 = vmatmul.mubr.bf16.gmra.mxu0 %v246
  %v348 = vpop.f32.mrf.mxu0
  %v349 = vadd.f32 %v88, %v348
  %v350 = vpop.f32.mrf.mxu0
  %v351 = vadd.f32 %v92, %v350
  %v352 = vpop.f32.mrf.mxu0
  %v353 = vadd.f32 %v88, %v352
  %v354 = vpop.f32.mrf.mxu0
  %v355 = vadd.f32 %v92, %v354
  %356 = vmatprep.mubr.bf16.mxu0 0
  %357 = vmatmul.mubr.bf16.gmra.mxu0 %v249
  %v358 = vpop.f32.mrf.mxu0
  %v359 = vadd.f32 %v88, %v358
  %v360 = vpop.f32.mrf.mxu0
  %v361 = vadd.f32 %v92, %v360
  %v362 = vpop.f32.mrf.mxu0
  %v363 = vadd.f32 %v88, %v362
  %v364 = vpop.f32.mrf.mxu0
  %v365 = vadd.f32 %v92, %v364
  %366 = vmatprep.mubr.bf16.mxu0 0
  %367 = vmatmul.mubr.bf16.gmra.mxu0 %v252
  %v368 = vpop.f32.mrf.mxu0
  %v369 = vadd.f32 %v88, %v368
  %v370 = vpop.f32.mrf.mxu0
  %v371 = vadd.f32 %v92, %v370
  %v372 = vpop.f32.mrf.mxu0
  %v373 = vadd.f32 %v88, %v372
  %v374 = vpop.f32.mrf.mxu0
  %v375 = vadd.f32 %v92, %v374
  %376 = vmatprep.mubr.bf16.mxu0 0
  %377 = vmatmul.mubr.bf16.gmra.mxu0 %v255
  %v378 = vpop.f32.mrf.mxu0
  %v379 = vadd.f32 %v88, %v378
  %v380 = vpop.f32.mrf.mxu0
  %v381 = vadd.f32 %v92, %v380
  %v382 = vpop.f32.mrf.mxu0
  %v383 = vadd.f32 %v88, %v382
  %v384 = vpop.f32.mrf.mxu0
  %v385 = vadd.f32 %v92, %v384
  %386 = vmatprep.mubr.bf16.mxu0 0
  %387 = vmatmul.mubr.bf16.gmra.mxu0 %v258
  %v388 = vpop.f32.mrf.mxu0
  %v389 = vadd.f32 %v88, %v388
  %v390 = vpop.f32.mrf.mxu0
  %v391 = vadd.f32 %v92, %v390
  %v392 = vpop.f32.mrf.mxu0
  %v393 = vadd.f32 %v88, %v392
  %v394 = vpop.f32.mrf.mxu0
  %v395 = vadd.f32 %v92, %v394
  %396 = vmatprep.mubr.bf16.mxu0 0
  %397 = vmatmul.mubr.bf16.gmra.mxu0 %v261
  %v398 = vpop.f32.mrf.mxu0
  %v399 = vadd.f32 %v88, %v398
  %v400 = vpop.f32.mrf.mxu0
  %v401 = vadd.f32 %v92, %v400
  %v402 = vpop.f32.mrf.mxu0
  %v403 = vadd.f32 %v88, %v402
  %v404 = vpop.f32.mrf.mxu0
  %v405 = vadd.f32 %v92, %v404
  %406 = vmatprep.mubr.bf16.mxu0 0
  %407 = vmatmul.mubr.bf16.gmra.mxu0 %v264
  %v408 = vpop.f32.mrf.mxu0
  %v409 = vadd.f32 %v88, %v408
  %v410 = vpop.f32.mrf.mxu0
  %v411 = vadd.f32 %v92, %v410
  %v412 = vpop.f32.mrf.mxu0
  %v413 = vadd.f32 %v88, %v412
  %v414 = vpop.f32.mrf.mxu0
  %v415 = vadd.f32 %v92, %v414
  %416 = vmatprep.mubr.bf16.mxu0 0
  %417 = vmatmul.mubr.bf16.gmra.mxu0 %v267
  %v418 = vpop.f32.mrf.mxu0
  %v419 = vadd.f32 %v88, %v418
  %v420 = vpop.f32.mrf.mxu0
  %v421 = vadd.f32 %v92, %v420
  %v422 = vpop.f32.mrf.mxu0
  %v423 = vadd.f32 %v88, %v422
  %v424 = vpop.f32.mrf.mxu0
  %v425 = vadd.f32 %v92, %v424
  %426 = vmatprep.mubr.bf16.mxu0 0
  %427 = vmatmul.mubr.bf16.gmra.mxu0 %v270
  %v428 = vpop.f32.mrf.mxu0
  %v429 = vadd.f32 %v88, %v428
  %v430 = vpop.f32.mrf.mxu0
  %v431 = vadd.f32 %v92, %v430
  %v432 = vpop.f32.mrf.mxu0
  %v433 = vadd.f32 %v88, %v432
  %v434 = vpop.f32.mrf.mxu0
  %v435 = vadd.f32 %v92, %v434
  %436 = vmatprep.mubr.bf16.mxu0 0
  %437 = vmatmul.mubr.bf16.gmra.mxu0 %v273
  %v438 = vpop.f32.mrf.mxu0
  %v439 = vadd.f32 %v88, %v438
  %v440 = vpop.f32.mrf.mxu0
  %v441 = vadd.f32 %v92, %v440
  %v442 = vpop.f32.mrf.mxu0
  %v443 = vadd.f32 %v88, %v442
  %v444 = vpop.f32.mrf.mxu0
  %v445 = vadd.f32 %v92, %v444
  %446 = vmatprep.mubr.bf16.mxu0 0
  %447 = vmatmul.mubr.bf16.gmra.mxu0 %v276
  %v448 = vpop.f32.mrf.mxu0
  %v449 = vadd.f32 %v88, %v448
  %v450 = vpop.f32.mrf.mxu0
  %v451 = vadd.f32 %v92, %v450
  %v452 = vpop.f32.mrf.mxu0
  %v453 = vadd.f32 %v88, %v452
  %v454 = vpop.f32.mrf.mxu0
  %v455 = vadd.f32 %v92, %v454
  %456 = vmatprep.mubr.bf16.mxu0 0
  %457 = vmatmul.mubr.bf16.gmra.mxu0 %v279
  %v458 = vpop.f32.mrf.mxu0
  %v459 = vadd.f32 %v88, %v458
  %v460 = vpop.f32.mrf.mxu0
  %v461 = vadd.f32 %v92, %v460
  %v462 = vpop.f32.mrf.mxu0
  %v463 = vadd.f32 %v88, %v462
  %v464 = vpop.f32.mrf.mxu0
  %v465 = vadd.f32 %v92, %v464
  %466 = vmatprep.mubr.bf16.mxu0 0
  %467 = vmatmul.mubr.bf16.gmra.mxu0 %v282
  %v468 = vpop.f32.mrf.mxu0
  %v469 = vadd.f32 %v88, %v468
  %v470 = vpop.f32.mrf.mxu0
  %v471 = vadd.f32 %v92, %v470
  %v472 = vpop.f32.mrf.mxu0
  %v473 = vadd.f32 %v88, %v472
  %v474 = vpop.f32.mrf.mxu0
  %v475 = vadd.f32 %v92, %v474
  %476 = vdwg.mxu0
  %477 = vst [vmem:[#allocation2] sm:$0xff] %v319
  %vm478 = vcmask 326656
  %479 = vst.msk [vmem:[#allocation2 + $0x8] sm:$0xff] %vm478, %v321
  %480 = vst [vmem:[#allocation2 + $0x10] sm:$0xff] %v323
  %481 = vst.msk [vmem:[#allocation2 + $0x18] sm:$0xff] %vm478, %v325
  %482 = vst [vmem:[#allocation2 + $0x20] sm:$0xff] %v329
  %483 = vst.msk [vmem:[#allocation2 + $0x28] sm:$0xff] %vm478, %v331
  %484 = vst [vmem:[#allocation2 + $0x30] sm:$0xff] %v333
  %485 = vst.msk [vmem:[#allocation2 + $0x38] sm:$0xff] %vm478, %v335
  %486 = vst [vmem:[#allocation2 + $0x40] sm:$0xff] %v339
  %487 = vst.msk [vmem:[#allocation2 + $0x48] sm:$0xff] %vm478, %v341
  %488 = vst [vmem:[#allocation2 + $0x50] sm:$0xff] %v343
  %489 = vst.msk [vmem:[#allocation2 + $0x58] sm:$0xff] %vm478, %v345
  %490 = vst [vmem:[#allocation2 + $0x60] sm:$0xff] %v349
  %491 = vst.msk [vmem:[#allocation2 + $0x68] sm:$0xff] %vm478, %v351
  %492 = vst [vmem:[#allocation2 + $0x70] sm:$0xff] %v353
  %493 = vst.msk [vmem:[#allocation2 + $0x78] sm:$0xff] %vm478, %v355
  %494 = vst [vmem:[#allocation2 + $0x80] sm:$0xff] %v359
  %495 = vst.msk [vmem:[#allocation2 + $0x88] sm:$0xff] %vm478, %v361
  %496 = vst [vmem:[#allocation2 + $0x90] sm:$0xff] %v363
  %497 = vst.msk [vmem:[#allocation2 + $0x98] sm:$0xff] %vm478, %v365
  %498 = vst [vmem:[#allocation2 + $0xa0] sm:$0xff] %v369
  %499 = vst.msk [vmem:[#allocation2 + $0xa8] sm:$0xff] %vm478, %v371
  %500 = vst [vmem:[#allocation2 + $0xb0] sm:$0xff] %v373
  %501 = vst.msk [vmem:[#allocation2 + $0xb8] sm:$0xff] %vm478, %v375
  %502 = vst [vmem:[#allocation2 + $0xc0] sm:$0xff] %v379
  %503 = vst.msk [vmem:[#allocation2 + $0xc8] sm:$0xff] %vm478, %v381
  %504 = vst [vmem:[#allocation2 + $0xd0] sm:$0xff] %v383
  %505 = vst.msk [vmem:[#allocation2 + $0xd8] sm:$0xff] %vm478, %v385
  %506 = vst [vmem:[#allocation2 + $0xe0] sm:$0xff] %v389
  %507 = vst.msk [vmem:[#allocation2 + $0xe8] sm:$0xff] %vm478, %v391
  %508 = vst [vmem:[#allocation2 + $0xf0] sm:$0xff] %v393
  %509 = vst.msk [vmem:[#allocation2 + $0xf8] sm:$0xff] %vm478, %v395
  %510 = vst [vmem:[#allocation2 + $0x100] sm:$0xff] %v399
  %511 = vst.msk [vmem:[#allocation2 + $0x108] sm:$0xff] %vm478, %v401
  %512 = vst [vmem:[#allocation2 + $0x110] sm:$0xff] %v403
  %513 = vst.msk [vmem:[#allocation2 + $0x118] sm:$0xff] %vm478, %v405
  %514 = vst [vmem:[#allocation2 + $0x120] sm:$0xff] %v409
  %515 = vst.msk [vmem:[#allocation2 + $0x128] sm:$0xff] %vm478, %v411
  %516 = vst [vmem:[#allocation2 + $0x130] sm:$0xff] %v413
  %517 = vst.msk [vmem:[#allocation2 + $0x138] sm:$0xff] %vm478, %v415
  %518 = vst [vmem:[#allocation2 + $0x140] sm:$0xff] %v419
  %519 = vst.msk [vmem:[#allocation2 + $0x148] sm:$0xff] %vm478, %v421
  %520 = vst [vmem:[#allocation2 + $0x150] sm:$0xff] %v423
  %521 = vst.msk [vmem:[#allocation2 + $0x158] sm:$0xff] %vm478, %v425
  %522 = vst [vmem:[#allocation2 + $0x160] sm:$0xff] %v429
  %523 = vst.msk [vmem:[#allocation2 + $0x168] sm:$0xff] %vm478, %v431
  %524 = vst [vmem:[#allocation2 + $0x170] sm:$0xff] %v433
  %525 = vst.msk [vmem:[#allocation2 + $0x178] sm:$0xff] %vm478, %v435
  %526 = vst [vmem:[#allocation2 + $0x180] sm:$0xff] %v439
  %527 = vst.msk [vmem:[#allocation2 + $0x188] sm:$0xff] %vm478, %v441
  %528 = vst [vmem:[#allocation2 + $0x190] sm:$0xff] %v443
  %529 = vst.msk [vmem:[#allocation2 + $0x198] sm:$0xff] %vm478, %v445
  %530 = vst [vmem:[#allocation2 + $0x1a0] sm:$0xff] %v449
  %531 = vst.msk [vmem:[#allocation2 + $0x1a8] sm:$0xff] %vm478, %v451
  %532 = vst [vmem:[#allocation2 + $0x1b0] sm:$0xff] %v453
  %533 = vst.msk [vmem:[#allocation2 + $0x1b8] sm:$0xff] %vm478, %v455
  %534 = vst [vmem:[#allocation2 + $0x1c0] sm:$0xff] %v459
  %535 = vst.msk [vmem:[#allocation2 + $0x1c8] sm:$0xff] %vm478, %v461
  %536 = vst [vmem:[#allocation2 + $0x1d0] sm:$0xff] %v463
  %537 = vst.msk [vmem:[#allocation2 + $0x1d8] sm:$0xff] %vm478, %v465
  %538 = vst [vmem:[#allocation2 + $0x1e0] sm:$0xff] %v469
  %539 = vst.msk [vmem:[#allocation2 + $0x1e8] sm:$0xff] %vm478, %v471
  %540 = vst [vmem:[#allocation2 + $0x1f0] sm:$0xf] %v473
  %vm541 = vcmask 322560
  %542 = vst.msk [vmem:[#allocation2 + $0x1f8] sm:$0xf] %vm541, %v475
  %v543 = vld [vmem:[%s0] sm:$0xf]
  %v544 = vld [vmem:[%s0 + $0x4] sm:$0xf]
  %v545 = vld [vmem:[%s0 + $0x8] sm:$0xf]
  %v546 = vld [vmem:[%s0 + $0xc] sm:$0xf]
  %v547 = vld [vmem:[%s0 + $0x10] sm:$0xf]
  %v548 = vld [vmem:[%s0 + $0x14] sm:$0xf]
  %v549 = vld [vmem:[%s0 + $0x18] sm:$0xf]
  %v550 = vld [vmem:[%s0 + $0x1c] sm:$0xf]
  %v551 = vld [vmem:[%s0 + $0x20] sm:$0xf]
  %v552 = vld [vmem:[%s0 + $0x24] sm:$0xf]
  %v553 = vld [vmem:[%s0 + $0x28] sm:$0xf]
  %v554 = vld [vmem:[%s0 + $0x2c] sm:$0xf]
  %v555 = vld [vmem:[%s0 + $0x30] sm:$0xf]
  %v556 = vld [vmem:[%s0 + $0x34] sm:$0xf]
  %v557 = vld [vmem:[%s0 + $0x38] sm:$0xf]
  %v558 = vld [vmem:[%s0 + $0x3c] sm:$0xf]
  %v559 = vld [vmem:[%s0 + $0x40] sm:$0xf]
  %v560 = vld [vmem:[%s0 + $0x44] sm:$0xf]
  %v561 = vld [vmem:[%s0 + $0x48] sm:$0xf]
  %v562 = vld [vmem:[%s0 + $0x4c] sm:$0xf]
  %v563 = vld [vmem:[%s0 + $0x50] sm:$0xf]
  %v564 = vld [vmem:[%s0 + $0x54] sm:$0xf]
  %v565 = vld [vmem:[%s0 + $0x58] sm:$0xf]
  %v566 = vld [vmem:[%s0 + $0x5c] sm:$0xf]
  %v567 = vld [vmem:[%s0 + $0x60] sm:$0xf]
  %v568 = vld [vmem:[%s0 + $0x64] sm:$0xf]
  %v569 = vld [vmem:[%s0 + $0x68] sm:$0xf]
  %v570 = vld [vmem:[%s0 + $0x6c] sm:$0xf]
  %v571 = vld [vmem:[%s0 + $0x70] sm:$0xf]
  %v572 = vld [vmem:[%s0 + $0x74] sm:$0xf]
  %v573 = vld [vmem:[%s0 + $0x78] sm:$0xf]
  %v574 = vld [vmem:[%s0 + $0x7c] sm:$0x7]
  %s575 = scalar_lea.vmem %s1, 96
  %v576 = vld [vmem:[%s575] sm:$0xff]
  %v577 = vld [vmem:[%s575 + $0x8] sm:$0xff]
  %v578 = vld [vmem:[%s575 + $0x10] sm:$0xff]
  %v579 = vld [vmem:[%s575 + $0x18] sm:$0xff]
  %v580 = vld [vmem:[%s575 + $0x20] sm:$0xff]
  %v581 = vld [vmem:[%s575 + $0x28] sm:$0xff]
  %v582 = vld [vmem:[%s575 + $0x30] sm:$0xff]
  %v583 = vld [vmem:[%s575 + $0x38] sm:$0xff]
  %v584 = vld [vmem:[%s575 + $0x40] sm:$0xff]
  %v585 = vld [vmem:[%s575 + $0x48] sm:$0xff]
  %v586 = vld [vmem:[%s575 + $0x50] sm:$0xff]
  %v587 = vld [vmem:[%s575 + $0x58] sm:$0xff]
  %v620 = vunpack.c.l.b16 %v543
  %v621 = vunpack.c.l.b16 %v544
  %v622 = vunpack.c.l.b16 %v545
  %v623 = vunpack.c.l.b16 %v546
  %v624 = vunpack.c.l.b16 %v547
  %v625 = vunpack.c.l.b16 %v548
  %v626 = vunpack.c.l.b16 %v549
  %v627 = vunpack.c.l.b16 %v550
  %v628 = vunpack.c.l.b16 %v551
  %v629 = vunpack.c.l.b16 %v552
  %v630 = vunpack.c.l.b16 %v553
  %v631 = vunpack.c.l.b16 %v554
  %v632 = vunpack.c.l.b16 %v555
  %v633 = vunpack.c.l.b16 %v556
  %v634 = vunpack.c.l.b16 %v557
  %v635 = vunpack.c.l.b16 %v558
  %v636 = vunpack.c.l.b16 %v559
  %v637 = vunpack.c.l.b16 %v560
  %v638 = vunpack.c.l.b16 %v561
  %v639 = vunpack.c.l.b16 %v562
  %v640 = vunpack.c.l.b16 %v563
  %v641 = vunpack.c.l.b16 %v564
  %v642 = vunpack.c.l.b16 %v565
  %v643 = vunpack.c.l.b16 %v566
  %v644 = vunpack.c.l.b16 %v567
  %v645 = vunpack.c.l.b16 %v568
  %v646 = vunpack.c.l.b16 %v569
  %v647 = vunpack.c.l.b16 %v570
  %v648 = vunpack.c.l.b16 %v571
  %v649 = vunpack.c.l.b16 %v572
  %v650 = vunpack.c.l.b16 %v573
  %v651 = vunpack.c.l.b16 %v574
  %v652 = vpack.c.b16 %v621, %v620
  %v653 = vpack.c.b16 %v623, %v622
  %v654 = vpack.c.b16 %v625, %v624
  %v655 = vpack.c.b16 %v627, %v626
  %v656 = vpack.c.b16 %v629, %v628
  %v657 = vpack.c.b16 %v631, %v630
  %v658 = vpack.c.b16 %v633, %v632
  %v659 = vpack.c.b16 %v635, %v634
  %v660 = vpack.c.b16 %v637, %v636
  %v661 = vpack.c.b16 %v639, %v638
  %v662 = vpack.c.b16 %v641, %v640
  %v663 = vpack.c.b16 %v643, %v642
  %v664 = vpack.c.b16 %v645, %v644
  %v665 = vpack.c.b16 %v647, %v646
  %v666 = vpack.c.b16 %v649, %v648
  %v667 = vpack.c.b16 %v651, %v650
  %vm668 = vsmask.f32 7424
  %v670 = vshrl.u32 %v652, 16
  %v672 = vshll.u32 %v652, 16
  %v674 = vrot.slane %v672, 1
  %v675 = vor.u32 %v670, %v674
  %v677 = vshll.u32 %v653, 16
  %v679 = vrot.slane %v677, 1
  %v680 = vsel %vm668, %v675, %v679
  %v681 = vshrl.u32 %v653, 16
  %v683 = vor.u32 %v681, %v679
  %v685 = vshll.u32 %v654, 16
  %v687 = vrot.slane %v685, 1
  %v688 = vsel %vm668, %v683, %v687
  %v689 = vshrl.u32 %v654, 16
  %v691 = vor.u32 %v689, %v687
  %v693 = vshll.u32 %v655, 16
  %v695 = vrot.slane %v693, 1
  %v696 = vsel %vm668, %v691, %v695
  %v697 = vshrl.u32 %v655, 16
  %v699 = vor.u32 %v697, %v695
  %v701 = vshll.u32 %v656, 16
  %v703 = vrot.slane %v701, 1
  %v704 = vsel %vm668, %v699, %v703
  %v705 = vshrl.u32 %v656, 16
  %v707 = vor.u32 %v705, %v703
  %v709 = vshll.u32 %v657, 16
  %v711 = vrot.slane %v709, 1
  %v712 = vsel %vm668, %v707, %v711
  %v713 = vshrl.u32 %v657, 16
  %v715 = vor.u32 %v713, %v711
  %v717 = vshll.u32 %v658, 16
  %v719 = vrot.slane %v717, 1
  %v720 = vsel %vm668, %v715, %v719
  %v721 = vshrl.u32 %v658, 16
  %v723 = vor.u32 %v721, %v719
  %v725 = vshll.u32 %v659, 16
  %v727 = vrot.slane %v725, 1
  %v728 = vsel %vm668, %v723, %v727
  %v729 = vshrl.u32 %v659, 16
  %v731 = vor.u32 %v729, %v727
  %v733 = vshll.u32 %v660, 16
  %v735 = vrot.slane %v733, 1
  %v736 = vsel %vm668, %v731, %v735
  %v737 = vshrl.u32 %v660, 16
  %v739 = vor.u32 %v737, %v735
  %v741 = vshll.u32 %v661, 16
  %v743 = vrot.slane %v741, 1
  %v744 = vsel %vm668, %v739, %v743
  %v745 = vshrl.u32 %v661, 16
  %v747 = vor.u32 %v745, %v743
  %v749 = vshll.u32 %v662, 16
  %v751 = vrot.slane %v749, 1
  %v752 = vsel %vm668, %v747, %v751
  %v753 = vshrl.u32 %v662, 16
  %v755 = vor.u32 %v753, %v751
  %v757 = vshll.u32 %v663, 16
  %v759 = vrot.slane %v757, 1
  %v760 = vsel %vm668, %v755, %v759
  %v761 = vshrl.u32 %v663, 16
  %v763 = vor.u32 %v761, %v759
  %v765 = vshll.u32 %v664, 16
  %v767 = vrot.slane %v765, 1
  %v768 = vsel %vm668, %v763, %v767
  %v769 = vshrl.u32 %v664, 16
  %v771 = vor.u32 %v769, %v767
  %v773 = vshll.u32 %v665, 16
  %v775 = vrot.slane %v773, 1
  %v776 = vsel %vm668, %v771, %v775
  %v777 = vshrl.u32 %v665, 16
  %v779 = vor.u32 %v777, %v775
  %v781 = vshll.u32 %v666, 16
  %v783 = vrot.slane %v781, 1
  %v784 = vsel %vm668, %v779, %v783
  %v785 = vshrl.u32 %v666, 16
  %v787 = vor.u32 %v785, %v783
  %v789 = vshll.u32 %v667, 16
  %v791 = vrot.slane %v789, 1
  %v792 = vsel %vm668, %v787, %v791
  %v793 = vshrl.u32 %v667, 16
  %v795 = vor.u32 %v793, %v791
  %v808 = vunpack.c.l.b16 %v576
  %v809 = vunpack.c.h.b16 %v576
  %v810 = vunpack.c.l.b16 %v577
  %v811 = vunpack.c.h.b16 %v577
  %v812 = vunpack.c.l.b16 %v578
  %v813 = vunpack.c.h.b16 %v578
  %v814 = vunpack.c.l.b16 %v579
  %v815 = vunpack.c.h.b16 %v579
  %v816 = vunpack.c.l.b16 %v580
  %v817 = vunpack.c.h.b16 %v580
  %v818 = vunpack.c.l.b16 %v581
  %v819 = vunpack.c.h.b16 %v581
  %v820 = vunpack.c.l.b16 %v582
  %v821 = vunpack.c.h.b16 %v582
  %v822 = vunpack.c.l.b16 %v583
  %v823 = vunpack.c.h.b16 %v583
  %v824 = vunpack.c.l.b16 %v584
  %v825 = vunpack.c.h.b16 %v584
  %v826 = vunpack.c.l.b16 %v585
  %v827 = vunpack.c.h.b16 %v585
  %v828 = vunpack.c.l.b16 %v586
  %v829 = vunpack.c.h.b16 %v586
  %v830 = vunpack.c.l.b16 %v587
  %v831 = vunpack.c.h.b16 %v587
  %v832 = vpack.c.b16 %v810, %v808
  %v833 = vpack.c.b16 %v811, %v809
  %v834 = vpack.c.b16 %v814, %v812
  %v835 = vpack.c.b16 %v815, %v813
  %v836 = vpack.c.b16 %v818, %v816
  %v837 = vpack.c.b16 %v819, %v817
  %v838 = vpack.c.b16 %v822, %v820
  %v839 = vpack.c.b16 %v823, %v821
  %v840 = vpack.c.b16 %v826, %v824
  %v841 = vpack.c.b16 %v827, %v825
  %v842 = vpack.c.b16 %v830, %v828
  %v843 = vpack.c.b16 %v831, %v829
  %v857 = vsel %vm235, %v680, 0
  %v860 = vsel %vm235, %v688, 0
  %v863 = vsel %vm235, %v696, 0
  %v866 = vsel %vm235, %v704, 0
  %v869 = vsel %vm235, %v712, 0
  %v872 = vsel %vm235, %v720, 0
  %v875 = vsel %vm235, %v728, 0
  %v878 = vsel %vm235, %v736, 0
  %v881 = vsel %vm235, %v744, 0
  %v884 = vsel %vm235, %v752, 0
  %v887 = vsel %vm235, %v760, 0
  %v890 = vsel %vm235, %v768, 0
  %v893 = vsel %vm235, %v776, 0
  %v896 = vsel %vm235, %v784, 0
  %v899 = vsel %vm235, %v792, 0
  %v902 = vsel %vm235, %v795, 0
  %904 = vmatprep.subr.bf16.mxu0 0
  %905 = vmatpush1.bf16.msra.mxu0 0
  %906 = vmatprep.subr.bf16.mxu0 0
  %907 = vmatpush1.bf16.msra.mxu0 0
  %908 = vmatprep.subr.bf16.mxu0 %v843
  %909 = vmatpush1.bf16.msra.mxu0 %v842
  %910 = vmatprep.subr.bf16.mxu0 %v841
  %911 = vmatpush1.bf16.msra.mxu0 %v840
  %912 = vmatprep.subr.bf16.mxu0 %v839
  %913 = vmatpush1.bf16.msra.mxu0 %v838
  %914 = vmatprep.subr.bf16.mxu0 %v837
  %915 = vmatpush1.bf16.msra.mxu0 %v836
  %916 = vmatprep.subr.bf16.mxu0 %v835
  %917 = vmatpush1.bf16.msra.mxu0 %v834
  %918 = vmatprep.subr.bf16.mxu0 %v833
  %919 = vmatpush1.bf16.msra.mxu0 %v832
  %920 = vmatprep.subr.bf16.mxu0 0
  %921 = vmatpush2.bf16.msra.mxu0 0
  %922 = vmatprep.subr.bf16.mxu0 0
  %923 = vmatpush2.bf16.msra.mxu0 0
  %924 = vmatprep.subr.bf16.mxu0 0
  %925 = vmatpush2.bf16.msra.mxu0 0
  %926 = vmatprep.subr.bf16.mxu0 0
  %927 = vmatpush2.bf16.msra.mxu0 0
  %928 = vmatprep.subr.bf16.mxu0 0
  %929 = vmatpush2.bf16.msra.mxu0 0
  %930 = vmatprep.subr.bf16.mxu0 0
  %931 = vmatpush2.bf16.msra.mxu0 0
  %932 = vmatprep.subr.bf16.mxu0 0
  %933 = vmatpush2.bf16.msra.mxu0 0
  %934 = vmatprep.subr.bf16.mxu0 0
  %935 = vmatpush2.bf16.msra.mxu0 0
  %936 = vmatprep.mubr.bf16.mxu0 0
  %937 = vmatmul.mubr.bf16.gmra.mxu0 %v857
  %v938 = vpop.f32.mrf.mxu0
  %v939 = vadd.f32 0.0, %v938
  %v940 = vpop.f32.mrf.mxu0
  %v941 = vadd.f32 0.0, %v940
  %v942 = vpop.f32.mrf.mxu0
  %v943 = vadd.f32 0.0, %v942
  %v944 = vpop.f32.mrf.mxu0
  %v945 = vadd.f32 0.0, %v944
  %946 = vmatprep.mubr.bf16.mxu0 0
  %947 = vmatmul.mubr.bf16.gmra.mxu0 %v860
  %v948 = vpop.f32.mrf.mxu0
  %v949 = vadd.f32 0.0, %v948
  %v950 = vpop.f32.mrf.mxu0
  %v951 = vadd.f32 0.0, %v950
  %v952 = vpop.f32.mrf.mxu0
  %v953 = vadd.f32 0.0, %v952
  %v954 = vpop.f32.mrf.mxu0
  %v955 = vadd.f32 0.0, %v954
  %956 = vmatprep.mubr.bf16.mxu0 0
  %957 = vmatmul.mubr.bf16.gmra.mxu0 %v863
  %v958 = vpop.f32.mrf.mxu0
  %v959 = vadd.f32 0.0, %v958
  %v960 = vpop.f32.mrf.mxu0
  %v961 = vadd.f32 0.0, %v960
  %v962 = vpop.f32.mrf.mxu0
  %v963 = vadd.f32 0.0, %v962
  %v964 = vpop.f32.mrf.mxu0
  %v965 = vadd.f32 0.0, %v964
  %966 = vmatprep.mubr.bf16.mxu0 0
  %967 = vmatmul.mubr.bf16.gmra.mxu0 %v866
  %v968 = vpop.f32.mrf.mxu0
  %v969 = vadd.f32 0.0, %v968
  %v970 = vpop.f32.mrf.mxu0
  %v971 = vadd.f32 0.0, %v970
  %v972 = vpop.f32.mrf.mxu0
  %v973 = vadd.f32 0.0, %v972
  %v974 = vpop.f32.mrf.mxu0
  %v975 = vadd.f32 0.0, %v974
  %976 = vmatprep.mubr.bf16.mxu0 0
  %977 = vmatmul.mubr.bf16.gmra.mxu0 %v869
  %v978 = vpop.f32.mrf.mxu0
  %v979 = vadd.f32 0.0, %v978
  %v980 = vpop.f32.mrf.mxu0
  %v981 = vadd.f32 0.0, %v980
  %v982 = vpop.f32.mrf.mxu0
  %v983 = vadd.f32 0.0, %v982
  %v984 = vpop.f32.mrf.mxu0
  %v985 = vadd.f32 0.0, %v984
  %986 = vmatprep.mubr.bf16.mxu0 0
  %987 = vmatmul.mubr.bf16.gmra.mxu0 %v872
  %v988 = vpop.f32.mrf.mxu0
  %v989 = vadd.f32 0.0, %v988
  %v990 = vpop.f32.mrf.mxu0
  %v991 = vadd.f32 0.0, %v990
  %v992 = vpop.f32.mrf.mxu0
  %v993 = vadd.f32 0.0, %v992
  %v994 = vpop.f32.mrf.mxu0
  %v995 = vadd.f32 0.0, %v994
  %996 = vmatprep.mubr.bf16.mxu0 0
  %997 = vmatmul.mubr.bf16.gmra.mxu0 %v875
  %v998 = vpop.f32.mrf.mxu0
  %v999 = vadd.f32 0.0, %v998
  %v1000 = vpop.f32.mrf.mxu0
  %v1001 = vadd.f32 0.0, %v1000
  %v1002 = vpop.f32.mrf.mxu0
  %v1003 = vadd.f32 0.0, %v1002
  %v1004 = vpop.f32.mrf.mxu0
  %v1005 = vadd.f32 0.0, %v1004
  %1006 = vmatprep.mubr.bf16.mxu0 0
  %1007 = vmatmul.mubr.bf16.gmra.mxu0 %v878
  %v1008 = vpop.f32.mrf.mxu0
  %v1009 = vadd.f32 0.0, %v1008
  %v1010 = vpop.f32.mrf.mxu0
  %v1011 = vadd.f32 0.0, %v1010
  %v1012 = vpop.f32.mrf.mxu0
  %v1013 = vadd.f32 0.0, %v1012
  %v1014 = vpop.f32.mrf.mxu0
  %v1015 = vadd.f32 0.0, %v1014
  %1016 = vmatprep.mubr.bf16.mxu0 0
  %1017 = vmatmul.mubr.bf16.gmra.mxu0 %v881
  %v1018 = vpop.f32.mrf.mxu0
  %v1019 = vadd.f32 0.0, %v1018
  %v1020 = vpop.f32.mrf.mxu0
  %v1021 = vadd.f32 0.0, %v1020
  %v1022 = vpop.f32.mrf.mxu0
  %v1023 = vadd.f32 0.0, %v1022
  %v1024 = vpop.f32.mrf.mxu0
  %v1025 = vadd.f32 0.0, %v1024
  %1026 = vmatprep.mubr.bf16.mxu0 0
  %1027 = vmatmul.mubr.bf16.gmra.mxu0 %v884
  %v1028 = vpop.f32.mrf.mxu0
  %v1029 = vadd.f32 0.0, %v1028
  %v1030 = vpop.f32.mrf.mxu0
  %v1031 = vadd.f32 0.0, %v1030
  %v1032 = vpop.f32.mrf.mxu0
  %v1033 = vadd.f32 0.0, %v1032
  %v1034 = vpop.f32.mrf.mxu0
  %v1035 = vadd.f32 0.0, %v1034
  %1036 = vmatprep.mubr.bf16.mxu0 0
  %1037 = vmatmul.mubr.bf16.gmra.mxu0 %v887
  %v1038 = vpop.f32.mrf.mxu0
  %v1039 = vadd.f32 0.0, %v1038
  %v1040 = vpop.f32.mrf.mxu0
  %v1041 = vadd.f32 0.0, %v1040
  %v1042 = vpop.f32.mrf.mxu0
  %v1043 = vadd.f32 0.0, %v1042
  %v1044 = vpop.f32.mrf.mxu0
  %v1045 = vadd.f32 0.0, %v1044
  %1046 = vmatprep.mubr.bf16.mxu0 0
  %1047 = vmatmul.mubr.bf16.gmra.mxu0 %v890
  %v1048 = vpop.f32.mrf.mxu0
  %v1049 = vadd.f32 0.0, %v1048
  %v1050 = vpop.f32.mrf.mxu0
  %v1051 = vadd.f32 0.0, %v1050
  %v1052 = vpop.f32.mrf.mxu0
  %v1053 = vadd.f32 0.0, %v1052
  %v1054 = vpop.f32.mrf.mxu0
  %v1055 = vadd.f32 0.0, %v1054
  %1056 = vmatprep.mubr.bf16.mxu0 0
  %1057 = vmatmul.mubr.bf16.gmra.mxu0 %v893
  %v1058 = vpop.f32.mrf.mxu0
  %v1059 = vadd.f32 0.0, %v1058
  %v1060 = vpop.f32.mrf.mxu0
  %v1061 = vadd.f32 0.0, %v1060
  %v1062 = vpop.f32.mrf.mxu0
  %v1063 = vadd.f32 0.0, %v1062
  %v1064 = vpop.f32.mrf.mxu0
  %v1065 = vadd.f32 0.0, %v1064
  %1066 = vmatprep.mubr.bf16.mxu0 0
  %1067 = vmatmul.mubr.bf16.gmra.mxu0 %v896
  %v1068 = vpop.f32.mrf.mxu0
  %v1069 = vadd.f32 0.0, %v1068
  %v1070 = vpop.f32.mrf.mxu0
  %v1071 = vadd.f32 0.0, %v1070
  %v1072 = vpop.f32.mrf.mxu0
  %v1073 = vadd.f32 0.0, %v1072
  %v1074 = vpop.f32.mrf.mxu0
  %v1075 = vadd.f32 0.0, %v1074
  %1076 = vmatprep.mubr.bf16.mxu0 0
  %1077 = vmatmul.mubr.bf16.gmra.mxu0 %v899
  %v1078 = vpop.f32.mrf.mxu0
  %v1079 = vadd.f32 0.0, %v1078
  %v1080 = vpop.f32.mrf.mxu0
  %v1081 = vadd.f32 0.0, %v1080
  %v1082 = vpop.f32.mrf.mxu0
  %v1083 = vadd.f32 0.0, %v1082
  %v1084 = vpop.f32.mrf.mxu0
  %v1085 = vadd.f32 0.0, %v1084
  %1086 = vmatprep.mubr.bf16.mxu0 0
  %1087 = vmatmul.mubr.bf16.gmra.mxu0 %v902
  %v1088 = vpop.f32.mrf.mxu0
  %v1089 = vadd.f32 0.0, %v1088
  %v1090 = vpop.f32.mrf.mxu0
  %v1091 = vadd.f32 0.0, %v1090
  %v1092 = vpop.f32.mrf.mxu0
  %v1093 = vadd.f32 0.0, %v1092
  %v1094 = vpop.f32.mrf.mxu0
  %v1095 = vadd.f32 0.0, %v1094
  %1096 = vdwg.mxu0
  %v1097 = vld [vmem:[#allocation2] sm:$0xff]
  %v1098 = vld [vmem:[#allocation2 + $0x8] sm:$0xff]
  %v1099 = vld [vmem:[#allocation2 + $0x10] sm:$0xff]
  %v1100 = vld [vmem:[#allocation2 + $0x18] sm:$0xff]
  %v1101 = vld [vmem:[#allocation2 + $0x20] sm:$0xff]
  %v1102 = vld [vmem:[#allocation2 + $0x28] sm:$0xff]
  %v1103 = vld [vmem:[#allocation2 + $0x30] sm:$0xff]
  %v1104 = vld [vmem:[#allocation2 + $0x38] sm:$0xff]
  %v1105 = vld [vmem:[#allocation2 + $0x40] sm:$0xff]
  %v1106 = vld [vmem:[#allocation2 + $0x48] sm:$0xff]
  %v1107 = vld [vmem:[#allocation2 + $0x50] sm:$0xff]
  %v1108 = vld [vmem:[#allocation2 + $0x58] sm:$0xff]
  %v1109 = vld [vmem:[#allocation2 + $0x60] sm:$0xff]
  %v1110 = vld [vmem:[#allocation2 + $0x68] sm:$0xff]
  %v1111 = vld [vmem:[#allocation2 + $0x70] sm:$0xff]
  %v1112 = vld [vmem:[#allocation2 + $0x78] sm:$0xff]
  %v1113 = vld [vmem:[#allocation2 + $0x80] sm:$0xff]
  %v1114 = vld [vmem:[#allocation2 + $0x88] sm:$0xff]
  %v1115 = vld [vmem:[#allocation2 + $0x90] sm:$0xff]
  %v1116 = vld [vmem:[#allocation2 + $0x98] sm:$0xff]
  %v1117 = vld [vmem:[#allocation2 + $0xa0] sm:$0xff]
  %v1118 = vld [vmem:[#allocation2 + $0xa8] sm:$0xff]
  %v1119 = vld [vmem:[#allocation2 + $0xb0] sm:$0xff]
  %v1120 = vld [vmem:[#allocation2 + $0xb8] sm:$0xff]
  %v1121 = vld [vmem:[#allocation2 + $0xc0] sm:$0xff]
  %v1122 = vld [vmem:[#allocation2 + $0xc8] sm:$0xff]
  %v1123 = vld [vmem:[#allocation2 + $0xd0] sm:$0xff]
  %v1124 = vld [vmem:[#allocation2 + $0xd8] sm:$0xff]
  %v1125 = vld [vmem:[#allocation2 + $0xe0] sm:$0xff]
  %v1126 = vld [vmem:[#allocation2 + $0xe8] sm:$0xff]
  %v1127 = vld [vmem:[#allocation2 + $0xf0] sm:$0xff]
  %v1128 = vld [vmem:[#allocation2 + $0xf8] sm:$0xff]
  %v1129 = vld [vmem:[#allocation2 + $0x100] sm:$0xff]
  %v1130 = vld [vmem:[#allocation2 + $0x108] sm:$0xff]
  %v1131 = vld [vmem:[#allocation2 + $0x110] sm:$0xff]
  %v1132 = vld [vmem:[#allocation2 + $0x118] sm:$0xff]
  %v1133 = vld [vmem:[#allocation2 + $0x120] sm:$0xff]
  %v1134 = vld [vmem:[#allocation2 + $0x128] sm:$0xff]
  %v1135 = vld [vmem:[#allocation2 + $0x130] sm:$0xff]
  %v1136 = vld [vmem:[#allocation2 + $0x138] sm:$0xff]
  %v1137 = vld [vmem:[#allocation2 + $0x140] sm:$0xff]
  %v1138 = vld [vmem:[#allocation2 + $0x148] sm:$0xff]
  %v1139 = vld [vmem:[#allocation2 + $0x150] sm:$0xff]
  %v1140 = vld [vmem:[#allocation2 + $0x158] sm:$0xff]
  %v1141 = vld [vmem:[#allocation2 + $0x160] sm:$0xff]
  %v1142 = vld [vmem:[#allocation2 + $0x168] sm:$0xff]
  %v1143 = vld [vmem:[#allocation2 + $0x170] sm:$0xff]
  %v1144 = vld [vmem:[#allocation2 + $0x178] sm:$0xff]
  %v1145 = vld [vmem:[#allocation2 + $0x180] sm:$0xff]
  %v1146 = vld [vmem:[#allocation2 + $0x188] sm:$0xff]
  %v1147 = vld [vmem:[#allocation2 + $0x190] sm:$0xff]
  %v1148 = vld [vmem:[#allocation2 + $0x198] sm:$0xff]
  %v1149 = vld [vmem:[#allocation2 + $0x1a0] sm:$0xff]
  %v1150 = vld [vmem:[#allocation2 + $0x1a8] sm:$0xff]
  %v1151 = vld [vmem:[#allocation2 + $0x1b0] sm:$0xff]
  %v1152 = vld [vmem:[#allocation2 + $0x1b8] sm:$0xff]
  %v1153 = vld [vmem:[#allocation2 + $0x1c0] sm:$0xff]
  %v1154 = vld [vmem:[#allocation2 + $0x1c8] sm:$0xff]
  %v1155 = vld [vmem:[#allocation2 + $0x1d0] sm:$0xff]
  %v1156 = vld [vmem:[#allocation2 + $0x1d8] sm:$0xff]
  %v1157 = vld [vmem:[#allocation2 + $0x1e0] sm:$0xff]
  %v1158 = vld [vmem:[#allocation2 + $0x1e8] sm:$0xff]
  %v1159 = vld [vmem:[#allocation2 + $0x1f0] sm:$0xf]
  %v1160 = vld [vmem:[#allocation2 + $0x1f8] sm:$0xf]
  %v1161 = vadd.f32 %v1097, %v939
  %v1162 = vadd.f32 %v1098, %v941
  %v1163 = vadd.f32 %v1099, %v943
  %v1164 = vadd.f32 %v1100, %v945
  %v1165 = vadd.f32 %v1101, %v949
  %v1166 = vadd.f32 %v1102, %v951
  %v1167 = vadd.f32 %v1103, %v953
  %v1168 = vadd.f32 %v1104, %v955
  %v1169 = vadd.f32 %v1105, %v959
  %v1170 = vadd.f32 %v1106, %v961
  %v1171 = vadd.f32 %v1107, %v963
  %v1172 = vadd.f32 %v1108, %v965
  %v1173 = vadd.f32 %v1109, %v969
  %v1174 = vadd.f32 %v1110, %v971
  %v1175 = vadd.f32 %v1111, %v973
  %v1176 = vadd.f32 %v1112, %v975
  %v1177 = vadd.f32 %v1113, %v979
  %v1178 = vadd.f32 %v1114, %v981
  %v1179 = vadd.f32 %v1115, %v983
  %v1180 = vadd.f32 %v1116, %v985
  %v1181 = vadd.f32 %v1117, %v989
  %v1182 = vadd.f32 %v1118, %v991
  %v1183 = vadd.f32 %v1119, %v993
  %v1184 = vadd.f32 %v1120, %v995
  %v1185 = vadd.f32 %v1121, %v999
  %v1186 = vadd.f32 %v1122, %v1001
  %v1187 = vadd.f32 %v1123, %v1003
  %v1188 = vadd.f32 %v1124, %v1005
  %v1189 = vadd.f32 %v1125, %v1009
  %v1190 = vadd.f32 %v1126, %v1011
  %v1191 = vadd.f32 %v1127, %v1013
  %v1192 = vadd.f32 %v1128, %v1015
  %v1193 = vadd.f32 %v1129, %v1019
  %v1194 = vadd.f32 %v1130, %v1021
  %v1195 = vadd.f32 %v1131, %v1023
  %v1196 = vadd.f32 %v1132, %v1025
  %v1197 = vadd.f32 %v1133, %v1029
  %v1198 = vadd.f32 %v1134, %v1031
  %v1199 = vadd.f32 %v1135, %v1033
  %v1200 = vadd.f32 %v1136, %v1035
  %v1201 = vadd.f32 %v1137, %v1039
  %v1202 = vadd.f32 %v1138, %v1041
  %v1203 = vadd.f32 %v1139, %v1043
  %v1204 = vadd.f32 %v1140, %v1045
  %v1205 = vadd.f32 %v1141, %v1049
  %v1206 = vadd.f32 %v1142, %v1051
  %v1207 = vadd.f32 %v1143, %v1053
  %v1208 = vadd.f32 %v1144, %v1055
  %v1209 = vadd.f32 %v1145, %v1059
  %v1210 = vadd.f32 %v1146, %v1061
  %v1211 = vadd.f32 %v1147, %v1063
  %v1212 = vadd.f32 %v1148, %v1065
  %v1213 = vadd.f32 %v1149, %v1069
  %v1214 = vadd.f32 %v1150, %v1071
  %v1215 = vadd.f32 %v1151, %v1073
  %v1216 = vadd.f32 %v1152, %v1075
  %v1217 = vadd.f32 %v1153, %v1079
  %v1218 = vadd.f32 %v1154, %v1081
  %v1219 = vadd.f32 %v1155, %v1083
  %v1220 = vadd.f32 %v1156, %v1085
  %v1221 = vadd.f32 %v1157, %v1089
  %v1222 = vadd.f32 %v1158, %v1091
  %v1223 = vadd.f32 %v1159, %v1093
  %v1224 = vadd.f32 %v1160, %v1095
  %1225 = vst [vmem:[#allocation2] sm:$0xff] %v1161
  %1226 = vst.msk [vmem:[#allocation2 + $0x8] sm:$0xff] %vm478, %v1162
  %1227 = vst [vmem:[#allocation2 + $0x10] sm:$0xff] %v1163
  %1228 = vst.msk [vmem:[#allocation2 + $0x18] sm:$0xff] %vm478, %v1164
  %1229 = vst [vmem:[#allocation2 + $0x20] sm:$0xff] %v1165
  %1230 = vst.msk [vmem:[#allocation2 + $0x28] sm:$0xff] %vm478, %v1166
  %1231 = vst [vmem:[#allocation2 + $0x30] sm:$0xff] %v1167
  %1232 = vst.msk [vmem:[#allocation2 + $0x38] sm:$0xff] %vm478, %v1168
  %1233 = vst [vmem:[#allocation2 + $0x40] sm:$0xff] %v1169
  %1234 = vst.msk [vmem:[#allocation2 + $0x48] sm:$0xff] %vm478, %v1170
  %1235 = vst [vmem:[#allocation2 + $0x50] sm:$0xff] %v1171
  %1236 = vst.msk [vmem:[#allocation2 + $0x58] sm:$0xff] %vm478, %v1172
  %1237 = vst [vmem:[#allocation2 + $0x60] sm:$0xff] %v1173
  %1238 = vst.msk [vmem:[#allocation2 + $0x68] sm:$0xff] %vm478, %v1174
  %1239 = vst [vmem:[#allocation2 + $0x70] sm:$0xff] %v1175
  %1240 = vst.msk [vmem:[#allocation2 + $0x78] sm:$0xff] %vm478, %v1176
  %1241 = vst [vmem:[#allocation2 + $0x80] sm:$0xff] %v1177
  %1242 = vst.msk [vmem:[#allocation2 + $0x88] sm:$0xff] %vm478, %v1178
  %1243 = vst [vmem:[#allocation2 + $0x90] sm:$0xff] %v1179
  %1244 = vst.msk [vmem:[#allocation2 + $0x98] sm:$0xff] %vm478, %v1180
  %1245 = vst [vmem:[#allocation2 + $0xa0] sm:$0xff] %v1181
  %1246 = vst.msk [vmem:[#allocation2 + $0xa8] sm:$0xff] %vm478, %v1182
  %1247 = vst [vmem:[#allocation2 + $0xb0] sm:$0xff] %v1183
  %1248 = vst.msk [vmem:[#allocation2 + $0xb8] sm:$0xff] %vm478, %v1184
  %1249 = vst [vmem:[#allocation2 + $0xc0] sm:$0xff] %v1185
  %1250 = vst.msk [vmem:[#allocation2 + $0xc8] sm:$0xff] %vm478, %v1186
  %1251 = vst [vmem:[#allocation2 + $0xd0] sm:$0xff] %v1187
  %1252 = vst.msk [vmem:[#allocation2 + $0xd8] sm:$0xff] %vm478, %v1188
  %1253 = vst [vmem:[#allocation2 + $0xe0] sm:$0xff] %v1189
  %1254 = vst.msk [vmem:[#allocation2 + $0xe8] sm:$0xff] %vm478, %v1190
  %1255 = vst [vmem:[#allocation2 + $0xf0] sm:$0xff] %v1191
  %1256 = vst.msk [vmem:[#allocation2 + $0xf8] sm:$0xff] %vm478, %v1192
  %1257 = vst [vmem:[#allocation2 + $0x100] sm:$0xff] %v1193
  %1258 = vst.msk [vmem:[#allocation2 + $0x108] sm:$0xff] %vm478, %v1194
  %1259 = vst [vmem:[#allocation2 + $0x110] sm:$0xff] %v1195
  %1260 = vst.msk [vmem:[#allocation2 + $0x118] sm:$0xff] %vm478, %v1196
  %1261 = vst [vmem:[#allocation2 + $0x120] sm:$0xff] %v1197
  %1262 = vst.msk [vmem:[#allocation2 + $0x128] sm:$0xff] %vm478, %v1198
  %1263 = vst [vmem:[#allocation2 + $0x130] sm:$0xff] %v1199
  %1264 = vst.msk [vmem:[#allocation2 + $0x138] sm:$0xff] %vm478, %v1200
  %1265 = vst [vmem:[#allocation2 + $0x140] sm:$0xff] %v1201
  %1266 = vst.msk [vmem:[#allocation2 + $0x148] sm:$0xff] %vm478, %v1202
  %1267 = vst [vmem:[#allocation2 + $0x150] sm:$0xff] %v1203
  %1268 = vst.msk [vmem:[#allocation2 + $0x158] sm:$0xff] %vm478, %v1204
  %1269 = vst [vmem:[#allocation2 + $0x160] sm:$0xff] %v1205
  %1270 = vst.msk [vmem:[#allocation2 + $0x168] sm:$0xff] %vm478, %v1206
  %1271 = vst [vmem:[#allocation2 + $0x170] sm:$0xff] %v1207
  %1272 = vst.msk [vmem:[#allocation2 + $0x178] sm:$0xff] %vm478, %v1208
  %1273 = vst [vmem:[#allocation2 + $0x180] sm:$0xff] %v1209
  %1274 = vst.msk [vmem:[#allocation2 + $0x188] sm:$0xff] %vm478, %v1210
  %1275 = vst [vmem:[#allocation2 + $0x190] sm:$0xff] %v1211
  %1276 = vst.msk [vmem:[#allocation2 + $0x198] sm:$0xff] %vm478, %v1212
  %1277 = vst [vmem:[#allocation2 + $0x1a0] sm:$0xff] %v1213
  %1278 = vst.msk [vmem:[#allocation2 + $0x1a8] sm:$0xff] %vm478, %v1214
  %1279 = vst [vmem:[#allocation2 + $0x1b0] sm:$0xff] %v1215
  %1280 = vst.msk [vmem:[#allocation2 + $0x1b8] sm:$0xff] %vm478, %v1216
  %1281 = vst [vmem:[#allocation2 + $0x1c0] sm:$0xff] %v1217
  %1282 = vst.msk [vmem:[#allocation2 + $0x1c8] sm:$0xff] %vm478, %v1218
  %1283 = vst [vmem:[#allocation2 + $0x1d0] sm:$0xff] %v1219
  %1284 = vst.msk [vmem:[#allocation2 + $0x1d8] sm:$0xff] %vm478, %v1220
  %1285 = vst [vmem:[#allocation2 + $0x1e0] sm:$0xff] %v1221
  %1286 = vst.msk [vmem:[#allocation2 + $0x1e8] sm:$0xff] %vm478, %v1222
  %1287 = vst [vmem:[#allocation2 + $0x1f0] sm:$0xf] %v1223
  %1288 = vst.msk [vmem:[#allocation2 + $0x1f8] sm:$0xf] %vm541, %v1224
  %v1289 = vld [vmem:[%s0] sm:$0xe]
  %v1290 = vld [vmem:[%s0 + $0x4] sm:$0xf]
  %v1291 = vld [vmem:[%s0 + $0x8] sm:$0xf]
  %v1292 = vld [vmem:[%s0 + $0xc] sm:$0xf]
  %v1293 = vld [vmem:[%s0 + $0x10] sm:$0xf]
  %v1294 = vld [vmem:[%s0 + $0x14] sm:$0xf]
  %v1295 = vld [vmem:[%s0 + $0x18] sm:$0xf]
  %v1296 = vld [vmem:[%s0 + $0x1c] sm:$0xf]
  %v1297 = vld [vmem:[%s0 + $0x20] sm:$0xf]
  %v1298 = vld [vmem:[%s0 + $0x24] sm:$0xf]
  %v1299 = vld [vmem:[%s0 + $0x28] sm:$0xf]
  %v1300 = vld [vmem:[%s0 + $0x2c] sm:$0xf]
  %v1301 = vld [vmem:[%s0 + $0x30] sm:$0xf]
  %v1302 = vld [vmem:[%s0 + $0x34] sm:$0xf]
  %v1303 = vld [vmem:[%s0 + $0x38] sm:$0xf]
  %v1304 = vld [vmem:[%s0 + $0x3c] sm:$0xf]
  %v1305 = vld [vmem:[%s0 + $0x40] sm:$0xf]
  %v1306 = vld [vmem:[%s0 + $0x44] sm:$0xf]
  %v1307 = vld [vmem:[%s0 + $0x48] sm:$0xf]
  %v1308 = vld [vmem:[%s0 + $0x4c] sm:$0xf]
  %v1309 = vld [vmem:[%s0 + $0x50] sm:$0xf]
  %v1310 = vld [vmem:[%s0 + $0x54] sm:$0xf]
  %v1311 = vld [vmem:[%s0 + $0x58] sm:$0xf]
  %v1312 = vld [vmem:[%s0 + $0x5c] sm:$0xf]
  %v1313 = vld [vmem:[%s0 + $0x60] sm:$0xf]
  %v1314 = vld [vmem:[%s0 + $0x64] sm:$0xf]
  %v1315 = vld [vmem:[%s0 + $0x68] sm:$0xf]
  %v1316 = vld [vmem:[%s0 + $0x6c] sm:$0xf]
  %v1317 = vld [vmem:[%s0 + $0x70] sm:$0xf]
  %v1318 = vld [vmem:[%s0 + $0x74] sm:$0xf]
  %v1319 = vld [vmem:[%s0 + $0x78] sm:$0xf]
  %v1320 = vld [vmem:[%s0 + $0x7c] sm:$0x7]
  %s1321 = scalar_lea.vmem %s1, 192
  %v1322 = vld [vmem:[%s1321] sm:$0xff]
  %v1323 = vld [vmem:[%s1321 + $0x8] sm:$0xff]
  %v1324 = vld [vmem:[%s1321 + $0x10] sm:$0xff]
  %v1325 = vld [vmem:[%s1321 + $0x18] sm:$0xff]
  %v1326 = vld [vmem:[%s1321 + $0x20] sm:$0xff]
  %v1327 = vld [vmem:[%s1321 + $0x28] sm:$0xff]
  %v1328 = vld [vmem:[%s1321 + $0x30] sm:$0xff]
  %v1329 = vld [vmem:[%s1321 + $0x38] sm:$0xff]
  %v1330 = vld [vmem:[%s1321 + $0x40] sm:$0xff]
  %v1331 = vld [vmem:[%s1321 + $0x48] sm:$0xff]
  %v1332 = vld [vmem:[%s1321 + $0x50] sm:$0xff]
  %v1333 = vld [vmem:[%s1321 + $0x58] sm:$0xff]
  %v1366 = vunpack.c.l.b16 %v1289
  %v1367 = vunpack.c.l.b16 %v1290
  %v1368 = vunpack.c.l.b16 %v1291
  %v1369 = vunpack.c.l.b16 %v1292
  %v1370 = vunpack.c.l.b16 %v1293
  %v1371 = vunpack.c.l.b16 %v1294
  %v1372 = vunpack.c.l.b16 %v1295
  %v1373 = vunpack.c.l.b16 %v1296
  %v1374 = vunpack.c.l.b16 %v1297
  %v1375 = vunpack.c.l.b16 %v1298
  %v1376 = vunpack.c.l.b16 %v1299
  %v1377 = vunpack.c.l.b16 %v1300
  %v1378 = vunpack.c.l.b16 %v1301
  %v1379 = vunpack.c.l.b16 %v1302
  %v1380 = vunpack.c.l.b16 %v1303
  %v1381 = vunpack.c.l.b16 %v1304
  %v1382 = vunpack.c.l.b16 %v1305
  %v1383 = vunpack.c.l.b16 %v1306
  %v1384 = vunpack.c.l.b16 %v1307
  %v1385 = vunpack.c.l.b16 %v1308
  %v1386 = vunpack.c.l.b16 %v1309
  %v1387 = vunpack.c.l.b16 %v1310
  %v1388 = vunpack.c.l.b16 %v1311
  %v1389 = vunpack.c.l.b16 %v1312
  %v1390 = vunpack.c.l.b16 %v1313
  %v1391 = vunpack.c.l.b16 %v1314
  %v1392 = vunpack.c.l.b16 %v1315
  %v1393 = vunpack.c.l.b16 %v1316
  %v1394 = vunpack.c.l.b16 %v1317
  %v1395 = vunpack.c.l.b16 %v1318
  %v1396 = vunpack.c.l.b16 %v1319
  %v1397 = vunpack.c.l.b16 %v1320
  %v1398 = vpack.c.b16 %v1367, %v1366
  %v1399 = vpack.c.b16 %v1369, %v1368
  %v1400 = vpack.c.b16 %v1371, %v1370
  %v1401 = vpack.c.b16 %v1373, %v1372
  %v1402 = vpack.c.b16 %v1375, %v1374
  %v1403 = vpack.c.b16 %v1377, %v1376
  %v1404 = vpack.c.b16 %v1379, %v1378
  %v1405 = vpack.c.b16 %v1381, %v1380
  %v1406 = vpack.c.b16 %v1383, %v1382
  %v1407 = vpack.c.b16 %v1385, %v1384
  %v1408 = vpack.c.b16 %v1387, %v1386
  %v1409 = vpack.c.b16 %v1389, %v1388
  %v1410 = vpack.c.b16 %v1391, %v1390
  %v1411 = vpack.c.b16 %v1393, %v1392
  %v1412 = vpack.c.b16 %v1395, %v1394
  %v1413 = vpack.c.b16 %v1397, %v1396
  %vm1414 = vcmask 1046528
  %v1415 = vrot.slane %v1398, 1
  %v1416 = vrot.slane %v1399, 1
  %v1417 = vsel %vm1414, %v1415, %v1416
  %v1418 = vrot.slane %v1400, 1
  %v1419 = vsel %vm1414, %v1416, %v1418
  %v1420 = vrot.slane %v1401, 1
  %v1421 = vsel %vm1414, %v1418, %v1420
  %v1422 = vrot.slane %v1402, 1
  %v1423 = vsel %vm1414, %v1420, %v1422
  %v1424 = vrot.slane %v1403, 1
  %v1425 = vsel %vm1414, %v1422, %v1424
  %v1426 = vrot.slane %v1404, 1
  %v1427 = vsel %vm1414, %v1424, %v1426
  %v1428 = vrot.slane %v1405, 1
  %v1429 = vsel %vm1414, %v1426, %v1428
  %v1430 = vrot.slane %v1406, 1
  %v1431 = vsel %vm1414, %v1428, %v1430
  %v1432 = vrot.slane %v1407, 1
  %v1433 = vsel %vm1414, %v1430, %v1432
  %v1434 = vrot.slane %v1408, 1
  %v1435 = vsel %vm1414, %v1432, %v1434
  %v1436 = vrot.slane %v1409, 1
  %v1437 = vsel %vm1414, %v1434, %v1436
  %v1438 = vrot.slane %v1410, 1
  %v1439 = vsel %vm1414, %v1436, %v1438
  %v1440 = vrot.slane %v1411, 1
  %v1441 = vsel %vm1414, %v1438, %v1440
  %v1442 = vrot.slane %v1412, 1
  %v1443 = vsel %vm1414, %v1440, %v1442
  %v1444 = vrot.slane %v1413, 1
  %v1445 = vsel %vm1414, %v1442, %v1444
  %v1458 = vunpack.c.l.b16 %v1322
  %v1459 = vunpack.c.h.b16 %v1322
  %v1460 = vunpack.c.l.b16 %v1323
  %v1461 = vunpack.c.h.b16 %v1323
  %v1462 = vunpack.c.l.b16 %v1324
  %v1463 = vunpack.c.h.b16 %v1324
  %v1464 = vunpack.c.l.b16 %v1325
  %v1465 = vunpack.c.h.b16 %v1325
  %v1466 = vunpack.c.l.b16 %v1326
  %v1467 = vunpack.c.h.b16 %v1326
  %v1468 = vunpack.c.l.b16 %v1327
  %v1469 = vunpack.c.h.b16 %v1327
  %v1470 = vunpack.c.l.b16 %v1328
  %v1471 = vunpack.c.h.b16 %v1328
  %v1472 = vunpack.c.l.b16 %v1329
  %v1473 = vunpack.c.h.b16 %v1329
  %v1474 = vunpack.c.l.b16 %v1330
  %v1475 = vunpack.c.h.b16 %v1330
  %v1476 = vunpack.c.l.b16 %v1331
  %v1477 = vunpack.c.h.b16 %v1331
  %v1478 = vunpack.c.l.b16 %v1332
  %v1479 = vunpack.c.h.b16 %v1332
  %v1480 = vunpack.c.l.b16 %v1333
  %v1481 = vunpack.c.h.b16 %v1333
  %v1482 = vpack.c.b16 %v1460, %v1458
  %v1483 = vpack.c.b16 %v1461, %v1459
  %v1484 = vpack.c.b16 %v1464, %v1462
  %v1485 = vpack.c.b16 %v1465, %v1463
  %v1486 = vpack.c.b16 %v1468, %v1466
  %v1487 = vpack.c.b16 %v1469, %v1467
  %v1488 = vpack.c.b16 %v1472, %v1470
  %v1489 = vpack.c.b16 %v1473, %v1471
  %v1490 = vpack.c.b16 %v1476, %v1474
  %v1491 = vpack.c.b16 %v1477, %v1475
  %v1492 = vpack.c.b16 %v1480, %v1478
  %v1493 = vpack.c.b16 %v1481, %v1479
  %v1507 = vsel %vm235, %v1417, 0
  %v1510 = vsel %vm235, %v1419, 0
  %v1513 = vsel %vm235, %v1421, 0
  %v1516 = vsel %vm235, %v1423, 0
  %v1519 = vsel %vm235, %v1425, 0
  %v1522 = vsel %vm235, %v1427, 0
  %v1525 = vsel %vm235, %v1429, 0
  %v1528 = vsel %vm235, %v1431, 0
  %v1531 = vsel %vm235, %v1433, 0
  %v1534 = vsel %vm235, %v1435, 0
  %v1537 = vsel %vm235, %v1437, 0
  %v1540 = vsel %vm235, %v1439, 0
  %v1543 = vsel %vm235, %v1441, 0
  %v1546 = vsel %vm235, %v1443, 0
  %v1549 = vsel %vm235, %v1445, 0
  %v1552 = vsel %vm235, %v1444, 0
  %1554 = vmatprep.subr.bf16.mxu0 0
  %1555 = vmatpush1.bf16.msra.mxu0 0
  %1556 = vmatprep.subr.bf16.mxu0 0
  %1557 = vmatpush1.bf16.msra.mxu0 0
  %1558 = vmatprep.subr.bf16.mxu0 %v1493
  %1559 = vmatpush1.bf16.msra.mxu0 %v1492
  %1560 = vmatprep.subr.bf16.mxu0 %v1491
  %1561 = vmatpush1.bf16.msra.mxu0 %v1490
  %1562 = vmatprep.subr.bf16.mxu0 %v1489
  %1563 = vmatpush1.bf16.msra.mxu0 %v1488
  %1564 = vmatprep.subr.bf16.mxu0 %v1487
  %1565 = vmatpush1.bf16.msra.mxu0 %v1486
  %1566 = vmatprep.subr.bf16.mxu0 %v1485
  %1567 = vmatpush1.bf16.msra.mxu0 %v1484
  %1568 = vmatprep.subr.bf16.mxu0 %v1483
  %1569 = vmatpush1.bf16.msra.mxu0 %v1482
  %1570 = vmatprep.subr.bf16.mxu0 0
  %1571 = vmatpush2.bf16.msra.mxu0 0
  %1572 = vmatprep.subr.bf16.mxu0 0
  %1573 = vmatpush2.bf16.msra.mxu0 0
  %1574 = vmatprep.subr.bf16.mxu0 0
  %1575 = vmatpush2.bf16.msra.mxu0 0
  %1576 = vmatprep.subr.bf16.mxu0 0
  %1577 = vmatpush2.bf16.msra.mxu0 0
  %1578 = vmatprep.subr.bf16.mxu0 0
  %1579 = vmatpush2.bf16.msra.mxu0 0
  %1580 = vmatprep.subr.bf16.mxu0 0
  %1581 = vmatpush2.bf16.msra.mxu0 0
  %1582 = vmatprep.subr.bf16.mxu0 0
  %1583 = vmatpush2.bf16.msra.mxu0 0
  %1584 = vmatprep.subr.bf16.mxu0 0
  %1585 = vmatpush2.bf16.msra.mxu0 0
  %1586 = vmatprep.mubr.bf16.mxu0 0
  %1587 = vmatmul.mubr.bf16.gmra.mxu0 %v1507
  %v1588 = vpop.f32.mrf.mxu0
  %v1589 = vadd.f32 0.0, %v1588
  %v1590 = vpop.f32.mrf.mxu0
  %v1591 = vadd.f32 0.0, %v1590
  %v1592 = vpop.f32.mrf.mxu0
  %v1593 = vadd.f32 0.0, %v1592
  %v1594 = vpop.f32.mrf.mxu0
  %v1595 = vadd.f32 0.0, %v1594
  %1596 = vmatprep.mubr.bf16.mxu0 0
  %1597 = vmatmul.mubr.bf16.gmra.mxu0 %v1510
  %v1598 = vpop.f32.mrf.mxu0
  %v1599 = vadd.f32 0.0, %v1598
  %v1600 = vpop.f32.mrf.mxu0
  %v1601 = vadd.f32 0.0, %v1600
  %v1602 = vpop.f32.mrf.mxu0
  %v1603 = vadd.f32 0.0, %v1602
  %v1604 = vpop.f32.mrf.mxu0
  %v1605 = vadd.f32 0.0, %v1604
  %1606 = vmatprep.mubr.bf16.mxu0 0
  %1607 = vmatmul.mubr.bf16.gmra.mxu0 %v1513
  %v1608 = vpop.f32.mrf.mxu0
  %v1609 = vadd.f32 0.0, %v1608
  %v1610 = vpop.f32.mrf.mxu0
  %v1611 = vadd.f32 0.0, %v1610
  %v1612 = vpop.f32.mrf.mxu0
  %v1613 = vadd.f32 0.0, %v1612
  %v1614 = vpop.f32.mrf.mxu0
  %v1615 = vadd.f32 0.0, %v1614
  %1616 = vmatprep.mubr.bf16.mxu0 0
  %1617 = vmatmul.mubr.bf16.gmra.mxu0 %v1516
  %v1618 = vpop.f32.mrf.mxu0
  %v1619 = vadd.f32 0.0, %v1618
  %v1620 = vpop.f32.mrf.mxu0
  %v1621 = vadd.f32 0.0, %v1620
  %v1622 = vpop.f32.mrf.mxu0
  %v1623 = vadd.f32 0.0, %v1622
  %v1624 = vpop.f32.mrf.mxu0
  %v1625 = vadd.f32 0.0, %v1624
  %1626 = vmatprep.mubr.bf16.mxu0 0
  %1627 = vmatmul.mubr.bf16.gmra.mxu0 %v1519
  %v1628 = vpop.f32.mrf.mxu0
  %v1629 = vadd.f32 0.0, %v1628
  %v1630 = vpop.f32.mrf.mxu0
  %v1631 = vadd.f32 0.0, %v1630
  %v1632 = vpop.f32.mrf.mxu0
  %v1633 = vadd.f32 0.0, %v1632
  %v1634 = vpop.f32.mrf.mxu0
  %v1635 = vadd.f32 0.0, %v1634
  %1636 = vmatprep.mubr.bf16.mxu0 0
  %1637 = vmatmul.mubr.bf16.gmra.mxu0 %v1522
  %v1638 = vpop.f32.mrf.mxu0
  %v1639 = vadd.f32 0.0, %v1638
  %v1640 = vpop.f32.mrf.mxu0
  %v1641 = vadd.f32 0.0, %v1640
  %v1642 = vpop.f32.mrf.mxu0
  %v1643 = vadd.f32 0.0, %v1642
  %v1644 = vpop.f32.mrf.mxu0
  %v1645 = vadd.f32 0.0, %v1644
  %1646 = vmatprep.mubr.bf16.mxu0 0
  %1647 = vmatmul.mubr.bf16.gmra.mxu0 %v1525
  %v1648 = vpop.f32.mrf.mxu0
  %v1649 = vadd.f32 0.0, %v1648
  %v1650 = vpop.f32.mrf.mxu0
  %v1651 = vadd.f32 0.0, %v1650
  %v1652 = vpop.f32.mrf.mxu0
  %v1653 = vadd.f32 0.0, %v1652
  %v1654 = vpop.f32.mrf.mxu0
  %v1655 = vadd.f32 0.0, %v1654
  %1656 = vmatprep.mubr.bf16.mxu0 0
  %1657 = vmatmul.mubr.bf16.gmra.mxu0 %v1528
  %v1658 = vpop.f32.mrf.mxu0
  %v1659 = vadd.f32 0.0, %v1658
  %v1660 = vpop.f32.mrf.mxu0
  %v1661 = vadd.f32 0.0, %v1660
  %v1662 = vpop.f32.mrf.mxu0
  %v1663 = vadd.f32 0.0, %v1662
  %v1664 = vpop.f32.mrf.mxu0
  %v1665 = vadd.f32 0.0, %v1664
  %1666 = vmatprep.mubr.bf16.mxu0 0
  %1667 = vmatmul.mubr.bf16.gmra.mxu0 %v1531
  %v1668 = vpop.f32.mrf.mxu0
  %v1669 = vadd.f32 0.0, %v1668
  %v1670 = vpop.f32.mrf.mxu0
  %v1671 = vadd.f32 0.0, %v1670
  %v1672 = vpop.f32.mrf.mxu0
  %v1673 = vadd.f32 0.0, %v1672
  %v1674 = vpop.f32.mrf.mxu0
  %v1675 = vadd.f32 0.0, %v1674
  %1676 = vmatprep.mubr.bf16.mxu0 0
  %1677 = vmatmul.mubr.bf16.gmra.mxu0 %v1534
  %v1678 = vpop.f32.mrf.mxu0
  %v1679 = vadd.f32 0.0, %v1678
  %v1680 = vpop.f32.mrf.mxu0
  %v1681 = vadd.f32 0.0, %v1680
  %v1682 = vpop.f32.mrf.mxu0
  %v1683 = vadd.f32 0.0, %v1682
  %v1684 = vpop.f32.mrf.mxu0
  %v1685 = vadd.f32 0.0, %v1684
  %1686 = vmatprep.mubr.bf16.mxu0 0
  %1687 = vmatmul.mubr.bf16.gmra.mxu0 %v1537
  %v1688 = vpop.f32.mrf.mxu0
  %v1689 = vadd.f32 0.0, %v1688
  %v1690 = vpop.f32.mrf.mxu0
  %v1691 = vadd.f32 0.0, %v1690
  %v1692 = vpop.f32.mrf.mxu0
  %v1693 = vadd.f32 0.0, %v1692
  %v1694 = vpop.f32.mrf.mxu0
  %v1695 = vadd.f32 0.0, %v1694
  %1696 = vmatprep.mubr.bf16.mxu0 0
  %1697 = vmatmul.mubr.bf16.gmra.mxu0 %v1540
  %v1698 = vpop.f32.mrf.mxu0
  %v1699 = vadd.f32 0.0, %v1698
  %v1700 = vpop.f32.mrf.mxu0
  %v1701 = vadd.f32 0.0, %v1700
  %v1702 = vpop.f32.mrf.mxu0
  %v1703 = vadd.f32 0.0, %v1702
  %v1704 = vpop.f32.mrf.mxu0
  %v1705 = vadd.f32 0.0, %v1704
  %1706 = vmatprep.mubr.bf16.mxu0 0
  %1707 = vmatmul.mubr.bf16.gmra.mxu0 %v1543
  %v1708 = vpop.f32.mrf.mxu0
  %v1709 = vadd.f32 0.0, %v1708
  %v1710 = vpop.f32.mrf.mxu0
  %v1711 = vadd.f32 0.0, %v1710
  %v1712 = vpop.f32.mrf.mxu0
  %v1713 = vadd.f32 0.0, %v1712
  %v1714 = vpop.f32.mrf.mxu0
  %v1715 = vadd.f32 0.0, %v1714
  %1716 = vmatprep.mubr.bf16.mxu0 0
  %1717 = vmatmul.mubr.bf16.gmra.mxu0 %v1546
  %v1718 = vpop.f32.mrf.mxu0
  %v1719 = vadd.f32 0.0, %v1718
  %v1720 = vpop.f32.mrf.mxu0
  %v1721 = vadd.f32 0.0, %v1720
  %v1722 = vpop.f32.mrf.mxu0
  %v1723 = vadd.f32 0.0, %v1722
  %v1724 = vpop.f32.mrf.mxu0
  %v1725 = vadd.f32 0.0, %v1724
  %1726 = vmatprep.mubr.bf16.mxu0 0
  %1727 = vmatmul.mubr.bf16.gmra.mxu0 %v1549
  %v1728 = vpop.f32.mrf.mxu0
  %v1729 = vadd.f32 0.0, %v1728
  %v1730 = vpop.f32.mrf.mxu0
  %v1731 = vadd.f32 0.0, %v1730
  %v1732 = vpop.f32.mrf.mxu0
  %v1733 = vadd.f32 0.0, %v1732
  %v1734 = vpop.f32.mrf.mxu0
  %v1735 = vadd.f32 0.0, %v1734
  %1736 = vmatprep.mubr.bf16.mxu0 0
  %1737 = vmatmul.mubr.bf16.gmra.mxu0 %v1552
  %v1738 = vpop.f32.mrf.mxu0
  %v1739 = vadd.f32 0.0, %v1738
  %v1740 = vpop.f32.mrf.mxu0
  %v1741 = vadd.f32 0.0, %v1740
  %v1742 = vpop.f32.mrf.mxu0
  %v1743 = vadd.f32 0.0, %v1742
  %v1744 = vpop.f32.mrf.mxu0
  %v1745 = vadd.f32 0.0, %v1744
  %1746 = vdwg.mxu0
  %v1747 = vld [vmem:[#allocation2] sm:$0xff]
  %v1748 = vld [vmem:[#allocation2 + $0x8] sm:$0xff]
  %v1749 = vld [vmem:[#allocation2 + $0x10] sm:$0xff]
  %v1750 = vld [vmem:[#allocation2 + $0x18] sm:$0xff]
  %v1751 = vld [vmem:[#allocation2 + $0x20] sm:$0xff]
  %v1752 = vld [vmem:[#allocation2 + $0x28] sm:$0xff]
  %v1753 = vld [vmem:[#allocation2 + $0x30] sm:$0xff]
  %v1754 = vld [vmem:[#allocation2 + $0x38] sm:$0xff]
  %v1755 = vld [vmem:[#allocation2 + $0x40] sm:$0xff]
  %v1756 = vld [vmem:[#allocation2 + $0x48] sm:$0xff]
  %v1757 = vld [vmem:[#allocation2 + $0x50] sm:$0xff]
  %v1758 = vld [vmem:[#allocation2 + $0x58] sm:$0xff]
  %v1759 = vld [vmem:[#allocation2 + $0x60] sm:$0xff]
  %v1760 = vld [vmem:[#allocation2 + $0x68] sm:$0xff]
  %v1761 = vld [vmem:[#allocation2 + $0x70] sm:$0xff]
  %v1762 = vld [vmem:[#allocation2 + $0x78] sm:$0xff]
  %v1763 = vld [vmem:[#allocation2 + $0x80] sm:$0xff]
  %v1764 = vld [vmem:[#allocation2 + $0x88] sm:$0xff]
  %v1765 = vld [vmem:[#allocation2 + $0x90] sm:$0xff]
  %v1766 = vld [vmem:[#allocation2 + $0x98] sm:$0xff]
  %v1767 = vld [vmem:[#allocation2 + $0xa0] sm:$0xff]
  %v1768 = vld [vmem:[#allocation2 + $0xa8] sm:$0xff]
  %v1769 = vld [vmem:[#allocation2 + $0xb0] sm:$0xff]
  %v1770 = vld [vmem:[#allocation2 + $0xb8] sm:$0xff]
  %v1771 = vld [vmem:[#allocation2 + $0xc0] sm:$0xff]
  %v1772 = vld [vmem:[#allocation2 + $0xc8] sm:$0xff]
  %v1773 = vld [vmem:[#allocation2 + $0xd0] sm:$0xff]
  %v1774 = vld [vmem:[#allocation2 + $0xd8] sm:$0xff]
  %v1775 = vld [vmem:[#allocation2 + $0xe0] sm:$0xff]
  %v1776 = vld [vmem:[#allocation2 + $0xe8] sm:$0xff]
  %v1777 = vld [vmem:[#allocation2 + $0xf0] sm:$0xff]
  %v1778 = vld [vmem:[#allocation2 + $0xf8] sm:$0xff]
  %v1779 = vld [vmem:[#allocation2 + $0x100] sm:$0xff]
  %v1780 = vld [vmem:[#allocation2 + $0x108] sm:$0xff]
  %v1781 = vld [vmem:[#allocation2 + $0x110] sm:$0xff]
  %v1782 = vld [vmem:[#allocation2 + $0x118] sm:$0xff]
  %v1783 = vld [vmem:[#allocation2 + $0x120] sm:$0xff]
  %v1784 = vld [vmem:[#allocation2 + $0x128] sm:$0xff]
  %v1785 = vld [vmem:[#allocation2 + $0x130] sm:$0xff]
  %v1786 = vld [vmem:[#allocation2 + $0x138] sm:$0xff]
  %v1787 = vld [vmem:[#allocation2 + $0x140] sm:$0xff]
  %v1788 = vld [vmem:[#allocation2 + $0x148] sm:$0xff]
  %v1789 = vld [vmem:[#allocation2 + $0x150] sm:$0xff]
  %v1790 = vld [vmem:[#allocation2 + $0x158] sm:$0xff]
  %v1791 = vld [vmem:[#allocation2 + $0x160] sm:$0xff]
  %v1792 = vld [vmem:[#allocation2 + $0x168] sm:$0xff]
  %v1793 = vld [vmem:[#allocation2 + $0x170] sm:$0xff]
  %v1794 = vld [vmem:[#allocation2 + $0x178] sm:$0xff]
  %v1795 = vld [vmem:[#allocation2 + $0x180] sm:$0xff]
  %v1796 = vld [vmem:[#allocation2 + $0x188] sm:$0xff]
  %v1797 = vld [vmem:[#allocation2 + $0x190] sm:$0xff]
  %v1798 = vld [vmem:[#allocation2 + $0x198] sm:$0xff]
  %v1799 = vld [vmem:[#allocation2 + $0x1a0] sm:$0xff]
  %v1800 = vld [vmem:[#allocation2 + $0x1a8] sm:$0xff]
  %v1801 = vld [vmem:[#allocation2 + $0x1b0] sm:$0xff]
  %v1802 = vld [vmem:[#allocation2 + $0x1b8] sm:$0xff]
  %v1803 = vld [vmem:[#allocation2 + $0x1c0] sm:$0xff]
  %v1804 = vld [vmem:[#allocation2 + $0x1c8] sm:$0xff]
  %v1805 = vld [vmem:[#allocation2 + $0x1d0] sm:$0xff]
  %v1806 = vld [vmem:[#allocation2 + $0x1d8] sm:$0xff]
  %v1807 = vld [vmem:[#allocation2 + $0x1e0] sm:$0xff]
  %v1808 = vld [vmem:[#allocation2 + $0x1e8] sm:$0xff]
  %v1809 = vld [vmem:[#allocation2 + $0x1f0] sm:$0xf]
  %v1810 = vld [vmem:[#allocation2 + $0x1f8] sm:$0xf]
  %v1811 = vadd.f32 %v1747, %v1589
  %v1812 = vadd.f32 %v1748, %v1591
  %v1813 = vadd.f32 %v1749, %v1593
  %v1814 = vadd.f32 %v1750, %v1595
  %v1815 = vadd.f32 %v1751, %v1599
  %v1816 = vadd.f32 %v1752, %v1601
  %v1817 = vadd.f32 %v1753, %v1603
  %v1818 = vadd.f32 %v1754, %v1605
  %v1819 = vadd.f32 %v1755, %v1609
  %v1820 = vadd.f32 %v1756, %v1611
  %v1821 = vadd.f32 %v1757, %v1613
  %v1822 = vadd.f32 %v1758, %v1615
  %v1823 = vadd.f32 %v1759, %v1619
  %v1824 = vadd.f32 %v1760, %v1621
  %v1825 = vadd.f32 %v1761, %v1623
  %v1826 = vadd.f32 %v1762, %v1625
  %v1827 = vadd.f32 %v1763, %v1629
  %v1828 = vadd.f32 %v1764, %v1631
  %v1829 = vadd.f32 %v1765, %v1633
  %v1830 = vadd.f32 %v1766, %v1635
  %v1831 = vadd.f32 %v1767, %v1639
  %v1832 = vadd.f32 %v1768, %v1641
  %v1833 = vadd.f32 %v1769, %v1643
  %v1834 = vadd.f32 %v1770, %v1645
  %v1835 = vadd.f32 %v1771, %v1649
  %v1836 = vadd.f32 %v1772, %v1651
  %v1837 = vadd.f32 %v1773, %v1653
  %v1838 = vadd.f32 %v1774, %v1655
  %v1839 = vadd.f32 %v1775, %v1659
  %v1840 = vadd.f32 %v1776, %v1661
  %v1841 = vadd.f32 %v1777, %v1663
  %v1842 = vadd.f32 %v1778, %v1665
  %v1843 = vadd.f32 %v1779, %v1669
  %v1844 = vadd.f32 %v1780, %v1671
  %v1845 = vadd.f32 %v1781, %v1673
  %v1846 = vadd.f32 %v1782, %v1675
  %v1847 = vadd.f32 %v1783, %v1679
  %v1848 = vadd.f32 %v1784, %v1681
  %v1849 = vadd.f32 %v1785, %v1683
  %v1850 = vadd.f32 %v1786, %v1685
  %v1851 = vadd.f32 %v1787, %v1689
  %v1852 = vadd.f32 %v1788, %v1691
  %v1853 = vadd.f32 %v1789, %v1693
  %v1854 = vadd.f32 %v1790, %v1695
  %v1855 = vadd.f32 %v1791, %v1699
  %v1856 = vadd.f32 %v1792, %v1701
  %v1857 = vadd.f32 %v1793, %v1703
  %v1858 = vadd.f32 %v1794, %v1705
  %v1859 = vadd.f32 %v1795, %v1709
  %v1860 = vadd.f32 %v1796, %v1711
  %v1861 = vadd.f32 %v1797, %v1713
  %v1862 = vadd.f32 %v1798, %v1715
  %v1863 = vadd.f32 %v1799, %v1719
  %v1864 = vadd.f32 %v1800, %v1721
  %v1865 = vadd.f32 %v1801, %v1723
  %v1866 = vadd.f32 %v1802, %v1725
  %v1867 = vadd.f32 %v1803, %v1729
  %v1868 = vadd.f32 %v1804, %v1731
  %v1869 = vadd.f32 %v1805, %v1733
  %v1870 = vadd.f32 %v1806, %v1735
  %v1871 = vadd.f32 %v1807, %v1739
  %v1872 = vadd.f32 %v1808, %v1741
  %v1873 = vadd.f32 %v1809, %v1743
  %v1874 = vadd.f32 %v1810, %v1745
  %1875 = vst [vmem:[#allocation2] sm:$0xff] %v1811
  %1876 = vst.msk [vmem:[#allocation2 + $0x8] sm:$0xff] %vm478, %v1812
  %1877 = vst [vmem:[#allocation2 + $0x10] sm:$0xff] %v1813
  %1878 = vst.msk [vmem:[#allocation2 + $0x18] sm:$0xff] %vm478, %v1814
  %1879 = vst [vmem:[#allocation2 + $0x20] sm:$0xff] %v1815
  %1880 = vst.msk [vmem:[#allocation2 + $0x28] sm:$0xff] %vm478, %v1816
  %1881 = vst [vmem:[#allocation2 + $0x30] sm:$0xff] %v1817
  %1882 = vst.msk [vmem:[#allocation2 + $0x38] sm:$0xff] %vm478, %v1818
  %1883 = vst [vmem:[#allocation2 + $0x40] sm:$0xff] %v1819
  %1884 = vst.msk [vmem:[#allocation2 + $0x48] sm:$0xff] %vm478, %v1820
  %1885 = vst [vmem:[#allocation2 + $0x50] sm:$0xff] %v1821
  %1886 = vst.msk [vmem:[#allocation2 + $0x58] sm:$0xff] %vm478, %v1822
  %1887 = vst [vmem:[#allocation2 + $0x60] sm:$0xff] %v1823
  %1888 = vst.msk [vmem:[#allocation2 + $0x68] sm:$0xff] %vm478, %v1824
  %1889 = vst [vmem:[#allocation2 + $0x70] sm:$0xff] %v1825
  %1890 = vst.msk [vmem:[#allocation2 + $0x78] sm:$0xff] %vm478, %v1826
  %1891 = vst [vmem:[#allocation2 + $0x80] sm:$0xff] %v1827
  %1892 = vst.msk [vmem:[#allocation2 + $0x88] sm:$0xff] %vm478, %v1828
  %1893 = vst [vmem:[#allocation2 + $0x90] sm:$0xff] %v1829
  %1894 = vst.msk [vmem:[#allocation2 + $0x98] sm:$0xff] %vm478, %v1830
  %1895 = vst [vmem:[#allocation2 + $0xa0] sm:$0xff] %v1831
  %1896 = vst.msk [vmem:[#allocation2 + $0xa8] sm:$0xff] %vm478, %v1832
  %1897 = vst [vmem:[#allocation2 + $0xb0] sm:$0xff] %v1833
  %1898 = vst.msk [vmem:[#allocation2 + $0xb8] sm:$0xff] %vm478, %v1834
  %1899 = vst [vmem:[#allocation2 + $0xc0] sm:$0xff] %v1835
  %1900 = vst.msk [vmem:[#allocation2 + $0xc8] sm:$0xff] %vm478, %v1836
  %1901 = vst [vmem:[#allocation2 + $0xd0] sm:$0xff] %v1837
  %1902 = vst.msk [vmem:[#allocation2 + $0xd8] sm:$0xff] %vm478, %v1838
  %1903 = vst [vmem:[#allocation2 + $0xe0] sm:$0xff] %v1839
  %1904 = vst.msk [vmem:[#allocation2 + $0xe8] sm:$0xff] %vm478, %v1840
  %1905 = vst [vmem:[#allocation2 + $0xf0] sm:$0xff] %v1841
  %1906 = vst.msk [vmem:[#allocation2 + $0xf8] sm:$0xff] %vm478, %v1842
  %1907 = vst [vmem:[#allocation2 + $0x100] sm:$0xff] %v1843
  %1908 = vst.msk [vmem:[#allocation2 + $0x108] sm:$0xff] %vm478, %v1844
  %1909 = vst [vmem:[#allocation2 + $0x110] sm:$0xff] %v1845
  %1910 = vst.msk [vmem:[#allocation2 + $0x118] sm:$0xff] %vm478, %v1846
  %1911 = vst [vmem:[#allocation2 + $0x120] sm:$0xff] %v1847
  %1912 = vst.msk [vmem:[#allocation2 + $0x128] sm:$0xff] %vm478, %v1848
  %1913 = vst [vmem:[#allocation2 + $0x130] sm:$0xff] %v1849
  %1914 = vst.msk [vmem:[#allocation2 + $0x138] sm:$0xff] %vm478, %v1850
  %1915 = vst [vmem:[#allocation2 + $0x140] sm:$0xff] %v1851
  %1916 = vst.msk [vmem:[#allocation2 + $0x148] sm:$0xff] %vm478, %v1852
  %1917 = vst [vmem:[#allocation2 + $0x150] sm:$0xff] %v1853
  %1918 = vst.msk [vmem:[#allocation2 + $0x158] sm:$0xff] %vm478, %v1854
  %1919 = vst [vmem:[#allocation2 + $0x160] sm:$0xff] %v1855
  %1920 = vst.msk [vmem:[#allocation2 + $0x168] sm:$0xff] %vm478, %v1856
  %1921 = vst [vmem:[#allocation2 + $0x170] sm:$0xff] %v1857
  %1922 = vst.msk [vmem:[#allocation2 + $0x178] sm:$0xff] %vm478, %v1858
  %1923 = vst [vmem:[#allocation2 + $0x180] sm:$0xff] %v1859
  %1924 = vst.msk [vmem:[#allocation2 + $0x188] sm:$0xff] %vm478, %v1860
  %1925 = vst [vmem:[#allocation2 + $0x190] sm:$0xff] %v1861
  %1926 = vst.msk [vmem:[#allocation2 + $0x198] sm:$0xff] %vm478, %v1862
  %1927 = vst [vmem:[#allocation2 + $0x1a0] sm:$0xff] %v1863
  %1928 = vst.msk [vmem:[#allocation2 + $0x1a8] sm:$0xff] %vm478, %v1864
  %1929 = vst [vmem:[#allocation2 + $0x1b0] sm:$0xff] %v1865
  %1930 = vst.msk [vmem:[#allocation2 + $0x1b8] sm:$0xff] %vm478, %v1866
  %1931 = vst [vmem:[#allocation2 + $0x1c0] sm:$0xff] %v1867
  %1932 = vst.msk [vmem:[#allocation2 + $0x1c8] sm:$0xff] %vm478, %v1868
  %1933 = vst [vmem:[#allocation2 + $0x1d0] sm:$0xff] %v1869
  %1934 = vst.msk [vmem:[#allocation2 + $0x1d8] sm:$0xff] %vm478, %v1870
  %1935 = vst [vmem:[#allocation2 + $0x1e0] sm:$0xff] %v1871
  %1936 = vst.msk [vmem:[#allocation2 + $0x1e8] sm:$0xff] %vm478, %v1872
  %1937 = vst [vmem:[#allocation2 + $0x1f0] sm:$0xf] %v1873
  %1938 = vst.msk [vmem:[#allocation2 + $0x1f8] sm:$0xf] %vm541, %v1874
  %v1939 = vld [vmem:[%s0] sm:$0xe]
  %v1940 = vld [vmem:[%s0 + $0x4] sm:$0xf]
  %v1941 = vld [vmem:[%s0 + $0x8] sm:$0xf]
  %v1942 = vld [vmem:[%s0 + $0xc] sm:$0xf]
  %v1943 = vld [vmem:[%s0 + $0x10] sm:$0xf]
  %v1944 = vld [vmem:[%s0 + $0x14] sm:$0xf]
  %v1945 = vld [vmem:[%s0 + $0x18] sm:$0xf]
  %v1946 = vld [vmem:[%s0 + $0x1c] sm:$0xf]
  %v1947 = vld [vmem:[%s0 + $0x20] sm:$0xf]
  %v1948 = vld [vmem:[%s0 + $0x24] sm:$0xf]
  %v1949 = vld [vmem:[%s0 + $0x28] sm:$0xf]
  %v1950 = vld [vmem:[%s0 + $0x2c] sm:$0xf]
  %v1951 = vld [vmem:[%s0 + $0x30] sm:$0xf]
  %v1952 = vld [vmem:[%s0 + $0x34] sm:$0xf]
  %v1953 = vld [vmem:[%s0 + $0x38] sm:$0xf]
  %v1954 = vld [vmem:[%s0 + $0x3c] sm:$0xf]
  %v1955 = vld [vmem:[%s0 + $0x40] sm:$0xf]
  %v1956 = vld [vmem:[%s0 + $0x44] sm:$0xf]
  %v1957 = vld [vmem:[%s0 + $0x48] sm:$0xf]
  %v1958 = vld [vmem:[%s0 + $0x4c] sm:$0xf]
  %v1959 = vld [vmem:[%s0 + $0x50] sm:$0xf]
  %v1960 = vld [vmem:[%s0 + $0x54] sm:$0xf]
  %v1961 = vld [vmem:[%s0 + $0x58] sm:$0xf]
  %v1962 = vld [vmem:[%s0 + $0x5c] sm:$0xf]
  %v1963 = vld [vmem:[%s0 + $0x60] sm:$0xf]
  %v1964 = vld [vmem:[%s0 + $0x64] sm:$0xf]
  %v1965 = vld [vmem:[%s0 + $0x68] sm:$0xf]
  %v1966 = vld [vmem:[%s0 + $0x6c] sm:$0xf]
  %v1967 = vld [vmem:[%s0 + $0x70] sm:$0xf]
  %v1968 = vld [vmem:[%s0 + $0x74] sm:$0xf]
  %v1969 = vld [vmem:[%s0 + $0x78] sm:$0xf]
  %v1970 = vld [vmem:[%s0 + $0x7c] sm:$0xf]
  %s1971 = scalar_lea.vmem %s1, 288
  %v1972 = vld [vmem:[%s1971] sm:$0xff]
  %v1973 = vld [vmem:[%s1971 + $0x8] sm:$0xff]
  %v1974 = vld [vmem:[%s1971 + $0x10] sm:$0xff]
  %v1975 = vld [vmem:[%s1971 + $0x18] sm:$0xff]
  %v1976 = vld [vmem:[%s1971 + $0x20] sm:$0xff]
  %v1977 = vld [vmem:[%s1971 + $0x28] sm:$0xff]
  %v1978 = vld [vmem:[%s1971 + $0x30] sm:$0xff]
  %v1979 = vld [vmem:[%s1971 + $0x38] sm:$0xff]
  %v1980 = vld [vmem:[%s1971 + $0x40] sm:$0xff]
  %v1981 = vld [vmem:[%s1971 + $0x48] sm:$0xff]
  %v1982 = vld [vmem:[%s1971 + $0x50] sm:$0xff]
  %v1983 = vld [vmem:[%s1971 + $0x58] sm:$0xff]
  %v2016 = vunpack.c.l.b16 %v1939
  %v2017 = vunpack.c.l.b16 %v1940
  %v2018 = vunpack.c.l.b16 %v1941
  %v2019 = vunpack.c.l.b16 %v1942
  %v2020 = vunpack.c.l.b16 %v1943
  %v2021 = vunpack.c.l.b16 %v1944
  %v2022 = vunpack.c.l.b16 %v1945
  %v2023 = vunpack.c.l.b16 %v1946
  %v2024 = vunpack.c.l.b16 %v1947
  %v2025 = vunpack.c.l.b16 %v1948
  %v2026 = vunpack.c.l.b16 %v1949
  %v2027 = vunpack.c.l.b16 %v1950
  %v2028 = vunpack.c.l.b16 %v1951
  %v2029 = vunpack.c.l.b16 %v1952
  %v2030 = vunpack.c.l.b16 %v1953
  %v2031 = vunpack.c.l.b16 %v1954
  %v2032 = vunpack.c.l.b16 %v1955
  %v2033 = vunpack.c.l.b16 %v1956
  %v2034 = vunpack.c.l.b16 %v1957
  %v2035 = vunpack.c.l.b16 %v1958
  %v2036 = vunpack.c.l.b16 %v1959
  %v2037 = vunpack.c.l.b16 %v1960
  %v2038 = vunpack.c.l.b16 %v1961
  %v2039 = vunpack.c.l.b16 %v1962
  %v2040 = vunpack.c.l.b16 %v1963
  %v2041 = vunpack.c.l.b16 %v1964
  %v2042 = vunpack.c.l.b16 %v1965
  %v2043 = vunpack.c.l.b16 %v1966
  %v2044 = vunpack.c.l.b16 %v1967
  %v2045 = vunpack.c.l.b16 %v1968
  %v2046 = vunpack.c.l.b16 %v1969
  %v2047 = vunpack.c.l.b16 %v1970
  %v2048 = vpack.c.b16 %v2017, %v2016
  %v2049 = vpack.c.b16 %v2019, %v2018
  %v2050 = vpack.c.b16 %v2021, %v2020
  %v2051 = vpack.c.b16 %v2023, %v2022
  %v2052 = vpack.c.b16 %v2025, %v2024
  %v2053 = vpack.c.b16 %v2027, %v2026
  %v2054 = vpack.c.b16 %v2029, %v2028
  %v2055 = vpack.c.b16 %v2031, %v2030
  %v2056 = vpack.c.b16 %v2033, %v2032
  %v2057 = vpack.c.b16 %v2035, %v2034
  %v2058 = vpack.c.b16 %v2037, %v2036
  %v2059 = vpack.c.b16 %v2039, %v2038
  %v2060 = vpack.c.b16 %v2041, %v2040
  %v2061 = vpack.c.b16 %v2043, %v2042
  %v2062 = vpack.c.b16 %v2045, %v2044
  %v2063 = vpack.c.b16 %v2047, %v2046
  %vm2064 = vsmask.f32 6400
  %v2066 = vshrl.u32 %v2048, 16
  %v2068 = vrot.slane %v2066, 1
  %v2069 = vshll.u32 %v2048, 16
  %v2071 = vrot.slane %v2069, 2
  %v2072 = vor.u32 %v2068, %v2071
  %v2074 = vshrl.u32 %v2049, 16
  %v2076 = vrot.slane %v2074, 1
  %v2077 = vshll.u32 %v2049, 16
  %v2079 = vrot.slane %v2077, 2
  %v2080 = vor.u32 %v2076, %v2079
  %v2081 = vsel %vm2064, %v2072, %v2080
  %v2083 = vshrl.u32 %v2050, 16
  %v2085 = vrot.slane %v2083, 1
  %v2086 = vshll.u32 %v2050, 16
  %v2088 = vrot.slane %v2086, 2
  %v2089 = vor.u32 %v2085, %v2088
  %v2090 = vsel %vm2064, %v2080, %v2089
  %v2092 = vshrl.u32 %v2051, 16
  %v2094 = vrot.slane %v2092, 1
  %v2095 = vshll.u32 %v2051, 16
  %v2097 = vrot.slane %v2095, 2
  %v2098 = vor.u32 %v2094, %v2097
  %v2099 = vsel %vm2064, %v2089, %v2098
  %v2101 = vshrl.u32 %v2052, 16
  %v2103 = vrot.slane %v2101, 1
  %v2104 = vshll.u32 %v2052, 16
  %v2106 = vrot.slane %v2104, 2
  %v2107 = vor.u32 %v2103, %v2106
  %v2108 = vsel %vm2064, %v2098, %v2107
  %v2110 = vshrl.u32 %v2053, 16
  %v2112 = vrot.slane %v2110, 1
  %v2113 = vshll.u32 %v2053, 16
  %v2115 = vrot.slane %v2113, 2
  %v2116 = vor.u32 %v2112, %v2115
  %v2117 = vsel %vm2064, %v2107, %v2116
  %v2119 = vshrl.u32 %v2054, 16
  %v2121 = vrot.slane %v2119, 1
  %v2122 = vshll.u32 %v2054, 16
  %v2124 = vrot.slane %v2122, 2
  %v2125 = vor.u32 %v2121, %v2124
  %v2126 = vsel %vm2064, %v2116, %v2125
  %v2128 = vshrl.u32 %v2055, 16
  %v2130 = vrot.slane %v2128, 1
  %v2131 = vshll.u32 %v2055, 16
  %v2133 = vrot.slane %v2131, 2
  %v2134 = vor.u32 %v2130, %v2133
  %v2135 = vsel %vm2064, %v2125, %v2134
  %v2137 = vshrl.u32 %v2056, 16
  %v2139 = vrot.slane %v2137, 1
  %v2140 = vshll.u32 %v2056, 16
  %v2142 = vrot.slane %v2140, 2
  %v2143 = vor.u32 %v2139, %v2142
  %v2144 = vsel %vm2064, %v2134, %v2143
  %v2146 = vshrl.u32 %v2057, 16
  %v2148 = vrot.slane %v2146, 1
  %v2149 = vshll.u32 %v2057, 16
  %v2151 = vrot.slane %v2149, 2
  %v2152 = vor.u32 %v2148, %v2151
  %v2153 = vsel %vm2064, %v2143, %v2152
  %v2155 = vshrl.u32 %v2058, 16
  %v2157 = vrot.slane %v2155, 1
  %v2158 = vshll.u32 %v2058, 16
  %v2160 = vrot.slane %v2158, 2
  %v2161 = vor.u32 %v2157, %v2160
  %v2162 = vsel %vm2064, %v2152, %v2161
  %v2164 = vshrl.u32 %v2059, 16
  %v2166 = vrot.slane %v2164, 1
  %v2167 = vshll.u32 %v2059, 16
  %v2169 = vrot.slane %v2167, 2
  %v2170 = vor.u32 %v2166, %v2169
  %v2171 = vsel %vm2064, %v2161, %v2170
  %v2173 = vshrl.u32 %v2060, 16
  %v2175 = vrot.slane %v2173, 1
  %v2176 = vshll.u32 %v2060, 16
  %v2178 = vrot.slane %v2176, 2
  %v2179 = vor.u32 %v2175, %v2178
  %v2180 = vsel %vm2064, %v2170, %v2179
  %v2182 = vshrl.u32 %v2061, 16
  %v2184 = vrot.slane %v2182, 1
  %v2185 = vshll.u32 %v2061, 16
  %v2187 = vrot.slane %v2185, 2
  %v2188 = vor.u32 %v2184, %v2187
  %v2189 = vsel %vm2064, %v2179, %v2188
  %v2191 = vshrl.u32 %v2062, 16
  %v2193 = vrot.slane %v2191, 1
  %v2194 = vshll.u32 %v2062, 16
  %v2196 = vrot.slane %v2194, 2
  %v2197 = vor.u32 %v2193, %v2196
  %v2198 = vsel %vm2064, %v2188, %v2197
  %v2200 = vshrl.u32 %v2063, 16
  %v2202 = vrot.slane %v2200, 1
  %v2203 = vshll.u32 %v2063, 16
  %v2205 = vrot.slane %v2203, 2
  %v2206 = vor.u32 %v2202, %v2205
  %v2207 = vsel %vm2064, %v2197, %v2206
  %v2220 = vunpack.c.l.b16 %v1972
  %v2221 = vunpack.c.h.b16 %v1972
  %v2222 = vunpack.c.l.b16 %v1973
  %v2223 = vunpack.c.h.b16 %v1973
  %v2224 = vunpack.c.l.b16 %v1974
  %v2225 = vunpack.c.h.b16 %v1974
  %v2226 = vunpack.c.l.b16 %v1975
  %v2227 = vunpack.c.h.b16 %v1975
  %v2228 = vunpack.c.l.b16 %v1976
  %v2229 = vunpack.c.h.b16 %v1976
  %v2230 = vunpack.c.l.b16 %v1977
  %v2231 = vunpack.c.h.b16 %v1977
  %v2232 = vunpack.c.l.b16 %v1978
  %v2233 = vunpack.c.h.b16 %v1978
  %v2234 = vunpack.c.l.b16 %v1979
  %v2235 = vunpack.c.h.b16 %v1979
  %v2236 = vunpack.c.l.b16 %v1980
  %v2237 = vunpack.c.h.b16 %v1980
  %v2238 = vunpack.c.l.b16 %v1981
  %v2239 = vunpack.c.h.b16 %v1981
  %v2240 = vunpack.c.l.b16 %v1982
  %v2241 = vunpack.c.h.b16 %v1982
  %v2242 = vunpack.c.l.b16 %v1983
  %v2243 = vunpack.c.h.b16 %v1983
  %v2244 = vpack.c.b16 %v2222, %v2220
  %v2245 = vpack.c.b16 %v2223, %v2221
  %v2246 = vpack.c.b16 %v2226, %v2224
  %v2247 = vpack.c.b16 %v2227, %v2225
  %v2248 = vpack.c.b16 %v2230, %v2228
  %v2249 = vpack.c.b16 %v2231, %v2229
  %v2250 = vpack.c.b16 %v2234, %v2232
  %v2251 = vpack.c.b16 %v2235, %v2233
  %v2252 = vpack.c.b16 %v2238, %v2236
  %v2253 = vpack.c.b16 %v2239, %v2237
  %v2254 = vpack.c.b16 %v2242, %v2240
  %v2255 = vpack.c.b16 %v2243, %v2241
  %v2269 = vsel %vm235, %v2081, 0
  %v2272 = vsel %vm235, %v2090, 0
  %v2275 = vsel %vm235, %v2099, 0
  %v2278 = vsel %vm235, %v2108, 0
  %v2281 = vsel %vm235, %v2117, 0
  %v2284 = vsel %vm235, %v2126, 0
  %v2287 = vsel %vm235, %v2135, 0
  %v2290 = vsel %vm235, %v2144, 0
  %v2293 = vsel %vm235, %v2153, 0
  %v2296 = vsel %vm235, %v2162, 0
  %v2299 = vsel %vm235, %v2171, 0
  %v2302 = vsel %vm235, %v2180, 0
  %v2305 = vsel %vm235, %v2189, 0
  %v2308 = vsel %vm235, %v2198, 0
  %v2311 = vsel %vm235, %v2207, 0
  %v2314 = vsel %vm235, %v2206, 0
  %2316 = vmatprep.subr.bf16.mxu0 0
  %2317 = vmatpush1.bf16.msra.mxu0 0
  %2318 = vmatprep.subr.bf16.mxu0 0
  %2319 = vmatpush1.bf16.msra.mxu0 0
  %2320 = vmatprep.subr.bf16.mxu0 %v2255
  %2321 = vmatpush1.bf16.msra.mxu0 %v2254
  %2322 = vmatprep.subr.bf16.mxu0 %v2253
  %2323 = vmatpush1.bf16.msra.mxu0 %v2252
  %2324 = vmatprep.subr.bf16.mxu0 %v2251
  %2325 = vmatpush1.bf16.msra.mxu0 %v2250
  %2326 = vmatprep.subr.bf16.mxu0 %v2249
  %2327 = vmatpush1.bf16.msra.mxu0 %v2248
  %2328 = vmatprep.subr.bf16.mxu0 %v2247
  %2329 = vmatpush1.bf16.msra.mxu0 %v2246
  %2330 = vmatprep.subr.bf16.mxu0 %v2245
  %2331 = vmatpush1.bf16.msra.mxu0 %v2244
  %2332 = vmatprep.subr.bf16.mxu0 0
  %2333 = vmatpush2.bf16.msra.mxu0 0
  %2334 = vmatprep.subr.bf16.mxu0 0
  %2335 = vmatpush2.bf16.msra.mxu0 0
  %2336 = vmatprep.subr.bf16.mxu0 0
  %2337 = vmatpush2.bf16.msra.mxu0 0
  %2338 = vmatprep.subr.bf16.mxu0 0
  %2339 = vmatpush2.bf16.msra.mxu0 0
  %2340 = vmatprep.subr.bf16.mxu0 0
  %2341 = vmatpush2.bf16.msra.mxu0 0
  %2342 = vmatprep.subr.bf16.mxu0 0
  %2343 = vmatpush2.bf16.msra.mxu0 0
  %2344 = vmatprep.subr.bf16.mxu0 0
  %2345 = vmatpush2.bf16.msra.mxu0 0
  %2346 = vmatprep.subr.bf16.mxu0 0
  %2347 = vmatpush2.bf16.msra.mxu0 0
  %2348 = vmatprep.mubr.bf16.mxu0 0
  %2349 = vmatmul.mubr.bf16.gmra.mxu0 %v2269
  %v2350 = vpop.f32.mrf.mxu0
  %v2351 = vadd.f32 0.0, %v2350
  %v2352 = vpop.f32.mrf.mxu0
  %v2353 = vadd.f32 0.0, %v2352
  %v2354 = vpop.f32.mrf.mxu0
  %v2355 = vadd.f32 0.0, %v2354
  %v2356 = vpop.f32.mrf.mxu0
  %v2357 = vadd.f32 0.0, %v2356
  %2358 = vmatprep.mubr.bf16.mxu0 0
  %2359 = vmatmul.mubr.bf16.gmra.mxu0 %v2272
  %v2360 = vpop.f32.mrf.mxu0
  %v2361 = vadd.f32 0.0, %v2360
  %v2362 = vpop.f32.mrf.mxu0
  %v2363 = vadd.f32 0.0, %v2362
  %v2364 = vpop.f32.mrf.mxu0
  %v2365 = vadd.f32 0.0, %v2364
  %v2366 = vpop.f32.mrf.mxu0
  %v2367 = vadd.f32 0.0, %v2366
  %2368 = vmatprep.mubr.bf16.mxu0 0
  %2369 = vmatmul.mubr.bf16.gmra.mxu0 %v2275
  %v2370 = vpop.f32.mrf.mxu0
  %v2371 = vadd.f32 0.0, %v2370
  %v2372 = vpop.f32.mrf.mxu0
  %v2373 = vadd.f32 0.0, %v2372
  %v2374 = vpop.f32.mrf.mxu0
  %v2375 = vadd.f32 0.0, %v2374
  %v2376 = vpop.f32.mrf.mxu0
  %v2377 = vadd.f32 0.0, %v2376
  %2378 = vmatprep.mubr.bf16.mxu0 0
  %2379 = vmatmul.mubr.bf16.gmra.mxu0 %v2278
  %v2380 = vpop.f32.mrf.mxu0
  %v2381 = vadd.f32 0.0, %v2380
  %v2382 = vpop.f32.mrf.mxu0
  %v2383 = vadd.f32 0.0, %v2382
  %v2384 = vpop.f32.mrf.mxu0
  %v2385 = vadd.f32 0.0, %v2384
  %v2386 = vpop.f32.mrf.mxu0
  %v2387 = vadd.f32 0.0, %v2386
  %2388 = vmatprep.mubr.bf16.mxu0 0
  %2389 = vmatmul.mubr.bf16.gmra.mxu0 %v2281
  %v2390 = vpop.f32.mrf.mxu0
  %v2391 = vadd.f32 0.0, %v2390
  %v2392 = vpop.f32.mrf.mxu0
  %v2393 = vadd.f32 0.0, %v2392
  %v2394 = vpop.f32.mrf.mxu0
  %v2395 = vadd.f32 0.0, %v2394
  %v2396 = vpop.f32.mrf.mxu0
  %v2397 = vadd.f32 0.0, %v2396
  %2398 = vmatprep.mubr.bf16.mxu0 0
  %2399 = vmatmul.mubr.bf16.gmra.mxu0 %v2284
  %v2400 = vpop.f32.mrf.mxu0
  %v2401 = vadd.f32 0.0, %v2400
  %v2402 = vpop.f32.mrf.mxu0
  %v2403 = vadd.f32 0.0, %v2402
  %v2404 = vpop.f32.mrf.mxu0
  %v2405 = vadd.f32 0.0, %v2404
  %v2406 = vpop.f32.mrf.mxu0
  %v2407 = vadd.f32 0.0, %v2406
  %2408 = vmatprep.mubr.bf16.mxu0 0
  %2409 = vmatmul.mubr.bf16.gmra.mxu0 %v2287
  %v2410 = vpop.f32.mrf.mxu0
  %v2411 = vadd.f32 0.0, %v2410
  %v2412 = vpop.f32.mrf.mxu0
  %v2413 = vadd.f32 0.0, %v2412
  %v2414 = vpop.f32.mrf.mxu0
  %v2415 = vadd.f32 0.0, %v2414
  %v2416 = vpop.f32.mrf.mxu0
  %v2417 = vadd.f32 0.0, %v2416
  %2418 = vmatprep.mubr.bf16.mxu0 0
  %2419 = vmatmul.mubr.bf16.gmra.mxu0 %v2290
  %v2420 = vpop.f32.mrf.mxu0
  %v2421 = vadd.f32 0.0, %v2420
  %v2422 = vpop.f32.mrf.mxu0
  %v2423 = vadd.f32 0.0, %v2422
  %v2424 = vpop.f32.mrf.mxu0
  %v2425 = vadd.f32 0.0, %v2424
  %v2426 = vpop.f32.mrf.mxu0
  %v2427 = vadd.f32 0.0, %v2426
  %2428 = vmatprep.mubr.bf16.mxu0 0
  %2429 = vmatmul.mubr.bf16.gmra.mxu0 %v2293
  %v2430 = vpop.f32.mrf.mxu0
  %v2431 = vadd.f32 0.0, %v2430
  %v2432 = vpop.f32.mrf.mxu0
  %v2433 = vadd.f32 0.0, %v2432
  %v2434 = vpop.f32.mrf.mxu0
  %v2435 = vadd.f32 0.0, %v2434
  %v2436 = vpop.f32.mrf.mxu0
  %v2437 = vadd.f32 0.0, %v2436
  %2438 = vmatprep.mubr.bf16.mxu0 0
  %2439 = vmatmul.mubr.bf16.gmra.mxu0 %v2296
  %v2440 = vpop.f32.mrf.mxu0
  %v2441 = vadd.f32 0.0, %v2440
  %v2442 = vpop.f32.mrf.mxu0
  %v2443 = vadd.f32 0.0, %v2442
  %v2444 = vpop.f32.mrf.mxu0
  %v2445 = vadd.f32 0.0, %v2444
  %v2446 = vpop.f32.mrf.mxu0
  %v2447 = vadd.f32 0.0, %v2446
  %2448 = vmatprep.mubr.bf16.mxu0 0
  %2449 = vmatmul.mubr.bf16.gmra.mxu0 %v2299
  %v2450 = vpop.f32.mrf.mxu0
  %v2451 = vadd.f32 0.0, %v2450
  %v2452 = vpop.f32.mrf.mxu0
  %v2453 = vadd.f32 0.0, %v2452
  %v2454 = vpop.f32.mrf.mxu0
  %v2455 = vadd.f32 0.0, %v2454
  %v2456 = vpop.f32.mrf.mxu0
  %v2457 = vadd.f32 0.0, %v2456
  %2458 = vmatprep.mubr.bf16.mxu0 0
  %2459 = vmatmul.mubr.bf16.gmra.mxu0 %v2302
  %v2460 = vpop.f32.mrf.mxu0
  %v2461 = vadd.f32 0.0, %v2460
  %v2462 = vpop.f32.mrf.mxu0
  %v2463 = vadd.f32 0.0, %v2462
  %v2464 = vpop.f32.mrf.mxu0
  %v2465 = vadd.f32 0.0, %v2464
  %v2466 = vpop.f32.mrf.mxu0
  %v2467 = vadd.f32 0.0, %v2466
  %2468 = vmatprep.mubr.bf16.mxu0 0
  %2469 = vmatmul.mubr.bf16.gmra.mxu0 %v2305
  %v2470 = vpop.f32.mrf.mxu0
  %v2471 = vadd.f32 0.0, %v2470
  %v2472 = vpop.f32.mrf.mxu0
  %v2473 = vadd.f32 0.0, %v2472
  %v2474 = vpop.f32.mrf.mxu0
  %v2475 = vadd.f32 0.0, %v2474
  %v2476 = vpop.f32.mrf.mxu0
  %v2477 = vadd.f32 0.0, %v2476
  %2478 = vmatprep.mubr.bf16.mxu0 0
  %2479 = vmatmul.mubr.bf16.gmra.mxu0 %v2308
  %v2480 = vpop.f32.mrf.mxu0
  %v2481 = vadd.f32 0.0, %v2480
  %v2482 = vpop.f32.mrf.mxu0
  %v2483 = vadd.f32 0.0, %v2482
  %v2484 = vpop.f32.mrf.mxu0
  %v2485 = vadd.f32 0.0, %v2484
  %v2486 = vpop.f32.mrf.mxu0
  %v2487 = vadd.f32 0.0, %v2486
  %2488 = vmatprep.mubr.bf16.mxu0 0
  %2489 = vmatmul.mubr.bf16.gmra.mxu0 %v2311
  %v2490 = vpop.f32.mrf.mxu0
  %v2491 = vadd.f32 0.0, %v2490
  %v2492 = vpop.f32.mrf.mxu0
  %v2493 = vadd.f32 0.0, %v2492
  %v2494 = vpop.f32.mrf.mxu0
  %v2495 = vadd.f32 0.0, %v2494
  %v2496 = vpop.f32.mrf.mxu0
  %v2497 = vadd.f32 0.0, %v2496
  %2498 = vmatprep.mubr.bf16.mxu0 0
  %2499 = vmatmul.mubr.bf16.gmra.mxu0 %v2314
  %v2500 = vpop.f32.mrf.mxu0
  %v2501 = vadd.f32 0.0, %v2500
  %v2502 = vpop.f32.mrf.mxu0
  %v2503 = vadd.f32 0.0, %v2502
  %v2504 = vpop.f32.mrf.mxu0
  %v2505 = vadd.f32 0.0, %v2504
  %v2506 = vpop.f32.mrf.mxu0
  %v2507 = vadd.f32 0.0, %v2506
  %2508 = vdwg.mxu0
  %v2509 = vld [vmem:[#allocation2] sm:$0xff]
  %v2510 = vld [vmem:[#allocation2 + $0x8] sm:$0xff]
  %v2511 = vld [vmem:[#allocation2 + $0x10] sm:$0xff]
  %v2512 = vld [vmem:[#allocation2 + $0x18] sm:$0xff]
  %v2513 = vld [vmem:[#allocation2 + $0x20] sm:$0xff]
  %v2514 = vld [vmem:[#allocation2 + $0x28] sm:$0xff]
  %v2515 = vld [vmem:[#allocation2 + $0x30] sm:$0xff]
  %v2516 = vld [vmem:[#allocation2 + $0x38] sm:$0xff]
  %v2517 = vld [vmem:[#allocation2 + $0x40] sm:$0xff]
  %v2518 = vld [vmem:[#allocation2 + $0x48] sm:$0xff]
  %v2519 = vld [vmem:[#allocation2 + $0x50] sm:$0xff]
  %v2520 = vld [vmem:[#allocation2 + $0x58] sm:$0xff]
  %v2521 = vld [vmem:[#allocation2 + $0x60] sm:$0xff]
  %v2522 = vld [vmem:[#allocation2 + $0x68] sm:$0xff]
  %v2523 = vld [vmem:[#allocation2 + $0x70] sm:$0xff]
  %v2524 = vld [vmem:[#allocation2 + $0x78] sm:$0xff]
  %v2525 = vld [vmem:[#allocation2 + $0x80] sm:$0xff]
  %v2526 = vld [vmem:[#allocation2 + $0x88] sm:$0xff]
  %v2527 = vld [vmem:[#allocation2 + $0x90] sm:$0xff]
  %v2528 = vld [vmem:[#allocation2 + $0x98] sm:$0xff]
  %v2529 = vld [vmem:[#allocation2 + $0xa0] sm:$0xff]
  %v2530 = vld [vmem:[#allocation2 + $0xa8] sm:$0xff]
  %v2531 = vld [vmem:[#allocation2 + $0xb0] sm:$0xff]
  %v2532 = vld [vmem:[#allocation2 + $0xb8] sm:$0xff]
  %v2533 = vld [vmem:[#allocation2 + $0xc0] sm:$0xff]
  %v2534 = vld [vmem:[#allocation2 + $0xc8] sm:$0xff]
  %v2535 = vld [vmem:[#allocation2 + $0xd0] sm:$0xff]
  %v2536 = vld [vmem:[#allocation2 + $0xd8] sm:$0xff]
  %v2537 = vld [vmem:[#allocation2 + $0xe0] sm:$0xff]
  %v2538 = vld [vmem:[#allocation2 + $0xe8] sm:$0xff]
  %v2539 = vld [vmem:[#allocation2 + $0xf0] sm:$0xff]
  %v2540 = vld [vmem:[#allocation2 + $0xf8] sm:$0xff]
  %v2541 = vld [vmem:[#allocation2 + $0x100] sm:$0xff]
  %v2542 = vld [vmem:[#allocation2 + $0x108] sm:$0xff]
  %v2543 = vld [vmem:[#allocation2 + $0x110] sm:$0xff]
  %v2544 = vld [vmem:[#allocation2 + $0x118] sm:$0xff]
  %v2545 = vld [vmem:[#allocation2 + $0x120] sm:$0xff]
  %v2546 = vld [vmem:[#allocation2 + $0x128] sm:$0xff]
  %v2547 = vld [vmem:[#allocation2 + $0x130] sm:$0xff]
  %v2548 = vld [vmem:[#allocation2 + $0x138] sm:$0xff]
  %v2549 = vld [vmem:[#allocation2 + $0x140] sm:$0xff]
  %v2550 = vld [vmem:[#allocation2 + $0x148] sm:$0xff]
  %v2551 = vld [vmem:[#allocation2 + $0x150] sm:$0xff]
  %v2552 = vld [vmem:[#allocation2 + $0x158] sm:$0xff]
  %v2553 = vld [vmem:[#allocation2 + $0x160] sm:$0xff]
  %v2554 = vld [vmem:[#allocation2 + $0x168] sm:$0xff]
  %v2555 = vld [vmem:[#allocation2 + $0x170] sm:$0xff]
  %v2556 = vld [vmem:[#allocation2 + $0x178] sm:$0xff]
  %v2557 = vld [vmem:[#allocation2 + $0x180] sm:$0xff]
  %v2558 = vld [vmem:[#allocation2 + $0x188] sm:$0xff]
  %v2559 = vld [vmem:[#allocation2 + $0x190] sm:$0xff]
  %v2560 = vld [vmem:[#allocation2 + $0x198] sm:$0xff]
  %v2561 = vld [vmem:[#allocation2 + $0x1a0] sm:$0xff]
  %v2562 = vld [vmem:[#allocation2 + $0x1a8] sm:$0xff]
  %v2563 = vld [vmem:[#allocation2 + $0x1b0] sm:$0xff]
  %v2564 = vld [vmem:[#allocation2 + $0x1b8] sm:$0xff]
  %v2565 = vld [vmem:[#allocation2 + $0x1c0] sm:$0xff]
  %v2566 = vld [vmem:[#allocation2 + $0x1c8] sm:$0xff]
  %v2567 = vld [vmem:[#allocation2 + $0x1d0] sm:$0xff]
  %v2568 = vld [vmem:[#allocation2 + $0x1d8] sm:$0xff]
  %v2569 = vld [vmem:[#allocation2 + $0x1e0] sm:$0xff]
  %v2570 = vld [vmem:[#allocation2 + $0x1e8] sm:$0xff]
  %v2571 = vld [vmem:[#allocation2 + $0x1f0] sm:$0xf]
  %v2572 = vld [vmem:[#allocation2 + $0x1f8] sm:$0xf]
  %v2573 = vadd.f32 %v2509, %v2351
  %v2574 = vadd.f32 %v2510, %v2353
  %v2575 = vadd.f32 %v2511, %v2355
  %v2576 = vadd.f32 %v2512, %v2357
  %v2577 = vadd.f32 %v2513, %v2361
  %v2578 = vadd.f32 %v2514, %v2363
  %v2579 = vadd.f32 %v2515, %v2365
  %v2580 = vadd.f32 %v2516, %v2367
  %v2581 = vadd.f32 %v2517, %v2371
  %v2582 = vadd.f32 %v2518, %v2373
  %v2583 = vadd.f32 %v2519, %v2375
  %v2584 = vadd.f32 %v2520, %v2377
  %v2585 = vadd.f32 %v2521, %v2381
  %v2586 = vadd.f32 %v2522, %v2383
  %v2587 = vadd.f32 %v2523, %v2385
  %v2588 = vadd.f32 %v2524, %v2387
  %v2589 = vadd.f32 %v2525, %v2391
  %v2590 = vadd.f32 %v2526, %v2393
  %v2591 = vadd.f32 %v2527, %v2395
  %v2592 = vadd.f32 %v2528, %v2397
  %v2593 = vadd.f32 %v2529, %v2401
  %v2594 = vadd.f32 %v2530, %v2403
  %v2595 = vadd.f32 %v2531, %v2405
  %v2596 = vadd.f32 %v2532, %v2407
  %v2597 = vadd.f32 %v2533, %v2411
  %v2598 = vadd.f32 %v2534, %v2413
  %v2599 = vadd.f32 %v2535, %v2415
  %v2600 = vadd.f32 %v2536, %v2417
  %v2601 = vadd.f32 %v2537, %v2421
  %v2602 = vadd.f32 %v2538, %v2423
  %v2603 = vadd.f32 %v2539, %v2425
  %v2604 = vadd.f32 %v2540, %v2427
  %v2605 = vadd.f32 %v2541, %v2431
  %v2606 = vadd.f32 %v2542, %v2433
  %v2607 = vadd.f32 %v2543, %v2435
  %v2608 = vadd.f32 %v2544, %v2437
  %v2609 = vadd.f32 %v2545, %v2441
  %v2610 = vadd.f32 %v2546, %v2443
  %v2611 = vadd.f32 %v2547, %v2445
  %v2612 = vadd.f32 %v2548, %v2447
  %v2613 = vadd.f32 %v2549, %v2451
  %v2614 = vadd.f32 %v2550, %v2453
  %v2615 = vadd.f32 %v2551, %v2455
  %v2616 = vadd.f32 %v2552, %v2457
  %v2617 = vadd.f32 %v2553, %v2461
  %v2618 = vadd.f32 %v2554, %v2463
  %v2619 = vadd.f32 %v2555, %v2465
  %v2620 = vadd.f32 %v2556, %v2467
  %v2621 = vadd.f32 %v2557, %v2471
  %v2622 = vadd.f32 %v2558, %v2473
  %v2623 = vadd.f32 %v2559, %v2475
  %v2624 = vadd.f32 %v2560, %v2477
  %v2625 = vadd.f32 %v2561, %v2481
  %v2626 = vadd.f32 %v2562, %v2483
  %v2627 = vadd.f32 %v2563, %v2485
  %v2628 = vadd.f32 %v2564, %v2487
  %v2629 = vadd.f32 %v2565, %v2491
  %v2630 = vadd.f32 %v2566, %v2493
  %v2631 = vadd.f32 %v2567, %v2495
  %v2632 = vadd.f32 %v2568, %v2497
  %v2633 = vadd.f32 %v2569, %v2501
  %v2634 = vadd.f32 %v2570, %v2503
  %v2635 = vadd.f32 %v2571, %v2505
  %v2636 = vadd.f32 %v2572, %v2507
  %2637 = vst [vmem:[#allocation2] sm:$0xff] %v2573
  %2638 = vst.msk [vmem:[#allocation2 + $0x8] sm:$0xff] %vm478, %v2574
  %2639 = vst [vmem:[#allocation2 + $0x10] sm:$0xff] %v2575
  %2640 = vst.msk [vmem:[#allocation2 + $0x18] sm:$0xff] %vm478, %v2576
  %2641 = vst [vmem:[#allocation2 + $0x20] sm:$0xff] %v2577
  %2642 = vst.msk [vmem:[#allocation2 + $0x28] sm:$0xff] %vm478, %v2578
  %2643 = vst [vmem:[#allocation2 + $0x30] sm:$0xff] %v2579
  %2644 = vst.msk [vmem:[#allocation2 + $0x38] sm:$0xff] %vm478, %v2580
  %2645 = vst [vmem:[#allocation2 + $0x40] sm:$0xff] %v2581
  %2646 = vst.msk [vmem:[#allocation2 + $0x48] sm:$0xff] %vm478, %v2582
  %2647 = vst [vmem:[#allocation2 + $0x50] sm:$0xff] %v2583
  %2648 = vst.msk [vmem:[#allocation2 + $0x58] sm:$0xff] %vm478, %v2584
  %2649 = vst [vmem:[#allocation2 + $0x60] sm:$0xff] %v2585
  %2650 = vst.msk [vmem:[#allocation2 + $0x68] sm:$0xff] %vm478, %v2586
  %2651 = vst [vmem:[#allocation2 + $0x70] sm:$0xff] %v2587
  %2652 = vst.msk [vmem:[#allocation2 + $0x78] sm:$0xff] %vm478, %v2588
  %2653 = vst [vmem:[#allocation2 + $0x80] sm:$0xff] %v2589
  %2654 = vst.msk [vmem:[#allocation2 + $0x88] sm:$0xff] %vm478, %v2590
  %2655 = vst [vmem:[#allocation2 + $0x90] sm:$0xff] %v2591
  %2656 = vst.msk [vmem:[#allocation2 + $0x98] sm:$0xff] %vm478, %v2592
  %2657 = vst [vmem:[#allocation2 + $0xa0] sm:$0xff] %v2593
  %2658 = vst.msk [vmem:[#allocation2 + $0xa8] sm:$0xff] %vm478, %v2594
  %2659 = vst [vmem:[#allocation2 + $0xb0] sm:$0xff] %v2595
  %2660 = vst.msk [vmem:[#allocation2 + $0xb8] sm:$0xff] %vm478, %v2596
  %2661 = vst [vmem:[#allocation2 + $0xc0] sm:$0xff] %v2597
  %2662 = vst.msk [vmem:[#allocation2 + $0xc8] sm:$0xff] %vm478, %v2598
  %2663 = vst [vmem:[#allocation2 + $0xd0] sm:$0xff] %v2599
  %2664 = vst.msk [vmem:[#allocation2 + $0xd8] sm:$0xff] %vm478, %v2600
  %2665 = vst [vmem:[#allocation2 + $0xe0] sm:$0xff] %v2601
  %2666 = vst.msk [vmem:[#allocation2 + $0xe8] sm:$0xff] %vm478, %v2602
  %2667 = vst [vmem:[#allocation2 + $0xf0] sm:$0xff] %v2603
  %2668 = vst.msk [vmem:[#allocation2 + $0xf8] sm:$0xff] %vm478, %v2604
  %2669 = vst [vmem:[#allocation2 + $0x100] sm:$0xff] %v2605
  %2670 = vst.msk [vmem:[#allocation2 + $0x108] sm:$0xff] %vm478, %v2606
  %2671 = vst [vmem:[#allocation2 + $0x110] sm:$0xff] %v2607
  %2672 = vst.msk [vmem:[#allocation2 + $0x118] sm:$0xff] %vm478, %v2608
  %2673 = vst [vmem:[#allocation2 + $0x120] sm:$0xff] %v2609
  %2674 = vst.msk [vmem:[#allocation2 + $0x128] sm:$0xff] %vm478, %v2610
  %2675 = vst [vmem:[#allocation2 + $0x130] sm:$0xff] %v2611
  %2676 = vst.msk [vmem:[#allocation2 + $0x138] sm:$0xff] %vm478, %v2612
  %2677 = vst [vmem:[#allocation2 + $0x140] sm:$0xff] %v2613
  %2678 = vst.msk [vmem:[#allocation2 + $0x148] sm:$0xff] %vm478, %v2614
  %2679 = vst [vmem:[#allocation2 + $0x150] sm:$0xff] %v2615
  %2680 = vst.msk [vmem:[#allocation2 + $0x158] sm:$0xff] %vm478, %v2616
  %2681 = vst [vmem:[#allocation2 + $0x160] sm:$0xff] %v2617
  %2682 = vst.msk [vmem:[#allocation2 + $0x168] sm:$0xff] %vm478, %v2618
  %2683 = vst [vmem:[#allocation2 + $0x170] sm:$0xff] %v2619
  %2684 = vst.msk [vmem:[#allocation2 + $0x178] sm:$0xff] %vm478, %v2620
  %2685 = vst [vmem:[#allocation2 + $0x180] sm:$0xff] %v2621
  %2686 = vst.msk [vmem:[#allocation2 + $0x188] sm:$0xff] %vm478, %v2622
  %2687 = vst [vmem:[#allocation2 + $0x190] sm:$0xff] %v2623
  %2688 = vst.msk [vmem:[#allocation2 + $0x198] sm:$0xff] %vm478, %v2624
  %2689 = vst [vmem:[#allocation2 + $0x1a0] sm:$0xff] %v2625
  %2690 = vst.msk [vmem:[#allocation2 + $0x1a8] sm:$0xff] %vm478, %v2626
  %2691 = vst [vmem:[#allocation2 + $0x1b0] sm:$0xff] %v2627
  %2692 = vst.msk [vmem:[#allocation2 + $0x1b8] sm:$0xff] %vm478, %v2628
  %2693 = vst [vmem:[#allocation2 + $0x1c0] sm:$0xff] %v2629
  %2694 = vst.msk [vmem:[#allocation2 + $0x1c8] sm:$0xff] %vm478, %v2630
  %2695 = vst [vmem:[#allocation2 + $0x1d0] sm:$0xff] %v2631
  %2696 = vst.msk [vmem:[#allocation2 + $0x1d8] sm:$0xff] %vm478, %v2632
  %2697 = vst [vmem:[#allocation2 + $0x1e0] sm:$0xff] %v2633
  %2698 = vst.msk [vmem:[#allocation2 + $0x1e8] sm:$0xff] %vm478, %v2634
  %2699 = vst [vmem:[#allocation2 + $0x1f0] sm:$0xf] %v2635
  %2700 = vst.msk [vmem:[#allocation2 + $0x1f8] sm:$0xf] %vm541, %v2636
  %v2701 = vld [vmem:[%s0] sm:$0xc]
  %v2702 = vld [vmem:[%s0 + $0x4] sm:$0xf]
  %v2703 = vld [vmem:[%s0 + $0x8] sm:$0xf]
  %v2704 = vld [vmem:[%s0 + $0xc] sm:$0xf]
  %v2705 = vld [vmem:[%s0 + $0x10] sm:$0xf]
  %v2706 = vld [vmem:[%s0 + $0x14] sm:$0xf]
  %v2707 = vld [vmem:[%s0 + $0x18] sm:$0xf]
  %v2708 = vld [vmem:[%s0 + $0x1c] sm:$0xf]
  %v2709 = vld [vmem:[%s0 + $0x20] sm:$0xf]
  %v2710 = vld [vmem:[%s0 + $0x24] sm:$0xf]
  %v2711 = vld [vmem:[%s0 + $0x28] sm:$0xf]
  %v2712 = vld [vmem:[%s0 + $0x2c] sm:$0xf]
  %v2713 = vld [vmem:[%s0 + $0x30] sm:$0xf]
  %v2714 = vld [vmem:[%s0 + $0x34] sm:$0xf]
  %v2715 = vld [vmem:[%s0 + $0x38] sm:$0xf]
  %v2716 = vld [vmem:[%s0 + $0x3c] sm:$0xf]
  %v2717 = vld [vmem:[%s0 + $0x40] sm:$0xf]
  %v2718 = vld [vmem:[%s0 + $0x44] sm:$0xf]
  %v2719 = vld [vmem:[%s0 + $0x48] sm:$0xf]
  %v2720 = vld [vmem:[%s0 + $0x4c] sm:$0xf]
  %v2721 = vld [vmem:[%s0 + $0x50] sm:$0xf]
  %v2722 = vld [vmem:[%s0 + $0x54] sm:$0xf]
  %v2723 = vld [vmem:[%s0 + $0x58] sm:$0xf]
  %v2724 = vld [vmem:[%s0 + $0x5c] sm:$0xf]
  %v2725 = vld [vmem:[%s0 + $0x60] sm:$0xf]
  %v2726 = vld [vmem:[%s0 + $0x64] sm:$0xf]
  %v2727 = vld [vmem:[%s0 + $0x68] sm:$0xf]
  %v2728 = vld [vmem:[%s0 + $0x6c] sm:$0xf]
  %v2729 = vld [vmem:[%s0 + $0x70] sm:$0xf]
  %v2730 = vld [vmem:[%s0 + $0x74] sm:$0xf]
  %v2731 = vld [vmem:[%s0 + $0x78] sm:$0xf]
  %v2732 = vld [vmem:[%s0 + $0x7c] sm:$0xf]
  %s2733 = scalar_lea.vmem %s1, 384
  %v2734 = vld [vmem:[%s2733] sm:$0xff]
  %v2735 = vld [vmem:[%s2733 + $0x8] sm:$0xff]
  %v2736 = vld [vmem:[%s2733 + $0x10] sm:$0xff]
  %v2737 = vld [vmem:[%s2733 + $0x18] sm:$0xff]
  %v2738 = vld [vmem:[%s2733 + $0x20] sm:$0xff]
  %v2739 = vld [vmem:[%s2733 + $0x28] sm:$0xff]
  %v2740 = vld [vmem:[%s2733 + $0x30] sm:$0xff]
  %v2741 = vld [vmem:[%s2733 + $0x38] sm:$0xff]
  %v2742 = vld [vmem:[%s2733 + $0x40] sm:$0xff]
  %v2743 = vld [vmem:[%s2733 + $0x48] sm:$0xff]
  %v2744 = vld [vmem:[%s2733 + $0x50] sm:$0xff]
  %v2745 = vld [vmem:[%s2733 + $0x58] sm:$0xff]
  %v2778 = vunpack.c.l.b16 %v2701
  %v2779 = vunpack.c.l.b16 %v2702
  %v2780 = vunpack.c.l.b16 %v2703
  %v2781 = vunpack.c.l.b16 %v2704
  %v2782 = vunpack.c.l.b16 %v2705
  %v2783 = vunpack.c.l.b16 %v2706
  %v2784 = vunpack.c.l.b16 %v2707
  %v2785 = vunpack.c.l.b16 %v2708
  %v2786 = vunpack.c.l.b16 %v2709
  %v2787 = vunpack.c.l.b16 %v2710
  %v2788 = vunpack.c.l.b16 %v2711
  %v2789 = vunpack.c.l.b16 %v2712
  %v2790 = vunpack.c.l.b16 %v2713
  %v2791 = vunpack.c.l.b16 %v2714
  %v2792 = vunpack.c.l.b16 %v2715
  %v2793 = vunpack.c.l.b16 %v2716
  %v2794 = vunpack.c.l.b16 %v2717
  %v2795 = vunpack.c.l.b16 %v2718
  %v2796 = vunpack.c.l.b16 %v2719
  %v2797 = vunpack.c.l.b16 %v2720
  %v2798 = vunpack.c.l.b16 %v2721
  %v2799 = vunpack.c.l.b16 %v2722
  %v2800 = vunpack.c.l.b16 %v2723
  %v2801 = vunpack.c.l.b16 %v2724
  %v2802 = vunpack.c.l.b16 %v2725
  %v2803 = vunpack.c.l.b16 %v2726
  %v2804 = vunpack.c.l.b16 %v2727
  %v2805 = vunpack.c.l.b16 %v2728
  %v2806 = vunpack.c.l.b16 %v2729
  %v2807 = vunpack.c.l.b16 %v2730
  %v2808 = vunpack.c.l.b16 %v2731
  %v2809 = vunpack.c.l.b16 %v2732
  %v2810 = vpack.c.b16 %v2779, %v2778
  %v2811 = vpack.c.b16 %v2781, %v2780
  %v2812 = vpack.c.b16 %v2783, %v2782
  %v2813 = vpack.c.b16 %v2785, %v2784
  %v2814 = vpack.c.b16 %v2787, %v2786
  %v2815 = vpack.c.b16 %v2789, %v2788
  %v2816 = vpack.c.b16 %v2791, %v2790
  %v2817 = vpack.c.b16 %v2793, %v2792
  %v2818 = vpack.c.b16 %v2795, %v2794
  %v2819 = vpack.c.b16 %v2797, %v2796
  %v2820 = vpack.c.b16 %v2799, %v2798
  %v2821 = vpack.c.b16 %v2801, %v2800
  %v2822 = vpack.c.b16 %v2803, %v2802
  %v2823 = vpack.c.b16 %v2805, %v2804
  %v2824 = vpack.c.b16 %v2807, %v2806
  %v2825 = vpack.c.b16 %v2809, %v2808
  %vm2826 = vcmask 1045504
  %v2827 = vrot.slane %v2810, 2
  %v2828 = vrot.slane %v2811, 2
  %v2829 = vsel %vm2826, %v2827, %v2828
  %v2830 = vrot.slane %v2812, 2
  %v2831 = vsel %vm2826, %v2828, %v2830
  %v2832 = vrot.slane %v2813, 2
  %v2833 = vsel %vm2826, %v2830, %v2832
  %v2834 = vrot.slane %v2814, 2
  %v2835 = vsel %vm2826, %v2832, %v2834
  %v2836 = vrot.slane %v2815, 2
  %v2837 = vsel %vm2826, %v2834, %v2836
  %v2838 = vrot.slane %v2816, 2
  %v2839 = vsel %vm2826, %v2836, %v2838
  %v2840 = vrot.slane %v2817, 2
  %v2841 = vsel %vm2826, %v2838, %v2840
  %v2842 = vrot.slane %v2818, 2
  %v2843 = vsel %vm2826, %v2840, %v2842
  %v2844 = vrot.slane %v2819, 2
  %v2845 = vsel %vm2826, %v2842, %v2844
  %v2846 = vrot.slane %v2820, 2
  %v2847 = vsel %vm2826, %v2844, %v2846
  %v2848 = vrot.slane %v2821, 2
  %v2849 = vsel %vm2826, %v2846, %v2848
  %v2850 = vrot.slane %v2822, 2
  %v2851 = vsel %vm2826, %v2848, %v2850
  %v2852 = vrot.slane %v2823, 2
  %v2853 = vsel %vm2826, %v2850, %v2852
  %v2854 = vrot.slane %v2824, 2
  %v2855 = vsel %vm2826, %v2852, %v2854
  %v2856 = vrot.slane %v2825, 2
  %v2857 = vsel %vm2826, %v2854, %v2856
  %v2870 = vunpack.c.l.b16 %v2734
  %v2871 = vunpack.c.h.b16 %v2734
  %v2872 = vunpack.c.l.b16 %v2735
  %v2873 = vunpack.c.h.b16 %v2735
  %v2874 = vunpack.c.l.b16 %v2736
  %v2875 = vunpack.c.h.b16 %v2736
  %v2876 = vunpack.c.l.b16 %v2737
  %v2877 = vunpack.c.h.b16 %v2737
  %v2878 = vunpack.c.l.b16 %v2738
  %v2879 = vunpack.c.h.b16 %v2738
  %v2880 = vunpack.c.l.b16 %v2739
  %v2881 = vunpack.c.h.b16 %v2739
  %v2882 = vunpack.c.l.b16 %v2740
  %v2883 = vunpack.c.h.b16 %v2740
  %v2884 = vunpack.c.l.b16 %v2741
  %v2885 = vunpack.c.h.b16 %v2741
  %v2886 = vunpack.c.l.b16 %v2742
  %v2887 = vunpack.c.h.b16 %v2742
  %v2888 = vunpack.c.l.b16 %v2743
  %v2889 = vunpack.c.h.b16 %v2743
  %v2890 = vunpack.c.l.b16 %v2744
  %v2891 = vunpack.c.h.b16 %v2744
  %v2892 = vunpack.c.l.b16 %v2745
  %v2893 = vunpack.c.h.b16 %v2745
  %v2894 = vpack.c.b16 %v2872, %v2870
  %v2895 = vpack.c.b16 %v2873, %v2871
  %v2896 = vpack.c.b16 %v2876, %v2874
  %v2897 = vpack.c.b16 %v2877, %v2875
  %v2898 = vpack.c.b16 %v2880, %v2878
  %v2899 = vpack.c.b16 %v2881, %v2879
  %v2900 = vpack.c.b16 %v2884, %v2882
  %v2901 = vpack.c.b16 %v2885, %v2883
  %v2902 = vpack.c.b16 %v2888, %v2886
  %v2903 = vpack.c.b16 %v2889, %v2887
  %v2904 = vpack.c.b16 %v2892, %v2890
  %v2905 = vpack.c.b16 %v2893, %v2891
  %v2919 = vsel %vm235, %v2829, 0
  %v2922 = vsel %vm235, %v2831, 0
  %v2925 = vsel %vm235, %v2833, 0
  %v2928 = vsel %vm235, %v2835, 0
  %v2931 = vsel %vm235, %v2837, 0
  %v2934 = vsel %vm235, %v2839, 0
  %v2937 = vsel %vm235, %v2841, 0
  %v2940 = vsel %vm235, %v2843, 0
  %v2943 = vsel %vm235, %v2845, 0
  %v2946 = vsel %vm235, %v2847, 0
  %v2949 = vsel %vm235, %v2849, 0
  %v2952 = vsel %vm235, %v2851, 0
  %v2955 = vsel %vm235, %v2853, 0
  %v2958 = vsel %vm235, %v2855, 0
  %v2961 = vsel %vm235, %v2857, 0
  %v2964 = vsel %vm235, %v2856, 0
  %2966 = vmatprep.subr.bf16.mxu0 0
  %2967 = vmatpush1.bf16.msra.mxu0 0
  %2968 = vmatprep.subr.bf16.mxu0 0
  %2969 = vmatpush1.bf16.msra.mxu0 0
  %2970 = vmatprep.subr.bf16.mxu0 %v2905
  %2971 = vmatpush1.bf16.msra.mxu0 %v2904
  %2972 = vmatprep.subr.bf16.mxu0 %v2903
  %2973 = vmatpush1.bf16.msra.mxu0 %v2902
  %2974 = vmatprep.subr.bf16.mxu0 %v2901
  %2975 = vmatpush1.bf16.msra.mxu0 %v2900
  %2976 = vmatprep.subr.bf16.mxu0 %v2899
  %2977 = vmatpush1.bf16.msra.mxu0 %v2898
  %2978 = vmatprep.subr.bf16.mxu0 %v2897
  %2979 = vmatpush1.bf16.msra.mxu0 %v2896
  %2980 = vmatprep.subr.bf16.mxu0 %v2895
  %2981 = vmatpush1.bf16.msra.mxu0 %v2894
  %2982 = vmatprep.subr.bf16.mxu0 0
  %2983 = vmatpush2.bf16.msra.mxu0 0
  %2984 = vmatprep.subr.bf16.mxu0 0
  %2985 = vmatpush2.bf16.msra.mxu0 0
  %2986 = vmatprep.subr.bf16.mxu0 0
  %2987 = vmatpush2.bf16.msra.mxu0 0
  %2988 = vmatprep.subr.bf16.mxu0 0
  %2989 = vmatpush2.bf16.msra.mxu0 0
  %2990 = vmatprep.subr.bf16.mxu0 0
  %2991 = vmatpush2.bf16.msra.mxu0 0
  %2992 = vmatprep.subr.bf16.mxu0 0
  %2993 = vmatpush2.bf16.msra.mxu0 0
  %2994 = vmatprep.subr.bf16.mxu0 0
  %2995 = vmatpush2.bf16.msra.mxu0 0
  %2996 = vmatprep.subr.bf16.mxu0 0
  %2997 = vmatpush2.bf16.msra.mxu0 0
  %2998 = vmatprep.mubr.bf16.mxu0 0
  %2999 = vmatmul.mubr.bf16.gmra.mxu0 %v2919
  %v3000 = vpop.f32.mrf.mxu0
  %v3001 = vadd.f32 0.0, %v3000
  %v3002 = vpop.f32.mrf.mxu0
  %v3003 = vadd.f32 0.0, %v3002
  %v3004 = vpop.f32.mrf.mxu0
  %v3005 = vadd.f32 0.0, %v3004
  %v3006 = vpop.f32.mrf.mxu0
  %v3007 = vadd.f32 0.0, %v3006
  %3008 = vmatprep.mubr.bf16.mxu0 0
  %3009 = vmatmul.mubr.bf16.gmra.mxu0 %v2922
  %v3010 = vpop.f32.mrf.mxu0
  %v3011 = vadd.f32 0.0, %v3010
  %v3012 = vpop.f32.mrf.mxu0
  %v3013 = vadd.f32 0.0, %v3012
  %v3014 = vpop.f32.mrf.mxu0
  %v3015 = vadd.f32 0.0, %v3014
  %v3016 = vpop.f32.mrf.mxu0
  %v3017 = vadd.f32 0.0, %v3016
  %3018 = vmatprep.mubr.bf16.mxu0 0
  %3019 = vmatmul.mubr.bf16.gmra.mxu0 %v2925
  %v3020 = vpop.f32.mrf.mxu0
  %v3021 = vadd.f32 0.0, %v3020
  %v3022 = vpop.f32.mrf.mxu0
  %v3023 = vadd.f32 0.0, %v3022
  %v3024 = vpop.f32.mrf.mxu0
  %v3025 = vadd.f32 0.0, %v3024
  %v3026 = vpop.f32.mrf.mxu0
  %v3027 = vadd.f32 0.0, %v3026
  %3028 = vmatprep.mubr.bf16.mxu0 0
  %3029 = vmatmul.mubr.bf16.gmra.mxu0 %v2928
  %v3030 = vpop.f32.mrf.mxu0
  %v3031 = vadd.f32 0.0, %v3030
  %v3032 = vpop.f32.mrf.mxu0
  %v3033 = vadd.f32 0.0, %v3032
  %v3034 = vpop.f32.mrf.mxu0
  %v3035 = vadd.f32 0.0, %v3034
  %v3036 = vpop.f32.mrf.mxu0
  %v3037 = vadd.f32 0.0, %v3036
  %3038 = vmatprep.mubr.bf16.mxu0 0
  %3039 = vmatmul.mubr.bf16.gmra.mxu0 %v2931
  %v3040 = vpop.f32.mrf.mxu0
  %v3041 = vadd.f32 0.0, %v3040
  %v3042 = vpop.f32.mrf.mxu0
  %v3043 = vadd.f32 0.0, %v3042
  %v3044 = vpop.f32.mrf.mxu0
  %v3045 = vadd.f32 0.0, %v3044
  %v3046 = vpop.f32.mrf.mxu0
  %v3047 = vadd.f32 0.0, %v3046
  %3048 = vmatprep.mubr.bf16.mxu0 0
  %3049 = vmatmul.mubr.bf16.gmra.mxu0 %v2934
  %v3050 = vpop.f32.mrf.mxu0
  %v3051 = vadd.f32 0.0, %v3050
  %v3052 = vpop.f32.mrf.mxu0
  %v3053 = vadd.f32 0.0, %v3052
  %v3054 = vpop.f32.mrf.mxu0
  %v3055 = vadd.f32 0.0, %v3054
  %v3056 = vpop.f32.mrf.mxu0
  %v3057 = vadd.f32 0.0, %v3056
  %3058 = vmatprep.mubr.bf16.mxu0 0
  %3059 = vmatmul.mubr.bf16.gmra.mxu0 %v2937
  %v3060 = vpop.f32.mrf.mxu0
  %v3061 = vadd.f32 0.0, %v3060
  %v3062 = vpop.f32.mrf.mxu0
  %v3063 = vadd.f32 0.0, %v3062
  %v3064 = vpop.f32.mrf.mxu0
  %v3065 = vadd.f32 0.0, %v3064
  %v3066 = vpop.f32.mrf.mxu0
  %v3067 = vadd.f32 0.0, %v3066
  %3068 = vmatprep.mubr.bf16.mxu0 0
  %3069 = vmatmul.mubr.bf16.gmra.mxu0 %v2940
  %v3070 = vpop.f32.mrf.mxu0
  %v3071 = vadd.f32 0.0, %v3070
  %v3072 = vpop.f32.mrf.mxu0
  %v3073 = vadd.f32 0.0, %v3072
  %v3074 = vpop.f32.mrf.mxu0
  %v3075 = vadd.f32 0.0, %v3074
  %v3076 = vpop.f32.mrf.mxu0
  %v3077 = vadd.f32 0.0, %v3076
  %3078 = vmatprep.mubr.bf16.mxu0 0
  %3079 = vmatmul.mubr.bf16.gmra.mxu0 %v2943
  %v3080 = vpop.f32.mrf.mxu0
  %v3081 = vadd.f32 0.0, %v3080
  %v3082 = vpop.f32.mrf.mxu0
  %v3083 = vadd.f32 0.0, %v3082
  %v3084 = vpop.f32.mrf.mxu0
  %v3085 = vadd.f32 0.0, %v3084
  %v3086 = vpop.f32.mrf.mxu0
  %v3087 = vadd.f32 0.0, %v3086
  %3088 = vmatprep.mubr.bf16.mxu0 0
  %3089 = vmatmul.mubr.bf16.gmra.mxu0 %v2946
  %v3090 = vpop.f32.mrf.mxu0
  %v3091 = vadd.f32 0.0, %v3090
  %v3092 = vpop.f32.mrf.mxu0
  %v3093 = vadd.f32 0.0, %v3092
  %v3094 = vpop.f32.mrf.mxu0
  %v3095 = vadd.f32 0.0, %v3094
  %v3096 = vpop.f32.mrf.mxu0
  %v3097 = vadd.f32 0.0, %v3096
  %3098 = vmatprep.mubr.bf16.mxu0 0
  %3099 = vmatmul.mubr.bf16.gmra.mxu0 %v2949
  %v3100 = vpop.f32.mrf.mxu0
  %v3101 = vadd.f32 0.0, %v3100
  %v3102 = vpop.f32.mrf.mxu0
  %v3103 = vadd.f32 0.0, %v3102
  %v3104 = vpop.f32.mrf.mxu0
  %v3105 = vadd.f32 0.0, %v3104
  %v3106 = vpop.f32.mrf.mxu0
  %v3107 = vadd.f32 0.0, %v3106
  %3108 = vmatprep.mubr.bf16.mxu0 0
  %3109 = vmatmul.mubr.bf16.gmra.mxu0 %v2952
  %v3110 = vpop.f32.mrf.mxu0
  %v3111 = vadd.f32 0.0, %v3110
  %v3112 = vpop.f32.mrf.mxu0
  %v3113 = vadd.f32 0.0, %v3112
  %v3114 = vpop.f32.mrf.mxu0
  %v3115 = vadd.f32 0.0, %v3114
  %v3116 = vpop.f32.mrf.mxu0
  %v3117 = vadd.f32 0.0, %v3116
  %3118 = vmatprep.mubr.bf16.mxu0 0
  %3119 = vmatmul.mubr.bf16.gmra.mxu0 %v2955
  %v3120 = vpop.f32.mrf.mxu0
  %v3121 = vadd.f32 0.0, %v3120
  %v3122 = vpop.f32.mrf.mxu0
  %v3123 = vadd.f32 0.0, %v3122
  %v3124 = vpop.f32.mrf.mxu0
  %v3125 = vadd.f32 0.0, %v3124
  %v3126 = vpop.f32.mrf.mxu0
  %v3127 = vadd.f32 0.0, %v3126
  %3128 = vmatprep.mubr.bf16.mxu0 0
  %3129 = vmatmul.mubr.bf16.gmra.mxu0 %v2958
  %v3130 = vpop.f32.mrf.mxu0
  %v3131 = vadd.f32 0.0, %v3130
  %v3132 = vpop.f32.mrf.mxu0
  %v3133 = vadd.f32 0.0, %v3132
  %v3134 = vpop.f32.mrf.mxu0
  %v3135 = vadd.f32 0.0, %v3134
  %v3136 = vpop.f32.mrf.mxu0
  %v3137 = vadd.f32 0.0, %v3136
  %3138 = vmatprep.mubr.bf16.mxu0 0
  %3139 = vmatmul.mubr.bf16.gmra.mxu0 %v2961
  %v3140 = vpop.f32.mrf.mxu0
  %v3141 = vadd.f32 0.0, %v3140
  %v3142 = vpop.f32.mrf.mxu0
  %v3143 = vadd.f32 0.0, %v3142
  %v3144 = vpop.f32.mrf.mxu0
  %v3145 = vadd.f32 0.0, %v3144
  %v3146 = vpop.f32.mrf.mxu0
  %v3147 = vadd.f32 0.0, %v3146
  %3148 = vmatprep.mubr.bf16.mxu0 0
  %3149 = vmatmul.mubr.bf16.gmra.mxu0 %v2964
  %v3150 = vpop.f32.mrf.mxu0
  %v3151 = vadd.f32 0.0, %v3150
  %v3152 = vpop.f32.mrf.mxu0
  %v3153 = vadd.f32 0.0, %v3152
  %v3154 = vpop.f32.mrf.mxu0
  %v3155 = vadd.f32 0.0, %v3154
  %v3156 = vpop.f32.mrf.mxu0
  %v3157 = vadd.f32 0.0, %v3156
  %3158 = vdwg.mxu0
  %v3159 = vld [vmem:[#allocation2] sm:$0xff]
  %v3160 = vld [vmem:[#allocation2 + $0x8] sm:$0xff]
  %v3161 = vld [vmem:[#allocation2 + $0x10] sm:$0xff]
  %v3162 = vld [vmem:[#allocation2 + $0x18] sm:$0xff]
  %v3163 = vld [vmem:[#allocation2 + $0x20] sm:$0xff]
  %v3164 = vld [vmem:[#allocation2 + $0x28] sm:$0xff]
  %v3165 = vld [vmem:[#allocation2 + $0x30] sm:$0xff]
  %v3166 = vld [vmem:[#allocation2 + $0x38] sm:$0xff]
  %v3167 = vld [vmem:[#allocation2 + $0x40] sm:$0xff]
  %v3168 = vld [vmem:[#allocation2 + $0x48] sm:$0xff]
  %v3169 = vld [vmem:[#allocation2 + $0x50] sm:$0xff]
  %v3170 = vld [vmem:[#allocation2 + $0x58] sm:$0xff]
  %v3171 = vld [vmem:[#allocation2 + $0x60] sm:$0xff]
  %v3172 = vld [vmem:[#allocation2 + $0x68] sm:$0xff]
  %v3173 = vld [vmem:[#allocation2 + $0x70] sm:$0xff]
  %v3174 = vld [vmem:[#allocation2 + $0x78] sm:$0xff]
  %v3175 = vld [vmem:[#allocation2 + $0x80] sm:$0xff]
  %v3176 = vld [vmem:[#allocation2 + $0x88] sm:$0xff]
  %v3177 = vld [vmem:[#allocation2 + $0x90] sm:$0xff]
  %v3178 = vld [vmem:[#allocation2 + $0x98] sm:$0xff]
  %v3179 = vld [vmem:[#allocation2 + $0xa0] sm:$0xff]
  %v3180 = vld [vmem:[#allocation2 + $0xa8] sm:$0xff]
  %v3181 = vld [vmem:[#allocation2 + $0xb0] sm:$0xff]
  %v3182 = vld [vmem:[#allocation2 + $0xb8] sm:$0xff]
  %v3183 = vld [vmem:[#allocation2 + $0xc0] sm:$0xff]
  %v3184 = vld [vmem:[#allocation2 + $0xc8] sm:$0xff]
  %v3185 = vld [vmem:[#allocation2 + $0xd0] sm:$0xff]
  %v3186 = vld [vmem:[#allocation2 + $0xd8] sm:$0xff]
  %v3187 = vld [vmem:[#allocation2 + $0xe0] sm:$0xff]
  %v3188 = vld [vmem:[#allocation2 + $0xe8] sm:$0xff]
  %v3189 = vld [vmem:[#allocation2 + $0xf0] sm:$0xff]
  %v3190 = vld [vmem:[#allocation2 + $0xf8] sm:$0xff]
  %v3191 = vld [vmem:[#allocation2 + $0x100] sm:$0xff]
  %v3192 = vld [vmem:[#allocation2 + $0x108] sm:$0xff]
  %v3193 = vld [vmem:[#allocation2 + $0x110] sm:$0xff]
  %v3194 = vld [vmem:[#allocation2 + $0x118] sm:$0xff]
  %v3195 = vld [vmem:[#allocation2 + $0x120] sm:$0xff]
  %v3196 = vld [vmem:[#allocation2 + $0x128] sm:$0xff]
  %v3197 = vld [vmem:[#allocation2 + $0x130] sm:$0xff]
  %v3198 = vld [vmem:[#allocation2 + $0x138] sm:$0xff]
  %v3199 = vld [vmem:[#allocation2 + $0x140] sm:$0xff]
  %v3200 = vld [vmem:[#allocation2 + $0x148] sm:$0xff]
  %v3201 = vld [vmem:[#allocation2 + $0x150] sm:$0xff]
  %v3202 = vld [vmem:[#allocation2 + $0x158] sm:$0xff]
  %v3203 = vld [vmem:[#allocation2 + $0x160] sm:$0xff]
  %v3204 = vld [vmem:[#allocation2 + $0x168] sm:$0xff]
  %v3205 = vld [vmem:[#allocation2 + $0x170] sm:$0xff]
  %v3206 = vld [vmem:[#allocation2 + $0x178] sm:$0xff]
  %v3207 = vld [vmem:[#allocation2 + $0x180] sm:$0xff]
  %v3208 = vld [vmem:[#allocation2 + $0x188] sm:$0xff]
  %v3209 = vld [vmem:[#allocation2 + $0x190] sm:$0xff]
  %v3210 = vld [vmem:[#allocation2 + $0x198] sm:$0xff]
  %v3211 = vld [vmem:[#allocation2 + $0x1a0] sm:$0xff]
  %v3212 = vld [vmem:[#allocation2 + $0x1a8] sm:$0xff]
  %v3213 = vld [vmem:[#allocation2 + $0x1b0] sm:$0xff]
  %v3214 = vld [vmem:[#allocation2 + $0x1b8] sm:$0xff]
  %v3215 = vld [vmem:[#allocation2 + $0x1c0] sm:$0xff]
  %v3216 = vld [vmem:[#allocation2 + $0x1c8] sm:$0xff]
  %v3217 = vld [vmem:[#allocation2 + $0x1d0] sm:$0xff]
  %v3218 = vld [vmem:[#allocation2 + $0x1d8] sm:$0xff]
  %v3219 = vld [vmem:[#allocation2 + $0x1e0] sm:$0xff]
  %v3220 = vld [vmem:[#allocation2 + $0x1e8] sm:$0xff]
  %v3221 = vld [vmem:[#allocation2 + $0x1f0] sm:$0xf]
  %v3222 = vld [vmem:[#allocation2 + $0x1f8] sm:$0xf]
  %v3223 = vadd.f32 %v3159, %v3001
  %v3224 = vadd.f32 %v3160, %v3003
  %v3225 = vadd.f32 %v3161, %v3005
  %v3226 = vadd.f32 %v3162, %v3007
  %v3227 = vadd.f32 %v3163, %v3011
  %v3228 = vadd.f32 %v3164, %v3013
  %v3229 = vadd.f32 %v3165, %v3015
  %v3230 = vadd.f32 %v3166, %v3017
  %v3231 = vadd.f32 %v3167, %v3021
  %v3232 = vadd.f32 %v3168, %v3023
  %v3233 = vadd.f32 %v3169, %v3025
  %v3234 = vadd.f32 %v3170, %v3027
  %v3235 = vadd.f32 %v3171, %v3031
  %v3236 = vadd.f32 %v3172, %v3033
  %v3237 = vadd.f32 %v3173, %v3035
  %v3238 = vadd.f32 %v3174, %v3037
  %v3239 = vadd.f32 %v3175, %v3041
  %v3240 = vadd.f32 %v3176, %v3043
  %v3241 = vadd.f32 %v3177, %v3045
  %v3242 = vadd.f32 %v3178, %v3047
  %v3243 = vadd.f32 %v3179, %v3051
  %v3244 = vadd.f32 %v3180, %v3053
  %v3245 = vadd.f32 %v3181, %v3055
  %v3246 = vadd.f32 %v3182, %v3057
  %v3247 = vadd.f32 %v3183, %v3061
  %v3248 = vadd.f32 %v3184, %v3063
  %v3249 = vadd.f32 %v3185, %v3065
  %v3250 = vadd.f32 %v3186, %v3067
  %v3251 = vadd.f32 %v3187, %v3071
  %v3252 = vadd.f32 %v3188, %v3073
  %v3253 = vadd.f32 %v3189, %v3075
  %v3254 = vadd.f32 %v3190, %v3077
  %v3255 = vadd.f32 %v3191, %v3081
  %v3256 = vadd.f32 %v3192, %v3083
  %v3257 = vadd.f32 %v3193, %v3085
  %v3258 = vadd.f32 %v3194, %v3087
  %v3259 = vadd.f32 %v3195, %v3091
  %v3260 = vadd.f32 %v3196, %v3093
  %v3261 = vadd.f32 %v3197, %v3095
  %v3262 = vadd.f32 %v3198, %v3097
  %v3263 = vadd.f32 %v3199, %v3101
  %v3264 = vadd.f32 %v3200, %v3103
  %v3265 = vadd.f32 %v3201, %v3105
  %v3266 = vadd.f32 %v3202, %v3107
  %v3267 = vadd.f32 %v3203, %v3111
  %v3268 = vadd.f32 %v3204, %v3113
  %v3269 = vadd.f32 %v3205, %v3115
  %v3270 = vadd.f32 %v3206, %v3117
  %v3271 = vadd.f32 %v3207, %v3121
  %v3272 = vadd.f32 %v3208, %v3123
  %v3273 = vadd.f32 %v3209, %v3125
  %v3274 = vadd.f32 %v3210, %v3127
  %v3275 = vadd.f32 %v3211, %v3131
  %v3276 = vadd.f32 %v3212, %v3133
  %v3277 = vadd.f32 %v3213, %v3135
  %v3278 = vadd.f32 %v3214, %v3137
  %v3279 = vadd.f32 %v3215, %v3141
  %v3280 = vadd.f32 %v3216, %v3143
  %v3281 = vadd.f32 %v3217, %v3145
  %v3282 = vadd.f32 %v3218, %v3147
  %v3283 = vadd.f32 %v3219, %v3151
  %v3284 = vadd.f32 %v3220, %v3153
  %v3285 = vadd.f32 %v3221, %v3155
  %v3286 = vadd.f32 %v3222, %v3157
  %3287 = vst [vmem:[#allocation2] sm:$0xff] %v3223
  %3288 = vst.msk [vmem:[#allocation2 + $0x8] sm:$0xff] %vm478, %v3224
  %3289 = vst [vmem:[#allocation2 + $0x10] sm:$0xff] %v3225
  %3290 = vst.msk [vmem:[#allocation2 + $0x18] sm:$0xff] %vm478, %v3226
  %3291 = vst [vmem:[#allocation2 + $0x20] sm:$0xff] %v3227
  %3292 = vst.msk [vmem:[#allocation2 + $0x28] sm:$0xff] %vm478, %v3228
  %3293 = vst [vmem:[#allocation2 + $0x30] sm:$0xff] %v3229
  %3294 = vst.msk [vmem:[#allocation2 + $0x38] sm:$0xff] %vm478, %v3230
  %3295 = vst [vmem:[#allocation2 + $0x40] sm:$0xff] %v3231
  %3296 = vst.msk [vmem:[#allocation2 + $0x48] sm:$0xff] %vm478, %v3232
  %3297 = vst [vmem:[#allocation2 + $0x50] sm:$0xff] %v3233
  %3298 = vst.msk [vmem:[#allocation2 + $0x58] sm:$0xff] %vm478, %v3234
  %3299 = vst [vmem:[#allocation2 + $0x60] sm:$0xff] %v3235
  %3300 = vst.msk [vmem:[#allocation2 + $0x68] sm:$0xff] %vm478, %v3236
  %3301 = vst [vmem:[#allocation2 + $0x70] sm:$0xff] %v3237
  %3302 = vst.msk [vmem:[#allocation2 + $0x78] sm:$0xff] %vm478, %v3238
  %3303 = vst [vmem:[#allocation2 + $0x80] sm:$0xff] %v3239
  %3304 = vst.msk [vmem:[#allocation2 + $0x88] sm:$0xff] %vm478, %v3240
  %3305 = vst [vmem:[#allocation2 + $0x90] sm:$0xff] %v3241
  %3306 = vst.msk [vmem:[#allocation2 + $0x98] sm:$0xff] %vm478, %v3242
  %3307 = vst [vmem:[#allocation2 + $0xa0] sm:$0xff] %v3243
  %3308 = vst.msk [vmem:[#allocation2 + $0xa8] sm:$0xff] %vm478, %v3244
  %3309 = vst [vmem:[#allocation2 + $0xb0] sm:$0xff] %v3245
  %3310 = vst.msk [vmem:[#allocation2 + $0xb8] sm:$0xff] %vm478, %v3246
  %3311 = vst [vmem:[#allocation2 + $0xc0] sm:$0xff] %v3247
  %3312 = vst.msk [vmem:[#allocation2 + $0xc8] sm:$0xff] %vm478, %v3248
  %3313 = vst [vmem:[#allocation2 + $0xd0] sm:$0xff] %v3249
  %3314 = vst.msk [vmem:[#allocation2 + $0xd8] sm:$0xff] %vm478, %v3250
  %3315 = vst [vmem:[#allocation2 + $0xe0] sm:$0xff] %v3251
  %3316 = vst.msk [vmem:[#allocation2 + $0xe8] sm:$0xff] %vm478, %v3252
  %3317 = vst [vmem:[#allocation2 + $0xf0] sm:$0xff] %v3253
  %3318 = vst.msk [vmem:[#allocation2 + $0xf8] sm:$0xff] %vm478, %v3254
  %3319 = vst [vmem:[#allocation2 + $0x100] sm:$0xff] %v3255
  %3320 = vst.msk [vmem:[#allocation2 + $0x108] sm:$0xff] %vm478, %v3256
  %3321 = vst [vmem:[#allocation2 + $0x110] sm:$0xff] %v3257
  %3322 = vst.msk [vmem:[#allocation2 + $0x118] sm:$0xff] %vm478, %v3258
  %3323 = vst [vmem:[#allocation2 + $0x120] sm:$0xff] %v3259
  %3324 = vst.msk [vmem:[#allocation2 + $0x128] sm:$0xff] %vm478, %v3260
  %3325 = vst [vmem:[#allocation2 + $0x130] sm:$0xff] %v3261
  %3326 = vst.msk [vmem:[#allocation2 + $0x138] sm:$0xff] %vm478, %v3262
  %3327 = vst [vmem:[#allocation2 + $0x140] sm:$0xff] %v3263
  %3328 = vst.msk [vmem:[#allocation2 + $0x148] sm:$0xff] %vm478, %v3264
  %3329 = vst [vmem:[#allocation2 + $0x150] sm:$0xff] %v3265
  %3330 = vst.msk [vmem:[#allocation2 + $0x158] sm:$0xff] %vm478, %v3266
  %3331 = vst [vmem:[#allocation2 + $0x160] sm:$0xff] %v3267
  %3332 = vst.msk [vmem:[#allocation2 + $0x168] sm:$0xff] %vm478, %v3268
  %3333 = vst [vmem:[#allocation2 + $0x170] sm:$0xff] %v3269
  %3334 = vst.msk [vmem:[#allocation2 + $0x178] sm:$0xff] %vm478, %v3270
  %3335 = vst [vmem:[#allocation2 + $0x180] sm:$0xff] %v3271
  %3336 = vst.msk [vmem:[#allocation2 + $0x188] sm:$0xff] %vm478, %v3272
  %3337 = vst [vmem:[#allocation2 + $0x190] sm:$0xff] %v3273
  %3338 = vst.msk [vmem:[#allocation2 + $0x198] sm:$0xff] %vm478, %v3274
  %3339 = vst [vmem:[#allocation2 + $0x1a0] sm:$0xff] %v3275
  %3340 = vst.msk [vmem:[#allocation2 + $0x1a8] sm:$0xff] %vm478, %v3276
  %3341 = vst [vmem:[#allocation2 + $0x1b0] sm:$0xff] %v3277
  %3342 = vst.msk [vmem:[#allocation2 + $0x1b8] sm:$0xff] %vm478, %v3278
  %3343 = vst [vmem:[#allocation2 + $0x1c0] sm:$0xff] %v3279
  %3344 = vst.msk [vmem:[#allocation2 + $0x1c8] sm:$0xff] %vm478, %v3280
  %3345 = vst [vmem:[#allocation2 + $0x1d0] sm:$0xff] %v3281
  %3346 = vst.msk [vmem:[#allocation2 + $0x1d8] sm:$0xff] %vm478, %v3282
  %3347 = vst [vmem:[#allocation2 + $0x1e0] sm:$0xff] %v3283
  %3348 = vst.msk [vmem:[#allocation2 + $0x1e8] sm:$0xff] %vm478, %v3284
  %3349 = vst [vmem:[#allocation2 + $0x1f0] sm:$0xf] %v3285
  %3350 = vst.msk [vmem:[#allocation2 + $0x1f8] sm:$0xf] %vm541, %v3286
  %v3351 = vld [vmem:[#allocation2] sm:$0xff]
  %v3352 = vld [vmem:[#allocation2 + $0x8] sm:$0xff]
  %v3353 = vld [vmem:[#allocation2 + $0x10] sm:$0xff]
  %v3354 = vld [vmem:[#allocation2 + $0x18] sm:$0xff]
  %v3355 = vld [vmem:[#allocation2 + $0x20] sm:$0xff]
  %v3356 = vld [vmem:[#allocation2 + $0x28] sm:$0xff]
  %v3357 = vld [vmem:[#allocation2 + $0x30] sm:$0xff]
  %v3358 = vld [vmem:[#allocation2 + $0x38] sm:$0xff]
  %v3359 = vld [vmem:[#allocation2 + $0x40] sm:$0xff]
  %v3360 = vld [vmem:[#allocation2 + $0x48] sm:$0xff]
  %v3361 = vld [vmem:[#allocation2 + $0x50] sm:$0xff]
  %v3362 = vld [vmem:[#allocation2 + $0x58] sm:$0xff]
  %v3363 = vld [vmem:[#allocation2 + $0x60] sm:$0xff]
  %v3364 = vld [vmem:[#allocation2 + $0x68] sm:$0xff]
  %v3365 = vld [vmem:[#allocation2 + $0x70] sm:$0xff]
  %v3366 = vld [vmem:[#allocation2 + $0x78] sm:$0xff]
  %v3367 = vld [vmem:[#allocation2 + $0x80] sm:$0xff]
  %v3368 = vld [vmem:[#allocation2 + $0x88] sm:$0xff]
  %v3369 = vld [vmem:[#allocation2 + $0x90] sm:$0xff]
  %v3370 = vld [vmem:[#allocation2 + $0x98] sm:$0xff]
  %v3371 = vld [vmem:[#allocation2 + $0xa0] sm:$0xff]
  %v3372 = vld [vmem:[#allocation2 + $0xa8] sm:$0xff]
  %v3373 = vld [vmem:[#allocation2 + $0xb0] sm:$0xff]
  %v3374 = vld [vmem:[#allocation2 + $0xb8] sm:$0xff]
  %v3375 = vld [vmem:[#allocation2 + $0xc0] sm:$0xff]
  %v3376 = vld [vmem:[#allocation2 + $0xc8] sm:$0xff]
  %v3377 = vld [vmem:[#allocation2 + $0xd0] sm:$0xff]
  %v3378 = vld [vmem:[#allocation2 + $0xd8] sm:$0xff]
  %v3379 = vld [vmem:[#allocation2 + $0xe0] sm:$0xff]
  %v3380 = vld [vmem:[#allocation2 + $0xe8] sm:$0xff]
  %v3381 = vld [vmem:[#allocation2 + $0xf0] sm:$0xff]
  %v3382 = vld [vmem:[#allocation2 + $0xf8] sm:$0xff]
  %v3383 = vld [vmem:[#allocation2 + $0x100] sm:$0xff]
  %v3384 = vld [vmem:[#allocation2 + $0x108] sm:$0xff]
  %v3385 = vld [vmem:[#allocation2 + $0x110] sm:$0xff]
  %v3386 = vld [vmem:[#allocation2 + $0x118] sm:$0xff]
  %v3387 = vld [vmem:[#allocation2 + $0x120] sm:$0xff]
  %v3388 = vld [vmem:[#allocation2 + $0x128] sm:$0xff]
  %v3389 = vld [vmem:[#allocation2 + $0x130] sm:$0xff]
  %v3390 = vld [vmem:[#allocation2 + $0x138] sm:$0xff]
  %v3391 = vld [vmem:[#allocation2 + $0x140] sm:$0xff]
  %v3392 = vld [vmem:[#allocation2 + $0x148] sm:$0xff]
  %v3393 = vld [vmem:[#allocation2 + $0x150] sm:$0xff]
  %v3394 = vld [vmem:[#allocation2 + $0x158] sm:$0xff]
  %v3395 = vld [vmem:[#allocation2 + $0x160] sm:$0xff]
  %v3396 = vld [vmem:[#allocation2 + $0x168] sm:$0xff]
  %v3397 = vld [vmem:[#allocation2 + $0x170] sm:$0xff]
  %v3398 = vld [vmem:[#allocation2 + $0x178] sm:$0xff]
  %v3399 = vld [vmem:[#allocation2 + $0x180] sm:$0xff]
  %v3400 = vld [vmem:[#allocation2 + $0x188] sm:$0xff]
  %v3401 = vld [vmem:[#allocation2 + $0x190] sm:$0xff]
  %v3402 = vld [vmem:[#allocation2 + $0x198] sm:$0xff]
  %v3403 = vld [vmem:[#allocation2 + $0x1a0] sm:$0xff]
  %v3404 = vld [vmem:[#allocation2 + $0x1a8] sm:$0xff]
  %v3405 = vld [vmem:[#allocation2 + $0x1b0] sm:$0xff]
  %v3406 = vld [vmem:[#allocation2 + $0x1b8] sm:$0xff]
  %v3407 = vld [vmem:[#allocation2 + $0x1c0] sm:$0xff]
  %v3408 = vld [vmem:[#allocation2 + $0x1c8] sm:$0xff]
  %v3409 = vld [vmem:[#allocation2 + $0x1d0] sm:$0xff]
  %v3410 = vld [vmem:[#allocation2 + $0x1d8] sm:$0xff]
  %v3411 = vld [vmem:[#allocation2 + $0x1e0] sm:$0xff]
  %v3412 = vld [vmem:[#allocation2 + $0x1e8] sm:$0xff]
  %v3413 = vld [vmem:[#allocation2 + $0x1f0] sm:$0x7]
  %v3414 = vld [vmem:[#allocation2 + $0x1f8] sm:$0x7]
  %v3415 = vld [vmem:[#allocation2] sm:$0xfe]
  %v3416 = vld [vmem:[#allocation2 + $0x8] sm:$0xfe]
  %v3417 = vld [vmem:[#allocation2 + $0x1f0] sm:$0xf]
  %v3418 = vld [vmem:[#allocation2 + $0x1f8] sm:$0xf]
  %vm3483 = vcmask 1046528
  %v3484 = vrot.slane %v3415, 1
  %v3485 = vrot.slane %v3353, 1
  %v3486 = vsel %vm3483, %v3484, %v3485
  %v3487 = vrot.slane %v3416, 1
  %v3488 = vrot.slane %v3354, 1
  %v3489 = vsel %vm3483, %v3487, %v3488
  %v3490 = vrot.slane %v3355, 1
  %v3491 = vsel %vm3483, %v3485, %v3490
  %v3492 = vrot.slane %v3356, 1
  %v3493 = vsel %vm3483, %v3488, %v3492
  %v3494 = vrot.slane %v3357, 1
  %v3495 = vsel %vm3483, %v3490, %v3494
  %v3496 = vrot.slane %v3358, 1
  %v3497 = vsel %vm3483, %v3492, %v3496
  %v3498 = vrot.slane %v3359, 1
  %v3499 = vsel %vm3483, %v3494, %v3498
  %v3500 = vrot.slane %v3360, 1
  %v3501 = vsel %vm3483, %v3496, %v3500
  %v3502 = vrot.slane %v3361, 1
  %v3503 = vsel %vm3483, %v3498, %v3502
  %v3504 = vrot.slane %v3362, 1
  %v3505 = vsel %vm3483, %v3500, %v3504
  %v3506 = vrot.slane %v3363, 1
  %v3507 = vsel %vm3483, %v3502, %v3506
  %v3508 = vrot.slane %v3364, 1
  %v3509 = vsel %vm3483, %v3504, %v3508
  %v3510 = vrot.slane %v3365, 1
  %v3511 = vsel %vm3483, %v3506, %v3510
  %v3512 = vrot.slane %v3366, 1
  %v3513 = vsel %vm3483, %v3508, %v3512
  %v3514 = vrot.slane %v3367, 1
  %v3515 = vsel %vm3483, %v3510, %v3514
  %v3516 = vrot.slane %v3368, 1
  %v3517 = vsel %vm3483, %v3512, %v3516
  %v3518 = vrot.slane %v3369, 1
  %v3519 = vsel %vm3483, %v3514, %v3518
  %v3520 = vrot.slane %v3370, 1
  %v3521 = vsel %vm3483, %v3516, %v3520
  %v3522 = vrot.slane %v3371, 1
  %v3523 = vsel %vm3483, %v3518, %v3522
  %v3524 = vrot.slane %v3372, 1
  %v3525 = vsel %vm3483, %v3520, %v3524
  %v3526 = vrot.slane %v3373, 1
  %v3527 = vsel %vm3483, %v3522, %v3526
  %v3528 = vrot.slane %v3374, 1
  %v3529 = vsel %vm3483, %v3524, %v3528
  %v3530 = vrot.slane %v3375, 1
  %v3531 = vsel %vm3483, %v3526, %v3530
  %v3532 = vrot.slane %v3376, 1
  %v3533 = vsel %vm3483, %v3528, %v3532
  %v3534 = vrot.slane %v3377, 1
  %v3535 = vsel %vm3483, %v3530, %v3534
  %v3536 = vrot.slane %v3378, 1
  %v3537 = vsel %vm3483, %v3532, %v3536
  %v3538 = vrot.slane %v3379, 1
  %v3539 = vsel %vm3483, %v3534, %v3538
  %v3540 = vrot.slane %v3380, 1
  %v3541 = vsel %vm3483, %v3536, %v3540
  %v3542 = vrot.slane %v3381, 1
  %v3543 = vsel %vm3483, %v3538, %v3542
  %v3544 = vrot.slane %v3382, 1
  %v3545 = vsel %vm3483, %v3540, %v3544
  %v3546 = vrot.slane %v3383, 1
  %v3547 = vsel %vm3483, %v3542, %v3546
  %v3548 = vrot.slane %v3384, 1
  %v3549 = vsel %vm3483, %v3544, %v3548
  %v3550 = vrot.slane %v3385, 1
  %v3551 = vsel %vm3483, %v3546, %v3550
  %v3552 = vrot.slane %v3386, 1
  %v3553 = vsel %vm3483, %v3548, %v3552
  %v3554 = vrot.slane %v3387, 1
  %v3555 = vsel %vm3483, %v3550, %v3554
  %v3556 = vrot.slane %v3388, 1
  %v3557 = vsel %vm3483, %v3552, %v3556
  %v3558 = vrot.slane %v3389, 1
  %v3559 = vsel %vm3483, %v3554, %v3558
  %v3560 = vrot.slane %v3390, 1
  %v3561 = vsel %vm3483, %v3556, %v3560
  %v3562 = vrot.slane %v3391, 1
  %v3563 = vsel %vm3483, %v3558, %v3562
  %v3564 = vrot.slane %v3392, 1
  %v3565 = vsel %vm3483, %v3560, %v3564
  %v3566 = vrot.slane %v3393, 1
  %v3567 = vsel %vm3483, %v3562, %v3566
  %v3568 = vrot.slane %v3394, 1
  %v3569 = vsel %vm3483, %v3564, %v3568
  %v3570 = vrot.slane %v3395, 1
  %v3571 = vsel %vm3483, %v3566, %v3570
  %v3572 = vrot.slane %v3396, 1
  %v3573 = vsel %vm3483, %v3568, %v3572
  %v3574 = vrot.slane %v3397, 1
  %v3575 = vsel %vm3483, %v3570, %v3574
  %v3576 = vrot.slane %v3398, 1
  %v3577 = vsel %vm3483, %v3572, %v3576
  %v3578 = vrot.slane %v3399, 1
  %v3579 = vsel %vm3483, %v3574, %v3578
  %v3580 = vrot.slane %v3400, 1
  %v3581 = vsel %vm3483, %v3576, %v3580
  %v3582 = vrot.slane %v3401, 1
  %v3583 = vsel %vm3483, %v3578, %v3582
  %v3584 = vrot.slane %v3402, 1
  %v3585 = vsel %vm3483, %v3580, %v3584
  %v3586 = vrot.slane %v3403, 1
  %v3587 = vsel %vm3483, %v3582, %v3586
  %v3588 = vrot.slane %v3404, 1
  %v3589 = vsel %vm3483, %v3584, %v3588
  %v3590 = vrot.slane %v3405, 1
  %v3591 = vsel %vm3483, %v3586, %v3590
  %v3592 = vrot.slane %v3406, 1
  %v3593 = vsel %vm3483, %v3588, %v3592
  %v3594 = vrot.slane %v3407, 1
  %v3595 = vsel %vm3483, %v3590, %v3594
  %v3596 = vrot.slane %v3408, 1
  %v3597 = vsel %vm3483, %v3592, %v3596
  %v3598 = vrot.slane %v3409, 1
  %v3599 = vsel %vm3483, %v3594, %v3598
  %v3600 = vrot.slane %v3410, 1
  %v3601 = vsel %vm3483, %v3596, %v3600
  %v3602 = vrot.slane %v3411, 1
  %v3603 = vsel %vm3483, %v3598, %v3602
  %v3604 = vrot.slane %v3412, 1
  %v3605 = vsel %vm3483, %v3600, %v3604
  %v3606 = vrot.slane %v3417, 1
  %v3607 = vsel %vm3483, %v3602, %v3606
  %v3608 = vrot.slane %v3418, 1
  %v3609 = vsel %vm3483, %v3604, %v3608
  %v3674 = vmax.f32 %v3351, %v3486
  %v3675 = vmax.f32 %v3352, %v3489
  %v3676 = vmax.f32 %v3353, %v3491
  %v3677 = vmax.f32 %v3354, %v3493
  %v3678 = vmax.f32 %v3355, %v3495
  %v3679 = vmax.f32 %v3356, %v3497
  %v3680 = vmax.f32 %v3357, %v3499
  %v3681 = vmax.f32 %v3358, %v3501
  %v3682 = vmax.f32 %v3359, %v3503
  %v3683 = vmax.f32 %v3360, %v3505
  %v3684 = vmax.f32 %v3361, %v3507
  %v3685 = vmax.f32 %v3362, %v3509
  %v3686 = vmax.f32 %v3363, %v3511
  %v3687 = vmax.f32 %v3364, %v3513
  %v3688 = vmax.f32 %v3365, %v3515
  %v3689 = vmax.f32 %v3366, %v3517
  %v3690 = vmax.f32 %v3367, %v3519
  %v3691 = vmax.f32 %v3368, %v3521
  %v3692 = vmax.f32 %v3369, %v3523
  %v3693 = vmax.f32 %v3370, %v3525
  %v3694 = vmax.f32 %v3371, %v3527
  %v3695 = vmax.f32 %v3372, %v3529
  %v3696 = vmax.f32 %v3373, %v3531
  %v3697 = vmax.f32 %v3374, %v3533
  %v3698 = vmax.f32 %v3375, %v3535
  %v3699 = vmax.f32 %v3376, %v3537
  %v3700 = vmax.f32 %v3377, %v3539
  %v3701 = vmax.f32 %v3378, %v3541
  %v3702 = vmax.f32 %v3379, %v3543
  %v3703 = vmax.f32 %v3380, %v3545
  %v3704 = vmax.f32 %v3381, %v3547
  %v3705 = vmax.f32 %v3382, %v3549
  %v3706 = vmax.f32 %v3383, %v3551
  %v3707 = vmax.f32 %v3384, %v3553
  %v3708 = vmax.f32 %v3385, %v3555
  %v3709 = vmax.f32 %v3386, %v3557
  %v3710 = vmax.f32 %v3387, %v3559
  %v3711 = vmax.f32 %v3388, %v3561
  %v3712 = vmax.f32 %v3389, %v3563
  %v3713 = vmax.f32 %v3390, %v3565
  %v3714 = vmax.f32 %v3391, %v3567
  %v3715 = vmax.f32 %v3392, %v3569
  %v3716 = vmax.f32 %v3393, %v3571
  %v3717 = vmax.f32 %v3394, %v3573
  %v3718 = vmax.f32 %v3395, %v3575
  %v3719 = vmax.f32 %v3396, %v3577
  %v3720 = vmax.f32 %v3397, %v3579
  %v3721 = vmax.f32 %v3398, %v3581
  %v3722 = vmax.f32 %v3399, %v3583
  %v3723 = vmax.f32 %v3400, %v3585
  %v3724 = vmax.f32 %v3401, %v3587
  %v3725 = vmax.f32 %v3402, %v3589
  %v3726 = vmax.f32 %v3403, %v3591
  %v3727 = vmax.f32 %v3404, %v3593
  %v3728 = vmax.f32 %v3405, %v3595
  %v3729 = vmax.f32 %v3406, %v3597
  %v3730 = vmax.f32 %v3407, %v3599
  %v3731 = vmax.f32 %v3408, %v3601
  %v3732 = vmax.f32 %v3409, %v3603
  %v3733 = vmax.f32 %v3410, %v3605
  %v3734 = vmax.f32 %v3411, %v3607
  %v3735 = vmax.f32 %v3412, %v3609
  %v3736 = vmax.f32 %v3413, %v3606
  %v3737 = vmax.f32 %v3414, %v3608
  %3802 = vrot.lane.b32.xlu0 %v3674, 127
  %v3803 = vpop.permute.xlu0 %3802
  %3804 = vrot.lane.b32.xlu0 %v3675, 127
  %v3805 = vpop.permute.xlu0 %3804
  %3806 = vrot.lane.b32.xlu0 %v3676, 127
  %v3807 = vpop.permute.xlu0 %3806
  %3808 = vrot.lane.b32.xlu0 %v3677, 127
  %v3809 = vpop.permute.xlu0 %3808
  %3810 = vrot.lane.b32.xlu0 %v3678, 127
  %v3811 = vpop.permute.xlu0 %3810
  %3812 = vrot.lane.b32.xlu0 %v3679, 127
  %v3813 = vpop.permute.xlu0 %3812
  %3814 = vrot.lane.b32.xlu0 %v3680, 127
  %v3815 = vpop.permute.xlu0 %3814
  %3816 = vrot.lane.b32.xlu0 %v3681, 127
  %v3817 = vpop.permute.xlu0 %3816
  %3818 = vrot.lane.b32.xlu0 %v3682, 127
  %v3819 = vpop.permute.xlu0 %3818
  %3820 = vrot.lane.b32.xlu0 %v3683, 127
  %v3821 = vpop.permute.xlu0 %3820
  %3822 = vrot.lane.b32.xlu0 %v3684, 127
  %v3823 = vpop.permute.xlu0 %3822
  %3824 = vrot.lane.b32.xlu0 %v3685, 127
  %v3825 = vpop.permute.xlu0 %3824
  %3826 = vrot.lane.b32.xlu0 %v3686, 127
  %v3827 = vpop.permute.xlu0 %3826
  %3828 = vrot.lane.b32.xlu0 %v3687, 127
  %v3829 = vpop.permute.xlu0 %3828
  %3830 = vrot.lane.b32.xlu0 %v3688, 127
  %v3831 = vpop.permute.xlu0 %3830
  %3832 = vrot.lane.b32.xlu0 %v3689, 127
  %v3833 = vpop.permute.xlu0 %3832
  %3834 = vrot.lane.b32.xlu0 %v3690, 127
  %v3835 = vpop.permute.xlu0 %3834
  %3836 = vrot.lane.b32.xlu0 %v3691, 127
  %v3837 = vpop.permute.xlu0 %3836
  %3838 = vrot.lane.b32.xlu0 %v3692, 127
  %v3839 = vpop.permute.xlu0 %3838
  %3840 = vrot.lane.b32.xlu0 %v3693, 127
  %v3841 = vpop.permute.xlu0 %3840
  %3842 = vrot.lane.b32.xlu0 %v3694, 127
  %v3843 = vpop.permute.xlu0 %3842
  %3844 = vrot.lane.b32.xlu0 %v3695, 127
  %v3845 = vpop.permute.xlu0 %3844
  %3846 = vrot.lane.b32.xlu0 %v3696, 127
  %v3847 = vpop.permute.xlu0 %3846
  %3848 = vrot.lane.b32.xlu0 %v3697, 127
  %v3849 = vpop.permute.xlu0 %3848
  %3850 = vrot.lane.b32.xlu0 %v3698, 127
  %v3851 = vpop.permute.xlu0 %3850
  %3852 = vrot.lane.b32.xlu0 %v3699, 127
  %v3853 = vpop.permute.xlu0 %3852
  %3854 = vrot.lane.b32.xlu0 %v3700, 127
  %v3855 = vpop.permute.xlu0 %3854
  %3856 = vrot.lane.b32.xlu0 %v3701, 127
  %v3857 = vpop.permute.xlu0 %3856
  %3858 = vrot.lane.b32.xlu0 %v3702, 127
  %v3859 = vpop.permute.xlu0 %3858
  %3860 = vrot.lane.b32.xlu0 %v3703, 127
  %v3861 = vpop.permute.xlu0 %3860
  %3862 = vrot.lane.b32.xlu0 %v3704, 127
  %v3863 = vpop.permute.xlu0 %3862
  %3864 = vrot.lane.b32.xlu0 %v3705, 127
  %v3865 = vpop.permute.xlu0 %3864
  %3866 = vrot.lane.b32.xlu0 %v3706, 127
  %v3867 = vpop.permute.xlu0 %3866
  %3868 = vrot.lane.b32.xlu0 %v3707, 127
  %v3869 = vpop.permute.xlu0 %3868
  %3870 = vrot.lane.b32.xlu0 %v3708, 127
  %v3871 = vpop.permute.xlu0 %3870
  %3872 = vrot.lane.b32.xlu0 %v3709, 127
  %v3873 = vpop.permute.xlu0 %3872
  %3874 = vrot.lane.b32.xlu0 %v3710, 127
  %v3875 = vpop.permute.xlu0 %3874
  %3876 = vrot.lane.b32.xlu0 %v3711, 127
  %v3877 = vpop.permute.xlu0 %3876
  %3878 = vrot.lane.b32.xlu0 %v3712, 127
  %v3879 = vpop.permute.xlu0 %3878
  %3880 = vrot.lane.b32.xlu0 %v3713, 127
  %v3881 = vpop.permute.xlu0 %3880
  %3882 = vrot.lane.b32.xlu0 %v3714, 127
  %v3883 = vpop.permute.xlu0 %3882
  %3884 = vrot.lane.b32.xlu0 %v3715, 127
  %v3885 = vpop.permute.xlu0 %3884
  %3886 = vrot.lane.b32.xlu0 %v3716, 127
  %v3887 = vpop.permute.xlu0 %3886
  %3888 = vrot.lane.b32.xlu0 %v3717, 127
  %v3889 = vpop.permute.xlu0 %3888
  %3890 = vrot.lane.b32.xlu0 %v3718, 127
  %v3891 = vpop.permute.xlu0 %3890
  %3892 = vrot.lane.b32.xlu0 %v3719, 127
  %v3893 = vpop.permute.xlu0 %3892
  %3894 = vrot.lane.b32.xlu0 %v3720, 127
  %v3895 = vpop.permute.xlu0 %3894
  %3896 = vrot.lane.b32.xlu0 %v3721, 127
  %v3897 = vpop.permute.xlu0 %3896
  %3898 = vrot.lane.b32.xlu0 %v3722, 127
  %v3899 = vpop.permute.xlu0 %3898
  %3900 = vrot.lane.b32.xlu0 %v3723, 127
  %v3901 = vpop.permute.xlu0 %3900
  %3902 = vrot.lane.b32.xlu0 %v3724, 127
  %v3903 = vpop.permute.xlu0 %3902
  %3904 = vrot.lane.b32.xlu0 %v3725, 127
  %v3905 = vpop.permute.xlu0 %3904
  %3906 = vrot.lane.b32.xlu0 %v3726, 127
  %v3907 = vpop.permute.xlu0 %3906
  %3908 = vrot.lane.b32.xlu0 %v3727, 127
  %v3909 = vpop.permute.xlu0 %3908
  %3910 = vrot.lane.b32.xlu0 %v3728, 127
  %v3911 = vpop.permute.xlu0 %3910
  %3912 = vrot.lane.b32.xlu0 %v3729, 127
  %v3913 = vpop.permute.xlu0 %3912
  %3914 = vrot.lane.b32.xlu0 %v3730, 127
  %v3915 = vpop.permute.xlu0 %3914
  %3916 = vrot.lane.b32.xlu0 %v3731, 127
  %v3917 = vpop.permute.xlu0 %3916
  %3918 = vrot.lane.b32.xlu0 %v3732, 127
  %v3919 = vpop.permute.xlu0 %3918
  %3920 = vrot.lane.b32.xlu0 %v3733, 127
  %v3921 = vpop.permute.xlu0 %3920
  %3922 = vrot.lane.b32.xlu0 %v3734, 127
  %v3923 = vpop.permute.xlu0 %3922
  %3924 = vrot.lane.b32.xlu0 %v3735, 127
  %v3925 = vpop.permute.xlu0 %3924
  %3926 = vrot.lane.b32.xlu0 %v3736, 127
  %v3927 = vpop.permute.xlu0 %3926
  %3928 = vrot.lane.b32.xlu0 %v3737, 127
  %v3929 = vpop.permute.xlu0 %3928
  %vm3930 = vcmask 1039360
  %v3931 = vsel %vm3930, %v3803, %v3805
  %v3932 = vsel %vm3930, %v3807, %v3809
  %v3933 = vsel %vm3930, %v3811, %v3813
  %v3934 = vsel %vm3930, %v3815, %v3817
  %v3935 = vsel %vm3930, %v3819, %v3821
  %v3936 = vsel %vm3930, %v3823, %v3825
  %v3937 = vsel %vm3930, %v3827, %v3829
  %v3938 = vsel %vm3930, %v3831, %v3833
  %v3939 = vsel %vm3930, %v3835, %v3837
  %v3940 = vsel %vm3930, %v3839, %v3841
  %v3941 = vsel %vm3930, %v3843, %v3845
  %v3942 = vsel %vm3930, %v3847, %v3849
  %v3943 = vsel %vm3930, %v3851, %v3853
  %v3944 = vsel %vm3930, %v3855, %v3857
  %v3945 = vsel %vm3930, %v3859, %v3861
  %v3946 = vsel %vm3930, %v3863, %v3865
  %v3947 = vsel %vm3930, %v3867, %v3869
  %v3948 = vsel %vm3930, %v3871, %v3873
  %v3949 = vsel %vm3930, %v3875, %v3877
  %v3950 = vsel %vm3930, %v3879, %v3881
  %v3951 = vsel %vm3930, %v3883, %v3885
  %v3952 = vsel %vm3930, %v3887, %v3889
  %v3953 = vsel %vm3930, %v3891, %v3893
  %v3954 = vsel %vm3930, %v3895, %v3897
  %v3955 = vsel %vm3930, %v3899, %v3901
  %v3956 = vsel %vm3930, %v3903, %v3905
  %v3957 = vsel %vm3930, %v3907, %v3909
  %v3958 = vsel %vm3930, %v3911, %v3913
  %v3959 = vsel %vm3930, %v3915, %v3917
  %v3960 = vsel %vm3930, %v3919, %v3921
  %v3961 = vsel %vm3930, %v3923, %v3925
  %v3962 = vsel %vm3930, %v3927, %v3929
  %v4027 = vmax.f32 %v3674, %v3931
  %v4028 = vmax.f32 %v3675, %v3805
  %v4029 = vmax.f32 %v3676, %v3932
  %v4030 = vmax.f32 %v3677, %v3809
  %v4031 = vmax.f32 %v3678, %v3933
  %v4032 = vmax.f32 %v3679, %v3813
  %v4033 = vmax.f32 %v3680, %v3934
  %v4034 = vmax.f32 %v3681, %v3817
  %v4035 = vmax.f32 %v3682, %v3935
  %v4036 = vmax.f32 %v3683, %v3821
  %v4037 = vmax.f32 %v3684, %v3936
  %v4038 = vmax.f32 %v3685, %v3825
  %v4039 = vmax.f32 %v3686, %v3937
  %v4040 = vmax.f32 %v3687, %v3829
  %v4041 = vmax.f32 %v3688, %v3938
  %v4042 = vmax.f32 %v3689, %v3833
  %v4043 = vmax.f32 %v3690, %v3939
  %v4044 = vmax.f32 %v3691, %v3837
  %v4045 = vmax.f32 %v3692, %v3940
  %v4046 = vmax.f32 %v3693, %v3841
  %v4047 = vmax.f32 %v3694, %v3941
  %v4048 = vmax.f32 %v3695, %v3845
  %v4049 = vmax.f32 %v3696, %v3942
  %v4050 = vmax.f32 %v3697, %v3849
  %v4051 = vmax.f32 %v3698, %v3943
  %v4052 = vmax.f32 %v3699, %v3853
  %v4053 = vmax.f32 %v3700, %v3944
  %v4054 = vmax.f32 %v3701, %v3857
  %v4055 = vmax.f32 %v3702, %v3945
  %v4056 = vmax.f32 %v3703, %v3861
  %v4057 = vmax.f32 %v3704, %v3946
  %v4058 = vmax.f32 %v3705, %v3865
  %v4059 = vmax.f32 %v3706, %v3947
  %v4060 = vmax.f32 %v3707, %v3869
  %v4061 = vmax.f32 %v3708, %v3948
  %v4062 = vmax.f32 %v3709, %v3873
  %v4063 = vmax.f32 %v3710, %v3949
  %v4064 = vmax.f32 %v3711, %v3877
  %v4065 = vmax.f32 %v3712, %v3950
  %v4066 = vmax.f32 %v3713, %v3881
  %v4067 = vmax.f32 %v3714, %v3951
  %v4068 = vmax.f32 %v3715, %v3885
  %v4069 = vmax.f32 %v3716, %v3952
  %v4070 = vmax.f32 %v3717, %v3889
  %v4071 = vmax.f32 %v3718, %v3953
  %v4072 = vmax.f32 %v3719, %v3893
  %v4073 = vmax.f32 %v3720, %v3954
  %v4074 = vmax.f32 %v3721, %v3897
  %v4075 = vmax.f32 %v3722, %v3955
  %v4076 = vmax.f32 %v3723, %v3901
  %v4077 = vmax.f32 %v3724, %v3956
  %v4078 = vmax.f32 %v3725, %v3905
  %v4079 = vmax.f32 %v3726, %v3957
  %v4080 = vmax.f32 %v3727, %v3909
  %v4081 = vmax.f32 %v3728, %v3958
  %v4082 = vmax.f32 %v3729, %v3913
  %v4083 = vmax.f32 %v3730, %v3959
  %v4084 = vmax.f32 %v3731, %v3917
  %v4085 = vmax.f32 %v3732, %v3960
  %v4086 = vmax.f32 %v3733, %v3921
  %v4087 = vmax.f32 %v3734, %v3961
  %v4088 = vmax.f32 %v3735, %v3925
  %v4089 = vmax.f32 %v3736, %v3962
  %v4090 = vmax.f32 %v3737, %v3929
  %v4091 = vmax.f32 %v4027, 0.0
  %v4092 = vmax.f32 %v4028, 0.0
  %v4093 = vmax.f32 %v4029, 0.0
  %v4094 = vmax.f32 %v4030, 0.0
  %v4095 = vmax.f32 %v4031, 0.0
  %v4096 = vmax.f32 %v4032, 0.0
  %v4097 = vmax.f32 %v4033, 0.0
  %v4098 = vmax.f32 %v4034, 0.0
  %v4099 = vmax.f32 %v4035, 0.0
  %v4100 = vmax.f32 %v4036, 0.0
  %v4101 = vmax.f32 %v4037, 0.0
  %v4102 = vmax.f32 %v4038, 0.0
  %v4103 = vmax.f32 %v4039, 0.0
  %v4104 = vmax.f32 %v4040, 0.0
  %v4105 = vmax.f32 %v4041, 0.0
  %v4106 = vmax.f32 %v4042, 0.0
  %v4107 = vmax.f32 %v4043, 0.0
  %v4108 = vmax.f32 %v4044, 0.0
  %v4109 = vmax.f32 %v4045, 0.0
  %v4110 = vmax.f32 %v4046, 0.0
  %v4111 = vmax.f32 %v4047, 0.0
  %v4112 = vmax.f32 %v4048, 0.0
  %v4113 = vmax.f32 %v4049, 0.0
  %v4114 = vmax.f32 %v4050, 0.0
  %v4115 = vmax.f32 %v4051, 0.0
  %v4116 = vmax.f32 %v4052, 0.0
  %v4117 = vmax.f32 %v4053, 0.0
  %v4118 = vmax.f32 %v4054, 0.0
  %v4119 = vmax.f32 %v4055, 0.0
  %v4120 = vmax.f32 %v4056, 0.0
  %v4121 = vmax.f32 %v4057, 0.0
  %v4122 = vmax.f32 %v4058, 0.0
  %v4123 = vmax.f32 %v4059, 0.0
  %v4124 = vmax.f32 %v4060, 0.0
  %v4125 = vmax.f32 %v4061, 0.0
  %v4126 = vmax.f32 %v4062, 0.0
  %v4127 = vmax.f32 %v4063, 0.0
  %v4128 = vmax.f32 %v4064, 0.0
  %v4129 = vmax.f32 %v4065, 0.0
  %v4130 = vmax.f32 %v4066, 0.0
  %v4131 = vmax.f32 %v4067, 0.0
  %v4132 = vmax.f32 %v4068, 0.0
  %v4133 = vmax.f32 %v4069, 0.0
  %v4134 = vmax.f32 %v4070, 0.0
  %v4135 = vmax.f32 %v4071, 0.0
  %v4136 = vmax.f32 %v4072, 0.0
  %v4137 = vmax.f32 %v4073, 0.0
  %v4138 = vmax.f32 %v4074, 0.0
  %v4139 = vmax.f32 %v4075, 0.0
  %v4140 = vmax.f32 %v4076, 0.0
  %v4141 = vmax.f32 %v4077, 0.0
  %v4142 = vmax.f32 %v4078, 0.0
  %v4143 = vmax.f32 %v4079, 0.0
  %v4144 = vmax.f32 %v4080, 0.0
  %v4145 = vmax.f32 %v4081, 0.0
  %v4146 = vmax.f32 %v4082, 0.0
  %v4147 = vmax.f32 %v4083, 0.0
  %v4148 = vmax.f32 %v4084, 0.0
  %v4149 = vmax.f32 %v4085, 0.0
  %v4150 = vmax.f32 %v4086, 0.0
  %v4151 = vmax.f32 %v4087, 0.0
  %v4152 = vmax.f32 %v4088, 0.0
  %v4153 = vmax.f32 %v4089, 0.0
  %v4154 = vmax.f32 %v4090, 0.0
  %v4155 = vpack.c.bf16 %v4093, %v4091
  %v4156 = vpack.c.bf16 %v4094, %v4092
  %v4157 = vpack.c.bf16 %v4097, %v4095
  %v4158 = vpack.c.bf16 %v4098, %v4096
  %v4159 = vpack.c.bf16 %v4101, %v4099
  %v4160 = vpack.c.bf16 %v4102, %v4100
  %v4161 = vpack.c.bf16 %v4105, %v4103
  %v4162 = vpack.c.bf16 %v4106, %v4104
  %v4163 = vpack.c.bf16 %v4109, %v4107
  %v4164 = vpack.c.bf16 %v4110, %v4108
  %v4165 = vpack.c.bf16 %v4113, %v4111
  %v4166 = vpack.c.bf16 %v4114, %v4112
  %v4167 = vpack.c.bf16 %v4117, %v4115
  %v4168 = vpack.c.bf16 %v4118, %v4116
  %v4169 = vpack.c.bf16 %v4121, %v4119
  %v4170 = vpack.c.bf16 %v4122, %v4120
  %v4171 = vpack.c.bf16 %v4125, %v4123
  %v4172 = vpack.c.bf16 %v4126, %v4124
  %v4173 = vpack.c.bf16 %v4129, %v4127
  %v4174 = vpack.c.bf16 %v4130, %v4128
  %v4175 = vpack.c.bf16 %v4133, %v4131
  %v4176 = vpack.c.bf16 %v4134, %v4132
  %v4177 = vpack.c.bf16 %v4137, %v4135
  %v4178 = vpack.c.bf16 %v4138, %v4136
  %v4179 = vpack.c.bf16 %v4141, %v4139
  %v4180 = vpack.c.bf16 %v4142, %v4140
  %v4181 = vpack.c.bf16 %v4145, %v4143
  %v4182 = vpack.c.bf16 %v4146, %v4144
  %v4183 = vpack.c.bf16 %v4149, %v4147
  %v4184 = vpack.c.bf16 %v4150, %v4148
  %v4185 = vpack.c.bf16 %v4153, %v4151
  %v4186 = vpack.c.bf16 %v4154, %v4152
  %v4219 = vunpack.c.l.b16 %v4155
  %v4220 = vunpack.c.l.b16 %v4156
  %v4221 = vunpack.c.h.b16 %v4155
  %v4222 = vunpack.c.h.b16 %v4156
  %v4223 = vunpack.c.l.b16 %v4157
  %v4224 = vunpack.c.l.b16 %v4158
  %v4225 = vunpack.c.h.b16 %v4157
  %v4226 = vunpack.c.h.b16 %v4158
  %v4227 = vunpack.c.l.b16 %v4159
  %v4228 = vunpack.c.l.b16 %v4160
  %v4229 = vunpack.c.h.b16 %v4159
  %v4230 = vunpack.c.h.b16 %v4160
  %v4231 = vunpack.c.l.b16 %v4161
  %v4232 = vunpack.c.l.b16 %v4162
  %v4233 = vunpack.c.h.b16 %v4161
  %v4234 = vunpack.c.h.b16 %v4162
  %v4235 = vunpack.c.l.b16 %v4163
  %v4236 = vunpack.c.l.b16 %v4164
  %v4237 = vunpack.c.h.b16 %v4163
  %v4238 = vunpack.c.h.b16 %v4164
  %v4239 = vunpack.c.l.b16 %v4165
  %v4240 = vunpack.c.l.b16 %v4166
  %v4241 = vunpack.c.h.b16 %v4165
  %v4242 = vunpack.c.h.b16 %v4166
  %v4243 = vunpack.c.l.b16 %v4167
  %v4244 = vunpack.c.l.b16 %v4168
  %v4245 = vunpack.c.h.b16 %v4167
  %v4246 = vunpack.c.h.b16 %v4168
  %v4247 = vunpack.c.l.b16 %v4169
  %v4248 = vunpack.c.l.b16 %v4170
  %v4249 = vunpack.c.h.b16 %v4169
  %v4250 = vunpack.c.h.b16 %v4170
  %v4251 = vunpack.c.l.b16 %v4171
  %v4252 = vunpack.c.l.b16 %v4172
  %v4253 = vunpack.c.h.b16 %v4171
  %v4254 = vunpack.c.h.b16 %v4172
  %v4255 = vunpack.c.l.b16 %v4173
  %v4256 = vunpack.c.l.b16 %v4174
  %v4257 = vunpack.c.h.b16 %v4173
  %v4258 = vunpack.c.h.b16 %v4174
  %v4259 = vunpack.c.l.b16 %v4175
  %v4260 = vunpack.c.l.b16 %v4176
  %v4261 = vunpack.c.h.b16 %v4175
  %v4262 = vunpack.c.h.b16 %v4176
  %v4263 = vunpack.c.l.b16 %v4177
  %v4264 = vunpack.c.l.b16 %v4178
  %v4265 = vunpack.c.h.b16 %v4177
  %v4266 = vunpack.c.h.b16 %v4178
  %v4267 = vunpack.c.l.b16 %v4179
  %v4268 = vunpack.c.l.b16 %v4180
  %v4269 = vunpack.c.h.b16 %v4179
  %v4270 = vunpack.c.h.b16 %v4180
  %v4271 = vunpack.c.l.b16 %v4181
  %v4272 = vunpack.c.l.b16 %v4182
  %v4273 = vunpack.c.h.b16 %v4181
  %v4274 = vunpack.c.h.b16 %v4182
  %v4275 = vunpack.c.l.b16 %v4183
  %v4276 = vunpack.c.l.b16 %v4184
  %v4277 = vunpack.c.h.b16 %v4183
  %v4278 = vunpack.c.h.b16 %v4184
  %v4279 = vunpack.c.l.b16 %v4185
  %v4280 = vunpack.c.l.b16 %v4186
  %v4281 = vunpack.c.h.b16 %v4185
  %v4282 = vunpack.c.h.b16 %v4186
  %v4283 = vpack.c.b16 %v4220, %v4219
  %v4284 = vpack.c.b16 %v4222, %v4221
  %v4285 = vpack.c.b16 %v4224, %v4223
  %v4286 = vpack.c.b16 %v4226, %v4225
  %v4287 = vpack.c.b16 %v4228, %v4227
  %v4288 = vpack.c.b16 %v4230, %v4229
  %v4289 = vpack.c.b16 %v4232, %v4231
  %v4290 = vpack.c.b16 %v4234, %v4233
  %v4291 = vpack.c.b16 %v4236, %v4235
  %v4292 = vpack.c.b16 %v4238, %v4237
  %v4293 = vpack.c.b16 %v4240, %v4239
  %v4294 = vpack.c.b16 %v4242, %v4241
  %v4295 = vpack.c.b16 %v4244, %v4243
  %v4296 = vpack.c.b16 %v4246, %v4245
  %v4297 = vpack.c.b16 %v4248, %v4247
  %v4298 = vpack.c.b16 %v4250, %v4249
  %v4299 = vpack.c.b16 %v4252, %v4251
  %v4300 = vpack.c.b16 %v4254, %v4253
  %v4301 = vpack.c.b16 %v4256, %v4255
  %v4302 = vpack.c.b16 %v4258, %v4257
  %v4303 = vpack.c.b16 %v4260, %v4259
  %v4304 = vpack.c.b16 %v4262, %v4261
  %v4305 = vpack.c.b16 %v4264, %v4263
  %v4306 = vpack.c.b16 %v4266, %v4265
  %v4307 = vpack.c.b16 %v4268, %v4267
  %v4308 = vpack.c.b16 %v4270, %v4269
  %v4309 = vpack.c.b16 %v4272, %v4271
  %v4310 = vpack.c.b16 %v4274, %v4273
  %v4311 = vpack.c.b16 %v4276, %v4275
  %v4312 = vpack.c.b16 %v4278, %v4277
  %v4313 = vpack.c.b16 %v4280, %v4279
  %v4314 = vpack.c.b16 %v4282, %v4281
  %vm4347 = vcmask 1043456
  %vm4348 = vcmask 318468
  %vm4349 = vmor %vm4348, %vm4347
  %4350 = vst.msk [vmem:[#allocation3] sm:$0xff] %vm4349, %v4283
  %4351 = vst.msk [vmem:[#allocation3 + $0x8] sm:$0xff] %vm4349, %v4284
  %4352 = vst.msk [vmem:[#allocation3 + $0x10] sm:$0xff] %vm4349, %v4285
  %4353 = vst.msk [vmem:[#allocation3 + $0x18] sm:$0xff] %vm4349, %v4286
  %4354 = vst.msk [vmem:[#allocation3 + $0x20] sm:$0xff] %vm4349, %v4287
  %4355 = vst.msk [vmem:[#allocation3 + $0x28] sm:$0xff] %vm4349, %v4288
  %4356 = vst.msk [vmem:[#allocation3 + $0x30] sm:$0xff] %vm4349, %v4289
  %4357 = vst.msk [vmem:[#allocation3 + $0x38] sm:$0xff] %vm4349, %v4290
  %4358 = vst.msk [vmem:[#allocation3 + $0x40] sm:$0xff] %vm4349, %v4291
  %4359 = vst.msk [vmem:[#allocation3 + $0x48] sm:$0xff] %vm4349, %v4292
  %4360 = vst.msk [vmem:[#allocation3 + $0x50] sm:$0xff] %vm4349, %v4293
  %4361 = vst.msk [vmem:[#allocation3 + $0x58] sm:$0xff] %vm4349, %v4294
  %4362 = vst.msk [vmem:[#allocation3 + $0x60] sm:$0xff] %vm4349, %v4295
  %4363 = vst.msk [vmem:[#allocation3 + $0x68] sm:$0xff] %vm4349, %v4296
  %4364 = vst.msk [vmem:[#allocation3 + $0x70] sm:$0xff] %vm4349, %v4297
  %4365 = vst.msk [vmem:[#allocation3 + $0x78] sm:$0xff] %vm4349, %v4298
  %4366 = vst.msk [vmem:[#allocation3 + $0x80] sm:$0xff] %vm4349, %v4299
  %4367 = vst.msk [vmem:[#allocation3 + $0x88] sm:$0xff] %vm4349, %v4300
  %4368 = vst.msk [vmem:[#allocation3 + $0x90] sm:$0xff] %vm4349, %v4301
  %4369 = vst.msk [vmem:[#allocation3 + $0x98] sm:$0xff] %vm4349, %v4302
  %4370 = vst.msk [vmem:[#allocation3 + $0xa0] sm:$0xff] %vm4349, %v4303
  %4371 = vst.msk [vmem:[#allocation3 + $0xa8] sm:$0xff] %vm4349, %v4304
  %4372 = vst.msk [vmem:[#allocation3 + $0xb0] sm:$0xff] %vm4349, %v4305
  %4373 = vst.msk [vmem:[#allocation3 + $0xb8] sm:$0xff] %vm4349, %v4306
  %4374 = vst.msk [vmem:[#allocation3 + $0xc0] sm:$0xff] %vm4349, %v4307
  %4375 = vst.msk [vmem:[#allocation3 + $0xc8] sm:$0xff] %vm4349, %v4308
  %4376 = vst.msk [vmem:[#allocation3 + $0xd0] sm:$0xff] %vm4349, %v4309
  %4377 = vst.msk [vmem:[#allocation3 + $0xd8] sm:$0xff] %vm4349, %v4310
  %4378 = vst.msk [vmem:[#allocation3 + $0xe0] sm:$0xff] %vm4349, %v4311
  %4379 = vst.msk [vmem:[#allocation3 + $0xe8] sm:$0xff] %vm4349, %v4312
  %4380 = vst.msk [vmem:[#allocation3 + $0xf0] sm:$0xff] %vm4349, %v4313
  %vm4381 = vcmask 1041408
  %vm4382 = vsmask.f32 1280
  %vm4383 = vmand %vm4381, %vm4382
  %vm4384 = vcmask 316420
  %vm4385 = vsmask.f32 5376
  %vm4386 = vmand %vm4384, %vm4385
  %vm4387 = vmor %vm4386, %vm4383
  %v4388 = vld [vmem:[#allocation3 + $0xf8] sm:$0x33]
  %v4389 = vsel %vm4387, %v4314, %v4388
  %4390 = vst [vmem:[#allocation3 + $0xf8] sm:$0x33] %v4389
  %v4391 = vld [vmem:[#allocation3] sm:$0xff]
  %v4392 = vld [vmem:[#allocation3 + $0x8] sm:$0xff]
  %v4393 = vld [vmem:[#allocation3 + $0x10] sm:$0xff]
  %v4394 = vld [vmem:[#allocation3 + $0x18] sm:$0xff]
  %v4395 = vld [vmem:[#allocation3 + $0x20] sm:$0xff]
  %v4396 = vld [vmem:[#allocation3 + $0x28] sm:$0xff]
  %v4397 = vld [vmem:[#allocation3 + $0x30] sm:$0xff]
  %v4398 = vld [vmem:[#allocation3 + $0x38] sm:$0xff]
  %v4399 = vld [vmem:[#allocation3 + $0x40] sm:$0xff]
  %v4400 = vld [vmem:[#allocation3 + $0x48] sm:$0xff]
  %v4401 = vld [vmem:[#allocation3 + $0x50] sm:$0xff]
  %v4402 = vld [vmem:[#allocation3 + $0x58] sm:$0xff]
  %v4403 = vld [vmem:[#allocation3 + $0x60] sm:$0xff]
  %v4404 = vld [vmem:[#allocation3 + $0x68] sm:$0xff]
  %v4405 = vld [vmem:[#allocation3 + $0x70] sm:$0xff]
  %v4406 = vld [vmem:[#allocation3 + $0x78] sm:$0xff]
  %v4407 = vld [vmem:[#allocation3 + $0x80] sm:$0xff]
  %v4408 = vld [vmem:[#allocation3 + $0x88] sm:$0xff]
  %v4409 = vld [vmem:[#allocation3 + $0x90] sm:$0xff]
  %v4410 = vld [vmem:[#allocation3 + $0x98] sm:$0xff]
  %v4411 = vld [vmem:[#allocation3 + $0xa0] sm:$0xff]
  %v4412 = vld [vmem:[#allocation3 + $0xa8] sm:$0xff]
  %v4413 = vld [vmem:[#allocation3 + $0xb0] sm:$0xff]
  %v4414 = vld [vmem:[#allocation3 + $0xb8] sm:$0xff]
  %v4415 = vld [vmem:[#allocation3 + $0xc0] sm:$0xff]
  %v4416 = vld [vmem:[#allocation3 + $0xc8] sm:$0xff]
  %v4417 = vld [vmem:[#allocation3 + $0xd0] sm:$0xff]
  %v4418 = vld [vmem:[#allocation3 + $0xd8] sm:$0xff]
  %v4419 = vld [vmem:[#allocation3 + $0xe0] sm:$0xff]
  %v4420 = vld [vmem:[#allocation3 + $0xe8] sm:$0xff]
  %v4421 = vld [vmem:[#allocation3 + $0xf0] sm:$0x33]
  %v4422 = vld [vmem:[%s3] sm:$0xff]
  %v4423 = vld [vmem:[%s3 + $0x8] sm:$0xff]
  %v4424 = vld [vmem:[%s3 + $0x10] sm:$0xff]
  %v4425 = vld [vmem:[%s3 + $0x18] sm:$0xff]
  %v4426 = vld [vmem:[%s3 + $0x20] sm:$0xff]
  %v4427 = vld [vmem:[%s3 + $0x28] sm:$0xff]
  %v4428 = vld [vmem:[%s3 + $0x30] sm:$0xff]
  %v4429 = vld [vmem:[%s3 + $0x38] sm:$0xff]
  %v4430 = vld [vmem:[%s3 + $0x40] sm:$0xff]
  %v4431 = vld [vmem:[%s3 + $0x48] sm:$0xff]
  %v4432 = vld [vmem:[%s3 + $0x50] sm:$0xff]
  %v4433 = vld [vmem:[%s3 + $0x58] sm:$0xff]
  %v4434 = vld [vmem:[%s3 + $0x60] sm:$0xff]
  %v4435 = vld [vmem:[%s3 + $0x68] sm:$0xff]
  %v4436 = vld [vmem:[%s3 + $0x70] sm:$0xff]
  %v4437 = vld [vmem:[%s3 + $0x78] sm:$0xff]
  %v4438 = vld [vmem:[%s3 + $0x80] sm:$0xff]
  %v4439 = vld [vmem:[%s3 + $0x88] sm:$0xff]
  %v4440 = vld [vmem:[%s3 + $0x90] sm:$0xff]
  %v4441 = vld [vmem:[%s3 + $0x98] sm:$0xff]
  %v4442 = vld [vmem:[%s3 + $0xa0] sm:$0xff]
  %v4443 = vld [vmem:[%s4] sm:$0x3]
  %v4445 = vlaneseq
  %v4446 = vshrl.u32 %v4445, 7
  %v4447 = vsub.s32 0, %v4446
  %v4448 = vrot.slane %v4443, %v4447
  %v4449 = vlaneseq
  %v4450 = vshrl.u32 %v4449, 7
  %v4451 = vsub.s32 1, %v4450
  %v4452 = vrot.slane %v4443, %v4451
  %v4486 = vunpack.c.l.b16 %v4391
  %v4487 = vunpack.c.h.b16 %v4391
  %v4488 = vunpack.c.l.b16 %v4392
  %v4489 = vunpack.c.h.b16 %v4392
  %v4490 = vunpack.c.l.b16 %v4393
  %v4491 = vunpack.c.h.b16 %v4393
  %v4492 = vunpack.c.l.b16 %v4394
  %v4493 = vunpack.c.h.b16 %v4394
  %v4494 = vunpack.c.l.b16 %v4395
  %v4495 = vunpack.c.h.b16 %v4395
  %v4496 = vunpack.c.l.b16 %v4396
  %v4497 = vunpack.c.h.b16 %v4396
  %v4498 = vunpack.c.l.b16 %v4397
  %v4499 = vunpack.c.h.b16 %v4397
  %v4500 = vunpack.c.l.b16 %v4398
  %v4501 = vunpack.c.h.b16 %v4398
  %v4502 = vunpack.c.l.b16 %v4399
  %v4503 = vunpack.c.h.b16 %v4399
  %v4504 = vunpack.c.l.b16 %v4400
  %v4505 = vunpack.c.h.b16 %v4400
  %v4506 = vunpack.c.l.b16 %v4401
  %v4507 = vunpack.c.h.b16 %v4401
  %v4508 = vunpack.c.l.b16 %v4402
  %v4509 = vunpack.c.h.b16 %v4402
  %v4510 = vunpack.c.l.b16 %v4403
  %v4511 = vunpack.c.h.b16 %v4403
  %v4512 = vunpack.c.l.b16 %v4404
  %v4513 = vunpack.c.h.b16 %v4404
  %v4514 = vunpack.c.l.b16 %v4405
  %v4515 = vunpack.c.h.b16 %v4405
  %v4516 = vunpack.c.l.b16 %v4406
  %v4517 = vunpack.c.h.b16 %v4406
  %v4518 = vunpack.c.l.b16 %v4407
  %v4519 = vunpack.c.h.b16 %v4407
  %v4520 = vunpack.c.l.b16 %v4408
  %v4521 = vunpack.c.h.b16 %v4408
  %v4522 = vunpack.c.l.b16 %v4409
  %v4523 = vunpack.c.h.b16 %v4409
  %v4524 = vunpack.c.l.b16 %v4410
  %v4525 = vunpack.c.h.b16 %v4410
  %v4526 = vunpack.c.l.b16 %v4411
  %v4527 = vunpack.c.h.b16 %v4411
  %v4528 = vunpack.c.l.b16 %v4412
  %v4529 = vunpack.c.h.b16 %v4412
  %v4530 = vunpack.c.l.b16 %v4413
  %v4531 = vunpack.c.h.b16 %v4413
  %v4532 = vunpack.c.l.b16 %v4414
  %v4533 = vunpack.c.h.b16 %v4414
  %v4534 = vunpack.c.l.b16 %v4415
  %v4535 = vunpack.c.h.b16 %v4415
  %v4536 = vunpack.c.l.b16 %v4416
  %v4537 = vunpack.c.h.b16 %v4416
  %v4538 = vunpack.c.l.b16 %v4417
  %v4539 = vunpack.c.h.b16 %v4417
  %v4540 = vunpack.c.l.b16 %v4418
  %v4541 = vunpack.c.h.b16 %v4418
  %v4542 = vunpack.c.l.b16 %v4419
  %v4543 = vunpack.c.h.b16 %v4419
  %v4544 = vunpack.c.l.b16 %v4420
  %v4545 = vunpack.c.h.b16 %v4420
  %v4546 = vunpack.c.l.b16 %v4421
  %v4547 = vunpack.c.h.b16 %v4421
  %v4548 = vpack.c.b16 %v4488, %v4486
  %v4549 = vpack.c.b16 %v4489, %v4487
  %v4550 = vpack.c.b16 %v4492, %v4490
  %v4551 = vpack.c.b16 %v4493, %v4491
  %v4552 = vpack.c.b16 %v4496, %v4494
  %v4553 = vpack.c.b16 %v4497, %v4495
  %v4554 = vpack.c.b16 %v4500, %v4498
  %v4555 = vpack.c.b16 %v4501, %v4499
  %v4556 = vpack.c.b16 %v4504, %v4502
  %v4557 = vpack.c.b16 %v4505, %v4503
  %v4558 = vpack.c.b16 %v4508, %v4506
  %v4559 = vpack.c.b16 %v4509, %v4507
  %v4560 = vpack.c.b16 %v4512, %v4510
  %v4561 = vpack.c.b16 %v4513, %v4511
  %v4562 = vpack.c.b16 %v4516, %v4514
  %v4563 = vpack.c.b16 %v4517, %v4515
  %v4564 = vpack.c.b16 %v4520, %v4518
  %v4565 = vpack.c.b16 %v4521, %v4519
  %v4566 = vpack.c.b16 %v4524, %v4522
  %v4567 = vpack.c.b16 %v4525, %v4523
  %v4568 = vpack.c.b16 %v4528, %v4526
  %v4569 = vpack.c.b16 %v4529, %v4527
  %v4570 = vpack.c.b16 %v4532, %v4530
  %v4571 = vpack.c.b16 %v4533, %v4531
  %v4572 = vpack.c.b16 %v4536, %v4534
  %v4573 = vpack.c.b16 %v4537, %v4535
  %v4574 = vpack.c.b16 %v4540, %v4538
  %v4575 = vpack.c.b16 %v4541, %v4539
  %v4576 = vpack.c.b16 %v4544, %v4542
  %v4577 = vpack.c.b16 %v4545, %v4543
  %v4578 = vpack.c.b16 %v4546, %v4546
  %v4579 = vpack.c.b16 %v4547, %v4547
  %v4617 = vunpack.c.l.b16 %v4422
  %v4618 = vunpack.c.h.b16 %v4422
  %v4619 = vunpack.c.l.b16 %v4423
  %v4620 = vunpack.c.h.b16 %v4423
  %v4621 = vunpack.c.l.b16 %v4424
  %v4622 = vunpack.c.h.b16 %v4424
  %v4623 = vunpack.c.l.b16 %v4425
  %v4624 = vunpack.c.h.b16 %v4425
  %v4625 = vunpack.c.l.b16 %v4426
  %v4626 = vunpack.c.h.b16 %v4426
  %v4627 = vunpack.c.l.b16 %v4427
  %v4628 = vunpack.c.h.b16 %v4427
  %v4629 = vunpack.c.l.b16 %v4428
  %v4630 = vunpack.c.h.b16 %v4428
  %v4631 = vunpack.c.l.b16 %v4429
  %v4632 = vunpack.c.h.b16 %v4429
  %v4633 = vunpack.c.l.b16 %v4430
  %v4634 = vunpack.c.h.b16 %v4430
  %v4635 = vunpack.c.l.b16 %v4431
  %v4636 = vunpack.c.h.b16 %v4431
  %v4637 = vunpack.c.l.b16 %v4432
  %v4638 = vunpack.c.h.b16 %v4432
  %v4639 = vunpack.c.l.b16 %v4433
  %v4640 = vunpack.c.h.b16 %v4433
  %v4641 = vunpack.c.l.b16 %v4434
  %v4642 = vunpack.c.h.b16 %v4434
  %v4643 = vunpack.c.l.b16 %v4435
  %v4644 = vunpack.c.h.b16 %v4435
  %v4645 = vunpack.c.l.b16 %v4436
  %v4646 = vunpack.c.h.b16 %v4436
  %v4647 = vunpack.c.l.b16 %v4437
  %v4648 = vunpack.c.h.b16 %v4437
  %v4649 = vunpack.c.l.b16 %v4438
  %v4650 = vunpack.c.h.b16 %v4438
  %v4651 = vunpack.c.l.b16 %v4439
  %v4652 = vunpack.c.h.b16 %v4439
  %v4653 = vunpack.c.l.b16 %v4440
  %v4654 = vunpack.c.h.b16 %v4440
  %v4655 = vunpack.c.l.b16 %v4441
  %v4656 = vunpack.c.h.b16 %v4441
  %v4657 = vunpack.c.l.b16 %v4442
  %v4658 = vunpack.c.h.b16 %v4442
  %v4659 = vpack.c.b16 %v4619, %v4617
  %v4660 = vpack.c.b16 %v4620, %v4618
  %v4661 = vpack.c.b16 %v4623, %v4621
  %v4662 = vpack.c.b16 %v4624, %v4622
  %v4663 = vpack.c.b16 %v4627, %v4625
  %v4664 = vpack.c.b16 %v4628, %v4626
  %v4665 = vpack.c.b16 %v4631, %v4629
  %v4666 = vpack.c.b16 %v4632, %v4630
  %v4667 = vpack.c.b16 %v4635, %v4633
  %v4668 = vpack.c.b16 %v4636, %v4634
  %v4669 = vpack.c.b16 %v4639, %v4637
  %v4670 = vpack.c.b16 %v4640, %v4638
  %v4671 = vpack.c.b16 %v4643, %v4641
  %v4672 = vpack.c.b16 %v4644, %v4642
  %v4673 = vpack.c.b16 %v4647, %v4645
  %v4674 = vpack.c.b16 %v4648, %v4646
  %v4675 = vpack.c.b16 %v4651, %v4649
  %v4676 = vpack.c.b16 %v4652, %v4650
  %v4677 = vpack.c.b16 %v4655, %v4653
  %v4678 = vpack.c.b16 %v4656, %v4654
  %v4679 = vpack.c.b16 %v4657, %v4657
  %v4680 = vpack.c.b16 %v4658, %v4658
  %vm4701 = vcmask 318464
  %v4703 = vsel %vm4701, %v4549, 0
  %v4706 = vsel %vm4701, %v4551, 0
  %v4709 = vsel %vm4701, %v4553, 0
  %v4712 = vsel %vm4701, %v4555, 0
  %v4715 = vsel %vm4701, %v4557, 0
  %v4718 = vsel %vm4701, %v4559, 0
  %v4721 = vsel %vm4701, %v4561, 0
  %v4724 = vsel %vm4701, %v4563, 0
  %v4727 = vsel %vm4701, %v4565, 0
  %v4730 = vsel %vm4701, %v4567, 0
  %v4733 = vsel %vm4701, %v4569, 0
  %v4736 = vsel %vm4701, %v4571, 0
  %v4739 = vsel %vm4701, %v4573, 0
  %v4742 = vsel %vm4701, %v4575, 0
  %v4745 = vsel %vm4701, %v4577, 0
  %v4748 = vsel %vm4701, %v4579, 0
  %vm4750 = vcmask 1042432
  %v4751 = vsel %vm4750, 4294967295, 65535
  %v4752 = vsel %vm4347, %v4751, 0
  %v4754 = vand.u32 %v4679, %v4752
  %v4757 = vand.u32 %v4680, %v4752
  %4759 = vmatprep.subr.bf16.mxu0 %v4674
  %4760 = vmatpush1.bf16.msra.mxu0 %v4673
  %4761 = vmatprep.subr.bf16.mxu0 %v4672
  %4762 = vmatpush1.bf16.msra.mxu0 %v4671
  %4763 = vmatprep.subr.bf16.mxu0 %v4670
  %4764 = vmatpush1.bf16.msra.mxu0 %v4669
  %4765 = vmatprep.subr.bf16.mxu0 %v4668
  %4766 = vmatpush1.bf16.msra.mxu0 %v4667
  %4767 = vmatprep.subr.bf16.mxu0 %v4666
  %4768 = vmatpush1.bf16.msra.mxu0 %v4665
  %4769 = vmatprep.subr.bf16.mxu0 %v4664
  %4770 = vmatpush1.bf16.msra.mxu0 %v4663
  %4771 = vmatprep.subr.bf16.mxu0 %v4662
  %4772 = vmatpush1.bf16.msra.mxu0 %v4661
  %4773 = vmatprep.subr.bf16.mxu0 %v4660
  %4774 = vmatpush1.bf16.msra.mxu0 %v4659
  %4775 = vmatprep.subr.bf16.mxu0 0
  %4776 = vmatpush2.bf16.msra.mxu0 0
  %4777 = vmatprep.subr.bf16.mxu0 0
  %4778 = vmatpush2.bf16.msra.mxu0 0
  %4779 = vmatprep.subr.bf16.mxu0 0
  %4780 = vmatpush2.bf16.msra.mxu0 0
  %4781 = vmatprep.subr.bf16.mxu0 0
  %4782 = vmatpush2.bf16.msra.mxu0 0
  %4783 = vmatprep.subr.bf16.mxu0 0
  %4784 = vmatpush2.bf16.msra.mxu0 0
  %4785 = vmatprep.subr.bf16.mxu0 %v4757
  %4786 = vmatpush2.bf16.msra.mxu0 %v4754
  %4787 = vmatprep.subr.bf16.mxu0 %v4678
  %4788 = vmatpush2.bf16.msra.mxu0 %v4677
  %4789 = vmatprep.subr.bf16.mxu0 %v4676
  %4790 = vmatpush2.bf16.msra.mxu0 %v4675
  %4791 = vmatprep.mubr.bf16.mxu0 %v4703
  %4792 = vmatmul.mubr.bf16.gmra.mxu0 %v4548
  %v4793 = vpop.f32.mrf.mxu0
  %v4794 = vadd.f32 %v4448, %v4793
  %v4795 = vpop.f32.mrf.mxu0
  %v4796 = vadd.f32 %v4452, %v4795
  %v4797 = vpop.f32.mrf.mxu0
  %v4798 = vadd.f32 %v4448, %v4797
  %v4799 = vpop.f32.mrf.mxu0
  %v4800 = vadd.f32 %v4452, %v4799
  %4801 = vmatprep.mubr.bf16.mxu0 %v4706
  %4802 = vmatmul.mubr.bf16.gmra.mxu0 %v4550
  %v4803 = vpop.f32.mrf.mxu0
  %v4804 = vadd.f32 %v4448, %v4803
  %v4805 = vpop.f32.mrf.mxu0
  %v4806 = vadd.f32 %v4452, %v4805
  %v4807 = vpop.f32.mrf.mxu0
  %v4808 = vadd.f32 %v4448, %v4807
  %v4809 = vpop.f32.mrf.mxu0
  %v4810 = vadd.f32 %v4452, %v4809
  %4811 = vmatprep.mubr.bf16.mxu0 %v4709
  %4812 = vmatmul.mubr.bf16.gmra.mxu0 %v4552
  %v4813 = vpop.f32.mrf.mxu0
  %v4814 = vadd.f32 %v4448, %v4813
  %v4815 = vpop.f32.mrf.mxu0
  %v4816 = vadd.f32 %v4452, %v4815
  %v4817 = vpop.f32.mrf.mxu0
  %v4818 = vadd.f32 %v4448, %v4817
  %v4819 = vpop.f32.mrf.mxu0
  %v4820 = vadd.f32 %v4452, %v4819
  %4821 = vmatprep.mubr.bf16.mxu0 %v4712
  %4822 = vmatmul.mubr.bf16.gmra.mxu0 %v4554
  %v4823 = vpop.f32.mrf.mxu0
  %v4824 = vadd.f32 %v4448, %v4823
  %v4825 = vpop.f32.mrf.mxu0
  %v4826 = vadd.f32 %v4452, %v4825
  %v4827 = vpop.f32.mrf.mxu0
  %v4828 = vadd.f32 %v4448, %v4827
  %v4829 = vpop.f32.mrf.mxu0
  %v4830 = vadd.f32 %v4452, %v4829
  %4831 = vmatprep.mubr.bf16.mxu0 %v4715
  %4832 = vmatmul.mubr.bf16.gmra.mxu0 %v4556
  %v4833 = vpop.f32.mrf.mxu0
  %v4834 = vadd.f32 %v4448, %v4833
  %v4835 = vpop.f32.mrf.mxu0
  %v4836 = vadd.f32 %v4452, %v4835
  %v4837 = vpop.f32.mrf.mxu0
  %v4838 = vadd.f32 %v4448, %v4837
  %v4839 = vpop.f32.mrf.mxu0
  %v4840 = vadd.f32 %v4452, %v4839
  %4841 = vmatprep.mubr.bf16.mxu0 %v4718
  %4842 = vmatmul.mubr.bf16.gmra.mxu0 %v4558
  %v4843 = vpop.f32.mrf.mxu0
  %v4844 = vadd.f32 %v4448, %v4843
  %v4845 = vpop.f32.mrf.mxu0
  %v4846 = vadd.f32 %v4452, %v4845
  %v4847 = vpop.f32.mrf.mxu0
  %v4848 = vadd.f32 %v4448, %v4847
  %v4849 = vpop.f32.mrf.mxu0
  %v4850 = vadd.f32 %v4452, %v4849
  %4851 = vmatprep.mubr.bf16.mxu0 %v4721
  %4852 = vmatmul.mubr.bf16.gmra.mxu0 %v4560
  %v4853 = vpop.f32.mrf.mxu0
  %v4854 = vadd.f32 %v4448, %v4853
  %v4855 = vpop.f32.mrf.mxu0
  %v4856 = vadd.f32 %v4452, %v4855
  %v4857 = vpop.f32.mrf.mxu0
  %v4858 = vadd.f32 %v4448, %v4857
  %v4859 = vpop.f32.mrf.mxu0
  %v4860 = vadd.f32 %v4452, %v4859
  %4861 = vmatprep.mubr.bf16.mxu0 %v4724
  %4862 = vmatmul.mubr.bf16.gmra.mxu0 %v4562
  %v4863 = vpop.f32.mrf.mxu0
  %v4864 = vadd.f32 %v4448, %v4863
  %v4865 = vpop.f32.mrf.mxu0
  %v4866 = vadd.f32 %v4452, %v4865
  %v4867 = vpop.f32.mrf.mxu0
  %v4868 = vadd.f32 %v4448, %v4867
  %v4869 = vpop.f32.mrf.mxu0
  %v4870 = vadd.f32 %v4452, %v4869
  %4871 = vmatprep.mubr.bf16.mxu0 %v4727
  %4872 = vmatmul.mubr.bf16.gmra.mxu0 %v4564
  %v4873 = vpop.f32.mrf.mxu0
  %v4874 = vadd.f32 %v4448, %v4873
  %v4875 = vpop.f32.mrf.mxu0
  %v4876 = vadd.f32 %v4452, %v4875
  %v4877 = vpop.f32.mrf.mxu0
  %v4878 = vadd.f32 %v4448, %v4877
  %v4879 = vpop.f32.mrf.mxu0
  %v4880 = vadd.f32 %v4452, %v4879
  %4881 = vmatprep.mubr.bf16.mxu0 %v4730
  %4882 = vmatmul.mubr.bf16.gmra.mxu0 %v4566
  %v4883 = vpop.f32.mrf.mxu0
  %v4884 = vadd.f32 %v4448, %v4883
  %v4885 = vpop.f32.mrf.mxu0
  %v4886 = vadd.f32 %v4452, %v4885
  %v4887 = vpop.f32.mrf.mxu0
  %v4888 = vadd.f32 %v4448, %v4887
  %v4889 = vpop.f32.mrf.mxu0
  %v4890 = vadd.f32 %v4452, %v4889
  %4891 = vmatprep.mubr.bf16.mxu0 %v4733
  %4892 = vmatmul.mubr.bf16.gmra.mxu0 %v4568
  %v4893 = vpop.f32.mrf.mxu0
  %v4894 = vadd.f32 %v4448, %v4893
  %v4895 = vpop.f32.mrf.mxu0
  %v4896 = vadd.f32 %v4452, %v4895
  %v4897 = vpop.f32.mrf.mxu0
  %v4898 = vadd.f32 %v4448, %v4897
  %v4899 = vpop.f32.mrf.mxu0
  %v4900 = vadd.f32 %v4452, %v4899
  %4901 = vmatprep.mubr.bf16.mxu0 %v4736
  %4902 = vmatmul.mubr.bf16.gmra.mxu0 %v4570
  %v4903 = vpop.f32.mrf.mxu0
  %v4904 = vadd.f32 %v4448, %v4903
  %v4905 = vpop.f32.mrf.mxu0
  %v4906 = vadd.f32 %v4452, %v4905
  %v4907 = vpop.f32.mrf.mxu0
  %v4908 = vadd.f32 %v4448, %v4907
  %v4909 = vpop.f32.mrf.mxu0
  %v4910 = vadd.f32 %v4452, %v4909
  %4911 = vmatprep.mubr.bf16.mxu0 %v4739
  %4912 = vmatmul.mubr.bf16.gmra.mxu0 %v4572
  %v4913 = vpop.f32.mrf.mxu0
  %v4914 = vadd.f32 %v4448, %v4913
  %v4915 = vpop.f32.mrf.mxu0
  %v4916 = vadd.f32 %v4452, %v4915
  %v4917 = vpop.f32.mrf.mxu0
  %v4918 = vadd.f32 %v4448, %v4917
  %v4919 = vpop.f32.mrf.mxu0
  %v4920 = vadd.f32 %v4452, %v4919
  %4921 = vmatprep.mubr.bf16.mxu0 %v4742
  %4922 = vmatmul.mubr.bf16.gmra.mxu0 %v4574
  %v4923 = vpop.f32.mrf.mxu0
  %v4924 = vadd.f32 %v4448, %v4923
  %v4925 = vpop.f32.mrf.mxu0
  %v4926 = vadd.f32 %v4452, %v4925
  %v4927 = vpop.f32.mrf.mxu0
  %v4928 = vadd.f32 %v4448, %v4927
  %v4929 = vpop.f32.mrf.mxu0
  %v4930 = vadd.f32 %v4452, %v4929
  %4931 = vmatprep.mubr.bf16.mxu0 %v4745
  %4932 = vmatmul.mubr.bf16.gmra.mxu0 %v4576
  %v4933 = vpop.f32.mrf.mxu0
  %v4934 = vadd.f32 %v4448, %v4933
  %v4935 = vpop.f32.mrf.mxu0
  %v4936 = vadd.f32 %v4452, %v4935
  %v4937 = vpop.f32.mrf.mxu0
  %v4938 = vadd.f32 %v4448, %v4937
  %v4939 = vpop.f32.mrf.mxu0
  %v4940 = vadd.f32 %v4452, %v4939
  %4941 = vmatprep.mubr.bf16.mxu0 %v4748
  %4942 = vmatmul.mubr.bf16.gmra.mxu0 %v4578
  %v4943 = vpop.f32.mrf.mxu0
  %v4944 = vadd.f32 %v4448, %v4943
  %v4945 = vpop.f32.mrf.mxu0
  %v4946 = vadd.f32 %v4452, %v4945
  %v4947 = vpop.f32.mrf.mxu0
  %v4948 = vpop.f32.mrf.mxu0
  %4949 = vdwg.mxu0
  %4950 = vst [vmem:[#allocation4] sm:$0xff] %v4794
  %vm4951 = vcmask 261120
  %4952 = vst.msk [vmem:[#allocation4 + $0x8] sm:$0xff] %vm4951, %v4796
  %4953 = vst [vmem:[#allocation4 + $0x10] sm:$0xff] %v4798
  %4954 = vst.msk [vmem:[#allocation4 + $0x18] sm:$0xff] %vm4951, %v4800
  %4955 = vst [vmem:[#allocation4 + $0x20] sm:$0xff] %v4804
  %4956 = vst.msk [vmem:[#allocation4 + $0x28] sm:$0xff] %vm4951, %v4806
  %4957 = vst [vmem:[#allocation4 + $0x30] sm:$0xff] %v4808
  %4958 = vst.msk [vmem:[#allocation4 + $0x38] sm:$0xff] %vm4951, %v4810
  %4959 = vst [vmem:[#allocation4 + $0x40] sm:$0xff] %v4814
  %4960 = vst.msk [vmem:[#allocation4 + $0x48] sm:$0xff] %vm4951, %v4816
  %4961 = vst [vmem:[#allocation4 + $0x50] sm:$0xff] %v4818
  %4962 = vst.msk [vmem:[#allocation4 + $0x58] sm:$0xff] %vm4951, %v4820
  %4963 = vst [vmem:[#allocation4 + $0x60] sm:$0xff] %v4824
  %4964 = vst.msk [vmem:[#allocation4 + $0x68] sm:$0xff] %vm4951, %v4826
  %4965 = vst [vmem:[#allocation4 + $0x70] sm:$0xff] %v4828
  %4966 = vst.msk [vmem:[#allocation4 + $0x78] sm:$0xff] %vm4951, %v4830
  %4967 = vst [vmem:[#allocation4 + $0x80] sm:$0xff] %v4834
  %4968 = vst.msk [vmem:[#allocation4 + $0x88] sm:$0xff] %vm4951, %v4836
  %4969 = vst [vmem:[#allocation4 + $0x90] sm:$0xff] %v4838
  %4970 = vst.msk [vmem:[#allocation4 + $0x98] sm:$0xff] %vm4951, %v4840
  %4971 = vst [vmem:[#allocation4 + $0xa0] sm:$0xff] %v4844
  %4972 = vst.msk [vmem:[#allocation4 + $0xa8] sm:$0xff] %vm4951, %v4846
  %4973 = vst [vmem:[#allocation4 + $0xb0] sm:$0xff] %v4848
  %4974 = vst.msk [vmem:[#allocation4 + $0xb8] sm:$0xff] %vm4951, %v4850
  %4975 = vst [vmem:[#allocation4 + $0xc0] sm:$0xff] %v4854
  %4976 = vst.msk [vmem:[#allocation4 + $0xc8] sm:$0xff] %vm4951, %v4856
  %4977 = vst [vmem:[#allocation4 + $0xd0] sm:$0xff] %v4858
  %4978 = vst.msk [vmem:[#allocation4 + $0xd8] sm:$0xff] %vm4951, %v4860
  %4979 = vst [vmem:[#allocation4 + $0xe0] sm:$0xff] %v4864
  %4980 = vst.msk [vmem:[#allocation4 + $0xe8] sm:$0xff] %vm4951, %v4866
  %4981 = vst [vmem:[#allocation4 + $0xf0] sm:$0xff] %v4868
  %4982 = vst.msk [vmem:[#allocation4 + $0xf8] sm:$0xff] %vm4951, %v4870
  %4983 = vst [vmem:[#allocation4 + $0x100] sm:$0xff] %v4874
  %4984 = vst.msk [vmem:[#allocation4 + $0x108] sm:$0xff] %vm4951, %v4876
  %4985 = vst [vmem:[#allocation4 + $0x110] sm:$0xff] %v4878
  %4986 = vst.msk [vmem:[#allocation4 + $0x118] sm:$0xff] %vm4951, %v4880
  %4987 = vst [vmem:[#allocation4 + $0x120] sm:$0xff] %v4884
  %4988 = vst.msk [vmem:[#allocation4 + $0x128] sm:$0xff] %vm4951, %v4886
  %4989 = vst [vmem:[#allocation4 + $0x130] sm:$0xff] %v4888
  %4990 = vst.msk [vmem:[#allocation4 + $0x138] sm:$0xff] %vm4951, %v4890
  %4991 = vst [vmem:[#allocation4 + $0x140] sm:$0xff] %v4894
  %4992 = vst.msk [vmem:[#allocation4 + $0x148] sm:$0xff] %vm4951, %v4896
  %4993 = vst [vmem:[#allocation4 + $0x150] sm:$0xff] %v4898
  %4994 = vst.msk [vmem:[#allocation4 + $0x158] sm:$0xff] %vm4951, %v4900
  %4995 = vst [vmem:[#allocation4 + $0x160] sm:$0xff] %v4904
  %4996 = vst.msk [vmem:[#allocation4 + $0x168] sm:$0xff] %vm4951, %v4906
  %4997 = vst [vmem:[#allocation4 + $0x170] sm:$0xff] %v4908
  %4998 = vst.msk [vmem:[#allocation4 + $0x178] sm:$0xff] %vm4951, %v4910
  %4999 = vst [vmem:[#allocation4 + $0x180] sm:$0xff] %v4914
  %5000 = vst.msk [vmem:[#allocation4 + $0x188] sm:$0xff] %vm4951, %v4916
  %5001 = vst [vmem:[#allocation4 + $0x190] sm:$0xff] %v4918
  %5002 = vst.msk [vmem:[#allocation4 + $0x198] sm:$0xff] %vm4951, %v4920
  %5003 = vst [vmem:[#allocation4 + $0x1a0] sm:$0xff] %v4924
  %5004 = vst.msk [vmem:[#allocation4 + $0x1a8] sm:$0xff] %vm4951, %v4926
  %5005 = vst [vmem:[#allocation4 + $0x1b0] sm:$0xff] %v4928
  %5006 = vst.msk [vmem:[#allocation4 + $0x1b8] sm:$0xff] %vm4951, %v4930
  %5007 = vst [vmem:[#allocation4 + $0x1c0] sm:$0xff] %v4934
  %5008 = vst.msk [vmem:[#allocation4 + $0x1c8] sm:$0xff] %vm4951, %v4936
  %5009 = vst [vmem:[#allocation4 + $0x1d0] sm:$0xff] %v4938
  %5010 = vst.msk [vmem:[#allocation4 + $0x1d8] sm:$0xff] %vm4951, %v4940
  %5011 = vst [vmem:[#allocation4 + $0x1e0] sm:$0x7] %v4944
  %vm5012 = vcmask 256000
  %5013 = vst.msk [vmem:[#allocation4 + $0x1e8] sm:$0x7] %vm5012, %v4946
  %v5014 = vld [vmem:[#allocation3] sm:$0xee]
  %v5015 = vld [vmem:[#allocation3 + $0x8] sm:$0xff]
  %v5016 = vld [vmem:[#allocation3 + $0x10] sm:$0xff]
  %v5017 = vld [vmem:[#allocation3 + $0x18] sm:$0xff]
  %v5018 = vld [vmem:[#allocation3 + $0x20] sm:$0xff]
  %v5019 = vld [vmem:[#allocation3 + $0x28] sm:$0xff]
  %v5020 = vld [vmem:[#allocation3 + $0x30] sm:$0xff]
  %v5021 = vld [vmem:[#allocation3 + $0x38] sm:$0xff]
  %v5022 = vld [vmem:[#allocation3 + $0x40] sm:$0xff]
  %v5023 = vld [vmem:[#allocation3 + $0x48] sm:$0xff]
  %v5024 = vld [vmem:[#allocation3 + $0x50] sm:$0xff]
  %v5025 = vld [vmem:[#allocation3 + $0x58] sm:$0xff]
  %v5026 = vld [vmem:[#allocation3 + $0x60] sm:$0xff]
  %v5027 = vld [vmem:[#allocation3 + $0x68] sm:$0xff]
  %v5028 = vld [vmem:[#allocation3 + $0x70] sm:$0xff]
  %v5029 = vld [vmem:[#allocation3 + $0x78] sm:$0xff]
  %v5030 = vld [vmem:[#allocation3 + $0x80] sm:$0xff]
  %v5031 = vld [vmem:[#allocation3 + $0x88] sm:$0xff]
  %v5032 = vld [vmem:[#allocation3 + $0x90] sm:$0xff]
  %v5033 = vld [vmem:[#allocation3 + $0x98] sm:$0xff]
  %v5034 = vld [vmem:[#allocation3 + $0xa0] sm:$0xff]
  %v5035 = vld [vmem:[#allocation3 + $0xa8] sm:$0xff]
  %v5036 = vld [vmem:[#allocation3 + $0xb0] sm:$0xff]
  %v5037 = vld [vmem:[#allocation3 + $0xb8] sm:$0xff]
  %v5038 = vld [vmem:[#allocation3 + $0xc0] sm:$0xff]
  %v5039 = vld [vmem:[#allocation3 + $0xc8] sm:$0xff]
  %v5040 = vld [vmem:[#allocation3 + $0xd0] sm:$0xff]
  %v5041 = vld [vmem:[#allocation3 + $0xd8] sm:$0xff]
  %v5042 = vld [vmem:[#allocation3 + $0xe0] sm:$0xff]
  %v5043 = vld [vmem:[#allocation3 + $0xe8] sm:$0xff]
  %v5044 = vld [vmem:[#allocation3 + $0xf0] sm:$0x77]
  %s5045 = scalar_lea.vmem %s3, 168
  %v5046 = vld [vmem:[%s5045] sm:$0xff]
  %v5047 = vld [vmem:[%s5045 + $0x8] sm:$0xff]
  %v5048 = vld [vmem:[%s5045 + $0x10] sm:$0xff]
  %v5049 = vld [vmem:[%s5045 + $0x18] sm:$0xff]
  %v5050 = vld [vmem:[%s5045 + $0x20] sm:$0xff]
  %v5051 = vld [vmem:[%s5045 + $0x28] sm:$0xff]
  %v5052 = vld [vmem:[%s5045 + $0x30] sm:$0xff]
  %v5053 = vld [vmem:[%s5045 + $0x38] sm:$0xff]
  %v5054 = vld [vmem:[%s5045 + $0x40] sm:$0xff]
  %v5055 = vld [vmem:[%s5045 + $0x48] sm:$0xff]
  %v5056 = vld [vmem:[%s5045 + $0x50] sm:$0xff]
  %v5057 = vld [vmem:[%s5045 + $0x58] sm:$0xff]
  %v5058 = vld [vmem:[%s5045 + $0x60] sm:$0xff]
  %v5059 = vld [vmem:[%s5045 + $0x68] sm:$0xff]
  %v5060 = vld [vmem:[%s5045 + $0x70] sm:$0xff]
  %v5061 = vld [vmem:[%s5045 + $0x78] sm:$0xff]
  %v5062 = vld [vmem:[%s5045 + $0x80] sm:$0xff]
  %v5063 = vld [vmem:[%s5045 + $0x88] sm:$0xff]
  %v5064 = vld [vmem:[%s5045 + $0x90] sm:$0xff]
  %v5065 = vld [vmem:[%s5045 + $0x98] sm:$0xff]
  %v5066 = vld [vmem:[%s5045 + $0xa0] sm:$0xff]
  %v5098 = vunpack.c.l.b16 %v5014
  %v5099 = vunpack.c.h.b16 %v5014
  %v5100 = vunpack.c.l.b16 %v5015
  %v5101 = vunpack.c.h.b16 %v5015
  %v5102 = vunpack.c.l.b16 %v5016
  %v5103 = vunpack.c.h.b16 %v5016
  %v5104 = vunpack.c.l.b16 %v5017
  %v5105 = vunpack.c.h.b16 %v5017
  %v5106 = vunpack.c.l.b16 %v5018
  %v5107 = vunpack.c.h.b16 %v5018
  %v5108 = vunpack.c.l.b16 %v5019
  %v5109 = vunpack.c.h.b16 %v5019
  %v5110 = vunpack.c.l.b16 %v5020
  %v5111 = vunpack.c.h.b16 %v5020
  %v5112 = vunpack.c.l.b16 %v5021
  %v5113 = vunpack.c.h.b16 %v5021
  %v5114 = vunpack.c.l.b16 %v5022
  %v5115 = vunpack.c.h.b16 %v5022
  %v5116 = vunpack.c.l.b16 %v5023
  %v5117 = vunpack.c.h.b16 %v5023
  %v5118 = vunpack.c.l.b16 %v5024
  %v5119 = vunpack.c.h.b16 %v5024
  %v5120 = vunpack.c.l.b16 %v5025
  %v5121 = vunpack.c.h.b16 %v5025
  %v5122 = vunpack.c.l.b16 %v5026
  %v5123 = vunpack.c.h.b16 %v5026
  %v5124 = vunpack.c.l.b16 %v5027
  %v5125 = vunpack.c.h.b16 %v5027
  %v5126 = vunpack.c.l.b16 %v5028
  %v5127 = vunpack.c.h.b16 %v5028
  %v5128 = vunpack.c.l.b16 %v5029
  %v5129 = vunpack.c.h.b16 %v5029
  %v5130 = vunpack.c.l.b16 %v5030
  %v5131 = vunpack.c.h.b16 %v5030
  %v5132 = vunpack.c.l.b16 %v5031
  %v5133 = vunpack.c.h.b16 %v5031
  %v5134 = vunpack.c.l.b16 %v5032
  %v5135 = vunpack.c.h.b16 %v5032
  %v5136 = vunpack.c.l.b16 %v5033
  %v5137 = vunpack.c.h.b16 %v5033
  %v5138 = vunpack.c.l.b16 %v5034
  %v5139 = vunpack.c.h.b16 %v5034
  %v5140 = vunpack.c.l.b16 %v5035
  %v5141 = vunpack.c.h.b16 %v5035
  %v5142 = vunpack.c.l.b16 %v5036
  %v5143 = vunpack.c.h.b16 %v5036
  %v5144 = vunpack.c.l.b16 %v5037
  %v5145 = vunpack.c.h.b16 %v5037
  %v5146 = vunpack.c.l.b16 %v5038
  %v5147 = vunpack.c.h.b16 %v5038
  %v5148 = vunpack.c.l.b16 %v5039
  %v5149 = vunpack.c.h.b16 %v5039
  %v5150 = vunpack.c.l.b16 %v5040
  %v5151 = vunpack.c.h.b16 %v5040
  %v5152 = vunpack.c.l.b16 %v5041
  %v5153 = vunpack.c.h.b16 %v5041
  %v5154 = vunpack.c.l.b16 %v5042
  %v5155 = vunpack.c.h.b16 %v5042
  %v5156 = vunpack.c.l.b16 %v5043
  %v5157 = vunpack.c.h.b16 %v5043
  %v5158 = vunpack.c.l.b16 %v5044
  %v5159 = vunpack.c.h.b16 %v5044
  %v5160 = vpack.c.b16 %v5100, %v5098
  %v5161 = vpack.c.b16 %v5101, %v5099
  %v5162 = vpack.c.b16 %v5104, %v5102
  %v5163 = vpack.c.b16 %v5105, %v5103
  %v5164 = vpack.c.b16 %v5108, %v5106
  %v5165 = vpack.c.b16 %v5109, %v5107
  %v5166 = vpack.c.b16 %v5112, %v5110
  %v5167 = vpack.c.b16 %v5113, %v5111
  %v5168 = vpack.c.b16 %v5116, %v5114
  %v5169 = vpack.c.b16 %v5117, %v5115
  %v5170 = vpack.c.b16 %v5120, %v5118
  %v5171 = vpack.c.b16 %v5121, %v5119
  %v5172 = vpack.c.b16 %v5124, %v5122
  %v5173 = vpack.c.b16 %v5125, %v5123
  %v5174 = vpack.c.b16 %v5128, %v5126
  %v5175 = vpack.c.b16 %v5129, %v5127
  %v5176 = vpack.c.b16 %v5132, %v5130
  %v5177 = vpack.c.b16 %v5133, %v5131
  %v5178 = vpack.c.b16 %v5136, %v5134
  %v5179 = vpack.c.b16 %v5137, %v5135
  %v5180 = vpack.c.b16 %v5140, %v5138
  %v5181 = vpack.c.b16 %v5141, %v5139
  %v5182 = vpack.c.b16 %v5144, %v5142
  %v5183 = vpack.c.b16 %v5145, %v5143
  %v5184 = vpack.c.b16 %v5148, %v5146
  %v5185 = vpack.c.b16 %v5149, %v5147
  %v5186 = vpack.c.b16 %v5152, %v5150
  %v5187 = vpack.c.b16 %v5153, %v5151
  %v5188 = vpack.c.b16 %v5156, %v5154
  %v5189 = vpack.c.b16 %v5157, %v5155
  %v5190 = vpack.c.b16 %v5158, %v5158
  %v5191 = vpack.c.b16 %v5159, %v5159
  %v5192 = vrot.slane %v5160, 1
  %v5193 = vrot.slane %v5162, 1
  %v5194 = vsel %vm1414, %v5192, %v5193
  %v5195 = vrot.slane %v5161, 1
  %v5196 = vrot.slane %v5163, 1
  %v5197 = vsel %vm1414, %v5195, %v5196
  %v5198 = vrot.slane %v5164, 1
  %v5199 = vsel %vm1414, %v5193, %v5198
  %v5200 = vrot.slane %v5165, 1
  %v5201 = vsel %vm1414, %v5196, %v5200
  %v5202 = vrot.slane %v5166, 1
  %v5203 = vsel %vm1414, %v5198, %v5202
  %v5204 = vrot.slane %v5167, 1
  %v5205 = vsel %vm1414, %v5200, %v5204
  %v5206 = vrot.slane %v5168, 1
  %v5207 = vsel %vm1414, %v5202, %v5206
  %v5208 = vrot.slane %v5169, 1
  %v5209 = vsel %vm1414, %v5204, %v5208
  %v5210 = vrot.slane %v5170, 1
  %v5211 = vsel %vm1414, %v5206, %v5210
  %v5212 = vrot.slane %v5171, 1
  %v5213 = vsel %vm1414, %v5208, %v5212
  %v5214 = vrot.slane %v5172, 1
  %v5215 = vsel %vm1414, %v5210, %v5214
  %v5216 = vrot.slane %v5173, 1
  %v5217 = vsel %vm1414, %v5212, %v5216
  %v5218 = vrot.slane %v5174, 1
  %v5219 = vsel %vm1414, %v5214, %v5218
  %v5220 = vrot.slane %v5175, 1
  %v5221 = vsel %vm1414, %v5216, %v5220
  %v5222 = vrot.slane %v5176, 1
  %v5223 = vsel %vm1414, %v5218, %v5222
  %v5224 = vrot.slane %v5177, 1
  %v5225 = vsel %vm1414, %v5220, %v5224
  %v5226 = vrot.slane %v5178, 1
  %v5227 = vsel %vm1414, %v5222, %v5226
  %v5228 = vrot.slane %v5179, 1
  %v5229 = vsel %vm1414, %v5224, %v5228
  %v5230 = vrot.slane %v5180, 1
  %v5231 = vsel %vm1414, %v5226, %v5230
  %v5232 = vrot.slane %v5181, 1
  %v5233 = vsel %vm1414, %v5228, %v5232
  %v5234 = vrot.slane %v5182, 1
  %v5235 = vsel %vm1414, %v5230, %v5234
  %v5236 = vrot.slane %v5183, 1
  %v5237 = vsel %vm1414, %v5232, %v5236
  %v5238 = vrot.slane %v5184, 1
  %v5239 = vsel %vm1414, %v5234, %v5238
  %v5240 = vrot.slane %v5185, 1
  %v5241 = vsel %vm1414, %v5236, %v5240
  %v5242 = vrot.slane %v5186, 1
  %v5243 = vsel %vm1414, %v5238, %v5242
  %v5244 = vrot.slane %v5187, 1
  %v5245 = vsel %vm1414, %v5240, %v5244
  %v5246 = vrot.slane %v5188, 1
  %v5247 = vsel %vm1414, %v5242, %v5246
  %v5248 = vrot.slane %v5189, 1
  %v5249 = vsel %vm1414, %v5244, %v5248
  %v5250 = vrot.slane %v5190, 1
  %v5251 = vsel %vm1414, %v5246, %v5250
  %v5252 = vrot.slane %v5191, 1
  %v5253 = vsel %vm1414, %v5248, %v5252
  %v5291 = vunpack.c.l.b16 %v5046
  %v5292 = vunpack.c.h.b16 %v5046
  %v5293 = vunpack.c.l.b16 %v5047
  %v5294 = vunpack.c.h.b16 %v5047
  %v5295 = vunpack.c.l.b16 %v5048
  %v5296 = vunpack.c.h.b16 %v5048
  %v5297 = vunpack.c.l.b16 %v5049
  %v5298 = vunpack.c.h.b16 %v5049
  %v5299 = vunpack.c.l.b16 %v5050
  %v5300 = vunpack.c.h.b16 %v5050
  %v5301 = vunpack.c.l.b16 %v5051
  %v5302 = vunpack.c.h.b16 %v5051
  %v5303 = vunpack.c.l.b16 %v5052
  %v5304 = vunpack.c.h.b16 %v5052
  %v5305 = vunpack.c.l.b16 %v5053
  %v5306 = vunpack.c.h.b16 %v5053
  %v5307 = vunpack.c.l.b16 %v5054
  %v5308 = vunpack.c.h.b16 %v5054
  %v5309 = vunpack.c.l.b16 %v5055
  %v5310 = vunpack.c.h.b16 %v5055
  %v5311 = vunpack.c.l.b16 %v5056
  %v5312 = vunpack.c.h.b16 %v5056
  %v5313 = vunpack.c.l.b16 %v5057
  %v5314 = vunpack.c.h.b16 %v5057
  %v5315 = vunpack.c.l.b16 %v5058
  %v5316 = vunpack.c.h.b16 %v5058
  %v5317 = vunpack.c.l.b16 %v5059
  %v5318 = vunpack.c.h.b16 %v5059
  %v5319 = vunpack.c.l.b16 %v5060
  %v5320 = vunpack.c.h.b16 %v5060
  %v5321 = vunpack.c.l.b16 %v5061
  %v5322 = vunpack.c.h.b16 %v5061
  %v5323 = vunpack.c.l.b16 %v5062
  %v5324 = vunpack.c.h.b16 %v5062
  %v5325 = vunpack.c.l.b16 %v5063
  %v5326 = vunpack.c.h.b16 %v5063
  %v5327 = vunpack.c.l.b16 %v5064
  %v5328 = vunpack.c.h.b16 %v5064
  %v5329 = vunpack.c.l.b16 %v5065
  %v5330 = vunpack.c.h.b16 %v5065
  %v5331 = vunpack.c.l.b16 %v5066
  %v5332 = vunpack.c.h.b16 %v5066
  %v5333 = vpack.c.b16 %v5293, %v5291
  %v5334 = vpack.c.b16 %v5294, %v5292
  %v5335 = vpack.c.b16 %v5297, %v5295
  %v5336 = vpack.c.b16 %v5298, %v5296
  %v5337 = vpack.c.b16 %v5301, %v5299
  %v5338 = vpack.c.b16 %v5302, %v5300
  %v5339 = vpack.c.b16 %v5305, %v5303
  %v5340 = vpack.c.b16 %v5306, %v5304
  %v5341 = vpack.c.b16 %v5309, %v5307
  %v5342 = vpack.c.b16 %v5310, %v5308
  %v5343 = vpack.c.b16 %v5313, %v5311
  %v5344 = vpack.c.b16 %v5314, %v5312
  %v5345 = vpack.c.b16 %v5317, %v5315
  %v5346 = vpack.c.b16 %v5318, %v5316
  %v5347 = vpack.c.b16 %v5321, %v5319
  %v5348 = vpack.c.b16 %v5322, %v5320
  %v5349 = vpack.c.b16 %v5325, %v5323
  %v5350 = vpack.c.b16 %v5326, %v5324
  %v5351 = vpack.c.b16 %v5329, %v5327
  %v5352 = vpack.c.b16 %v5330, %v5328
  %v5353 = vpack.c.b16 %v5331, %v5331
  %v5354 = vpack.c.b16 %v5332, %v5332
  %v5376 = vsel %vm4701, %v5197, 0
  %v5379 = vsel %vm4701, %v5201, 0
  %v5382 = vsel %vm4701, %v5205, 0
  %v5385 = vsel %vm4701, %v5209, 0
  %v5388 = vsel %vm4701, %v5213, 0
  %v5391 = vsel %vm4701, %v5217, 0
  %v5394 = vsel %vm4701, %v5221, 0
  %v5397 = vsel %vm4701, %v5225, 0
  %v5400 = vsel %vm4701, %v5229, 0
  %v5403 = vsel %vm4701, %v5233, 0
  %v5406 = vsel %vm4701, %v5237, 0
  %v5409 = vsel %vm4701, %v5241, 0
  %v5412 = vsel %vm4701, %v5245, 0
  %v5415 = vsel %vm4701, %v5249, 0
  %v5418 = vsel %vm4701, %v5253, 0
  %v5421 = vsel %vm4701, %v5252, 0
  %v5424 = vand.u32 %v5353, %v4752
  %v5427 = vand.u32 %v5354, %v4752
  %5429 = vmatprep.subr.bf16.mxu0 %v5348
  %5430 = vmatpush1.bf16.msra.mxu0 %v5347
  %5431 = vmatprep.subr.bf16.mxu0 %v5346
  %5432 = vmatpush1.bf16.msra.mxu0 %v5345
  %5433 = vmatprep.subr.bf16.mxu0 %v5344
  %5434 = vmatpush1.bf16.msra.mxu0 %v5343
  %5435 = vmatprep.subr.bf16.mxu0 %v5342
  %5436 = vmatpush1.bf16.msra.mxu0 %v5341
  %5437 = vmatprep.subr.bf16.mxu0 %v5340
  %5438 = vmatpush1.bf16.msra.mxu0 %v5339
  %5439 = vmatprep.subr.bf16.mxu0 %v5338
  %5440 = vmatpush1.bf16.msra.mxu0 %v5337
  %5441 = vmatprep.subr.bf16.mxu0 %v5336
  %5442 = vmatpush1.bf16.msra.mxu0 %v5335
  %5443 = vmatprep.subr.bf16.mxu0 %v5334
  %5444 = vmatpush1.bf16.msra.mxu0 %v5333
  %5445 = vmatprep.subr.bf16.mxu0 0
  %5446 = vmatpush2.bf16.msra.mxu0 0
  %5447 = vmatprep.subr.bf16.mxu0 0
  %5448 = vmatpush2.bf16.msra.mxu0 0
  %5449 = vmatprep.subr.bf16.mxu0 0
  %5450 = vmatpush2.bf16.msra.mxu0 0
  %5451 = vmatprep.subr.bf16.mxu0 0
  %5452 = vmatpush2.bf16.msra.mxu0 0
  %5453 = vmatprep.subr.bf16.mxu0 0
  %5454 = vmatpush2.bf16.msra.mxu0 0
  %5455 = vmatprep.subr.bf16.mxu0 %v5427
  %5456 = vmatpush2.bf16.msra.mxu0 %v5424
  %5457 = vmatprep.subr.bf16.mxu0 %v5352
  %5458 = vmatpush2.bf16.msra.mxu0 %v5351
  %5459 = vmatprep.subr.bf16.mxu0 %v5350
  %5460 = vmatpush2.bf16.msra.mxu0 %v5349
  %5461 = vmatprep.mubr.bf16.mxu0 %v5376
  %5462 = vmatmul.mubr.bf16.gmra.mxu0 %v5194
  %v5463 = vpop.f32.mrf.mxu0
  %v5464 = vadd.f32 0.0, %v5463
  %v5465 = vpop.f32.mrf.mxu0
  %v5466 = vadd.f32 0.0, %v5465
  %v5467 = vpop.f32.mrf.mxu0
  %v5468 = vadd.f32 0.0, %v5467
  %v5469 = vpop.f32.mrf.mxu0
  %v5470 = vadd.f32 0.0, %v5469
  %5471 = vmatprep.mubr.bf16.mxu0 %v5379
  %5472 = vmatmul.mubr.bf16.gmra.mxu0 %v5199
  %v5473 = vpop.f32.mrf.mxu0
  %v5474 = vadd.f32 0.0, %v5473
  %v5475 = vpop.f32.mrf.mxu0
  %v5476 = vadd.f32 0.0, %v5475
  %v5477 = vpop.f32.mrf.mxu0
  %v5478 = vadd.f32 0.0, %v5477
  %v5479 = vpop.f32.mrf.mxu0
  %v5480 = vadd.f32 0.0, %v5479
  %5481 = vmatprep.mubr.bf16.mxu0 %v5382
  %5482 = vmatmul.mubr.bf16.gmra.mxu0 %v5203
  %v5483 = vpop.f32.mrf.mxu0
  %v5484 = vadd.f32 0.0, %v5483
  %v5485 = vpop.f32.mrf.mxu0
  %v5486 = vadd.f32 0.0, %v5485
  %v5487 = vpop.f32.mrf.mxu0
  %v5488 = vadd.f32 0.0, %v5487
  %v5489 = vpop.f32.mrf.mxu0
  %v5490 = vadd.f32 0.0, %v5489
  %5491 = vmatprep.mubr.bf16.mxu0 %v5385
  %5492 = vmatmul.mubr.bf16.gmra.mxu0 %v5207
  %v5493 = vpop.f32.mrf.mxu0
  %v5494 = vadd.f32 0.0, %v5493
  %v5495 = vpop.f32.mrf.mxu0
  %v5496 = vadd.f32 0.0, %v5495
  %v5497 = vpop.f32.mrf.mxu0
  %v5498 = vadd.f32 0.0, %v5497
  %v5499 = vpop.f32.mrf.mxu0
  %v5500 = vadd.f32 0.0, %v5499
  %5501 = vmatprep.mubr.bf16.mxu0 %v5388
  %5502 = vmatmul.mubr.bf16.gmra.mxu0 %v5211
  %v5503 = vpop.f32.mrf.mxu0
  %v5504 = vadd.f32 0.0, %v5503
  %v5505 = vpop.f32.mrf.mxu0
  %v5506 = vadd.f32 0.0, %v5505
  %v5507 = vpop.f32.mrf.mxu0
  %v5508 = vadd.f32 0.0, %v5507
  %v5509 = vpop.f32.mrf.mxu0
  %v5510 = vadd.f32 0.0, %v5509
  %5511 = vmatprep.mubr.bf16.mxu0 %v5391
  %5512 = vmatmul.mubr.bf16.gmra.mxu0 %v5215
  %v5513 = vpop.f32.mrf.mxu0
  %v5514 = vadd.f32 0.0, %v5513
  %v5515 = vpop.f32.mrf.mxu0
  %v5516 = vadd.f32 0.0, %v5515
  %v5517 = vpop.f32.mrf.mxu0
  %v5518 = vadd.f32 0.0, %v5517
  %v5519 = vpop.f32.mrf.mxu0
  %v5520 = vadd.f32 0.0, %v5519
  %5521 = vmatprep.mubr.bf16.mxu0 %v5394
  %5522 = vmatmul.mubr.bf16.gmra.mxu0 %v5219
  %v5523 = vpop.f32.mrf.mxu0
  %v5524 = vadd.f32 0.0, %v5523
  %v5525 = vpop.f32.mrf.mxu0
  %v5526 = vadd.f32 0.0, %v5525
  %v5527 = vpop.f32.mrf.mxu0
  %v5528 = vadd.f32 0.0, %v5527
  %v5529 = vpop.f32.mrf.mxu0
  %v5530 = vadd.f32 0.0, %v5529
  %5531 = vmatprep.mubr.bf16.mxu0 %v5397
  %5532 = vmatmul.mubr.bf16.gmra.mxu0 %v5223
  %v5533 = vpop.f32.mrf.mxu0
  %v5534 = vadd.f32 0.0, %v5533
  %v5535 = vpop.f32.mrf.mxu0
  %v5536 = vadd.f32 0.0, %v5535
  %v5537 = vpop.f32.mrf.mxu0
  %v5538 = vadd.f32 0.0, %v5537
  %v5539 = vpop.f32.mrf.mxu0
  %v5540 = vadd.f32 0.0, %v5539
  %5541 = vmatprep.mubr.bf16.mxu0 %v5400
  %5542 = vmatmul.mubr.bf16.gmra.mxu0 %v5227
  %v5543 = vpop.f32.mrf.mxu0
  %v5544 = vadd.f32 0.0, %v5543
  %v5545 = vpop.f32.mrf.mxu0
  %v5546 = vadd.f32 0.0, %v5545
  %v5547 = vpop.f32.mrf.mxu0
  %v5548 = vadd.f32 0.0, %v5547
  %v5549 = vpop.f32.mrf.mxu0
  %v5550 = vadd.f32 0.0, %v5549
  %5551 = vmatprep.mubr.bf16.mxu0 %v5403
  %5552 = vmatmul.mubr.bf16.gmra.mxu0 %v5231
  %v5553 = vpop.f32.mrf.mxu0
  %v5554 = vadd.f32 0.0, %v5553
  %v5555 = vpop.f32.mrf.mxu0
  %v5556 = vadd.f32 0.0, %v5555
  %v5557 = vpop.f32.mrf.mxu0
  %v5558 = vadd.f32 0.0, %v5557
  %v5559 = vpop.f32.mrf.mxu0
  %v5560 = vadd.f32 0.0, %v5559
  %5561 = vmatprep.mubr.bf16.mxu0 %v5406
  %5562 = vmatmul.mubr.bf16.gmra.mxu0 %v5235
  %v5563 = vpop.f32.mrf.mxu0
  %v5564 = vadd.f32 0.0, %v5563
  %v5565 = vpop.f32.mrf.mxu0
  %v5566 = vadd.f32 0.0, %v5565
  %v5567 = vpop.f32.mrf.mxu0
  %v5568 = vadd.f32 0.0, %v5567
  %v5569 = vpop.f32.mrf.mxu0
  %v5570 = vadd.f32 0.0, %v5569
  %5571 = vmatprep.mubr.bf16.mxu0 %v5409
  %5572 = vmatmul.mubr.bf16.gmra.mxu0 %v5239
  %v5573 = vpop.f32.mrf.mxu0
  %v5574 = vadd.f32 0.0, %v5573
  %v5575 = vpop.f32.mrf.mxu0
  %v5576 = vadd.f32 0.0, %v5575
  %v5577 = vpop.f32.mrf.mxu0
  %v5578 = vadd.f32 0.0, %v5577
  %v5579 = vpop.f32.mrf.mxu0
  %v5580 = vadd.f32 0.0, %v5579
  %5581 = vmatprep.mubr.bf16.mxu0 %v5412
  %5582 = vmatmul.mubr.bf16.gmra.mxu0 %v5243
  %v5583 = vpop.f32.mrf.mxu0
  %v5584 = vadd.f32 0.0, %v5583
  %v5585 = vpop.f32.mrf.mxu0
  %v5586 = vadd.f32 0.0, %v5585
  %v5587 = vpop.f32.mrf.mxu0
  %v5588 = vadd.f32 0.0, %v5587
  %v5589 = vpop.f32.mrf.mxu0
  %v5590 = vadd.f32 0.0, %v5589
  %5591 = vmatprep.mubr.bf16.mxu0 %v5415
  %5592 = vmatmul.mubr.bf16.gmra.mxu0 %v5247
  %v5593 = vpop.f32.mrf.mxu0
  %v5594 = vadd.f32 0.0, %v5593
  %v5595 = vpop.f32.mrf.mxu0
  %v5596 = vadd.f32 0.0, %v5595
  %v5597 = vpop.f32.mrf.mxu0
  %v5598 = vadd.f32 0.0, %v5597
  %v5599 = vpop.f32.mrf.mxu0
  %v5600 = vadd.f32 0.0, %v5599
  %5601 = vmatprep.mubr.bf16.mxu0 %v5418
  %5602 = vmatmul.mubr.bf16.gmra.mxu0 %v5251
  %v5603 = vpop.f32.mrf.mxu0
  %v5604 = vadd.f32 0.0, %v5603
  %v5605 = vpop.f32.mrf.mxu0
  %v5606 = vadd.f32 0.0, %v5605
  %v5607 = vpop.f32.mrf.mxu0
  %v5608 = vadd.f32 0.0, %v5607
  %v5609 = vpop.f32.mrf.mxu0
  %v5610 = vadd.f32 0.0, %v5609
  %5611 = vmatprep.mubr.bf16.mxu0 %v5421
  %5612 = vmatmul.mubr.bf16.gmra.mxu0 %v5250
  %v5613 = vpop.f32.mrf.mxu0
  %v5614 = vadd.f32 0.0, %v5613
  %v5615 = vpop.f32.mrf.mxu0
  %v5616 = vadd.f32 0.0, %v5615
  %v5617 = vpop.f32.mrf.mxu0
  %v5618 = vpop.f32.mrf.mxu0
  %5619 = vdwg.mxu0
  %v5620 = vld [vmem:[#allocation4] sm:$0xff]
  %v5621 = vld [vmem:[#allocation4 + $0x8] sm:$0xff]
  %v5622 = vld [vmem:[#allocation4 + $0x10] sm:$0xff]
  %v5623 = vld [vmem:[#allocation4 + $0x18] sm:$0xff]
  %v5624 = vld [vmem:[#allocation4 + $0x20] sm:$0xff]
  %v5625 = vld [vmem:[#allocation4 + $0x28] sm:$0xff]
  %v5626 = vld [vmem:[#allocation4 + $0x30] sm:$0xff]
  %v5627 = vld [vmem:[#allocation4 + $0x38] sm:$0xff]
  %v5628 = vld [vmem:[#allocation4 + $0x40] sm:$0xff]
  %v5629 = vld [vmem:[#allocation4 + $0x48] sm:$0xff]
  %v5630 = vld [vmem:[#allocation4 + $0x50] sm:$0xff]
  %v5631 = vld [vmem:[#allocation4 + $0x58] sm:$0xff]
  %v5632 = vld [vmem:[#allocation4 + $0x60] sm:$0xff]
  %v5633 = vld [vmem:[#allocation4 + $0x68] sm:$0xff]
  %v5634 = vld [vmem:[#allocation4 + $0x70] sm:$0xff]
  %v5635 = vld [vmem:[#allocation4 + $0x78] sm:$0xff]
  %v5636 = vld [vmem:[#allocation4 + $0x80] sm:$0xff]
  %v5637 = vld [vmem:[#allocation4 + $0x88] sm:$0xff]
  %v5638 = vld [vmem:[#allocation4 + $0x90] sm:$0xff]
  %v5639 = vld [vmem:[#allocation4 + $0x98] sm:$0xff]
  %v5640 = vld [vmem:[#allocation4 + $0xa0] sm:$0xff]
  %v5641 = vld [vmem:[#allocation4 + $0xa8] sm:$0xff]
  %v5642 = vld [vmem:[#allocation4 + $0xb0] sm:$0xff]
  %v5643 = vld [vmem:[#allocation4 + $0xb8] sm:$0xff]
  %v5644 = vld [vmem:[#allocation4 + $0xc0] sm:$0xff]
  %v5645 = vld [vmem:[#allocation4 + $0xc8] sm:$0xff]
  %v5646 = vld [vmem:[#allocation4 + $0xd0] sm:$0xff]
  %v5647 = vld [vmem:[#allocation4 + $0xd8] sm:$0xff]
  %v5648 = vld [vmem:[#allocation4 + $0xe0] sm:$0xff]
  %v5649 = vld [vmem:[#allocation4 + $0xe8] sm:$0xff]
  %v5650 = vld [vmem:[#allocation4 + $0xf0] sm:$0xff]
  %v5651 = vld [vmem:[#allocation4 + $0xf8] sm:$0xff]
  %v5652 = vld [vmem:[#allocation4 + $0x100] sm:$0xff]
  %v5653 = vld [vmem:[#allocation4 + $0x108] sm:$0xff]
  %v5654 = vld [vmem:[#allocation4 + $0x110] sm:$0xff]
  %v5655 = vld [vmem:[#allocation4 + $0x118] sm:$0xff]
  %v5656 = vld [vmem:[#allocation4 + $0x120] sm:$0xff]
  %v5657 = vld [vmem:[#allocation4 + $0x128] sm:$0xff]
  %v5658 = vld [vmem:[#allocation4 + $0x130] sm:$0xff]
  %v5659 = vld [vmem:[#allocation4 + $0x138] sm:$0xff]
  %v5660 = vld [vmem:[#allocation4 + $0x140] sm:$0xff]
  %v5661 = vld [vmem:[#allocation4 + $0x148] sm:$0xff]
  %v5662 = vld [vmem:[#allocation4 + $0x150] sm:$0xff]
  %v5663 = vld [vmem:[#allocation4 + $0x158] sm:$0xff]
  %v5664 = vld [vmem:[#allocation4 + $0x160] sm:$0xff]
  %v5665 = vld [vmem:[#allocation4 + $0x168] sm:$0xff]
  %v5666 = vld [vmem:[#allocation4 + $0x170] sm:$0xff]
  %v5667 = vld [vmem:[#allocation4 + $0x178] sm:$0xff]
  %v5668 = vld [vmem:[#allocation4 + $0x180] sm:$0xff]
  %v5669 = vld [vmem:[#allocation4 + $0x188] sm:$0xff]
  %v5670 = vld [vmem:[#allocation4 + $0x190] sm:$0xff]
  %v5671 = vld [vmem:[#allocation4 + $0x198] sm:$0xff]
  %v5672 = vld [vmem:[#allocation4 + $0x1a0] sm:$0xff]
  %v5673 = vld [vmem:[#allocation4 + $0x1a8] sm:$0xff]
  %v5674 = vld [vmem:[#allocation4 + $0x1b0] sm:$0xff]
  %v5675 = vld [vmem:[#allocation4 + $0x1b8] sm:$0xff]
  %v5676 = vld [vmem:[#allocation4 + $0x1c0] sm:$0xff]
  %v5677 = vld [vmem:[#allocation4 + $0x1c8] sm:$0xff]
  %v5678 = vld [vmem:[#allocation4 + $0x1d0] sm:$0xff]
  %v5679 = vld [vmem:[#allocation4 + $0x1d8] sm:$0xff]
  %v5680 = vld [vmem:[#allocation4 + $0x1e0] sm:$0x7]
  %v5681 = vld [vmem:[#allocation4 + $0x1e8] sm:$0x7]
  %v5682 = vadd.f32 %v5620, %v5464
  %v5683 = vadd.f32 %v5621, %v5466
  %v5684 = vadd.f32 %v5622, %v5468
  %v5685 = vadd.f32 %v5623, %v5470
  %v5686 = vadd.f32 %v5624, %v5474
  %v5687 = vadd.f32 %v5625, %v5476
  %v5688 = vadd.f32 %v5626, %v5478
  %v5689 = vadd.f32 %v5627, %v5480
  %v5690 = vadd.f32 %v5628, %v5484
  %v5691 = vadd.f32 %v5629, %v5486
  %v5692 = vadd.f32 %v5630, %v5488
  %v5693 = vadd.f32 %v5631, %v5490
  %v5694 = vadd.f32 %v5632, %v5494
  %v5695 = vadd.f32 %v5633, %v5496
  %v5696 = vadd.f32 %v5634, %v5498
  %v5697 = vadd.f32 %v5635, %v5500
  %v5698 = vadd.f32 %v5636, %v5504
  %v5699 = vadd.f32 %v5637, %v5506
  %v5700 = vadd.f32 %v5638, %v5508
  %v5701 = vadd.f32 %v5639, %v5510
  %v5702 = vadd.f32 %v5640, %v5514
  %v5703 = vadd.f32 %v5641, %v5516
  %v5704 = vadd.f32 %v5642, %v5518
  %v5705 = vadd.f32 %v5643, %v5520
  %v5706 = vadd.f32 %v5644, %v5524
  %v5707 = vadd.f32 %v5645, %v5526
  %v5708 = vadd.f32 %v5646, %v5528
  %v5709 = vadd.f32 %v5647, %v5530
  %v5710 = vadd.f32 %v5648, %v5534
  %v5711 = vadd.f32 %v5649, %v5536
  %v5712 = vadd.f32 %v5650, %v5538
  %v5713 = vadd.f32 %v5651, %v5540
  %v5714 = vadd.f32 %v5652, %v5544
  %v5715 = vadd.f32 %v5653, %v5546
  %v5716 = vadd.f32 %v5654, %v5548
  %v5717 = vadd.f32 %v5655, %v5550
  %v5718 = vadd.f32 %v5656, %v5554
  %v5719 = vadd.f32 %v5657, %v5556
  %v5720 = vadd.f32 %v5658, %v5558
  %v5721 = vadd.f32 %v5659, %v5560
  %v5722 = vadd.f32 %v5660, %v5564
  %v5723 = vadd.f32 %v5661, %v5566
  %v5724 = vadd.f32 %v5662, %v5568
  %v5725 = vadd.f32 %v5663, %v5570
  %v5726 = vadd.f32 %v5664, %v5574
  %v5727 = vadd.f32 %v5665, %v5576
  %v5728 = vadd.f32 %v5666, %v5578
  %v5729 = vadd.f32 %v5667, %v5580
  %v5730 = vadd.f32 %v5668, %v5584
  %v5731 = vadd.f32 %v5669, %v5586
  %v5732 = vadd.f32 %v5670, %v5588
  %v5733 = vadd.f32 %v5671, %v5590
  %v5734 = vadd.f32 %v5672, %v5594
  %v5735 = vadd.f32 %v5673, %v5596
  %v5736 = vadd.f32 %v5674, %v5598
  %v5737 = vadd.f32 %v5675, %v5600
  %v5738 = vadd.f32 %v5676, %v5604
  %v5739 = vadd.f32 %v5677, %v5606
  %v5740 = vadd.f32 %v5678, %v5608
  %v5741 = vadd.f32 %v5679, %v5610
  %v5742 = vadd.f32 %v5680, %v5614
  %v5743 = vadd.f32 %v5681, %v5616
  %5744 = vst [vmem:[#allocation4] sm:$0xff] %v5682
  %5745 = vst.msk [vmem:[#allocation4 + $0x8] sm:$0xff] %vm4951, %v5683
  %5746 = vst [vmem:[#allocation4 + $0x10] sm:$0xff] %v5684
  %5747 = vst.msk [vmem:[#allocation4 + $0x18] sm:$0xff] %vm4951, %v5685
  %5748 = vst [vmem:[#allocation4 + $0x20] sm:$0xff] %v5686
  %5749 = vst.msk [vmem:[#allocation4 + $0x28] sm:$0xff] %vm4951, %v5687
  %5750 = vst [vmem:[#allocation4 + $0x30] sm:$0xff] %v5688
  %5751 = vst.msk [vmem:[#allocation4 + $0x38] sm:$0xff] %vm4951, %v5689
  %5752 = vst [vmem:[#allocation4 + $0x40] sm:$0xff] %v5690
  %5753 = vst.msk [vmem:[#allocation4 + $0x48] sm:$0xff] %vm4951, %v5691
  %5754 = vst [vmem:[#allocation4 + $0x50] sm:$0xff] %v5692
  %5755 = vst.msk [vmem:[#allocation4 + $0x58] sm:$0xff] %vm4951, %v5693
  %5756 = vst [vmem:[#allocation4 + $0x60] sm:$0xff] %v5694
  %5757 = vst.msk [vmem:[#allocation4 + $0x68] sm:$0xff] %vm4951, %v5695
  %5758 = vst [vmem:[#allocation4 + $0x70] sm:$0xff] %v5696
  %5759 = vst.msk [vmem:[#allocation4 + $0x78] sm:$0xff] %vm4951, %v5697
  %5760 = vst [vmem:[#allocation4 + $0x80] sm:$0xff] %v5698
  %5761 = vst.msk [vmem:[#allocation4 + $0x88] sm:$0xff] %vm4951, %v5699
  %5762 = vst [vmem:[#allocation4 + $0x90] sm:$0xff] %v5700
  %5763 = vst.msk [vmem:[#allocation4 + $0x98] sm:$0xff] %vm4951, %v5701
  %5764 = vst [vmem:[#allocation4 + $0xa0] sm:$0xff] %v5702
  %5765 = vst.msk [vmem:[#allocation4 + $0xa8] sm:$0xff] %vm4951, %v5703
  %5766 = vst [vmem:[#allocation4 + $0xb0] sm:$0xff] %v5704
  %5767 = vst.msk [vmem:[#allocation4 + $0xb8] sm:$0xff] %vm4951, %v5705
  %5768 = vst [vmem:[#allocation4 + $0xc0] sm:$0xff] %v5706
  %5769 = vst.msk [vmem:[#allocation4 + $0xc8] sm:$0xff] %vm4951, %v5707
  %5770 = vst [vmem:[#allocation4 + $0xd0] sm:$0xff] %v5708
  %5771 = vst.msk [vmem:[#allocation4 + $0xd8] sm:$0xff] %vm4951, %v5709
  %5772 = vst [vmem:[#allocation4 + $0xe0] sm:$0xff] %v5710
  %5773 = vst.msk [vmem:[#allocation4 + $0xe8] sm:$0xff] %vm4951, %v5711
  %5774 = vst [vmem:[#allocation4 + $0xf0] sm:$0xff] %v5712
  %5775 = vst.msk [vmem:[#allocation4 + $0xf8] sm:$0xff] %vm4951, %v5713
  %5776 = vst [vmem:[#allocation4 + $0x100] sm:$0xff] %v5714
  %5777 = vst.msk [vmem:[#allocation4 + $0x108] sm:$0xff] %vm4951, %v5715
  %5778 = vst [vmem:[#allocation4 + $0x110] sm:$0xff] %v5716
  %5779 = vst.msk [vmem:[#allocation4 + $0x118] sm:$0xff] %vm4951, %v5717
  %5780 = vst [vmem:[#allocation4 + $0x120] sm:$0xff] %v5718
  %5781 = vst.msk [vmem:[#allocation4 + $0x128] sm:$0xff] %vm4951, %v5719
  %5782 = vst [vmem:[#allocation4 + $0x130] sm:$0xff] %v5720
  %5783 = vst.msk [vmem:[#allocation4 + $0x138] sm:$0xff] %vm4951, %v5721
  %5784 = vst [vmem:[#allocation4 + $0x140] sm:$0xff] %v5722
  %5785 = vst.msk [vmem:[#allocation4 + $0x148] sm:$0xff] %vm4951, %v5723
  %5786 = vst [vmem:[#allocation4 + $0x150] sm:$0xff] %v5724
  %5787 = vst.msk [vmem:[#allocation4 + $0x158] sm:$0xff] %vm4951, %v5725
  %5788 = vst [vmem:[#allocation4 + $0x160] sm:$0xff] %v5726
  %5789 = vst.msk [vmem:[#allocation4 + $0x168] sm:$0xff] %vm4951, %v5727
  %5790 = vst [vmem:[#allocation4 + $0x170] sm:$0xff] %v5728
  %5791 = vst.msk [vmem:[#allocation4 + $0x178] sm:$0xff] %vm4951, %v5729
  %5792 = vst [vmem:[#allocation4 + $0x180] sm:$0xff] %v5730
  %5793 = vst.msk [vmem:[#allocation4 + $0x188] sm:$0xff] %vm4951, %v5731
  %5794 = vst [vmem:[#allocation4 + $0x190] sm:$0xff] %v5732
  %5795 = vst.msk [vmem:[#allocation4 + $0x198] sm:$0xff] %vm4951, %v5733
  %5796 = vst [vmem:[#allocation4 + $0x1a0] sm:$0xff] %v5734
  %5797 = vst.msk [vmem:[#allocation4 + $0x1a8] sm:$0xff] %vm4951, %v5735
  %5798 = vst [vmem:[#allocation4 + $0x1b0] sm:$0xff] %v5736
  %5799 = vst.msk [vmem:[#allocation4 + $0x1b8] sm:$0xff] %vm4951, %v5737
  %5800 = vst [vmem:[#allocation4 + $0x1c0] sm:$0xff] %v5738
  %5801 = vst.msk [vmem:[#allocation4 + $0x1c8] sm:$0xff] %vm4951, %v5739
  %5802 = vst [vmem:[#allocation4 + $0x1d0] sm:$0xff] %v5740
  %5803 = vst.msk [vmem:[#allocation4 + $0x1d8] sm:$0xff] %vm4951, %v5741
  %5804 = vst [vmem:[#allocation4 + $0x1e0] sm:$0x7] %v5742
  %5805 = vst.msk [vmem:[#allocation4 + $0x1e8] sm:$0x7] %vm5012, %v5743
  %v5806 = vld [vmem:[#allocation3] sm:$0xcc]
  %v5807 = vld [vmem:[#allocation3 + $0x8] sm:$0xff]
  %v5808 = vld [vmem:[#allocation3 + $0x10] sm:$0xff]
  %v5809 = vld [vmem:[#allocation3 + $0x18] sm:$0xff]
  %v5810 = vld [vmem:[#allocation3 + $0x20] sm:$0xff]
  %v5811 = vld [vmem:[#allocation3 + $0x28] sm:$0xff]
  %v5812 = vld [vmem:[#allocation3 + $0x30] sm:$0xff]
  %v5813 = vld [vmem:[#allocation3 + $0x38] sm:$0xff]
  %v5814 = vld [vmem:[#allocation3 + $0x40] sm:$0xff]
  %v5815 = vld [vmem:[#allocation3 + $0x48] sm:$0xff]
  %v5816 = vld [vmem:[#allocation3 + $0x50] sm:$0xff]
  %v5817 = vld [vmem:[#allocation3 + $0x58] sm:$0xff]
  %v5818 = vld [vmem:[#allocation3 + $0x60] sm:$0xff]
  %v5819 = vld [vmem:[#allocation3 + $0x68] sm:$0xff]
  %v5820 = vld [vmem:[#allocation3 + $0x70] sm:$0xff]
  %v5821 = vld [vmem:[#allocation3 + $0x78] sm:$0xff]
  %v5822 = vld [vmem:[#allocation3 + $0x80] sm:$0xff]
  %v5823 = vld [vmem:[#allocation3 + $0x88] sm:$0xff]
  %v5824 = vld [vmem:[#allocation3 + $0x90] sm:$0xff]
  %v5825 = vld [vmem:[#allocation3 + $0x98] sm:$0xff]
  %v5826 = vld [vmem:[#allocation3 + $0xa0] sm:$0xff]
  %v5827 = vld [vmem:[#allocation3 + $0xa8] sm:$0xff]
  %v5828 = vld [vmem:[#allocation3 + $0xb0] sm:$0xff]
  %v5829 = vld [vmem:[#allocation3 + $0xb8] sm:$0xff]
  %v5830 = vld [vmem:[#allocation3 + $0xc0] sm:$0xff]
  %v5831 = vld [vmem:[#allocation3 + $0xc8] sm:$0xff]
  %v5832 = vld [vmem:[#allocation3 + $0xd0] sm:$0xff]
  %v5833 = vld [vmem:[#allocation3 + $0xd8] sm:$0xff]
  %v5834 = vld [vmem:[#allocation3 + $0xe0] sm:$0xff]
  %v5835 = vld [vmem:[#allocation3 + $0xe8] sm:$0xff]
  %v5836 = vld [vmem:[#allocation3 + $0xf0] sm:$0xff]
  %s5837 = scalar_lea.vmem %s3, 336
  %v5838 = vld [vmem:[%s5837] sm:$0xff]
  %v5839 = vld [vmem:[%s5837 + $0x8] sm:$0xff]
  %v5840 = vld [vmem:[%s5837 + $0x10] sm:$0xff]
  %v5841 = vld [vmem:[%s5837 + $0x18] sm:$0xff]
  %v5842 = vld [vmem:[%s5837 + $0x20] sm:$0xff]
  %v5843 = vld [vmem:[%s5837 + $0x28] sm:$0xff]
  %v5844 = vld [vmem:[%s5837 + $0x30] sm:$0xff]
  %v5845 = vld [vmem:[%s5837 + $0x38] sm:$0xff]
  %v5846 = vld [vmem:[%s5837 + $0x40] sm:$0xff]
  %v5847 = vld [vmem:[%s5837 + $0x48] sm:$0xff]
  %v5848 = vld [vmem:[%s5837 + $0x50] sm:$0xff]
  %v5849 = vld [vmem:[%s5837 + $0x58] sm:$0xff]
  %v5850 = vld [vmem:[%s5837 + $0x60] sm:$0xff]
  %v5851 = vld [vmem:[%s5837 + $0x68] sm:$0xff]
  %v5852 = vld [vmem:[%s5837 + $0x70] sm:$0xff]
  %v5853 = vld [vmem:[%s5837 + $0x78] sm:$0xff]
  %v5854 = vld [vmem:[%s5837 + $0x80] sm:$0xff]
  %v5855 = vld [vmem:[%s5837 + $0x88] sm:$0xff]
  %v5856 = vld [vmem:[%s5837 + $0x90] sm:$0xff]
  %v5857 = vld [vmem:[%s5837 + $0x98] sm:$0xff]
  %v5858 = vld [vmem:[%s5837 + $0xa0] sm:$0xff]
  %v5890 = vunpack.c.l.b16 %v5806
  %v5891 = vunpack.c.h.b16 %v5806
  %v5892 = vunpack.c.l.b16 %v5807
  %v5893 = vunpack.c.h.b16 %v5807
  %v5894 = vunpack.c.l.b16 %v5808
  %v5895 = vunpack.c.h.b16 %v5808
  %v5896 = vunpack.c.l.b16 %v5809
  %v5897 = vunpack.c.h.b16 %v5809
  %v5898 = vunpack.c.l.b16 %v5810
  %v5899 = vunpack.c.h.b16 %v5810
  %v5900 = vunpack.c.l.b16 %v5811
  %v5901 = vunpack.c.h.b16 %v5811
  %v5902 = vunpack.c.l.b16 %v5812
  %v5903 = vunpack.c.h.b16 %v5812
  %v5904 = vunpack.c.l.b16 %v5813
  %v5905 = vunpack.c.h.b16 %v5813
  %v5906 = vunpack.c.l.b16 %v5814
  %v5907 = vunpack.c.h.b16 %v5814
  %v5908 = vunpack.c.l.b16 %v5815
  %v5909 = vunpack.c.h.b16 %v5815
  %v5910 = vunpack.c.l.b16 %v5816
  %v5911 = vunpack.c.h.b16 %v5816
  %v5912 = vunpack.c.l.b16 %v5817
  %v5913 = vunpack.c.h.b16 %v5817
  %v5914 = vunpack.c.l.b16 %v5818
  %v5915 = vunpack.c.h.b16 %v5818
  %v5916 = vunpack.c.l.b16 %v5819
  %v5917 = vunpack.c.h.b16 %v5819
  %v5918 = vunpack.c.l.b16 %v5820
  %v5919 = vunpack.c.h.b16 %v5820
  %v5920 = vunpack.c.l.b16 %v5821
  %v5921 = vunpack.c.h.b16 %v5821
  %v5922 = vunpack.c.l.b16 %v5822
  %v5923 = vunpack.c.h.b16 %v5822
  %v5924 = vunpack.c.l.b16 %v5823
  %v5925 = vunpack.c.h.b16 %v5823
  %v5926 = vunpack.c.l.b16 %v5824
  %v5927 = vunpack.c.h.b16 %v5824
  %v5928 = vunpack.c.l.b16 %v5825
  %v5929 = vunpack.c.h.b16 %v5825
  %v5930 = vunpack.c.l.b16 %v5826
  %v5931 = vunpack.c.h.b16 %v5826
  %v5932 = vunpack.c.l.b16 %v5827
  %v5933 = vunpack.c.h.b16 %v5827
  %v5934 = vunpack.c.l.b16 %v5828
  %v5935 = vunpack.c.h.b16 %v5828
  %v5936 = vunpack.c.l.b16 %v5829
  %v5937 = vunpack.c.h.b16 %v5829
  %v5938 = vunpack.c.l.b16 %v5830
  %v5939 = vunpack.c.h.b16 %v5830
  %v5940 = vunpack.c.l.b16 %v5831
  %v5941 = vunpack.c.h.b16 %v5831
  %v5942 = vunpack.c.l.b16 %v5832
  %v5943 = vunpack.c.h.b16 %v5832
  %v5944 = vunpack.c.l.b16 %v5833
  %v5945 = vunpack.c.h.b16 %v5833
  %v5946 = vunpack.c.l.b16 %v5834
  %v5947 = vunpack.c.h.b16 %v5834
  %v5948 = vunpack.c.l.b16 %v5835
  %v5949 = vunpack.c.h.b16 %v5835
  %v5950 = vunpack.c.l.b16 %v5836
  %v5951 = vunpack.c.h.b16 %v5836
  %v5952 = vpack.c.b16 %v5892, %v5890
  %v5953 = vpack.c.b16 %v5893, %v5891
  %v5954 = vpack.c.b16 %v5896, %v5894
  %v5955 = vpack.c.b16 %v5897, %v5895
  %v5956 = vpack.c.b16 %v5900, %v5898
  %v5957 = vpack.c.b16 %v5901, %v5899
  %v5958 = vpack.c.b16 %v5904, %v5902
  %v5959 = vpack.c.b16 %v5905, %v5903
  %v5960 = vpack.c.b16 %v5908, %v5906
  %v5961 = vpack.c.b16 %v5909, %v5907
  %v5962 = vpack.c.b16 %v5912, %v5910
  %v5963 = vpack.c.b16 %v5913, %v5911
  %v5964 = vpack.c.b16 %v5916, %v5914
  %v5965 = vpack.c.b16 %v5917, %v5915
  %v5966 = vpack.c.b16 %v5920, %v5918
  %v5967 = vpack.c.b16 %v5921, %v5919
  %v5968 = vpack.c.b16 %v5924, %v5922
  %v5969 = vpack.c.b16 %v5925, %v5923
  %v5970 = vpack.c.b16 %v5928, %v5926
  %v5971 = vpack.c.b16 %v5929, %v5927
  %v5972 = vpack.c.b16 %v5932, %v5930
  %v5973 = vpack.c.b16 %v5933, %v5931
  %v5974 = vpack.c.b16 %v5936, %v5934
  %v5975 = vpack.c.b16 %v5937, %v5935
  %v5976 = vpack.c.b16 %v5940, %v5938
  %v5977 = vpack.c.b16 %v5941, %v5939
  %v5978 = vpack.c.b16 %v5944, %v5942
  %v5979 = vpack.c.b16 %v5945, %v5943
  %v5980 = vpack.c.b16 %v5948, %v5946
  %v5981 = vpack.c.b16 %v5949, %v5947
  %v5982 = vpack.c.b16 %v5950, %v5950
  %v5983 = vpack.c.b16 %v5951, %v5951
  %v5984 = vrot.slane %v5952, 2
  %v5985 = vrot.slane %v5954, 2
  %v5986 = vsel %vm2826, %v5984, %v5985
  %v5987 = vrot.slane %v5953, 2
  %v5988 = vrot.slane %v5955, 2
  %v5989 = vsel %vm2826, %v5987, %v5988
  %v5990 = vrot.slane %v5956, 2
  %v5991 = vsel %vm2826, %v5985, %v5990
  %v5992 = vrot.slane %v5957, 2
  %v5993 = vsel %vm2826, %v5988, %v5992
  %v5994 = vrot.slane %v5958, 2
  %v5995 = vsel %vm2826, %v5990, %v5994
  %v5996 = vrot.slane %v5959, 2
  %v5997 = vsel %vm2826, %v5992, %v5996
  %v5998 = vrot.slane %v5960, 2
  %v5999 = vsel %vm2826, %v5994, %v5998
  %v6000 = vrot.slane %v5961, 2
  %v6001 = vsel %vm2826, %v5996, %v6000
  %v6002 = vrot.slane %v5962, 2
  %v6003 = vsel %vm2826, %v5998, %v6002
  %v6004 = vrot.slane %v5963, 2
  %v6005 = vsel %vm2826, %v6000, %v6004
  %v6006 = vrot.slane %v5964, 2
  %v6007 = vsel %vm2826, %v6002, %v6006
  %v6008 = vrot.slane %v5965, 2
  %v6009 = vsel %vm2826, %v6004, %v6008
  %v6010 = vrot.slane %v5966, 2
  %v6011 = vsel %vm2826, %v6006, %v6010
  %v6012 = vrot.slane %v5967, 2
  %v6013 = vsel %vm2826, %v6008, %v6012
  %v6014 = vrot.slane %v5968, 2
  %v6015 = vsel %vm2826, %v6010, %v6014
  %v6016 = vrot.slane %v5969, 2
  %v6017 = vsel %vm2826, %v6012, %v6016
  %v6018 = vrot.slane %v5970, 2
  %v6019 = vsel %vm2826, %v6014, %v6018
  %v6020 = vrot.slane %v5971, 2
  %v6021 = vsel %vm2826, %v6016, %v6020
  %v6022 = vrot.slane %v5972, 2
  %v6023 = vsel %vm2826, %v6018, %v6022
  %v6024 = vrot.slane %v5973, 2
  %v6025 = vsel %vm2826, %v6020, %v6024
  %v6026 = vrot.slane %v5974, 2
  %v6027 = vsel %vm2826, %v6022, %v6026
  %v6028 = vrot.slane %v5975, 2
  %v6029 = vsel %vm2826, %v6024, %v6028
  %v6030 = vrot.slane %v5976, 2
  %v6031 = vsel %vm2826, %v6026, %v6030
  %v6032 = vrot.slane %v5977, 2
  %v6033 = vsel %vm2826, %v6028, %v6032
  %v6034 = vrot.slane %v5978, 2
  %v6035 = vsel %vm2826, %v6030, %v6034
  %v6036 = vrot.slane %v5979, 2
  %v6037 = vsel %vm2826, %v6032, %v6036
  %v6038 = vrot.slane %v5980, 2
  %v6039 = vsel %vm2826, %v6034, %v6038
  %v6040 = vrot.slane %v5981, 2
  %v6041 = vsel %vm2826, %v6036, %v6040
  %v6042 = vrot.slane %v5982, 2
  %v6043 = vsel %vm2826, %v6038, %v6042
  %v6044 = vrot.slane %v5983, 2
  %v6045 = vsel %vm2826, %v6040, %v6044
  %v6083 = vunpack.c.l.b16 %v5838
  %v6084 = vunpack.c.h.b16 %v5838
  %v6085 = vunpack.c.l.b16 %v5839
  %v6086 = vunpack.c.h.b16 %v5839
  %v6087 = vunpack.c.l.b16 %v5840
  %v6088 = vunpack.c.h.b16 %v5840
  %v6089 = vunpack.c.l.b16 %v5841
  %v6090 = vunpack.c.h.b16 %v5841
  %v6091 = vunpack.c.l.b16 %v5842
  %v6092 = vunpack.c.h.b16 %v5842
  %v6093 = vunpack.c.l.b16 %v5843
  %v6094 = vunpack.c.h.b16 %v5843
  %v6095 = vunpack.c.l.b16 %v5844
  %v6096 = vunpack.c.h.b16 %v5844
  %v6097 = vunpack.c.l.b16 %v5845
  %v6098 = vunpack.c.h.b16 %v5845
  %v6099 = vunpack.c.l.b16 %v5846
  %v6100 = vunpack.c.h.b16 %v5846
  %v6101 = vunpack.c.l.b16 %v5847
  %v6102 = vunpack.c.h.b16 %v5847
  %v6103 = vunpack.c.l.b16 %v5848
  %v6104 = vunpack.c.h.b16 %v5848
  %v6105 = vunpack.c.l.b16 %v5849
  %v6106 = vunpack.c.h.b16 %v5849
  %v6107 = vunpack.c.l.b16 %v5850
  %v6108 = vunpack.c.h.b16 %v5850
  %v6109 = vunpack.c.l.b16 %v5851
  %v6110 = vunpack.c.h.b16 %v5851
  %v6111 = vunpack.c.l.b16 %v5852
  %v6112 = vunpack.c.h.b16 %v5852
  %v6113 = vunpack.c.l.b16 %v5853
  %v6114 = vunpack.c.h.b16 %v5853
  %v6115 = vunpack.c.l.b16 %v5854
  %v6116 = vunpack.c.h.b16 %v5854
  %v6117 = vunpack.c.l.b16 %v5855
  %v6118 = vunpack.c.h.b16 %v5855
  %v6119 = vunpack.c.l.b16 %v5856
  %v6120 = vunpack.c.h.b16 %v5856
  %v6121 = vunpack.c.l.b16 %v5857
  %v6122 = vunpack.c.h.b16 %v5857
  %v6123 = vunpack.c.l.b16 %v5858
  %v6124 = vunpack.c.h.b16 %v5858
  %v6125 = vpack.c.b16 %v6085, %v6083
  %v6126 = vpack.c.b16 %v6086, %v6084
  %v6127 = vpack.c.b16 %v6089, %v6087
  %v6128 = vpack.c.b16 %v6090, %v6088
  %v6129 = vpack.c.b16 %v6093, %v6091
  %v6130 = vpack.c.b16 %v6094, %v6092
  %v6131 = vpack.c.b16 %v6097, %v6095
  %v6132 = vpack.c.b16 %v6098, %v6096
  %v6133 = vpack.c.b16 %v6101, %v6099
  %v6134 = vpack.c.b16 %v6102, %v6100
  %v6135 = vpack.c.b16 %v6105, %v6103
  %v6136 = vpack.c.b16 %v6106, %v6104
  %v6137 = vpack.c.b16 %v6109, %v6107
  %v6138 = vpack.c.b16 %v6110, %v6108
  %v6139 = vpack.c.b16 %v6113, %v6111
  %v6140 = vpack.c.b16 %v6114, %v6112
  %v6141 = vpack.c.b16 %v6117, %v6115
  %v6142 = vpack.c.b16 %v6118, %v6116
  %v6143 = vpack.c.b16 %v6121, %v6119
  %v6144 = vpack.c.b16 %v6122, %v6120
  %v6145 = vpack.c.b16 %v6123, %v6123
  %v6146 = vpack.c.b16 %v6124, %v6124
  %v6168 = vsel %vm4701, %v5989, 0
  %v6171 = vsel %vm4701, %v5993, 0
  %v6174 = vsel %vm4701, %v5997, 0
  %v6177 = vsel %vm4701, %v6001, 0
  %v6180 = vsel %vm4701, %v6005, 0
  %v6183 = vsel %vm4701, %v6009, 0
  %v6186 = vsel %vm4701, %v6013, 0
  %v6189 = vsel %vm4701, %v6017, 0
  %v6192 = vsel %vm4701, %v6021, 0
  %v6195 = vsel %vm4701, %v6025, 0
  %v6198 = vsel %vm4701, %v6029, 0
  %v6201 = vsel %vm4701, %v6033, 0
  %v6204 = vsel %vm4701, %v6037, 0
  %v6207 = vsel %vm4701, %v6041, 0
  %v6210 = vsel %vm4701, %v6045, 0
  %v6213 = vsel %vm4701, %v6044, 0
  %v6216 = vand.u32 %v6145, %v4752
  %v6219 = vand.u32 %v6146, %v4752
  %6221 = vmatprep.subr.bf16.mxu0 %v6140
  %6222 = vmatpush1.bf16.msra.mxu0 %v6139
  %6223 = vmatprep.subr.bf16.mxu0 %v6138
  %6224 = vmatpush1.bf16.msra.mxu0 %v6137
  %6225 = vmatprep.subr.bf16.mxu0 %v6136
  %6226 = vmatpush1.bf16.msra.mxu0 %v6135
  %6227 = vmatprep.subr.bf16.mxu0 %v6134
  %6228 = vmatpush1.bf16.msra.mxu0 %v6133
  %6229 = vmatprep.subr.bf16.mxu0 %v6132
  %6230 = vmatpush1.bf16.msra.mxu0 %v6131
  %6231 = vmatprep.subr.bf16.mxu0 %v6130
  %6232 = vmatpush1.bf16.msra.mxu0 %v6129
  %6233 = vmatprep.subr.bf16.mxu0 %v6128
  %6234 = vmatpush1.bf16.msra.mxu0 %v6127
  %6235 = vmatprep.subr.bf16.mxu0 %v6126
  %6236 = vmatpush1.bf16.msra.mxu0 %v6125
  %6237 = vmatprep.subr.bf16.mxu0 0
  %6238 = vmatpush2.bf16.msra.mxu0 0
  %6239 = vmatprep.subr.bf16.mxu0 0
  %6240 = vmatpush2.bf16.msra.mxu0 0
  %6241 = vmatprep.subr.bf16.mxu0 0
  %6242 = vmatpush2.bf16.msra.mxu0 0
  %6243 = vmatprep.subr.bf16.mxu0 0
  %6244 = vmatpush2.bf16.msra.mxu0 0
  %6245 = vmatprep.subr.bf16.mxu0 0
  %6246 = vmatpush2.bf16.msra.mxu0 0
  %6247 = vmatprep.subr.bf16.mxu0 %v6219
  %6248 = vmatpush2.bf16.msra.mxu0 %v6216
  %6249 = vmatprep.subr.bf16.mxu0 %v6144
  %6250 = vmatpush2.bf16.msra.mxu0 %v6143
  %6251 = vmatprep.subr.bf16.mxu0 %v6142
  %6252 = vmatpush2.bf16.msra.mxu0 %v6141
  %6253 = vmatprep.mubr.bf16.mxu0 %v6168
  %6254 = vmatmul.mubr.bf16.gmra.mxu0 %v5986
  %v6255 = vpop.f32.mrf.mxu0
  %v6256 = vadd.f32 0.0, %v6255
  %v6257 = vpop.f32.mrf.mxu0
  %v6258 = vadd.f32 0.0, %v6257
  %v6259 = vpop.f32.mrf.mxu0
  %v6260 = vadd.f32 0.0, %v6259
  %v6261 = vpop.f32.mrf.mxu0
  %v6262 = vadd.f32 0.0, %v6261
  %6263 = vmatprep.mubr.bf16.mxu0 %v6171
  %6264 = vmatmul.mubr.bf16.gmra.mxu0 %v5991
  %v6265 = vpop.f32.mrf.mxu0
  %v6266 = vadd.f32 0.0, %v6265
  %v6267 = vpop.f32.mrf.mxu0
  %v6268 = vadd.f32 0.0, %v6267
  %v6269 = vpop.f32.mrf.mxu0
  %v6270 = vadd.f32 0.0, %v6269
  %v6271 = vpop.f32.mrf.mxu0
  %v6272 = vadd.f32 0.0, %v6271
  %6273 = vmatprep.mubr.bf16.mxu0 %v6174
  %6274 = vmatmul.mubr.bf16.gmra.mxu0 %v5995
  %v6275 = vpop.f32.mrf.mxu0
  %v6276 = vadd.f32 0.0, %v6275
  %v6277 = vpop.f32.mrf.mxu0
  %v6278 = vadd.f32 0.0, %v6277
  %v6279 = vpop.f32.mrf.mxu0
  %v6280 = vadd.f32 0.0, %v6279
  %v6281 = vpop.f32.mrf.mxu0
  %v6282 = vadd.f32 0.0, %v6281
  %6283 = vmatprep.mubr.bf16.mxu0 %v6177
  %6284 = vmatmul.mubr.bf16.gmra.mxu0 %v5999
  %v6285 = vpop.f32.mrf.mxu0
  %v6286 = vadd.f32 0.0, %v6285
  %v6287 = vpop.f32.mrf.mxu0
  %v6288 = vadd.f32 0.0, %v6287
  %v6289 = vpop.f32.mrf.mxu0
  %v6290 = vadd.f32 0.0, %v6289
  %v6291 = vpop.f32.mrf.mxu0
  %v6292 = vadd.f32 0.0, %v6291
  %6293 = vmatprep.mubr.bf16.mxu0 %v6180
  %6294 = vmatmul.mubr.bf16.gmra.mxu0 %v6003
  %v6295 = vpop.f32.mrf.mxu0
  %v6296 = vadd.f32 0.0, %v6295
  %v6297 = vpop.f32.mrf.mxu0
  %v6298 = vadd.f32 0.0, %v6297
  %v6299 = vpop.f32.mrf.mxu0
  %v6300 = vadd.f32 0.0, %v6299
  %v6301 = vpop.f32.mrf.mxu0
  %v6302 = vadd.f32 0.0, %v6301
  %6303 = vmatprep.mubr.bf16.mxu0 %v6183
  %6304 = vmatmul.mubr.bf16.gmra.mxu0 %v6007
  %v6305 = vpop.f32.mrf.mxu0
  %v6306 = vadd.f32 0.0, %v6305
  %v6307 = vpop.f32.mrf.mxu0
  %v6308 = vadd.f32 0.0, %v6307
  %v6309 = vpop.f32.mrf.mxu0
  %v6310 = vadd.f32 0.0, %v6309
  %v6311 = vpop.f32.mrf.mxu0
  %v6312 = vadd.f32 0.0, %v6311
  %6313 = vmatprep.mubr.bf16.mxu0 %v6186
  %6314 = vmatmul.mubr.bf16.gmra.mxu0 %v6011
  %v6315 = vpop.f32.mrf.mxu0
  %v6316 = vadd.f32 0.0, %v6315
  %v6317 = vpop.f32.mrf.mxu0
  %v6318 = vadd.f32 0.0, %v6317
  %v6319 = vpop.f32.mrf.mxu0
  %v6320 = vadd.f32 0.0, %v6319
  %v6321 = vpop.f32.mrf.mxu0
  %v6322 = vadd.f32 0.0, %v6321
  %6323 = vmatprep.mubr.bf16.mxu0 %v6189
  %6324 = vmatmul.mubr.bf16.gmra.mxu0 %v6015
  %v6325 = vpop.f32.mrf.mxu0
  %v6326 = vadd.f32 0.0, %v6325
  %v6327 = vpop.f32.mrf.mxu0
  %v6328 = vadd.f32 0.0, %v6327
  %v6329 = vpop.f32.mrf.mxu0
  %v6330 = vadd.f32 0.0, %v6329
  %v6331 = vpop.f32.mrf.mxu0
  %v6332 = vadd.f32 0.0, %v6331
  %6333 = vmatprep.mubr.bf16.mxu0 %v6192
  %6334 = vmatmul.mubr.bf16.gmra.mxu0 %v6019
  %v6335 = vpop.f32.mrf.mxu0
  %v6336 = vadd.f32 0.0, %v6335
  %v6337 = vpop.f32.mrf.mxu0
  %v6338 = vadd.f32 0.0, %v6337
  %v6339 = vpop.f32.mrf.mxu0
  %v6340 = vadd.f32 0.0, %v6339
  %v6341 = vpop.f32.mrf.mxu0
  %v6342 = vadd.f32 0.0, %v6341
  %6343 = vmatprep.mubr.bf16.mxu0 %v6195
  %6344 = vmatmul.mubr.bf16.gmra.mxu0 %v6023
  %v6345 = vpop.f32.mrf.mxu0
  %v6346 = vadd.f32 0.0, %v6345
  %v6347 = vpop.f32.mrf.mxu0
  %v6348 = vadd.f32 0.0, %v6347
  %v6349 = vpop.f32.mrf.mxu0
  %v6350 = vadd.f32 0.0, %v6349
  %v6351 = vpop.f32.mrf.mxu0
  %v6352 = vadd.f32 0.0, %v6351
  %6353 = vmatprep.mubr.bf16.mxu0 %v6198
  %6354 = vmatmul.mubr.bf16.gmra.mxu0 %v6027
  %v6355 = vpop.f32.mrf.mxu0
  %v6356 = vadd.f32 0.0, %v6355
  %v6357 = vpop.f32.mrf.mxu0
  %v6358 = vadd.f32 0.0, %v6357
  %v6359 = vpop.f32.mrf.mxu0
  %v6360 = vadd.f32 0.0, %v6359
  %v6361 = vpop.f32.mrf.mxu0
  %v6362 = vadd.f32 0.0, %v6361
  %6363 = vmatprep.mubr.bf16.mxu0 %v6201
  %6364 = vmatmul.mubr.bf16.gmra.mxu0 %v6031
  %v6365 = vpop.f32.mrf.mxu0
  %v6366 = vadd.f32 0.0, %v6365
  %v6367 = vpop.f32.mrf.mxu0
  %v6368 = vadd.f32 0.0, %v6367
  %v6369 = vpop.f32.mrf.mxu0
  %v6370 = vadd.f32 0.0, %v6369
  %v6371 = vpop.f32.mrf.mxu0
  %v6372 = vadd.f32 0.0, %v6371
  %6373 = vmatprep.mubr.bf16.mxu0 %v6204
  %6374 = vmatmul.mubr.bf16.gmra.mxu0 %v6035
  %v6375 = vpop.f32.mrf.mxu0
  %v6376 = vadd.f32 0.0, %v6375
  %v6377 = vpop.f32.mrf.mxu0
  %v6378 = vadd.f32 0.0, %v6377
  %v6379 = vpop.f32.mrf.mxu0
  %v6380 = vadd.f32 0.0, %v6379
  %v6381 = vpop.f32.mrf.mxu0
  %v6382 = vadd.f32 0.0, %v6381
  %6383 = vmatprep.mubr.bf16.mxu0 %v6207
  %6384 = vmatmul.mubr.bf16.gmra.mxu0 %v6039
  %v6385 = vpop.f32.mrf.mxu0
  %v6386 = vadd.f32 0.0, %v6385
  %v6387 = vpop.f32.mrf.mxu0
  %v6388 = vadd.f32 0.0, %v6387
  %v6389 = vpop.f32.mrf.mxu0
  %v6390 = vadd.f32 0.0, %v6389
  %v6391 = vpop.f32.mrf.mxu0
  %v6392 = vadd.f32 0.0, %v6391
  %6393 = vmatprep.mubr.bf16.mxu0 %v6210
  %6394 = vmatmul.mubr.bf16.gmra.mxu0 %v6043
  %v6395 = vpop.f32.mrf.mxu0
  %v6396 = vadd.f32 0.0, %v6395
  %v6397 = vpop.f32.mrf.mxu0
  %v6398 = vadd.f32 0.0, %v6397
  %v6399 = vpop.f32.mrf.mxu0
  %v6400 = vadd.f32 0.0, %v6399
  %v6401 = vpop.f32.mrf.mxu0
  %v6402 = vadd.f32 0.0, %v6401
  %6403 = vmatprep.mubr.bf16.mxu0 %v6213
  %6404 = vmatmul.mubr.bf16.gmra.mxu0 %v6042
  %v6405 = vpop.f32.mrf.mxu0
  %v6406 = vadd.f32 0.0, %v6405
  %v6407 = vpop.f32.mrf.mxu0
  %v6408 = vadd.f32 0.0, %v6407
  %v6409 = vpop.f32.mrf.mxu0
  %v6410 = vpop.f32.mrf.mxu0
  %6411 = vdwg.mxu0
  %v6412 = vld [vmem:[#allocation4] sm:$0xff]
  %v6413 = vld [vmem:[#allocation4 + $0x8] sm:$0xff]
  %v6414 = vld [vmem:[#allocation4 + $0x10] sm:$0xff]
  %v6415 = vld [vmem:[#allocation4 + $0x18] sm:$0xff]
  %v6416 = vld [vmem:[#allocation4 + $0x20] sm:$0xff]
  %v6417 = vld [vmem:[#allocation4 + $0x28] sm:$0xff]
  %v6418 = vld [vmem:[#allocation4 + $0x30] sm:$0xff]
  %v6419 = vld [vmem:[#allocation4 + $0x38] sm:$0xff]
  %v6420 = vld [vmem:[#allocation4 + $0x40] sm:$0xff]
  %v6421 = vld [vmem:[#allocation4 + $0x48] sm:$0xff]
  %v6422 = vld [vmem:[#allocation4 + $0x50] sm:$0xff]
  %v6423 = vld [vmem:[#allocation4 + $0x58] sm:$0xff]
  %v6424 = vld [vmem:[#allocation4 + $0x60] sm:$0xff]
  %v6425 = vld [vmem:[#allocation4 + $0x68] sm:$0xff]
  %v6426 = vld [vmem:[#allocation4 + $0x70] sm:$0xff]
  %v6427 = vld [vmem:[#allocation4 + $0x78] sm:$0xff]
  %v6428 = vld [vmem:[#allocation4 + $0x80] sm:$0xff]
  %v6429 = vld [vmem:[#allocation4 + $0x88] sm:$0xff]
  %v6430 = vld [vmem:[#allocation4 + $0x90] sm:$0xff]
  %v6431 = vld [vmem:[#allocation4 + $0x98] sm:$0xff]
  %v6432 = vld [vmem:[#allocation4 + $0xa0] sm:$0xff]
  %v6433 = vld [vmem:[#allocation4 + $0xa8] sm:$0xff]
  %v6434 = vld [vmem:[#allocation4 + $0xb0] sm:$0xff]
  %v6435 = vld [vmem:[#allocation4 + $0xb8] sm:$0xff]
  %v6436 = vld [vmem:[#allocation4 + $0xc0] sm:$0xff]
  %v6437 = vld [vmem:[#allocation4 + $0xc8] sm:$0xff]
  %v6438 = vld [vmem:[#allocation4 + $0xd0] sm:$0xff]
  %v6439 = vld [vmem:[#allocation4 + $0xd8] sm:$0xff]
  %v6440 = vld [vmem:[#allocation4 + $0xe0] sm:$0xff]
  %v6441 = vld [vmem:[#allocation4 + $0xe8] sm:$0xff]
  %v6442 = vld [vmem:[#allocation4 + $0xf0] sm:$0xff]
  %v6443 = vld [vmem:[#allocation4 + $0xf8] sm:$0xff]
  %v6444 = vld [vmem:[#allocation4 + $0x100] sm:$0xff]
  %v6445 = vld [vmem:[#allocation4 + $0x108] sm:$0xff]
  %v6446 = vld [vmem:[#allocation4 + $0x110] sm:$0xff]
  %v6447 = vld [vmem:[#allocation4 + $0x118] sm:$0xff]
  %v6448 = vld [vmem:[#allocation4 + $0x120] sm:$0xff]
  %v6449 = vld [vmem:[#allocation4 + $0x128] sm:$0xff]
  %v6450 = vld [vmem:[#allocation4 + $0x130] sm:$0xff]
  %v6451 = vld [vmem:[#allocation4 + $0x138] sm:$0xff]
  %v6452 = vld [vmem:[#allocation4 + $0x140] sm:$0xff]
  %v6453 = vld [vmem:[#allocation4 + $0x148] sm:$0xff]
  %v6454 = vld [vmem:[#allocation4 + $0x150] sm:$0xff]
  %v6455 = vld [vmem:[#allocation4 + $0x158] sm:$0xff]
  %v6456 = vld [vmem:[#allocation4 + $0x160] sm:$0xff]
  %v6457 = vld [vmem:[#allocation4 + $0x168] sm:$0xff]
  %v6458 = vld [vmem:[#allocation4 + $0x170] sm:$0xff]
  %v6459 = vld [vmem:[#allocation4 + $0x178] sm:$0xff]
  %v6460 = vld [vmem:[#allocation4 + $0x180] sm:$0xff]
  %v6461 = vld [vmem:[#allocation4 + $0x188] sm:$0xff]
  %v6462 = vld [vmem:[#allocation4 + $0x190] sm:$0xff]
  %v6463 = vld [vmem:[#allocation4 + $0x198] sm:$0xff]
  %v6464 = vld [vmem:[#allocation4 + $0x1a0] sm:$0xff]
  %v6465 = vld [vmem:[#allocation4 + $0x1a8] sm:$0xff]
  %v6466 = vld [vmem:[#allocation4 + $0x1b0] sm:$0xff]
  %v6467 = vld [vmem:[#allocation4 + $0x1b8] sm:$0xff]
  %v6468 = vld [vmem:[#allocation4 + $0x1c0] sm:$0xff]
  %v6469 = vld [vmem:[#allocation4 + $0x1c8] sm:$0xff]
  %v6470 = vld [vmem:[#allocation4 + $0x1d0] sm:$0xff]
  %v6471 = vld [vmem:[#allocation4 + $0x1d8] sm:$0xff]
  %v6472 = vld [vmem:[#allocation4 + $0x1e0] sm:$0x7]
  %v6473 = vld [vmem:[#allocation4 + $0x1e8] sm:$0x7]
  %v6474 = vadd.f32 %v6412, %v6256
  %v6475 = vadd.f32 %v6413, %v6258
  %v6476 = vadd.f32 %v6414, %v6260
  %v6477 = vadd.f32 %v6415, %v6262
  %v6478 = vadd.f32 %v6416, %v6266
  %v6479 = vadd.f32 %v6417, %v6268
  %v6480 = vadd.f32 %v6418, %v6270
  %v6481 = vadd.f32 %v6419, %v6272
  %v6482 = vadd.f32 %v6420, %v6276
  %v6483 = vadd.f32 %v6421, %v6278
  %v6484 = vadd.f32 %v6422, %v6280
  %v6485 = vadd.f32 %v6423, %v6282
  %v6486 = vadd.f32 %v6424, %v6286
  %v6487 = vadd.f32 %v6425, %v6288
  %v6488 = vadd.f32 %v6426, %v6290
  %v6489 = vadd.f32 %v6427, %v6292
  %v6490 = vadd.f32 %v6428, %v6296
  %v6491 = vadd.f32 %v6429, %v6298
  %v6492 = vadd.f32 %v6430, %v6300
  %v6493 = vadd.f32 %v6431, %v6302
  %v6494 = vadd.f32 %v6432, %v6306
  %v6495 = vadd.f32 %v6433, %v6308
  %v6496 = vadd.f32 %v6434, %v6310
  %v6497 = vadd.f32 %v6435, %v6312
  %v6498 = vadd.f32 %v6436, %v6316
  %v6499 = vadd.f32 %v6437, %v6318
  %v6500 = vadd.f32 %v6438, %v6320
  %v6501 = vadd.f32 %v6439, %v6322
  %v6502 = vadd.f32 %v6440, %v6326
  %v6503 = vadd.f32 %v6441, %v6328
  %v6504 = vadd.f32 %v6442, %v6330
  %v6505 = vadd.f32 %v6443, %v6332
  %v6506 = vadd.f32 %v6444, %v6336
  %v6507 = vadd.f32 %v6445, %v6338
  %v6508 = vadd.f32 %v6446, %v6340
  %v6509 = vadd.f32 %v6447, %v6342
  %v6510 = vadd.f32 %v6448, %v6346
  %v6511 = vadd.f32 %v6449, %v6348
  %v6512 = vadd.f32 %v6450, %v6350
  %v6513 = vadd.f32 %v6451, %v6352
  %v6514 = vadd.f32 %v6452, %v6356
  %v6515 = vadd.f32 %v6453, %v6358
  %v6516 = vadd.f32 %v6454, %v6360
  %v6517 = vadd.f32 %v6455, %v6362
  %v6518 = vadd.f32 %v6456, %v6366
  %v6519 = vadd.f32 %v6457, %v6368
  %v6520 = vadd.f32 %v6458, %v6370
  %v6521 = vadd.f32 %v6459, %v6372
  %v6522 = vadd.f32 %v6460, %v6376
  %v6523 = vadd.f32 %v6461, %v6378
  %v6524 = vadd.f32 %v6462, %v6380
  %v6525 = vadd.f32 %v6463, %v6382
  %v6526 = vadd.f32 %v6464, %v6386
  %v6527 = vadd.f32 %v6465, %v6388
  %v6528 = vadd.f32 %v6466, %v6390
  %v6529 = vadd.f32 %v6467, %v6392
  %v6530 = vadd.f32 %v6468, %v6396
  %v6531 = vadd.f32 %v6469, %v6398
  %v6532 = vadd.f32 %v6470, %v6400
  %v6533 = vadd.f32 %v6471, %v6402
  %v6534 = vadd.f32 %v6472, %v6406
  %v6535 = vadd.f32 %v6473, %v6408
  %6536 = vst [vmem:[#allocation4] sm:$0xff] %v6474
  %6537 = vst.msk [vmem:[#allocation4 + $0x8] sm:$0xff] %vm4951, %v6475
  %6538 = vst [vmem:[#allocation4 + $0x10] sm:$0xff] %v6476
  %6539 = vst.msk [vmem:[#allocation4 + $0x18] sm:$0xff] %vm4951, %v6477
  %6540 = vst [vmem:[#allocation4 + $0x20] sm:$0xff] %v6478
  %6541 = vst.msk [vmem:[#allocation4 + $0x28] sm:$0xff] %vm4951, %v6479
  %6542 = vst [vmem:[#allocation4 + $0x30] sm:$0xff] %v6480
  %6543 = vst.msk [vmem:[#allocation4 + $0x38] sm:$0xff] %vm4951, %v6481
  %6544 = vst [vmem:[#allocation4 + $0x40] sm:$0xff] %v6482
  %6545 = vst.msk [vmem:[#allocation4 + $0x48] sm:$0xff] %vm4951, %v6483
  %6546 = vst [vmem:[#allocation4 + $0x50] sm:$0xff] %v6484
  %6547 = vst.msk [vmem:[#allocation4 + $0x58] sm:$0xff] %vm4951, %v6485
  %6548 = vst [vmem:[#allocation4 + $0x60] sm:$0xff] %v6486
  %6549 = vst.msk [vmem:[#allocation4 + $0x68] sm:$0xff] %vm4951, %v6487
  %6550 = vst [vmem:[#allocation4 + $0x70] sm:$0xff] %v6488
  %6551 = vst.msk [vmem:[#allocation4 + $0x78] sm:$0xff] %vm4951, %v6489
  %6552 = vst [vmem:[#allocation4 + $0x80] sm:$0xff] %v6490
  %6553 = vst.msk [vmem:[#allocation4 + $0x88] sm:$0xff] %vm4951, %v6491
  %6554 = vst [vmem:[#allocation4 + $0x90] sm:$0xff] %v6492
  %6555 = vst.msk [vmem:[#allocation4 + $0x98] sm:$0xff] %vm4951, %v6493
  %6556 = vst [vmem:[#allocation4 + $0xa0] sm:$0xff] %v6494
  %6557 = vst.msk [vmem:[#allocation4 + $0xa8] sm:$0xff] %vm4951, %v6495
  %6558 = vst [vmem:[#allocation4 + $0xb0] sm:$0xff] %v6496
  %6559 = vst.msk [vmem:[#allocation4 + $0xb8] sm:$0xff] %vm4951, %v6497
  %6560 = vst [vmem:[#allocation4 + $0xc0] sm:$0xff] %v6498
  %6561 = vst.msk [vmem:[#allocation4 + $0xc8] sm:$0xff] %vm4951, %v6499
  %6562 = vst [vmem:[#allocation4 + $0xd0] sm:$0xff] %v6500
  %6563 = vst.msk [vmem:[#allocation4 + $0xd8] sm:$0xff] %vm4951, %v6501
  %6564 = vst [vmem:[#allocation4 + $0xe0] sm:$0xff] %v6502
  %6565 = vst.msk [vmem:[#allocation4 + $0xe8] sm:$0xff] %vm4951, %v6503
  %6566 = vst [vmem:[#allocation4 + $0xf0] sm:$0xff] %v6504
  %6567 = vst.msk [vmem:[#allocation4 + $0xf8] sm:$0xff] %vm4951, %v6505
  %6568 = vst [vmem:[#allocation4 + $0x100] sm:$0xff] %v6506
  %6569 = vst.msk [vmem:[#allocation4 + $0x108] sm:$0xff] %vm4951, %v6507
  %6570 = vst [vmem:[#allocation4 + $0x110] sm:$0xff] %v6508
  %6571 = vst.msk [vmem:[#allocation4 + $0x118] sm:$0xff] %vm4951, %v6509
  %6572 = vst [vmem:[#allocation4 + $0x120] sm:$0xff] %v6510
  %6573 = vst.msk [vmem:[#allocation4 + $0x128] sm:$0xff] %vm4951, %v6511
  %6574 = vst [vmem:[#allocation4 + $0x130] sm:$0xff] %v6512
  %6575 = vst.msk [vmem:[#allocation4 + $0x138] sm:$0xff] %vm4951, %v6513
  %6576 = vst [vmem:[#allocation4 + $0x140] sm:$0xff] %v6514
  %6577 = vst.msk [vmem:[#allocation4 + $0x148] sm:$0xff] %vm4951, %v6515
  %6578 = vst [vmem:[#allocation4 + $0x150] sm:$0xff] %v6516
  %6579 = vst.msk [vmem:[#allocation4 + $0x158] sm:$0xff] %vm4951, %v6517
  %6580 = vst [vmem:[#allocation4 + $0x160] sm:$0xff] %v6518
  %6581 = vst.msk [vmem:[#allocation4 + $0x168] sm:$0xff] %vm4951, %v6519
  %6582 = vst [vmem:[#allocation4 + $0x170] sm:$0xff] %v6520
  %6583 = vst.msk [vmem:[#allocation4 + $0x178] sm:$0xff] %vm4951, %v6521
  %6584 = vst [vmem:[#allocation4 + $0x180] sm:$0xff] %v6522
  %6585 = vst.msk [vmem:[#allocation4 + $0x188] sm:$0xff] %vm4951, %v6523
  %6586 = vst [vmem:[#allocation4 + $0x190] sm:$0xff] %v6524
  %6587 = vst.msk [vmem:[#allocation4 + $0x198] sm:$0xff] %vm4951, %v6525
  %6588 = vst [vmem:[#allocation4 + $0x1a0] sm:$0xff] %v6526
  %6589 = vst.msk [vmem:[#allocation4 + $0x1a8] sm:$0xff] %vm4951, %v6527
  %6590 = vst [vmem:[#allocation4 + $0x1b0] sm:$0xff] %v6528
  %6591 = vst.msk [vmem:[#allocation4 + $0x1b8] sm:$0xff] %vm4951, %v6529
  %6592 = vst [vmem:[#allocation4 + $0x1c0] sm:$0xff] %v6530
  %6593 = vst.msk [vmem:[#allocation4 + $0x1c8] sm:$0xff] %vm4951, %v6531
  %6594 = vst [vmem:[#allocation4 + $0x1d0] sm:$0xff] %v6532
  %6595 = vst.msk [vmem:[#allocation4 + $0x1d8] sm:$0xff] %vm4951, %v6533
  %6596 = vst [vmem:[#allocation4 + $0x1e0] sm:$0x7] %v6534
  %6597 = vst.msk [vmem:[#allocation4 + $0x1e8] sm:$0x7] %vm5012, %v6535
  %v6598 = vld [vmem:[#allocation3] sm:$0x88]
  %v6599 = vld [vmem:[#allocation3 + $0x8] sm:$0xff]
  %v6600 = vld [vmem:[#allocation3 + $0x10] sm:$0xff]
  %v6601 = vld [vmem:[#allocation3 + $0x18] sm:$0xff]
  %v6602 = vld [vmem:[#allocation3 + $0x20] sm:$0xff]
  %v6603 = vld [vmem:[#allocation3 + $0x28] sm:$0xff]
  %v6604 = vld [vmem:[#allocation3 + $0x30] sm:$0xff]
  %v6605 = vld [vmem:[#allocation3 + $0x38] sm:$0xff]
  %v6606 = vld [vmem:[#allocation3 + $0x40] sm:$0xff]
  %v6607 = vld [vmem:[#allocation3 + $0x48] sm:$0xff]
  %v6608 = vld [vmem:[#allocation3 + $0x50] sm:$0xff]
  %v6609 = vld [vmem:[#allocation3 + $0x58] sm:$0xff]
  %v6610 = vld [vmem:[#allocation3 + $0x60] sm:$0xff]
  %v6611 = vld [vmem:[#allocation3 + $0x68] sm:$0xff]
  %v6612 = vld [vmem:[#allocation3 + $0x70] sm:$0xff]
  %v6613 = vld [vmem:[#allocation3 + $0x78] sm:$0xff]
  %v6614 = vld [vmem:[#allocation3 + $0x80] sm:$0xff]
  %v6615 = vld [vmem:[#allocation3 + $0x88] sm:$0xff]
  %v6616 = vld [vmem:[#allocation3 + $0x90] sm:$0xff]
  %v6617 = vld [vmem:[#allocation3 + $0x98] sm:$0xff]
  %v6618 = vld [vmem:[#allocation3 + $0xa0] sm:$0xff]
  %v6619 = vld [vmem:[#allocation3 + $0xa8] sm:$0xff]
  %v6620 = vld [vmem:[#allocation3 + $0xb0] sm:$0xff]
  %v6621 = vld [vmem:[#allocation3 + $0xb8] sm:$0xff]
  %v6622 = vld [vmem:[#allocation3 + $0xc0] sm:$0xff]
  %v6623 = vld [vmem:[#allocation3 + $0xc8] sm:$0xff]
  %v6624 = vld [vmem:[#allocation3 + $0xd0] sm:$0xff]
  %v6625 = vld [vmem:[#allocation3 + $0xd8] sm:$0xff]
  %v6626 = vld [vmem:[#allocation3 + $0xe0] sm:$0xff]
  %v6627 = vld [vmem:[#allocation3 + $0xe8] sm:$0xff]
  %v6628 = vld [vmem:[#allocation3 + $0xf0] sm:$0xff]
  %v6629 = vld [vmem:[#allocation3 + $0xf8] sm:$0x11]
  %s6630 = scalar_lea.vmem %s3, 504
  %v6631 = vld [vmem:[%s6630] sm:$0xff]
  %v6632 = vld [vmem:[%s6630 + $0x8] sm:$0xff]
  %v6633 = vld [vmem:[%s6630 + $0x10] sm:$0xff]
  %v6634 = vld [vmem:[%s6630 + $0x18] sm:$0xff]
  %v6635 = vld [vmem:[%s6630 + $0x20] sm:$0xff]
  %v6636 = vld [vmem:[%s6630 + $0x28] sm:$0xff]
  %v6637 = vld [vmem:[%s6630 + $0x30] sm:$0xff]
  %v6638 = vld [vmem:[%s6630 + $0x38] sm:$0xff]
  %v6639 = vld [vmem:[%s6630 + $0x40] sm:$0xff]
  %v6640 = vld [vmem:[%s6630 + $0x48] sm:$0xff]
  %v6641 = vld [vmem:[%s6630 + $0x50] sm:$0xff]
  %v6642 = vld [vmem:[%s6630 + $0x58] sm:$0xff]
  %v6643 = vld [vmem:[%s6630 + $0x60] sm:$0xff]
  %v6644 = vld [vmem:[%s6630 + $0x68] sm:$0xff]
  %v6645 = vld [vmem:[%s6630 + $0x70] sm:$0xff]
  %v6646 = vld [vmem:[%s6630 + $0x78] sm:$0xff]
  %v6647 = vld [vmem:[%s6630 + $0x80] sm:$0xff]
  %v6648 = vld [vmem:[%s6630 + $0x88] sm:$0xff]
  %v6649 = vld [vmem:[%s6630 + $0x90] sm:$0xff]
  %v6650 = vld [vmem:[%s6630 + $0x98] sm:$0xff]
  %v6651 = vld [vmem:[%s6630 + $0xa0] sm:$0xff]
  %v6684 = vunpack.c.l.b16 %v6598
  %v6685 = vunpack.c.h.b16 %v6598
  %v6686 = vunpack.c.l.b16 %v6599
  %v6687 = vunpack.c.h.b16 %v6599
  %v6688 = vunpack.c.l.b16 %v6600
  %v6689 = vunpack.c.h.b16 %v6600
  %v6690 = vunpack.c.l.b16 %v6601
  %v6691 = vunpack.c.h.b16 %v6601
  %v6692 = vunpack.c.l.b16 %v6602
  %v6693 = vunpack.c.h.b16 %v6602
  %v6694 = vunpack.c.l.b16 %v6603
  %v6695 = vunpack.c.h.b16 %v6603
  %v6696 = vunpack.c.l.b16 %v6604
  %v6697 = vunpack.c.h.b16 %v6604
  %v6698 = vunpack.c.l.b16 %v6605
  %v6699 = vunpack.c.h.b16 %v6605
  %v6700 = vunpack.c.l.b16 %v6606
  %v6701 = vunpack.c.h.b16 %v6606
  %v6702 = vunpack.c.l.b16 %v6607
  %v6703 = vunpack.c.h.b16 %v6607
  %v6704 = vunpack.c.l.b16 %v6608
  %v6705 = vunpack.c.h.b16 %v6608
  %v6706 = vunpack.c.l.b16 %v6609
  %v6707 = vunpack.c.h.b16 %v6609
  %v6708 = vunpack.c.l.b16 %v6610
  %v6709 = vunpack.c.h.b16 %v6610
  %v6710 = vunpack.c.l.b16 %v6611
  %v6711 = vunpack.c.h.b16 %v6611
  %v6712 = vunpack.c.l.b16 %v6612
  %v6713 = vunpack.c.h.b16 %v6612
  %v6714 = vunpack.c.l.b16 %v6613
  %v6715 = vunpack.c.h.b16 %v6613
  %v6716 = vunpack.c.l.b16 %v6614
  %v6717 = vunpack.c.h.b16 %v6614
  %v6718 = vunpack.c.l.b16 %v6615
  %v6719 = vunpack.c.h.b16 %v6615
  %v6720 = vunpack.c.l.b16 %v6616
  %v6721 = vunpack.c.h.b16 %v6616
  %v6722 = vunpack.c.l.b16 %v6617
  %v6723 = vunpack.c.h.b16 %v6617
  %v6724 = vunpack.c.l.b16 %v6618
  %v6725 = vunpack.c.h.b16 %v6618
  %v6726 = vunpack.c.l.b16 %v6619
  %v6727 = vunpack.c.h.b16 %v6619
  %v6728 = vunpack.c.l.b16 %v6620
  %v6729 = vunpack.c.h.b16 %v6620
  %v6730 = vunpack.c.l.b16 %v6621
  %v6731 = vunpack.c.h.b16 %v6621
  %v6732 = vunpack.c.l.b16 %v6622
  %v6733 = vunpack.c.h.b16 %v6622
  %v6734 = vunpack.c.l.b16 %v6623
  %v6735 = vunpack.c.h.b16 %v6623
  %v6736 = vunpack.c.l.b16 %v6624
  %v6737 = vunpack.c.h.b16 %v6624
  %v6738 = vunpack.c.l.b16 %v6625
  %v6739 = vunpack.c.h.b16 %v6625
  %v6740 = vunpack.c.l.b16 %v6626
  %v6741 = vunpack.c.h.b16 %v6626
  %v6742 = vunpack.c.l.b16 %v6627
  %v6743 = vunpack.c.h.b16 %v6627
  %v6744 = vunpack.c.l.b16 %v6628
  %v6745 = vunpack.c.h.b16 %v6628
  %v6746 = vunpack.c.l.b16 %v6629
  %v6747 = vunpack.c.h.b16 %v6629
  %v6748 = vpack.c.b16 %v6686, %v6684
  %v6749 = vpack.c.b16 %v6687, %v6685
  %v6750 = vpack.c.b16 %v6690, %v6688
  %v6751 = vpack.c.b16 %v6691, %v6689
  %v6752 = vpack.c.b16 %v6694, %v6692
  %v6753 = vpack.c.b16 %v6695, %v6693
  %v6754 = vpack.c.b16 %v6698, %v6696
  %v6755 = vpack.c.b16 %v6699, %v6697
  %v6756 = vpack.c.b16 %v6702, %v6700
  %v6757 = vpack.c.b16 %v6703, %v6701
  %v6758 = vpack.c.b16 %v6706, %v6704
  %v6759 = vpack.c.b16 %v6707, %v6705
  %v6760 = vpack.c.b16 %v6710, %v6708
  %v6761 = vpack.c.b16 %v6711, %v6709
  %v6762 = vpack.c.b16 %v6714, %v6712
  %v6763 = vpack.c.b16 %v6715, %v6713
  %v6764 = vpack.c.b16 %v6718, %v6716
  %v6765 = vpack.c.b16 %v6719, %v6717
  %v6766 = vpack.c.b16 %v6722, %v6720
  %v6767 = vpack.c.b16 %v6723, %v6721
  %v6768 = vpack.c.b16 %v6726, %v6724
  %v6769 = vpack.c.b16 %v6727, %v6725
  %v6770 = vpack.c.b16 %v6730, %v6728
  %v6771 = vpack.c.b16 %v6731, %v6729
  %v6772 = vpack.c.b16 %v6734, %v6732
  %v6773 = vpack.c.b16 %v6735, %v6733
  %v6774 = vpack.c.b16 %v6738, %v6736
  %v6775 = vpack.c.b16 %v6739, %v6737
  %v6776 = vpack.c.b16 %v6742, %v6740
  %v6777 = vpack.c.b16 %v6743, %v6741
  %v6778 = vpack.c.b16 %v6746, %v6744
  %v6779 = vpack.c.b16 %v6747, %v6745
  %vm6780 = vcmask 1044480
  %v6781 = vrot.slane %v6748, 3
  %v6782 = vrot.slane %v6750, 3
  %v6783 = vsel %vm6780, %v6781, %v6782
  %v6784 = vrot.slane %v6749, 3
  %v6785 = vrot.slane %v6751, 3
  %v6786 = vsel %vm6780, %v6784, %v6785
  %v6787 = vrot.slane %v6752, 3
  %v6788 = vsel %vm6780, %v6782, %v6787
  %v6789 = vrot.slane %v6753, 3
  %v6790 = vsel %vm6780, %v6785, %v6789
  %v6791 = vrot.slane %v6754, 3
  %v6792 = vsel %vm6780, %v6787, %v6791
  %v6793 = vrot.slane %v6755, 3
  %v6794 = vsel %vm6780, %v6789, %v6793
  %v6795 = vrot.slane %v6756, 3
  %v6796 = vsel %vm6780, %v6791, %v6795
  %v6797 = vrot.slane %v6757, 3
  %v6798 = vsel %vm6780, %v6793, %v6797
  %v6799 = vrot.slane %v6758, 3
  %v6800 = vsel %vm6780, %v6795, %v6799
  %v6801 = vrot.slane %v6759, 3
  %v6802 = vsel %vm6780, %v6797, %v6801
  %v6803 = vrot.slane %v6760, 3
  %v6804 = vsel %vm6780, %v6799, %v6803
  %v6805 = vrot.slane %v6761, 3
  %v6806 = vsel %vm6780, %v6801, %v6805
  %v6807 = vrot.slane %v6762, 3
  %v6808 = vsel %vm6780, %v6803, %v6807
  %v6809 = vrot.slane %v6763, 3
  %v6810 = vsel %vm6780, %v6805, %v6809
  %v6811 = vrot.slane %v6764, 3
  %v6812 = vsel %vm6780, %v6807, %v6811
  %v6813 = vrot.slane %v6765, 3
  %v6814 = vsel %vm6780, %v6809, %v6813
  %v6815 = vrot.slane %v6766, 3
  %v6816 = vsel %vm6780, %v6811, %v6815
  %v6817 = vrot.slane %v6767, 3
  %v6818 = vsel %vm6780, %v6813, %v6817
  %v6819 = vrot.slane %v6768, 3
  %v6820 = vsel %vm6780, %v6815, %v6819
  %v6821 = vrot.slane %v6769, 3
  %v6822 = vsel %vm6780, %v6817, %v6821
  %v6823 = vrot.slane %v6770, 3
  %v6824 = vsel %vm6780, %v6819, %v6823
  %v6825 = vrot.slane %v6771, 3
  %v6826 = vsel %vm6780, %v6821, %v6825
  %v6827 = vrot.slane %v6772, 3
  %v6828 = vsel %vm6780, %v6823, %v6827
  %v6829 = vrot.slane %v6773, 3
  %v6830 = vsel %vm6780, %v6825, %v6829
  %v6831 = vrot.slane %v6774, 3
  %v6832 = vsel %vm6780, %v6827, %v6831
  %v6833 = vrot.slane %v6775, 3
  %v6834 = vsel %vm6780, %v6829, %v6833
  %v6835 = vrot.slane %v6776, 3
  %v6836 = vsel %vm6780, %v6831, %v6835
  %v6837 = vrot.slane %v6777, 3
  %v6838 = vsel %vm6780, %v6833, %v6837
  %v6839 = vrot.slane %v6778, 3
  %v6840 = vsel %vm6780, %v6835, %v6839
  %v6841 = vrot.slane %v6779, 3
  %v6842 = vsel %vm6780, %v6837, %v6841
  %v6880 = vunpack.c.l.b16 %v6631
  %v6881 = vunpack.c.h.b16 %v6631
  %v6882 = vunpack.c.l.b16 %v6632
  %v6883 = vunpack.c.h.b16 %v6632
  %v6884 = vunpack.c.l.b16 %v6633
  %v6885 = vunpack.c.h.b16 %v6633
  %v6886 = vunpack.c.l.b16 %v6634
  %v6887 = vunpack.c.h.b16 %v6634
  %v6888 = vunpack.c.l.b16 %v6635
  %v6889 = vunpack.c.h.b16 %v6635
  %v6890 = vunpack.c.l.b16 %v6636
  %v6891 = vunpack.c.h.b16 %v6636
  %v6892 = vunpack.c.l.b16 %v6637
  %v6893 = vunpack.c.h.b16 %v6637
  %v6894 = vunpack.c.l.b16 %v6638
  %v6895 = vunpack.c.h.b16 %v6638
  %v6896 = vunpack.c.l.b16 %v6639
  %v6897 = vunpack.c.h.b16 %v6639
  %v6898 = vunpack.c.l.b16 %v6640
  %v6899 = vunpack.c.h.b16 %v6640
  %v6900 = vunpack.c.l.b16 %v6641
  %v6901 = vunpack.c.h.b16 %v6641
  %v6902 = vunpack.c.l.b16 %v6642
  %v6903 = vunpack.c.h.b16 %v6642
  %v6904 = vunpack.c.l.b16 %v6643
  %v6905 = vunpack.c.h.b16 %v6643
  %v6906 = vunpack.c.l.b16 %v6644
  %v6907 = vunpack.c.h.b16 %v6644
  %v6908 = vunpack.c.l.b16 %v6645
  %v6909 = vunpack.c.h.b16 %v6645
  %v6910 = vunpack.c.l.b16 %v6646
  %v6911 = vunpack.c.h.b16 %v6646
  %v6912 = vunpack.c.l.b16 %v6647
  %v6913 = vunpack.c.h.b16 %v6647
  %v6914 = vunpack.c.l.b16 %v6648
  %v6915 = vunpack.c.h.b16 %v6648
  %v6916 = vunpack.c.l.b16 %v6649
  %v6917 = vunpack.c.h.b16 %v6649
  %v6918 = vunpack.c.l.b16 %v6650
  %v6919 = vunpack.c.h.b16 %v6650
  %v6920 = vunpack.c.l.b16 %v6651
  %v6921 = vunpack.c.h.b16 %v6651
  %v6922 = vpack.c.b16 %v6882, %v6880
  %v6923 = vpack.c.b16 %v6883, %v6881
  %v6924 = vpack.c.b16 %v6886, %v6884
  %v6925 = vpack.c.b16 %v6887, %v6885
  %v6926 = vpack.c.b16 %v6890, %v6888
  %v6927 = vpack.c.b16 %v6891, %v6889
  %v6928 = vpack.c.b16 %v6894, %v6892
  %v6929 = vpack.c.b16 %v6895, %v6893
  %v6930 = vpack.c.b16 %v6898, %v6896
  %v6931 = vpack.c.b16 %v6899, %v6897
  %v6932 = vpack.c.b16 %v6902, %v6900
  %v6933 = vpack.c.b16 %v6903, %v6901
  %v6934 = vpack.c.b16 %v6906, %v6904
  %v6935 = vpack.c.b16 %v6907, %v6905
  %v6936 = vpack.c.b16 %v6910, %v6908
  %v6937 = vpack.c.b16 %v6911, %v6909
  %v6938 = vpack.c.b16 %v6914, %v6912
  %v6939 = vpack.c.b16 %v6915, %v6913
  %v6940 = vpack.c.b16 %v6918, %v6916
  %v6941 = vpack.c.b16 %v6919, %v6917
  %v6942 = vpack.c.b16 %v6920, %v6920
  %v6943 = vpack.c.b16 %v6921, %v6921
  %v6965 = vsel %vm4701, %v6786, 0
  %v6968 = vsel %vm4701, %v6790, 0
  %v6971 = vsel %vm4701, %v6794, 0
  %v6974 = vsel %vm4701, %v6798, 0
  %v6977 = vsel %vm4701, %v6802, 0
  %v6980 = vsel %vm4701, %v6806, 0
  %v6983 = vsel %vm4701, %v6810, 0
  %v6986 = vsel %vm4701, %v6814, 0
  %v6989 = vsel %vm4701, %v6818, 0
  %v6992 = vsel %vm4701, %v6822, 0
  %v6995 = vsel %vm4701, %v6826, 0
  %v6998 = vsel %vm4701, %v6830, 0
  %v7001 = vsel %vm4701, %v6834, 0
  %v7004 = vsel %vm4701, %v6838, 0
  %v7007 = vsel %vm4701, %v6842, 0
  %v7010 = vsel %vm4701, %v6841, 0
  %v7013 = vand.u32 %v6942, %v4752
  %v7016 = vand.u32 %v6943, %v4752
  %7018 = vmatprep.subr.bf16.mxu0 %v6937
  %7019 = vmatpush1.bf16.msra.mxu0 %v6936
  %7020 = vmatprep.subr.bf16.mxu0 %v6935
  %7021 = vmatpush1.bf16.msra.mxu0 %v6934
  %7022 = vmatprep.subr.bf16.mxu0 %v6933
  %7023 = vmatpush1.bf16.msra.mxu0 %v6932
  %7024 = vmatprep.subr.bf16.mxu0 %v6931
  %7025 = vmatpush1.bf16.msra.mxu0 %v6930
  %7026 = vmatprep.subr.bf16.mxu0 %v6929
  %7027 = vmatpush1.bf16.msra.mxu0 %v6928
  %7028 = vmatprep.subr.bf16.mxu0 %v6927
  %7029 = vmatpush1.bf16.msra.mxu0 %v6926
  %7030 = vmatprep.subr.bf16.mxu0 %v6925
  %7031 = vmatpush1.bf16.msra.mxu0 %v6924
  %7032 = vmatprep.subr.bf16.mxu0 %v6923
  %7033 = vmatpush1.bf16.msra.mxu0 %v6922
  %7034 = vmatprep.subr.bf16.mxu0 0
  %7035 = vmatpush2.bf16.msra.mxu0 0
  %7036 = vmatprep.subr.bf16.mxu0 0
  %7037 = vmatpush2.bf16.msra.mxu0 0
  %7038 = vmatprep.subr.bf16.mxu0 0
  %7039 = vmatpush2.bf16.msra.mxu0 0
  %7040 = vmatprep.subr.bf16.mxu0 0
  %7041 = vmatpush2.bf16.msra.mxu0 0
  %7042 = vmatprep.subr.bf16.mxu0 0
  %7043 = vmatpush2.bf16.msra.mxu0 0
  %7044 = vmatprep.subr.bf16.mxu0 %v7016
  %7045 = vmatpush2.bf16.msra.mxu0 %v7013
  %7046 = vmatprep.subr.bf16.mxu0 %v6941
  %7047 = vmatpush2.bf16.msra.mxu0 %v6940
  %7048 = vmatprep.subr.bf16.mxu0 %v6939
  %7049 = vmatpush2.bf16.msra.mxu0 %v6938
  %7050 = vmatprep.mubr.bf16.mxu0 %v6965
  %7051 = vmatmul.mubr.bf16.gmra.mxu0 %v6783
  %v7052 = vpop.f32.mrf.mxu0
  %v7053 = vadd.f32 0.0, %v7052
  %v7054 = vpop.f32.mrf.mxu0
  %v7055 = vadd.f32 0.0, %v7054
  %v7056 = vpop.f32.mrf.mxu0
  %v7057 = vadd.f32 0.0, %v7056
  %v7058 = vpop.f32.mrf.mxu0
  %v7059 = vadd.f32 0.0, %v7058
  %7060 = vmatprep.mubr.bf16.mxu0 %v6968
  %7061 = vmatmul.mubr.bf16.gmra.mxu0 %v6788
  %v7062 = vpop.f32.mrf.mxu0
  %v7063 = vadd.f32 0.0, %v7062
  %v7064 = vpop.f32.mrf.mxu0
  %v7065 = vadd.f32 0.0, %v7064
  %v7066 = vpop.f32.mrf.mxu0
  %v7067 = vadd.f32 0.0, %v7066
  %v7068 = vpop.f32.mrf.mxu0
  %v7069 = vadd.f32 0.0, %v7068
  %7070 = vmatprep.mubr.bf16.mxu0 %v6971
  %7071 = vmatmul.mubr.bf16.gmra.mxu0 %v6792
  %v7072 = vpop.f32.mrf.mxu0
  %v7073 = vadd.f32 0.0, %v7072
  %v7074 = vpop.f32.mrf.mxu0
  %v7075 = vadd.f32 0.0, %v7074
  %v7076 = vpop.f32.mrf.mxu0
  %v7077 = vadd.f32 0.0, %v7076
  %v7078 = vpop.f32.mrf.mxu0
  %v7079 = vadd.f32 0.0, %v7078
  %7080 = vmatprep.mubr.bf16.mxu0 %v6974
  %7081 = vmatmul.mubr.bf16.gmra.mxu0 %v6796
  %v7082 = vpop.f32.mrf.mxu0
  %v7083 = vadd.f32 0.0, %v7082
  %v7084 = vpop.f32.mrf.mxu0
  %v7085 = vadd.f32 0.0, %v7084
  %v7086 = vpop.f32.mrf.mxu0
  %v7087 = vadd.f32 0.0, %v7086
  %v7088 = vpop.f32.mrf.mxu0
  %v7089 = vadd.f32 0.0, %v7088
  %7090 = vmatprep.mubr.bf16.mxu0 %v6977
  %7091 = vmatmul.mubr.bf16.gmra.mxu0 %v6800
  %v7092 = vpop.f32.mrf.mxu0
  %v7093 = vadd.f32 0.0, %v7092
  %v7094 = vpop.f32.mrf.mxu0
  %v7095 = vadd.f32 0.0, %v7094
  %v7096 = vpop.f32.mrf.mxu0
  %v7097 = vadd.f32 0.0, %v7096
  %v7098 = vpop.f32.mrf.mxu0
  %v7099 = vadd.f32 0.0, %v7098
  %7100 = vmatprep.mubr.bf16.mxu0 %v6980
  %7101 = vmatmul.mubr.bf16.gmra.mxu0 %v6804
  %v7102 = vpop.f32.mrf.mxu0
  %v7103 = vadd.f32 0.0, %v7102
  %v7104 = vpop.f32.mrf.mxu0
  %v7105 = vadd.f32 0.0, %v7104
  %v7106 = vpop.f32.mrf.mxu0
  %v7107 = vadd.f32 0.0, %v7106
  %v7108 = vpop.f32.mrf.mxu0
  %v7109 = vadd.f32 0.0, %v7108
  %7110 = vmatprep.mubr.bf16.mxu0 %v6983
  %7111 = vmatmul.mubr.bf16.gmra.mxu0 %v6808
  %v7112 = vpop.f32.mrf.mxu0
  %v7113 = vadd.f32 0.0, %v7112
  %v7114 = vpop.f32.mrf.mxu0
  %v7115 = vadd.f32 0.0, %v7114
  %v7116 = vpop.f32.mrf.mxu0
  %v7117 = vadd.f32 0.0, %v7116
  %v7118 = vpop.f32.mrf.mxu0
  %v7119 = vadd.f32 0.0, %v7118
  %7120 = vmatprep.mubr.bf16.mxu0 %v6986
  %7121 = vmatmul.mubr.bf16.gmra.mxu0 %v6812
  %v7122 = vpop.f32.mrf.mxu0
  %v7123 = vadd.f32 0.0, %v7122
  %v7124 = vpop.f32.mrf.mxu0
  %v7125 = vadd.f32 0.0, %v7124
  %v7126 = vpop.f32.mrf.mxu0
  %v7127 = vadd.f32 0.0, %v7126
  %v7128 = vpop.f32.mrf.mxu0
  %v7129 = vadd.f32 0.0, %v7128
  %7130 = vmatprep.mubr.bf16.mxu0 %v6989
  %7131 = vmatmul.mubr.bf16.gmra.mxu0 %v6816
  %v7132 = vpop.f32.mrf.mxu0
  %v7133 = vadd.f32 0.0, %v7132
  %v7134 = vpop.f32.mrf.mxu0
  %v7135 = vadd.f32 0.0, %v7134
  %v7136 = vpop.f32.mrf.mxu0
  %v7137 = vadd.f32 0.0, %v7136
  %v7138 = vpop.f32.mrf.mxu0
  %v7139 = vadd.f32 0.0, %v7138
  %7140 = vmatprep.mubr.bf16.mxu0 %v6992
  %7141 = vmatmul.mubr.bf16.gmra.mxu0 %v6820
  %v7142 = vpop.f32.mrf.mxu0
  %v7143 = vadd.f32 0.0, %v7142
  %v7144 = vpop.f32.mrf.mxu0
  %v7145 = vadd.f32 0.0, %v7144
  %v7146 = vpop.f32.mrf.mxu0
  %v7147 = vadd.f32 0.0, %v7146
  %v7148 = vpop.f32.mrf.mxu0
  %v7149 = vadd.f32 0.0, %v7148
  %7150 = vmatprep.mubr.bf16.mxu0 %v6995
  %7151 = vmatmul.mubr.bf16.gmra.mxu0 %v6824
  %v7152 = vpop.f32.mrf.mxu0
  %v7153 = vadd.f32 0.0, %v7152
  %v7154 = vpop.f32.mrf.mxu0
  %v7155 = vadd.f32 0.0, %v7154
  %v7156 = vpop.f32.mrf.mxu0
  %v7157 = vadd.f32 0.0, %v7156
  %v7158 = vpop.f32.mrf.mxu0
  %v7159 = vadd.f32 0.0, %v7158
  %7160 = vmatprep.mubr.bf16.mxu0 %v6998
  %7161 = vmatmul.mubr.bf16.gmra.mxu0 %v6828
  %v7162 = vpop.f32.mrf.mxu0
  %v7163 = vadd.f32 0.0, %v7162
  %v7164 = vpop.f32.mrf.mxu0
  %v7165 = vadd.f32 0.0, %v7164
  %v7166 = vpop.f32.mrf.mxu0
  %v7167 = vadd.f32 0.0, %v7166
  %v7168 = vpop.f32.mrf.mxu0
  %v7169 = vadd.f32 0.0, %v7168
  %7170 = vmatprep.mubr.bf16.mxu0 %v7001
  %7171 = vmatmul.mubr.bf16.gmra.mxu0 %v6832
  %v7172 = vpop.f32.mrf.mxu0
  %v7173 = vadd.f32 0.0, %v7172
  %v7174 = vpop.f32.mrf.mxu0
  %v7175 = vadd.f32 0.0, %v7174
  %v7176 = vpop.f32.mrf.mxu0
  %v7177 = vadd.f32 0.0, %v7176
  %v7178 = vpop.f32.mrf.mxu0
  %v7179 = vadd.f32 0.0, %v7178
  %7180 = vmatprep.mubr.bf16.mxu0 %v7004
  %7181 = vmatmul.mubr.bf16.gmra.mxu0 %v6836
  %v7182 = vpop.f32.mrf.mxu0
  %v7183 = vadd.f32 0.0, %v7182
  %v7184 = vpop.f32.mrf.mxu0
  %v7185 = vadd.f32 0.0, %v7184
  %v7186 = vpop.f32.mrf.mxu0
  %v7187 = vadd.f32 0.0, %v7186
  %v7188 = vpop.f32.mrf.mxu0
  %v7189 = vadd.f32 0.0, %v7188
  %7190 = vmatprep.mubr.bf16.mxu0 %v7007
  %7191 = vmatmul.mubr.bf16.gmra.mxu0 %v6840
  %v7192 = vpop.f32.mrf.mxu0
  %v7193 = vadd.f32 0.0, %v7192
  %v7194 = vpop.f32.mrf.mxu0
  %v7195 = vadd.f32 0.0, %v7194
  %v7196 = vpop.f32.mrf.mxu0
  %v7197 = vadd.f32 0.0, %v7196
  %v7198 = vpop.f32.mrf.mxu0
  %v7199 = vadd.f32 0.0, %v7198
  %7200 = vmatprep.mubr.bf16.mxu0 %v7010
  %7201 = vmatmul.mubr.bf16.gmra.mxu0 %v6839
  %v7202 = vpop.f32.mrf.mxu0
  %v7203 = vadd.f32 0.0, %v7202
  %v7204 = vpop.f32.mrf.mxu0
  %v7205 = vadd.f32 0.0, %v7204
  %v7206 = vpop.f32.mrf.mxu0
  %v7207 = vpop.f32.mrf.mxu0
  %7208 = vdwg.mxu0
  %v7209 = vld [vmem:[#allocation4] sm:$0xff]
  %v7210 = vld [vmem:[#allocation4 + $0x8] sm:$0xff]
  %v7211 = vld [vmem:[#allocation4 + $0x10] sm:$0xff]
  %v7212 = vld [vmem:[#allocation4 + $0x18] sm:$0xff]
  %v7213 = vld [vmem:[#allocation4 + $0x20] sm:$0xff]
  %v7214 = vld [vmem:[#allocation4 + $0x28] sm:$0xff]
  %v7215 = vld [vmem:[#allocation4 + $0x30] sm:$0xff]
  %v7216 = vld [vmem:[#allocation4 + $0x38] sm:$0xff]
  %v7217 = vld [vmem:[#allocation4 + $0x40] sm:$0xff]
  %v7218 = vld [vmem:[#allocation4 + $0x48] sm:$0xff]
  %v7219 = vld [vmem:[#allocation4 + $0x50] sm:$0xff]
  %v7220 = vld [vmem:[#allocation4 + $0x58] sm:$0xff]
  %v7221 = vld [vmem:[#allocation4 + $0x60] sm:$0xff]
  %v7222 = vld [vmem:[#allocation4 + $0x68] sm:$0xff]
  %v7223 = vld [vmem:[#allocation4 + $0x70] sm:$0xff]
  %v7224 = vld [vmem:[#allocation4 + $0x78] sm:$0xff]
  %v7225 = vld [vmem:[#allocation4 + $0x80] sm:$0xff]
  %v7226 = vld [vmem:[#allocation4 + $0x88] sm:$0xff]
  %v7227 = vld [vmem:[#allocation4 + $0x90] sm:$0xff]
  %v7228 = vld [vmem:[#allocation4 + $0x98] sm:$0xff]
  %v7229 = vld [vmem:[#allocation4 + $0xa0] sm:$0xff]
  %v7230 = vld [vmem:[#allocation4 + $0xa8] sm:$0xff]
  %v7231 = vld [vmem:[#allocation4 + $0xb0] sm:$0xff]
  %v7232 = vld [vmem:[#allocation4 + $0xb8] sm:$0xff]
  %v7233 = vld [vmem:[#allocation4 + $0xc0] sm:$0xff]
  %v7234 = vld [vmem:[#allocation4 + $0xc8] sm:$0xff]
  %v7235 = vld [vmem:[#allocation4 + $0xd0] sm:$0xff]
  %v7236 = vld [vmem:[#allocation4 + $0xd8] sm:$0xff]
  %v7237 = vld [vmem:[#allocation4 + $0xe0] sm:$0xff]
  %v7238 = vld [vmem:[#allocation4 + $0xe8] sm:$0xff]
  %v7239 = vld [vmem:[#allocation4 + $0xf0] sm:$0xff]
  %v7240 = vld [vmem:[#allocation4 + $0xf8] sm:$0xff]
  %v7241 = vld [vmem:[#allocation4 + $0x100] sm:$0xff]
  %v7242 = vld [vmem:[#allocation4 + $0x108] sm:$0xff]
  %v7243 = vld [vmem:[#allocation4 + $0x110] sm:$0xff]
  %v7244 = vld [vmem:[#allocation4 + $0x118] sm:$0xff]
  %v7245 = vld [vmem:[#allocation4 + $0x120] sm:$0xff]
  %v7246 = vld [vmem:[#allocation4 + $0x128] sm:$0xff]
  %v7247 = vld [vmem:[#allocation4 + $0x130] sm:$0xff]
  %v7248 = vld [vmem:[#allocation4 + $0x138] sm:$0xff]
  %v7249 = vld [vmem:[#allocation4 + $0x140] sm:$0xff]
  %v7250 = vld [vmem:[#allocation4 + $0x148] sm:$0xff]
  %v7251 = vld [vmem:[#allocation4 + $0x150] sm:$0xff]
  %v7252 = vld [vmem:[#allocation4 + $0x158] sm:$0xff]
  %v7253 = vld [vmem:[#allocation4 + $0x160] sm:$0xff]
  %v7254 = vld [vmem:[#allocation4 + $0x168] sm:$0xff]
  %v7255 = vld [vmem:[#allocation4 + $0x170] sm:$0xff]
  %v7256 = vld [vmem:[#allocation4 + $0x178] sm:$0xff]
  %v7257 = vld [vmem:[#allocation4 + $0x180] sm:$0xff]
  %v7258 = vld [vmem:[#allocation4 + $0x188] sm:$0xff]
  %v7259 = vld [vmem:[#allocation4 + $0x190] sm:$0xff]
  %v7260 = vld [vmem:[#allocation4 + $0x198] sm:$0xff]
  %v7261 = vld [vmem:[#allocation4 + $0x1a0] sm:$0xff]
  %v7262 = vld [vmem:[#allocation4 + $0x1a8] sm:$0xff]
  %v7263 = vld [vmem:[#allocation4 + $0x1b0] sm:$0xff]
  %v7264 = vld [vmem:[#allocation4 + $0x1b8] sm:$0xff]
  %v7265 = vld [vmem:[#allocation4 + $0x1c0] sm:$0xff]
  %v7266 = vld [vmem:[#allocation4 + $0x1c8] sm:$0xff]
  %v7267 = vld [vmem:[#allocation4 + $0x1d0] sm:$0xff]
  %v7268 = vld [vmem:[#allocation4 + $0x1d8] sm:$0xff]
  %v7269 = vld [vmem:[#allocation4 + $0x1e0] sm:$0x7]
  %v7270 = vld [vmem:[#allocation4 + $0x1e8] sm:$0x7]
  %v7271 = vadd.f32 %v7209, %v7053
  %v7272 = vadd.f32 %v7210, %v7055
  %v7273 = vadd.f32 %v7211, %v7057
  %v7274 = vadd.f32 %v7212, %v7059
  %v7275 = vadd.f32 %v7213, %v7063
  %v7276 = vadd.f32 %v7214, %v7065
  %v7277 = vadd.f32 %v7215, %v7067
  %v7278 = vadd.f32 %v7216, %v7069
  %v7279 = vadd.f32 %v7217, %v7073
  %v7280 = vadd.f32 %v7218, %v7075
  %v7281 = vadd.f32 %v7219, %v7077
  %v7282 = vadd.f32 %v7220, %v7079
  %v7283 = vadd.f32 %v7221, %v7083
  %v7284 = vadd.f32 %v7222, %v7085
  %v7285 = vadd.f32 %v7223, %v7087
  %v7286 = vadd.f32 %v7224, %v7089
  %v7287 = vadd.f32 %v7225, %v7093
  %v7288 = vadd.f32 %v7226, %v7095
  %v7289 = vadd.f32 %v7227, %v7097
  %v7290 = vadd.f32 %v7228, %v7099
  %v7291 = vadd.f32 %v7229, %v7103
  %v7292 = vadd.f32 %v7230, %v7105
  %v7293 = vadd.f32 %v7231, %v7107
  %v7294 = vadd.f32 %v7232, %v7109
  %v7295 = vadd.f32 %v7233, %v7113
  %v7296 = vadd.f32 %v7234, %v7115
  %v7297 = vadd.f32 %v7235, %v7117
  %v7298 = vadd.f32 %v7236, %v7119
  %v7299 = vadd.f32 %v7237, %v7123
  %v7300 = vadd.f32 %v7238, %v7125
  %v7301 = vadd.f32 %v7239, %v7127
  %v7302 = vadd.f32 %v7240, %v7129
  %v7303 = vadd.f32 %v7241, %v7133
  %v7304 = vadd.f32 %v7242, %v7135
  %v7305 = vadd.f32 %v7243, %v7137
  %v7306 = vadd.f32 %v7244, %v7139
  %v7307 = vadd.f32 %v7245, %v7143
  %v7308 = vadd.f32 %v7246, %v7145
  %v7309 = vadd.f32 %v7247, %v7147
  %v7310 = vadd.f32 %v7248, %v7149
  %v7311 = vadd.f32 %v7249, %v7153
  %v7312 = vadd.f32 %v7250, %v7155
  %v7313 = vadd.f32 %v7251, %v7157
  %v7314 = vadd.f32 %v7252, %v7159
  %v7315 = vadd.f32 %v7253, %v7163
  %v7316 = vadd.f32 %v7254, %v7165
  %v7317 = vadd.f32 %v7255, %v7167
  %v7318 = vadd.f32 %v7256, %v7169
  %v7319 = vadd.f32 %v7257, %v7173
  %v7320 = vadd.f32 %v7258, %v7175
  %v7321 = vadd.f32 %v7259, %v7177
  %v7322 = vadd.f32 %v7260, %v7179
  %v7323 = vadd.f32 %v7261, %v7183
  %v7324 = vadd.f32 %v7262, %v7185
  %v7325 = vadd.f32 %v7263, %v7187
  %v7326 = vadd.f32 %v7264, %v7189
  %v7327 = vadd.f32 %v7265, %v7193
  %v7328 = vadd.f32 %v7266, %v7195
  %v7329 = vadd.f32 %v7267, %v7197
  %v7330 = vadd.f32 %v7268, %v7199
  %v7331 = vadd.f32 %v7269, %v7203
  %v7332 = vadd.f32 %v7270, %v7205
  %7333 = vst [vmem:[#allocation4] sm:$0xff] %v7271
  %7334 = vst.msk [vmem:[#allocation4 + $0x8] sm:$0xff] %vm4951, %v7272
  %7335 = vst [vmem:[#allocation4 + $0x10] sm:$0xff] %v7273
  %7336 = vst.msk [vmem:[#allocation4 + $0x18] sm:$0xff] %vm4951, %v7274
  %7337 = vst [vmem:[#allocation4 + $0x20] sm:$0xff] %v7275
  %7338 = vst.msk [vmem:[#allocation4 + $0x28] sm:$0xff] %vm4951, %v7276
  %7339 = vst [vmem:[#allocation4 + $0x30] sm:$0xff] %v7277
  %7340 = vst.msk [vmem:[#allocation4 + $0x38] sm:$0xff] %vm4951, %v7278
  %7341 = vst [vmem:[#allocation4 + $0x40] sm:$0xff] %v7279
  %7342 = vst.msk [vmem:[#allocation4 + $0x48] sm:$0xff] %vm4951, %v7280
  %7343 = vst [vmem:[#allocation4 + $0x50] sm:$0xff] %v7281
  %7344 = vst.msk [vmem:[#allocation4 + $0x58] sm:$0xff] %vm4951, %v7282
  %7345 = vst [vmem:[#allocation4 + $0x60] sm:$0xff] %v7283
  %7346 = vst.msk [vmem:[#allocation4 + $0x68] sm:$0xff] %vm4951, %v7284
  %7347 = vst [vmem:[#allocation4 + $0x70] sm:$0xff] %v7285
  %7348 = vst.msk [vmem:[#allocation4 + $0x78] sm:$0xff] %vm4951, %v7286
  %7349 = vst [vmem:[#allocation4 + $0x80] sm:$0xff] %v7287
  %7350 = vst.msk [vmem:[#allocation4 + $0x88] sm:$0xff] %vm4951, %v7288
  %7351 = vst [vmem:[#allocation4 + $0x90] sm:$0xff] %v7289
  %7352 = vst.msk [vmem:[#allocation4 + $0x98] sm:$0xff] %vm4951, %v7290
  %7353 = vst [vmem:[#allocation4 + $0xa0] sm:$0xff] %v7291
  %7354 = vst.msk [vmem:[#allocation4 + $0xa8] sm:$0xff] %vm4951, %v7292
  %7355 = vst [vmem:[#allocation4 + $0xb0] sm:$0xff] %v7293
  %7356 = vst.msk [vmem:[#allocation4 + $0xb8] sm:$0xff] %vm4951, %v7294
  %7357 = vst [vmem:[#allocation4 + $0xc0] sm:$0xff] %v7295
  %7358 = vst.msk [vmem:[#allocation4 + $0xc8] sm:$0xff] %vm4951, %v7296
  %7359 = vst [vmem:[#allocation4 + $0xd0] sm:$0xff] %v7297
  %7360 = vst.msk [vmem:[#allocation4 + $0xd8] sm:$0xff] %vm4951, %v7298
  %7361 = vst [vmem:[#allocation4 + $0xe0] sm:$0xff] %v7299
  %7362 = vst.msk [vmem:[#allocation4 + $0xe8] sm:$0xff] %vm4951, %v7300
  %7363 = vst [vmem:[#allocation4 + $0xf0] sm:$0xff] %v7301
  %7364 = vst.msk [vmem:[#allocation4 + $0xf8] sm:$0xff] %vm4951, %v7302
  %7365 = vst [vmem:[#allocation4 + $0x100] sm:$0xff] %v7303
  %7366 = vst.msk [vmem:[#allocation4 + $0x108] sm:$0xff] %vm4951, %v7304
  %7367 = vst [vmem:[#allocation4 + $0x110] sm:$0xff] %v7305
  %7368 = vst.msk [vmem:[#allocation4 + $0x118] sm:$0xff] %vm4951, %v7306
  %7369 = vst [vmem:[#allocation4 + $0x120] sm:$0xff] %v7307
  %7370 = vst.msk [vmem:[#allocation4 + $0x128] sm:$0xff] %vm4951, %v7308
  %7371 = vst [vmem:[#allocation4 + $0x130] sm:$0xff] %v7309
  %7372 = vst.msk [vmem:[#allocation4 + $0x138] sm:$0xff] %vm4951, %v7310
  %7373 = vst [vmem:[#allocation4 + $0x140] sm:$0xff] %v7311
  %7374 = vst.msk [vmem:[#allocation4 + $0x148] sm:$0xff] %vm4951, %v7312
  %7375 = vst [vmem:[#allocation4 + $0x150] sm:$0xff] %v7313
  %7376 = vst.msk [vmem:[#allocation4 + $0x158] sm:$0xff] %vm4951, %v7314
  %7377 = vst [vmem:[#allocation4 + $0x160] sm:$0xff] %v7315
  %7378 = vst.msk [vmem:[#allocation4 + $0x168] sm:$0xff] %vm4951, %v7316
  %7379 = vst [vmem:[#allocation4 + $0x170] sm:$0xff] %v7317
  %7380 = vst.msk [vmem:[#allocation4 + $0x178] sm:$0xff] %vm4951, %v7318
  %7381 = vst [vmem:[#allocation4 + $0x180] sm:$0xff] %v7319
  %7382 = vst.msk [vmem:[#allocation4 + $0x188] sm:$0xff] %vm4951, %v7320
  %7383 = vst [vmem:[#allocation4 + $0x190] sm:$0xff] %v7321
  %7384 = vst.msk [vmem:[#allocation4 + $0x198] sm:$0xff] %vm4951, %v7322
  %7385 = vst [vmem:[#allocation4 + $0x1a0] sm:$0xff] %v7323
  %7386 = vst.msk [vmem:[#allocation4 + $0x1a8] sm:$0xff] %vm4951, %v7324
  %7387 = vst [vmem:[#allocation4 + $0x1b0] sm:$0xff] %v7325
  %7388 = vst.msk [vmem:[#allocation4 + $0x1b8] sm:$0xff] %vm4951, %v7326
  %7389 = vst [vmem:[#allocation4 + $0x1c0] sm:$0xff] %v7327
  %7390 = vst.msk [vmem:[#allocation4 + $0x1c8] sm:$0xff] %vm4951, %v7328
  %7391 = vst [vmem:[#allocation4 + $0x1d0] sm:$0xff] %v7329
  %7392 = vst.msk [vmem:[#allocation4 + $0x1d8] sm:$0xff] %vm4951, %v7330
  %7393 = vst [vmem:[#allocation4 + $0x1e0] sm:$0x7] %v7331
  %7394 = vst.msk [vmem:[#allocation4 + $0x1e8] sm:$0x7] %vm5012, %v7332
  %v7395 = vld [vmem:[#allocation3 + $0x8] sm:$0xff]
  %v7396 = vld [vmem:[#allocation3 + $0x10] sm:$0xff]
  %v7397 = vld [vmem:[#allocation3 + $0x18] sm:$0xff]
  %v7398 = vld [vmem:[#allocation3 + $0x20] sm:$0xff]
  %v7399 = vld [vmem:[#allocation3 + $0x28] sm:$0xff]
  %v7400 = vld [vmem:[#allocation3 + $0x30] sm:$0xff]
  %v7401 = vld [vmem:[#allocation3 + $0x38] sm:$0xff]
  %v7402 = vld [vmem:[#allocation3 + $0x40] sm:$0xff]
  %v7403 = vld [vmem:[#allocation3 + $0x48] sm:$0xff]
  %v7404 = vld [vmem:[#allocation3 + $0x50] sm:$0xff]
  %v7405 = vld [vmem:[#allocation3 + $0x58] sm:$0xff]
  %v7406 = vld [vmem:[#allocation3 + $0x60] sm:$0xff]
  %v7407 = vld [vmem:[#allocation3 + $0x68] sm:$0xff]
  %v7408 = vld [vmem:[#allocation3 + $0x70] sm:$0xff]
  %v7409 = vld [vmem:[#allocation3 + $0x78] sm:$0xff]
  %v7410 = vld [vmem:[#allocation3 + $0x80] sm:$0xff]
  %v7411 = vld [vmem:[#allocation3 + $0x88] sm:$0xff]
  %v7412 = vld [vmem:[#allocation3 + $0x90] sm:$0xff]
  %v7413 = vld [vmem:[#allocation3 + $0x98] sm:$0xff]
  %v7414 = vld [vmem:[#allocation3 + $0xa0] sm:$0xff]
  %v7415 = vld [vmem:[#allocation3 + $0xa8] sm:$0xff]
  %v7416 = vld [vmem:[#allocation3 + $0xb0] sm:$0xff]
  %v7417 = vld [vmem:[#allocation3 + $0xb8] sm:$0xff]
  %v7418 = vld [vmem:[#allocation3 + $0xc0] sm:$0xff]
  %v7419 = vld [vmem:[#allocation3 + $0xc8] sm:$0xff]
  %v7420 = vld [vmem:[#allocation3 + $0xd0] sm:$0xff]
  %v7421 = vld [vmem:[#allocation3 + $0xd8] sm:$0xff]
  %v7422 = vld [vmem:[#allocation3 + $0xe0] sm:$0xff]
  %v7423 = vld [vmem:[#allocation3 + $0xe8] sm:$0xff]
  %v7424 = vld [vmem:[#allocation3 + $0xf0] sm:$0xff]
  %v7425 = vld [vmem:[#allocation3 + $0xf8] sm:$0x33]
  %s7426 = scalar_lea.vmem %s3, 672
  %v7427 = vld [vmem:[%s7426] sm:$0xff]
  %v7428 = vld [vmem:[%s7426 + $0x8] sm:$0xff]
  %v7429 = vld [vmem:[%s7426 + $0x10] sm:$0xff]
  %v7430 = vld [vmem:[%s7426 + $0x18] sm:$0xff]
  %v7431 = vld [vmem:[%s7426 + $0x20] sm:$0xff]
  %v7432 = vld [vmem:[%s7426 + $0x28] sm:$0xff]
  %v7433 = vld [vmem:[%s7426 + $0x30] sm:$0xff]
  %v7434 = vld [vmem:[%s7426 + $0x38] sm:$0xff]
  %v7435 = vld [vmem:[%s7426 + $0x40] sm:$0xff]
  %v7436 = vld [vmem:[%s7426 + $0x48] sm:$0xff]
  %v7437 = vld [vmem:[%s7426 + $0x50] sm:$0xff]
  %v7438 = vld [vmem:[%s7426 + $0x58] sm:$0xff]
  %v7439 = vld [vmem:[%s7426 + $0x60] sm:$0xff]
  %v7440 = vld [vmem:[%s7426 + $0x68] sm:$0xff]
  %v7441 = vld [vmem:[%s7426 + $0x70] sm:$0xff]
  %v7442 = vld [vmem:[%s7426 + $0x78] sm:$0xff]
  %v7443 = vld [vmem:[%s7426 + $0x80] sm:$0xff]
  %v7444 = vld [vmem:[%s7426 + $0x88] sm:$0xff]
  %v7445 = vld [vmem:[%s7426 + $0x90] sm:$0xff]
  %v7446 = vld [vmem:[%s7426 + $0x98] sm:$0xff]
  %v7447 = vld [vmem:[%s7426 + $0xa0] sm:$0xff]
  %v7479 = vunpack.c.l.b16 %v7395
  %v7480 = vunpack.c.h.b16 %v7395
  %v7481 = vunpack.c.l.b16 %v7396
  %v7482 = vunpack.c.h.b16 %v7396
  %v7483 = vunpack.c.l.b16 %v7397
  %v7484 = vunpack.c.h.b16 %v7397
  %v7485 = vunpack.c.l.b16 %v7398
  %v7486 = vunpack.c.h.b16 %v7398
  %v7487 = vunpack.c.l.b16 %v7399
  %v7488 = vunpack.c.h.b16 %v7399
  %v7489 = vunpack.c.l.b16 %v7400
  %v7490 = vunpack.c.h.b16 %v7400
  %v7491 = vunpack.c.l.b16 %v7401
  %v7492 = vunpack.c.h.b16 %v7401
  %v7493 = vunpack.c.l.b16 %v7402
  %v7494 = vunpack.c.h.b16 %v7402
  %v7495 = vunpack.c.l.b16 %v7403
  %v7496 = vunpack.c.h.b16 %v7403
  %v7497 = vunpack.c.l.b16 %v7404
  %v7498 = vunpack.c.h.b16 %v7404
  %v7499 = vunpack.c.l.b16 %v7405
  %v7500 = vunpack.c.h.b16 %v7405
  %v7501 = vunpack.c.l.b16 %v7406
  %v7502 = vunpack.c.h.b16 %v7406
  %v7503 = vunpack.c.l.b16 %v7407
  %v7504 = vunpack.c.h.b16 %v7407
  %v7505 = vunpack.c.l.b16 %v7408
  %v7506 = vunpack.c.h.b16 %v7408
  %v7507 = vunpack.c.l.b16 %v7409
  %v7508 = vunpack.c.h.b16 %v7409
  %v7509 = vunpack.c.l.b16 %v7410
  %v7510 = vunpack.c.h.b16 %v7410
  %v7511 = vunpack.c.l.b16 %v7411
  %v7512 = vunpack.c.h.b16 %v7411
  %v7513 = vunpack.c.l.b16 %v7412
  %v7514 = vunpack.c.h.b16 %v7412
  %v7515 = vunpack.c.l.b16 %v7413
  %v7516 = vunpack.c.h.b16 %v7413
  %v7517 = vunpack.c.l.b16 %v7414
  %v7518 = vunpack.c.h.b16 %v7414
  %v7519 = vunpack.c.l.b16 %v7415
  %v7520 = vunpack.c.h.b16 %v7415
  %v7521 = vunpack.c.l.b16 %v7416
  %v7522 = vunpack.c.h.b16 %v7416
  %v7523 = vunpack.c.l.b16 %v7417
  %v7524 = vunpack.c.h.b16 %v7417
  %v7525 = vunpack.c.l.b16 %v7418
  %v7526 = vunpack.c.h.b16 %v7418
  %v7527 = vunpack.c.l.b16 %v7419
  %v7528 = vunpack.c.h.b16 %v7419
  %v7529 = vunpack.c.l.b16 %v7420
  %v7530 = vunpack.c.h.b16 %v7420
  %v7531 = vunpack.c.l.b16 %v7421
  %v7532 = vunpack.c.h.b16 %v7421
  %v7533 = vunpack.c.l.b16 %v7422
  %v7534 = vunpack.c.h.b16 %v7422
  %v7535 = vunpack.c.l.b16 %v7423
  %v7536 = vunpack.c.h.b16 %v7423
  %v7537 = vunpack.c.l.b16 %v7424
  %v7538 = vunpack.c.h.b16 %v7424
  %v7539 = vunpack.c.l.b16 %v7425
  %v7540 = vunpack.c.h.b16 %v7425
  %v7541 = vpack.c.b16 %v7481, %v7479
  %v7542 = vpack.c.b16 %v7482, %v7480
  %v7543 = vpack.c.b16 %v7485, %v7483
  %v7544 = vpack.c.b16 %v7486, %v7484
  %v7545 = vpack.c.b16 %v7489, %v7487
  %v7546 = vpack.c.b16 %v7490, %v7488
  %v7547 = vpack.c.b16 %v7493, %v7491
  %v7548 = vpack.c.b16 %v7494, %v7492
  %v7549 = vpack.c.b16 %v7497, %v7495
  %v7550 = vpack.c.b16 %v7498, %v7496
  %v7551 = vpack.c.b16 %v7501, %v7499
  %v7552 = vpack.c.b16 %v7502, %v7500
  %v7553 = vpack.c.b16 %v7505, %v7503
  %v7554 = vpack.c.b16 %v7506, %v7504
  %v7555 = vpack.c.b16 %v7509, %v7507
  %v7556 = vpack.c.b16 %v7510, %v7508
  %v7557 = vpack.c.b16 %v7513, %v7511
  %v7558 = vpack.c.b16 %v7514, %v7512
  %v7559 = vpack.c.b16 %v7517, %v7515
  %v7560 = vpack.c.b16 %v7518, %v7516
  %v7561 = vpack.c.b16 %v7521, %v7519
  %v7562 = vpack.c.b16 %v7522, %v7520
  %v7563 = vpack.c.b16 %v7525, %v7523
  %v7564 = vpack.c.b16 %v7526, %v7524
  %v7565 = vpack.c.b16 %v7529, %v7527
  %v7566 = vpack.c.b16 %v7530, %v7528
  %v7567 = vpack.c.b16 %v7533, %v7531
  %v7568 = vpack.c.b16 %v7534, %v7532
  %v7569 = vpack.c.b16 %v7537, %v7535
  %v7570 = vpack.c.b16 %v7538, %v7536
  %v7571 = vpack.c.b16 %v7539, %v7539
  %v7572 = vpack.c.b16 %v7540, %v7540
  %v7610 = vunpack.c.l.b16 %v7427
  %v7611 = vunpack.c.h.b16 %v7427
  %v7612 = vunpack.c.l.b16 %v7428
  %v7613 = vunpack.c.h.b16 %v7428
  %v7614 = vunpack.c.l.b16 %v7429
  %v7615 = vunpack.c.h.b16 %v7429
  %v7616 = vunpack.c.l.b16 %v7430
  %v7617 = vunpack.c.h.b16 %v7430
  %v7618 = vunpack.c.l.b16 %v7431
  %v7619 = vunpack.c.h.b16 %v7431
  %v7620 = vunpack.c.l.b16 %v7432
  %v7621 = vunpack.c.h.b16 %v7432
  %v7622 = vunpack.c.l.b16 %v7433
  %v7623 = vunpack.c.h.b16 %v7433
  %v7624 = vunpack.c.l.b16 %v7434
  %v7625 = vunpack.c.h.b16 %v7434
  %v7626 = vunpack.c.l.b16 %v7435
  %v7627 = vunpack.c.h.b16 %v7435
  %v7628 = vunpack.c.l.b16 %v7436
  %v7629 = vunpack.c.h.b16 %v7436
  %v7630 = vunpack.c.l.b16 %v7437
  %v7631 = vunpack.c.h.b16 %v7437
  %v7632 = vunpack.c.l.b16 %v7438
  %v7633 = vunpack.c.h.b16 %v7438
  %v7634 = vunpack.c.l.b16 %v7439
  %v7635 = vunpack.c.h.b16 %v7439
  %v7636 = vunpack.c.l.b16 %v7440
  %v7637 = vunpack.c.h.b16 %v7440
  %v7638 = vunpack.c.l.b16 %v7441
  %v7639 = vunpack.c.h.b16 %v7441
  %v7640 = vunpack.c.l.b16 %v7442
  %v7641 = vunpack.c.h.b16 %v7442
  %v7642 = vunpack.c.l.b16 %v7443
  %v7643 = vunpack.c.h.b16 %v7443
  %v7644 = vunpack.c.l.b16 %v7444
  %v7645 = vunpack.c.h.b16 %v7444
  %v7646 = vunpack.c.l.b16 %v7445
  %v7647 = vunpack.c.h.b16 %v7445
  %v7648 = vunpack.c.l.b16 %v7446
  %v7649 = vunpack.c.h.b16 %v7446
  %v7650 = vunpack.c.l.b16 %v7447
  %v7651 = vunpack.c.h.b16 %v7447
  %v7652 = vpack.c.b16 %v7612, %v7610
  %v7653 = vpack.c.b16 %v7613, %v7611
  %v7654 = vpack.c.b16 %v7616, %v7614
  %v7655 = vpack.c.b16 %v7617, %v7615
  %v7656 = vpack.c.b16 %v7620, %v7618
  %v7657 = vpack.c.b16 %v7621, %v7619
  %v7658 = vpack.c.b16 %v7624, %v7622
  %v7659 = vpack.c.b16 %v7625, %v7623
  %v7660 = vpack.c.b16 %v7628, %v7626
  %v7661 = vpack.c.b16 %v7629, %v7627
  %v7662 = vpack.c.b16 %v7632, %v7630
  %v7663 = vpack.c.b16 %v7633, %v7631
  %v7664 = vpack.c.b16 %v7636, %v7634
  %v7665 = vpack.c.b16 %v7637, %v7635
  %v7666 = vpack.c.b16 %v7640, %v7638
  %v7667 = vpack.c.b16 %v7641, %v7639
  %v7668 = vpack.c.b16 %v7644, %v7642
  %v7669 = vpack.c.b16 %v7645, %v7643
  %v7670 = vpack.c.b16 %v7648, %v7646
  %v7671 = vpack.c.b16 %v7649, %v7647
  %v7672 = vpack.c.b16 %v7650, %v7650
  %v7673 = vpack.c.b16 %v7651, %v7651
  %v7695 = vsel %vm4701, %v7542, 0
  %v7698 = vsel %vm4701, %v7544, 0
  %v7701 = vsel %vm4701, %v7546, 0
  %v7704 = vsel %vm4701, %v7548, 0
  %v7707 = vsel %vm4701, %v7550, 0
  %v7710 = vsel %vm4701, %v7552, 0
  %v7713 = vsel %vm4701, %v7554, 0
  %v7716 = vsel %vm4701, %v7556, 0
  %v7719 = vsel %vm4701, %v7558, 0
  %v7722 = vsel %vm4701, %v7560, 0
  %v7725 = vsel %vm4701, %v7562, 0
  %v7728 = vsel %vm4701, %v7564, 0
  %v7731 = vsel %vm4701, %v7566, 0
  %v7734 = vsel %vm4701, %v7568, 0
  %v7737 = vsel %vm4701, %v7570, 0
  %v7740 = vsel %vm4701, %v7572, 0
  %v7743 = vand.u32 %v7672, %v4752
  %v7746 = vand.u32 %v7673, %v4752
  %7748 = vmatprep.subr.bf16.mxu0 %v7667
  %7749 = vmatpush1.bf16.msra.mxu0 %v7666
  %7750 = vmatprep.subr.bf16.mxu0 %v7665
  %7751 = vmatpush1.bf16.msra.mxu0 %v7664
  %7752 = vmatprep.subr.bf16.mxu0 %v7663
  %7753 = vmatpush1.bf16.msra.mxu0 %v7662
  %7754 = vmatprep.subr.bf16.mxu0 %v7661
  %7755 = vmatpush1.bf16.msra.mxu0 %v7660
  %7756 = vmatprep.subr.bf16.mxu0 %v7659
  %7757 = vmatpush1.bf16.msra.mxu0 %v7658
  %7758 = vmatprep.subr.bf16.mxu0 %v7657
  %7759 = vmatpush1.bf16.msra.mxu0 %v7656
  %7760 = vmatprep.subr.bf16.mxu0 %v7655
  %7761 = vmatpush1.bf16.msra.mxu0 %v7654
  %7762 = vmatprep.subr.bf16.mxu0 %v7653
  %7763 = vmatpush1.bf16.msra.mxu0 %v7652
  %7764 = vmatprep.subr.bf16.mxu0 0
  %7765 = vmatpush2.bf16.msra.mxu0 0
  %7766 = vmatprep.subr.bf16.mxu0 0
  %7767 = vmatpush2.bf16.msra.mxu0 0
  %7768 = vmatprep.subr.bf16.mxu0 0
  %7769 = vmatpush2.bf16.msra.mxu0 0
  %7770 = vmatprep.subr.bf16.mxu0 0
  %7771 = vmatpush2.bf16.msra.mxu0 0
  %7772 = vmatprep.subr.bf16.mxu0 0
  %7773 = vmatpush2.bf16.msra.mxu0 0
  %7774 = vmatprep.subr.bf16.mxu0 %v7746
  %7775 = vmatpush2.bf16.msra.mxu0 %v7743
  %7776 = vmatprep.subr.bf16.mxu0 %v7671
  %7777 = vmatpush2.bf16.msra.mxu0 %v7670
  %7778 = vmatprep.subr.bf16.mxu0 %v7669
  %7779 = vmatpush2.bf16.msra.mxu0 %v7668
  %7780 = vmatprep.mubr.bf16.mxu0 %v7695
  %7781 = vmatmul.mubr.bf16.gmra.mxu0 %v7541
  %v7782 = vpop.f32.mrf.mxu0
  %v7783 = vadd.f32 0.0, %v7782
  %v7784 = vpop.f32.mrf.mxu0
  %v7785 = vadd.f32 0.0, %v7784
  %v7786 = vpop.f32.mrf.mxu0
  %v7787 = vadd.f32 0.0, %v7786
  %v7788 = vpop.f32.mrf.mxu0
  %v7789 = vadd.f32 0.0, %v7788
  %7790 = vmatprep.mubr.bf16.mxu0 %v7698
  %7791 = vmatmul.mubr.bf16.gmra.mxu0 %v7543
  %v7792 = vpop.f32.mrf.mxu0
  %v7793 = vadd.f32 0.0, %v7792
  %v7794 = vpop.f32.mrf.mxu0
  %v7795 = vadd.f32 0.0, %v7794
  %v7796 = vpop.f32.mrf.mxu0
  %v7797 = vadd.f32 0.0, %v7796
  %v7798 = vpop.f32.mrf.mxu0
  %v7799 = vadd.f32 0.0, %v7798
  %7800 = vmatprep.mubr.bf16.mxu0 %v7701
  %7801 = vmatmul.mubr.bf16.gmra.mxu0 %v7545
  %v7802 = vpop.f32.mrf.mxu0
  %v7803 = vadd.f32 0.0, %v7802
  %v7804 = vpop.f32.mrf.mxu0
  %v7805 = vadd.f32 0.0, %v7804
  %v7806 = vpop.f32.mrf.mxu0
  %v7807 = vadd.f32 0.0, %v7806
  %v7808 = vpop.f32.mrf.mxu0
  %v7809 = vadd.f32 0.0, %v7808
  %7810 = vmatprep.mubr.bf16.mxu0 %v7704
  %7811 = vmatmul.mubr.bf16.gmra.mxu0 %v7547
  %v7812 = vpop.f32.mrf.mxu0
  %v7813 = vadd.f32 0.0, %v7812
  %v7814 = vpop.f32.mrf.mxu0
  %v7815 = vadd.f32 0.0, %v7814
  %v7816 = vpop.f32.mrf.mxu0
  %v7817 = vadd.f32 0.0, %v7816
  %v7818 = vpop.f32.mrf.mxu0
  %v7819 = vadd.f32 0.0, %v7818
  %7820 = vmatprep.mubr.bf16.mxu0 %v7707
  %7821 = vmatmul.mubr.bf16.gmra.mxu0 %v7549
  %v7822 = vpop.f32.mrf.mxu0
  %v7823 = vadd.f32 0.0, %v7822
  %v7824 = vpop.f32.mrf.mxu0
  %v7825 = vadd.f32 0.0, %v7824
  %v7826 = vpop.f32.mrf.mxu0
  %v7827 = vadd.f32 0.0, %v7826
  %v7828 = vpop.f32.mrf.mxu0
  %v7829 = vadd.f32 0.0, %v7828
  %7830 = vmatprep.mubr.bf16.mxu0 %v7710
  %7831 = vmatmul.mubr.bf16.gmra.mxu0 %v7551
  %v7832 = vpop.f32.mrf.mxu0
  %v7833 = vadd.f32 0.0, %v7832
  %v7834 = vpop.f32.mrf.mxu0
  %v7835 = vadd.f32 0.0, %v7834
  %v7836 = vpop.f32.mrf.mxu0
  %v7837 = vadd.f32 0.0, %v7836
  %v7838 = vpop.f32.mrf.mxu0
  %v7839 = vadd.f32 0.0, %v7838
  %7840 = vmatprep.mubr.bf16.mxu0 %v7713
  %7841 = vmatmul.mubr.bf16.gmra.mxu0 %v7553
  %v7842 = vpop.f32.mrf.mxu0
  %v7843 = vadd.f32 0.0, %v7842
  %v7844 = vpop.f32.mrf.mxu0
  %v7845 = vadd.f32 0.0, %v7844
  %v7846 = vpop.f32.mrf.mxu0
  %v7847 = vadd.f32 0.0, %v7846
  %v7848 = vpop.f32.mrf.mxu0
  %v7849 = vadd.f32 0.0, %v7848
  %7850 = vmatprep.mubr.bf16.mxu0 %v7716
  %7851 = vmatmul.mubr.bf16.gmra.mxu0 %v7555
  %v7852 = vpop.f32.mrf.mxu0
  %v7853 = vadd.f32 0.0, %v7852
  %v7854 = vpop.f32.mrf.mxu0
  %v7855 = vadd.f32 0.0, %v7854
  %v7856 = vpop.f32.mrf.mxu0
  %v7857 = vadd.f32 0.0, %v7856
  %v7858 = vpop.f32.mrf.mxu0
  %v7859 = vadd.f32 0.0, %v7858
  %7860 = vmatprep.mubr.bf16.mxu0 %v7719
  %7861 = vmatmul.mubr.bf16.gmra.mxu0 %v7557
  %v7862 = vpop.f32.mrf.mxu0
  %v7863 = vadd.f32 0.0, %v7862
  %v7864 = vpop.f32.mrf.mxu0
  %v7865 = vadd.f32 0.0, %v7864
  %v7866 = vpop.f32.mrf.mxu0
  %v7867 = vadd.f32 0.0, %v7866
  %v7868 = vpop.f32.mrf.mxu0
  %v7869 = vadd.f32 0.0, %v7868
  %7870 = vmatprep.mubr.bf16.mxu0 %v7722
  %7871 = vmatmul.mubr.bf16.gmra.mxu0 %v7559
  %v7872 = vpop.f32.mrf.mxu0
  %v7873 = vadd.f32 0.0, %v7872
  %v7874 = vpop.f32.mrf.mxu0
  %v7875 = vadd.f32 0.0, %v7874
  %v7876 = vpop.f32.mrf.mxu0
  %v7877 = vadd.f32 0.0, %v7876
  %v7878 = vpop.f32.mrf.mxu0
  %v7879 = vadd.f32 0.0, %v7878
  %7880 = vmatprep.mubr.bf16.mxu0 %v7725
  %7881 = vmatmul.mubr.bf16.gmra.mxu0 %v7561
  %v7882 = vpop.f32.mrf.mxu0
  %v7883 = vadd.f32 0.0, %v7882
  %v7884 = vpop.f32.mrf.mxu0
  %v7885 = vadd.f32 0.0, %v7884
  %v7886 = vpop.f32.mrf.mxu0
  %v7887 = vadd.f32 0.0, %v7886
  %v7888 = vpop.f32.mrf.mxu0
  %v7889 = vadd.f32 0.0, %v7888
  %7890 = vmatprep.mubr.bf16.mxu0 %v7728
  %7891 = vmatmul.mubr.bf16.gmra.mxu0 %v7563
  %v7892 = vpop.f32.mrf.mxu0
  %v7893 = vadd.f32 0.0, %v7892
  %v7894 = vpop.f32.mrf.mxu0
  %v7895 = vadd.f32 0.0, %v7894
  %v7896 = vpop.f32.mrf.mxu0
  %v7897 = vadd.f32 0.0, %v7896
  %v7898 = vpop.f32.mrf.mxu0
  %v7899 = vadd.f32 0.0, %v7898
  %7900 = vmatprep.mubr.bf16.mxu0 %v7731
  %7901 = vmatmul.mubr.bf16.gmra.mxu0 %v7565
  %v7902 = vpop.f32.mrf.mxu0
  %v7903 = vadd.f32 0.0, %v7902
  %v7904 = vpop.f32.mrf.mxu0
  %v7905 = vadd.f32 0.0, %v7904
  %v7906 = vpop.f32.mrf.mxu0
  %v7907 = vadd.f32 0.0, %v7906
  %v7908 = vpop.f32.mrf.mxu0
  %v7909 = vadd.f32 0.0, %v7908
  %7910 = vmatprep.mubr.bf16.mxu0 %v7734
  %7911 = vmatmul.mubr.bf16.gmra.mxu0 %v7567
  %v7912 = vpop.f32.mrf.mxu0
  %v7913 = vadd.f32 0.0, %v7912
  %v7914 = vpop.f32.mrf.mxu0
  %v7915 = vadd.f32 0.0, %v7914
  %v7916 = vpop.f32.mrf.mxu0
  %v7917 = vadd.f32 0.0, %v7916
  %v7918 = vpop.f32.mrf.mxu0
  %v7919 = vadd.f32 0.0, %v7918
  %7920 = vmatprep.mubr.bf16.mxu0 %v7737
  %7921 = vmatmul.mubr.bf16.gmra.mxu0 %v7569
  %v7922 = vpop.f32.mrf.mxu0
  %v7923 = vadd.f32 0.0, %v7922
  %v7924 = vpop.f32.mrf.mxu0
  %v7925 = vadd.f32 0.0, %v7924
  %v7926 = vpop.f32.mrf.mxu0
  %v7927 = vadd.f32 0.0, %v7926
  %v7928 = vpop.f32.mrf.mxu0
  %v7929 = vadd.f32 0.0, %v7928
  %7930 = vmatprep.mubr.bf16.mxu0 %v7740
  %7931 = vmatmul.mubr.bf16.gmra.mxu0 %v7571
  %v7932 = vpop.f32.mrf.mxu0
  %v7933 = vadd.f32 0.0, %v7932
  %v7934 = vpop.f32.mrf.mxu0
  %v7935 = vadd.f32 0.0, %v7934
  %v7936 = vpop.f32.mrf.mxu0
  %v7937 = vpop.f32.mrf.mxu0
  %7938 = vdwg.mxu0
  %v7939 = vld [vmem:[#allocation4] sm:$0xff]
  %v7940 = vld [vmem:[#allocation4 + $0x8] sm:$0xff]
  %v7941 = vld [vmem:[#allocation4 + $0x10] sm:$0xff]
  %v7942 = vld [vmem:[#allocation4 + $0x18] sm:$0xff]
  %v7943 = vld [vmem:[#allocation4 + $0x20] sm:$0xff]
  %v7944 = vld [vmem:[#allocation4 + $0x28] sm:$0xff]
  %v7945 = vld [vmem:[#allocation4 + $0x30] sm:$0xff]
  %v7946 = vld [vmem:[#allocation4 + $0x38] sm:$0xff]
  %v7947 = vld [vmem:[#allocation4 + $0x40] sm:$0xff]
  %v7948 = vld [vmem:[#allocation4 + $0x48] sm:$0xff]
  %v7949 = vld [vmem:[#allocation4 + $0x50] sm:$0xff]
  %v7950 = vld [vmem:[#allocation4 + $0x58] sm:$0xff]
  %v7951 = vld [vmem:[#allocation4 + $0x60] sm:$0xff]
  %v7952 = vld [vmem:[#allocation4 + $0x68] sm:$0xff]
  %v7953 = vld [vmem:[#allocation4 + $0x70] sm:$0xff]
  %v7954 = vld [vmem:[#allocation4 + $0x78] sm:$0xff]
  %v7955 = vld [vmem:[#allocation4 + $0x80] sm:$0xff]
  %v7956 = vld [vmem:[#allocation4 + $0x88] sm:$0xff]
  %v7957 = vld [vmem:[#allocation4 + $0x90] sm:$0xff]
  %v7958 = vld [vmem:[#allocation4 + $0x98] sm:$0xff]
  %v7959 = vld [vmem:[#allocation4 + $0xa0] sm:$0xff]
  %v7960 = vld [vmem:[#allocation4 + $0xa8] sm:$0xff]
  %v7961 = vld [vmem:[#allocation4 + $0xb0] sm:$0xff]
  %v7962 = vld [vmem:[#allocation4 + $0xb8] sm:$0xff]
  %v7963 = vld [vmem:[#allocation4 + $0xc0] sm:$0xff]
  %v7964 = vld [vmem:[#allocation4 + $0xc8] sm:$0xff]
  %v7965 = vld [vmem:[#allocation4 + $0xd0] sm:$0xff]
  %v7966 = vld [vmem:[#allocation4 + $0xd8] sm:$0xff]
  %v7967 = vld [vmem:[#allocation4 + $0xe0] sm:$0xff]
  %v7968 = vld [vmem:[#allocation4 + $0xe8] sm:$0xff]
  %v7969 = vld [vmem:[#allocation4 + $0xf0] sm:$0xff]
  %v7970 = vld [vmem:[#allocation4 + $0xf8] sm:$0xff]
  %v7971 = vld [vmem:[#allocation4 + $0x100] sm:$0xff]
  %v7972 = vld [vmem:[#allocation4 + $0x108] sm:$0xff]
  %v7973 = vld [vmem:[#allocation4 + $0x110] sm:$0xff]
  %v7974 = vld [vmem:[#allocation4 + $0x118] sm:$0xff]
  %v7975 = vld [vmem:[#allocation4 + $0x120] sm:$0xff]
  %v7976 = vld [vmem:[#allocation4 + $0x128] sm:$0xff]
  %v7977 = vld [vmem:[#allocation4 + $0x130] sm:$0xff]
  %v7978 = vld [vmem:[#allocation4 + $0x138] sm:$0xff]
  %v7979 = vld [vmem:[#allocation4 + $0x140] sm:$0xff]
  %v7980 = vld [vmem:[#allocation4 + $0x148] sm:$0xff]
  %v7981 = vld [vmem:[#allocation4 + $0x150] sm:$0xff]
  %v7982 = vld [vmem:[#allocation4 + $0x158] sm:$0xff]
  %v7983 = vld [vmem:[#allocation4 + $0x160] sm:$0xff]
  %v7984 = vld [vmem:[#allocation4 + $0x168] sm:$0xff]
  %v7985 = vld [vmem:[#allocation4 + $0x170] sm:$0xff]
  %v7986 = vld [vmem:[#allocation4 + $0x178] sm:$0xff]
  %v7987 = vld [vmem:[#allocation4 + $0x180] sm:$0xff]
  %v7988 = vld [vmem:[#allocation4 + $0x188] sm:$0xff]
  %v7989 = vld [vmem:[#allocation4 + $0x190] sm:$0xff]
  %v7990 = vld [vmem:[#allocation4 + $0x198] sm:$0xff]
  %v7991 = vld [vmem:[#allocation4 + $0x1a0] sm:$0xff]
  %v7992 = vld [vmem:[#allocation4 + $0x1a8] sm:$0xff]
  %v7993 = vld [vmem:[#allocation4 + $0x1b0] sm:$0xff]
  %v7994 = vld [vmem:[#allocation4 + $0x1b8] sm:$0xff]
  %v7995 = vld [vmem:[#allocation4 + $0x1c0] sm:$0xff]
  %v7996 = vld [vmem:[#allocation4 + $0x1c8] sm:$0xff]
  %v7997 = vld [vmem:[#allocation4 + $0x1d0] sm:$0xff]
  %v7998 = vld [vmem:[#allocation4 + $0x1d8] sm:$0xff]
  %v7999 = vld [vmem:[#allocation4 + $0x1e0] sm:$0x7]
  %v8000 = vld [vmem:[#allocation4 + $0x1e8] sm:$0x7]
  %v8001 = vadd.f32 %v7939, %v7783
  %v8002 = vadd.f32 %v7940, %v7785
  %v8003 = vadd.f32 %v7941, %v7787
  %v8004 = vadd.f32 %v7942, %v7789
  %v8005 = vadd.f32 %v7943, %v7793
  %v8006 = vadd.f32 %v7944, %v7795
  %v8007 = vadd.f32 %v7945, %v7797
  %v8008 = vadd.f32 %v7946, %v7799
  %v8009 = vadd.f32 %v7947, %v7803
  %v8010 = vadd.f32 %v7948, %v7805
  %v8011 = vadd.f32 %v7949, %v7807
  %v8012 = vadd.f32 %v7950, %v7809
  %v8013 = vadd.f32 %v7951, %v7813
  %v8014 = vadd.f32 %v7952, %v7815
  %v8015 = vadd.f32 %v7953, %v7817
  %v8016 = vadd.f32 %v7954, %v7819
  %v8017 = vadd.f32 %v7955, %v7823
  %v8018 = vadd.f32 %v7956, %v7825
  %v8019 = vadd.f32 %v7957, %v7827
  %v8020 = vadd.f32 %v7958, %v7829
  %v8021 = vadd.f32 %v7959, %v7833
  %v8022 = vadd.f32 %v7960, %v7835
  %v8023 = vadd.f32 %v7961, %v7837
  %v8024 = vadd.f32 %v7962, %v7839
  %v8025 = vadd.f32 %v7963, %v7843
  %v8026 = vadd.f32 %v7964, %v7845
  %v8027 = vadd.f32 %v7965, %v7847
  %v8028 = vadd.f32 %v7966, %v7849
  %v8029 = vadd.f32 %v7967, %v7853
  %v8030 = vadd.f32 %v7968, %v7855
  %v8031 = vadd.f32 %v7969, %v7857
  %v8032 = vadd.f32 %v7970, %v7859
  %v8033 = vadd.f32 %v7971, %v7863
  %v8034 = vadd.f32 %v7972, %v7865
  %v8035 = vadd.f32 %v7973, %v7867
  %v8036 = vadd.f32 %v7974, %v7869
  %v8037 = vadd.f32 %v7975, %v7873
  %v8038 = vadd.f32 %v7976, %v7875
  %v8039 = vadd.f32 %v7977, %v7877
  %v8040 = vadd.f32 %v7978, %v7879
  %v8041 = vadd.f32 %v7979, %v7883
  %v8042 = vadd.f32 %v7980, %v7885
  %v8043 = vadd.f32 %v7981, %v7887
  %v8044 = vadd.f32 %v7982, %v7889
  %v8045 = vadd.f32 %v7983, %v7893
  %v8046 = vadd.f32 %v7984, %v7895
  %v8047 = vadd.f32 %v7985, %v7897
  %v8048 = vadd.f32 %v7986, %v7899
  %v8049 = vadd.f32 %v7987, %v7903
  %v8050 = vadd.f32 %v7988, %v7905
  %v8051 = vadd.f32 %v7989, %v7907
  %v8052 = vadd.f32 %v7990, %v7909
  %v8053 = vadd.f32 %v7991, %v7913
  %v8054 = vadd.f32 %v7992, %v7915
  %v8055 = vadd.f32 %v7993, %v7917
  %v8056 = vadd.f32 %v7994, %v7919
  %v8057 = vadd.f32 %v7995, %v7923
  %v8058 = vadd.f32 %v7996, %v7925
  %v8059 = vadd.f32 %v7997, %v7927
  %v8060 = vadd.f32 %v7998, %v7929
  %v8061 = vadd.f32 %v7999, %v7933
  %v8062 = vadd.f32 %v8000, %v7935
  %8063 = vst [vmem:[#allocation4] sm:$0xff] %v8001
  %8064 = vst.msk [vmem:[#allocation4 + $0x8] sm:$0xff] %vm4951, %v8002
  %8065 = vst [vmem:[#allocation4 + $0x10] sm:$0xff] %v8003
  %8066 = vst.msk [vmem:[#allocation4 + $0x18] sm:$0xff] %vm4951, %v8004
  %8067 = vst [vmem:[#allocation4 + $0x20] sm:$0xff] %v8005
  %8068 = vst.msk [vmem:[#allocation4 + $0x28] sm:$0xff] %vm4951, %v8006
  %8069 = vst [vmem:[#allocation4 + $0x30] sm:$0xff] %v8007
  %8070 = vst.msk [vmem:[#allocation4 + $0x38] sm:$0xff] %vm4951, %v8008
  %8071 = vst [vmem:[#allocation4 + $0x40] sm:$0xff] %v8009
  %8072 = vst.msk [vmem:[#allocation4 + $0x48] sm:$0xff] %vm4951, %v8010
  %8073 = vst [vmem:[#allocation4 + $0x50] sm:$0xff] %v8011
  %8074 = vst.msk [vmem:[#allocation4 + $0x58] sm:$0xff] %vm4951, %v8012
  %8075 = vst [vmem:[#allocation4 + $0x60] sm:$0xff] %v8013
  %8076 = vst.msk [vmem:[#allocation4 + $0x68] sm:$0xff] %vm4951, %v8014
  %8077 = vst [vmem:[#allocation4 + $0x70] sm:$0xff] %v8015
  %8078 = vst.msk [vmem:[#allocation4 + $0x78] sm:$0xff] %vm4951, %v8016
  %8079 = vst [vmem:[#allocation4 + $0x80] sm:$0xff] %v8017
  %8080 = vst.msk [vmem:[#allocation4 + $0x88] sm:$0xff] %vm4951, %v8018
  %8081 = vst [vmem:[#allocation4 + $0x90] sm:$0xff] %v8019
  %8082 = vst.msk [vmem:[#allocation4 + $0x98] sm:$0xff] %vm4951, %v8020
  %8083 = vst [vmem:[#allocation4 + $0xa0] sm:$0xff] %v8021
  %8084 = vst.msk [vmem:[#allocation4 + $0xa8] sm:$0xff] %vm4951, %v8022
  %8085 = vst [vmem:[#allocation4 + $0xb0] sm:$0xff] %v8023
  %8086 = vst.msk [vmem:[#allocation4 + $0xb8] sm:$0xff] %vm4951, %v8024
  %8087 = vst [vmem:[#allocation4 + $0xc0] sm:$0xff] %v8025
  %8088 = vst.msk [vmem:[#allocation4 + $0xc8] sm:$0xff] %vm4951, %v8026
  %8089 = vst [vmem:[#allocation4 + $0xd0] sm:$0xff] %v8027
  %8090 = vst.msk [vmem:[#allocation4 + $0xd8] sm:$0xff] %vm4951, %v8028
  %8091 = vst [vmem:[#allocation4 + $0xe0] sm:$0xff] %v8029
  %8092 = vst.msk [vmem:[#allocation4 + $0xe8] sm:$0xff] %vm4951, %v8030
  %8093 = vst [vmem:[#allocation4 + $0xf0] sm:$0xff] %v8031
  %8094 = vst.msk [vmem:[#allocation4 + $0xf8] sm:$0xff] %vm4951, %v8032
  %8095 = vst [vmem:[#allocation4 + $0x100] sm:$0xff] %v8033
  %8096 = vst.msk [vmem:[#allocation4 + $0x108] sm:$0xff] %vm4951, %v8034
  %8097 = vst [vmem:[#allocation4 + $0x110] sm:$0xff] %v8035
  %8098 = vst.msk [vmem:[#allocation4 + $0x118] sm:$0xff] %vm4951, %v8036
  %8099 = vst [vmem:[#allocation4 + $0x120] sm:$0xff] %v8037
  %8100 = vst.msk [vmem:[#allocation4 + $0x128] sm:$0xff] %vm4951, %v8038
  %8101 = vst [vmem:[#allocation4 + $0x130] sm:$0xff] %v8039
  %8102 = vst.msk [vmem:[#allocation4 + $0x138] sm:$0xff] %vm4951, %v8040
  %8103 = vst [vmem:[#allocation4 + $0x140] sm:$0xff] %v8041
  %8104 = vst.msk [vmem:[#allocation4 + $0x148] sm:$0xff] %vm4951, %v8042
  %8105 = vst [vmem:[#allocation4 + $0x150] sm:$0xff] %v8043
  %8106 = vst.msk [vmem:[#allocation4 + $0x158] sm:$0xff] %vm4951, %v8044
  %8107 = vst [vmem:[#allocation4 + $0x160] sm:$0xff] %v8045
  %8108 = vst.msk [vmem:[#allocation4 + $0x168] sm:$0xff] %vm4951, %v8046
  %8109 = vst [vmem:[#allocation4 + $0x170] sm:$0xff] %v8047
  %8110 = vst.msk [vmem:[#allocation4 + $0x178] sm:$0xff] %vm4951, %v8048
  %8111 = vst [vmem:[#allocation4 + $0x180] sm:$0xff] %v8049
  %8112 = vst.msk [vmem:[#allocation4 + $0x188] sm:$0xff] %vm4951, %v8050
  %8113 = vst [vmem:[#allocation4 + $0x190] sm:$0xff] %v8051
  %8114 = vst.msk [vmem:[#allocation4 + $0x198] sm:$0xff] %vm4951, %v8052
  %8115 = vst [vmem:[#allocation4 + $0x1a0] sm:$0xff] %v8053
  %8116 = vst.msk [vmem:[#allocation4 + $0x1a8] sm:$0xff] %vm4951, %v8054
  %8117 = vst [vmem:[#allocation4 + $0x1b0] sm:$0xff] %v8055
  %8118 = vst.msk [vmem:[#allocation4 + $0x1b8] sm:$0xff] %vm4951, %v8056
  %8119 = vst [vmem:[#allocation4 + $0x1c0] sm:$0xff] %v8057
  %8120 = vst.msk [vmem:[#allocation4 + $0x1c8] sm:$0xff] %vm4951, %v8058
  %8121 = vst [vmem:[#allocation4 + $0x1d0] sm:$0xff] %v8059
  %8122 = vst.msk [vmem:[#allocation4 + $0x1d8] sm:$0xff] %vm4951, %v8060
  %8123 = vst [vmem:[#allocation4 + $0x1e0] sm:$0x7] %v8061
  %8124 = vst.msk [vmem:[#allocation4 + $0x1e8] sm:$0x7] %vm5012, %v8062
  %v8125 = vld [vmem:[#allocation4] sm:$0xff]
  %v8126 = vld [vmem:[#allocation4 + $0x8] sm:$0xff]
  %v8127 = vld [vmem:[#allocation4 + $0x10] sm:$0xff]
  %v8128 = vld [vmem:[#allocation4 + $0x18] sm:$0xff]
  %v8129 = vld [vmem:[#allocation4 + $0x20] sm:$0xff]
  %v8130 = vld [vmem:[#allocation4 + $0x28] sm:$0xff]
  %v8131 = vld [vmem:[#allocation4 + $0x30] sm:$0xff]
  %v8132 = vld [vmem:[#allocation4 + $0x38] sm:$0xff]
  %v8133 = vld [vmem:[#allocation4 + $0x40] sm:$0xff]
  %v8134 = vld [vmem:[#allocation4 + $0x48] sm:$0xff]
  %v8135 = vld [vmem:[#allocation4 + $0x50] sm:$0xff]
  %v8136 = vld [vmem:[#allocation4 + $0x58] sm:$0xff]
  %v8137 = vld [vmem:[#allocation4 + $0x60] sm:$0xff]
  %v8138 = vld [vmem:[#allocation4 + $0x68] sm:$0xff]
  %v8139 = vld [vmem:[#allocation4 + $0x70] sm:$0xff]
  %v8140 = vld [vmem:[#allocation4 + $0x78] sm:$0xff]
  %v8141 = vld [vmem:[#allocation4 + $0x80] sm:$0xff]
  %v8142 = vld [vmem:[#allocation4 + $0x88] sm:$0xff]
  %v8143 = vld [vmem:[#allocation4 + $0x90] sm:$0xff]
  %v8144 = vld [vmem:[#allocation4 + $0x98] sm:$0xff]
  %v8145 = vld [vmem:[#allocation4 + $0xa0] sm:$0xff]
  %v8146 = vld [vmem:[#allocation4 + $0xa8] sm:$0xff]
  %v8147 = vld [vmem:[#allocation4 + $0xb0] sm:$0xff]
  %v8148 = vld [vmem:[#allocation4 + $0xb8] sm:$0xff]
  %v8149 = vld [vmem:[#allocation4 + $0xc0] sm:$0xff]
  %v8150 = vld [vmem:[#allocation4 + $0xc8] sm:$0xff]
  %v8151 = vld [vmem:[#allocation4 + $0xd0] sm:$0xff]
  %v8152 = vld [vmem:[#allocation4 + $0xd8] sm:$0xff]
  %v8153 = vld [vmem:[#allocation4 + $0xe0] sm:$0xff]
  %v8154 = vld [vmem:[#allocation4 + $0xe8] sm:$0xff]
  %v8155 = vld [vmem:[#allocation4 + $0xf0] sm:$0xff]
  %v8156 = vld [vmem:[#allocation4 + $0xf8] sm:$0xff]
  %v8157 = vld [vmem:[#allocation4 + $0x100] sm:$0xff]
  %v8158 = vld [vmem:[#allocation4 + $0x108] sm:$0xff]
  %v8159 = vld [vmem:[#allocation4 + $0x110] sm:$0xff]
  %v8160 = vld [vmem:[#allocation4 + $0x118] sm:$0xff]
  %v8161 = vld [vmem:[#allocation4 + $0x120] sm:$0xff]
  %v8162 = vld [vmem:[#allocation4 + $0x128] sm:$0xff]
  %v8163 = vld [vmem:[#allocation4 + $0x130] sm:$0xff]
  %v8164 = vld [vmem:[#allocation4 + $0x138] sm:$0xff]
  %v8165 = vld [vmem:[#allocation4 + $0x140] sm:$0xff]
  %v8166 = vld [vmem:[#allocation4 + $0x148] sm:$0xff]
  %v8167 = vld [vmem:[#allocation4 + $0x150] sm:$0xff]
  %v8168 = vld [vmem:[#allocation4 + $0x158] sm:$0xff]
  %v8169 = vld [vmem:[#allocation4 + $0x160] sm:$0xff]
  %v8170 = vld [vmem:[#allocation4 + $0x168] sm:$0xff]
  %v8171 = vld [vmem:[#allocation4 + $0x170] sm:$0xff]
  %v8172 = vld [vmem:[#allocation4 + $0x178] sm:$0xff]
  %v8173 = vld [vmem:[#allocation4 + $0x180] sm:$0xff]
  %v8174 = vld [vmem:[#allocation4 + $0x188] sm:$0xff]
  %v8175 = vld [vmem:[#allocation4 + $0x190] sm:$0xff]
  %v8176 = vld [vmem:[#allocation4 + $0x198] sm:$0xff]
  %v8177 = vld [vmem:[#allocation4 + $0x1a0] sm:$0xff]
  %v8178 = vld [vmem:[#allocation4 + $0x1a8] sm:$0xff]
  %v8179 = vld [vmem:[#allocation4 + $0x1b0] sm:$0xff]
  %v8180 = vld [vmem:[#allocation4 + $0x1b8] sm:$0xff]
  %v8181 = vld [vmem:[#allocation4 + $0x1c0] sm:$0xff]
  %v8182 = vld [vmem:[#allocation4 + $0x1c8] sm:$0xff]
  %v8183 = vld [vmem:[#allocation4 + $0x1d0] sm:$0xff]
  %v8184 = vld [vmem:[#allocation4 + $0x1d8] sm:$0xff]
  %v8185 = vld [vmem:[#allocation4 + $0x1e0] sm:$0x1]
  %v8186 = vld [vmem:[#allocation4 + $0x1e8] sm:$0x1]
  %v8187 = vld [vmem:[#allocation4] sm:$0xfc]
  %v8188 = vld [vmem:[#allocation4 + $0x8] sm:$0xfc]
  %v8189 = vld [vmem:[#allocation4 + $0x1e0] sm:$0x7]
  %v8190 = vld [vmem:[#allocation4 + $0x1e8] sm:$0x7]
  %vm8253 = vcmask 1045504
  %v8254 = vrot.slane %v8187, 2
  %v8255 = vrot.slane %v8127, 2
  %v8256 = vsel %vm8253, %v8254, %v8255
  %v8257 = vrot.slane %v8188, 2
  %v8258 = vrot.slane %v8128, 2
  %v8259 = vsel %vm8253, %v8257, %v8258
  %v8260 = vrot.slane %v8129, 2
  %v8261 = vsel %vm8253, %v8255, %v8260
  %v8262 = vrot.slane %v8130, 2
  %v8263 = vsel %vm8253, %v8258, %v8262
  %v8264 = vrot.slane %v8131, 2
  %v8265 = vsel %vm8253, %v8260, %v8264
  %v8266 = vrot.slane %v8132, 2
  %v8267 = vsel %vm8253, %v8262, %v8266
  %v8268 = vrot.slane %v8133, 2
  %v8269 = vsel %vm8253, %v8264, %v8268
  %v8270 = vrot.slane %v8134, 2
  %v8271 = vsel %vm8253, %v8266, %v8270
  %v8272 = vrot.slane %v8135, 2
  %v8273 = vsel %vm8253, %v8268, %v8272
  %v8274 = vrot.slane %v8136, 2
  %v8275 = vsel %vm8253, %v8270, %v8274
  %v8276 = vrot.slane %v8137, 2
  %v8277 = vsel %vm8253, %v8272, %v8276
  %v8278 = vrot.slane %v8138, 2
  %v8279 = vsel %vm8253, %v8274, %v8278
  %v8280 = vrot.slane %v8139, 2
  %v8281 = vsel %vm8253, %v8276, %v8280
  %v8282 = vrot.slane %v8140, 2
  %v8283 = vsel %vm8253, %v8278, %v8282
  %v8284 = vrot.slane %v8141, 2
  %v8285 = vsel %vm8253, %v8280, %v8284
  %v8286 = vrot.slane %v8142, 2
  %v8287 = vsel %vm8253, %v8282, %v8286
  %v8288 = vrot.slane %v8143, 2
  %v8289 = vsel %vm8253, %v8284, %v8288
  %v8290 = vrot.slane %v8144, 2
  %v8291 = vsel %vm8253, %v8286, %v8290
  %v8292 = vrot.slane %v8145, 2
  %v8293 = vsel %vm8253, %v8288, %v8292
  %v8294 = vrot.slane %v8146, 2
  %v8295 = vsel %vm8253, %v8290, %v8294
  %v8296 = vrot.slane %v8147, 2
  %v8297 = vsel %vm8253, %v8292, %v8296
  %v8298 = vrot.slane %v8148, 2
  %v8299 = vsel %vm8253, %v8294, %v8298
  %v8300 = vrot.slane %v8149, 2
  %v8301 = vsel %vm8253, %v8296, %v8300
  %v8302 = vrot.slane %v8150, 2
  %v8303 = vsel %vm8253, %v8298, %v8302
  %v8304 = vrot.slane %v8151, 2
  %v8305 = vsel %vm8253, %v8300, %v8304
  %v8306 = vrot.slane %v8152, 2
  %v8307 = vsel %vm8253, %v8302, %v8306
  %v8308 = vrot.slane %v8153, 2
  %v8309 = vsel %vm8253, %v8304, %v8308
  %v8310 = vrot.slane %v8154, 2
  %v8311 = vsel %vm8253, %v8306, %v8310
  %v8312 = vrot.slane %v8155, 2
  %v8313 = vsel %vm8253, %v8308, %v8312
  %v8314 = vrot.slane %v8156, 2
  %v8315 = vsel %vm8253, %v8310, %v8314
  %v8316 = vrot.slane %v8157, 2
  %v8317 = vsel %vm8253, %v8312, %v8316
  %v8318 = vrot.slane %v8158, 2
  %v8319 = vsel %vm8253, %v8314, %v8318
  %v8320 = vrot.slane %v8159, 2
  %v8321 = vsel %vm8253, %v8316, %v8320
  %v8322 = vrot.slane %v8160, 2
  %v8323 = vsel %vm8253, %v8318, %v8322
  %v8324 = vrot.slane %v8161, 2
  %v8325 = vsel %vm8253, %v8320, %v8324
  %v8326 = vrot.slane %v8162, 2
  %v8327 = vsel %vm8253, %v8322, %v8326
  %v8328 = vrot.slane %v8163, 2
  %v8329 = vsel %vm8253, %v8324, %v8328
  %v8330 = vrot.slane %v8164, 2
  %v8331 = vsel %vm8253, %v8326, %v8330
  %v8332 = vrot.slane %v8165, 2
  %v8333 = vsel %vm8253, %v8328, %v8332
  %v8334 = vrot.slane %v8166, 2
  %v8335 = vsel %vm8253, %v8330, %v8334
  %v8336 = vrot.slane %v8167, 2
  %v8337 = vsel %vm8253, %v8332, %v8336
  %v8338 = vrot.slane %v8168, 2
  %v8339 = vsel %vm8253, %v8334, %v8338
  %v8340 = vrot.slane %v8169, 2
  %v8341 = vsel %vm8253, %v8336, %v8340
  %v8342 = vrot.slane %v8170, 2
  %v8343 = vsel %vm8253, %v8338, %v8342
  %v8344 = vrot.slane %v8171, 2
  %v8345 = vsel %vm8253, %v8340, %v8344
  %v8346 = vrot.slane %v8172, 2
  %v8347 = vsel %vm8253, %v8342, %v8346
  %v8348 = vrot.slane %v8173, 2
  %v8349 = vsel %vm8253, %v8344, %v8348
  %v8350 = vrot.slane %v8174, 2
  %v8351 = vsel %vm8253, %v8346, %v8350
  %v8352 = vrot.slane %v8175, 2
  %v8353 = vsel %vm8253, %v8348, %v8352
  %v8354 = vrot.slane %v8176, 2
  %v8355 = vsel %vm8253, %v8350, %v8354
  %v8356 = vrot.slane %v8177, 2
  %v8357 = vsel %vm8253, %v8352, %v8356
  %v8358 = vrot.slane %v8178, 2
  %v8359 = vsel %vm8253, %v8354, %v8358
  %v8360 = vrot.slane %v8179, 2
  %v8361 = vsel %vm8253, %v8356, %v8360
  %v8362 = vrot.slane %v8180, 2
  %v8363 = vsel %vm8253, %v8358, %v8362
  %v8364 = vrot.slane %v8181, 2
  %v8365 = vsel %vm8253, %v8360, %v8364
  %v8366 = vrot.slane %v8182, 2
  %v8367 = vsel %vm8253, %v8362, %v8366
  %v8368 = vrot.slane %v8183, 2
  %v8369 = vsel %vm8253, %v8364, %v8368
  %v8370 = vrot.slane %v8184, 2
  %v8371 = vsel %vm8253, %v8366, %v8370
  %v8372 = vrot.slane %v8189, 2
  %v8373 = vsel %vm8253, %v8368, %v8372
  %v8374 = vrot.slane %v8190, 2
  %v8375 = vsel %vm8253, %v8370, %v8374
  %v8438 = vmax.f32 %v8125, %v8256
  %v8439 = vmax.f32 %v8126, %v8259
  %v8440 = vmax.f32 %v8127, %v8261
  %v8441 = vmax.f32 %v8128, %v8263
  %v8442 = vmax.f32 %v8129, %v8265
  %v8443 = vmax.f32 %v8130, %v8267
  %v8444 = vmax.f32 %v8131, %v8269
  %v8445 = vmax.f32 %v8132, %v8271
  %v8446 = vmax.f32 %v8133, %v8273
  %v8447 = vmax.f32 %v8134, %v8275
  %v8448 = vmax.f32 %v8135, %v8277
  %v8449 = vmax.f32 %v8136, %v8279
  %v8450 = vmax.f32 %v8137, %v8281
  %v8451 = vmax.f32 %v8138, %v8283
  %v8452 = vmax.f32 %v8139, %v8285
  %v8453 = vmax.f32 %v8140, %v8287
  %v8454 = vmax.f32 %v8141, %v8289
  %v8455 = vmax.f32 %v8142, %v8291
  %v8456 = vmax.f32 %v8143, %v8293
  %v8457 = vmax.f32 %v8144, %v8295
  %v8458 = vmax.f32 %v8145, %v8297
  %v8459 = vmax.f32 %v8146, %v8299
  %v8460 = vmax.f32 %v8147, %v8301
  %v8461 = vmax.f32 %v8148, %v8303
  %v8462 = vmax.f32 %v8149, %v8305
  %v8463 = vmax.f32 %v8150, %v8307
  %v8464 = vmax.f32 %v8151, %v8309
  %v8465 = vmax.f32 %v8152, %v8311
  %v8466 = vmax.f32 %v8153, %v8313
  %v8467 = vmax.f32 %v8154, %v8315
  %v8468 = vmax.f32 %v8155, %v8317
  %v8469 = vmax.f32 %v8156, %v8319
  %v8470 = vmax.f32 %v8157, %v8321
  %v8471 = vmax.f32 %v8158, %v8323
  %v8472 = vmax.f32 %v8159, %v8325
  %v8473 = vmax.f32 %v8160, %v8327
  %v8474 = vmax.f32 %v8161, %v8329
  %v8475 = vmax.f32 %v8162, %v8331
  %v8476 = vmax.f32 %v8163, %v8333
  %v8477 = vmax.f32 %v8164, %v8335
  %v8478 = vmax.f32 %v8165, %v8337
  %v8479 = vmax.f32 %v8166, %v8339
  %v8480 = vmax.f32 %v8167, %v8341
  %v8481 = vmax.f32 %v8168, %v8343
  %v8482 = vmax.f32 %v8169, %v8345
  %v8483 = vmax.f32 %v8170, %v8347
  %v8484 = vmax.f32 %v8171, %v8349
  %v8485 = vmax.f32 %v8172, %v8351
  %v8486 = vmax.f32 %v8173, %v8353
  %v8487 = vmax.f32 %v8174, %v8355
  %v8488 = vmax.f32 %v8175, %v8357
  %v8489 = vmax.f32 %v8176, %v8359
  %v8490 = vmax.f32 %v8177, %v8361
  %v8491 = vmax.f32 %v8178, %v8363
  %v8492 = vmax.f32 %v8179, %v8365
  %v8493 = vmax.f32 %v8180, %v8367
  %v8494 = vmax.f32 %v8181, %v8369
  %v8495 = vmax.f32 %v8182, %v8371
  %v8496 = vmax.f32 %v8183, %v8373
  %v8497 = vmax.f32 %v8184, %v8375
  %v8498 = vmax.f32 %v8185, %v8372
  %v8499 = vmax.f32 %v8186, %v8374
  %8562 = vrot.lane.b32.xlu0 %v8438, 127
  %v8563 = vpop.permute.xlu0 %8562
  %8564 = vrot.lane.b32.xlu0 %v8439, 127
  %v8565 = vpop.permute.xlu0 %8564
  %8566 = vrot.lane.b32.xlu0 %v8440, 127
  %v8567 = vpop.permute.xlu0 %8566
  %8568 = vrot.lane.b32.xlu0 %v8441, 127
  %v8569 = vpop.permute.xlu0 %8568
  %8570 = vrot.lane.b32.xlu0 %v8442, 127
  %v8571 = vpop.permute.xlu0 %8570
  %8572 = vrot.lane.b32.xlu0 %v8443, 127
  %v8573 = vpop.permute.xlu0 %8572
  %8574 = vrot.lane.b32.xlu0 %v8444, 127
  %v8575 = vpop.permute.xlu0 %8574
  %8576 = vrot.lane.b32.xlu0 %v8445, 127
  %v8577 = vpop.permute.xlu0 %8576
  %8578 = vrot.lane.b32.xlu0 %v8446, 127
  %v8579 = vpop.permute.xlu0 %8578
  %8580 = vrot.lane.b32.xlu0 %v8447, 127
  %v8581 = vpop.permute.xlu0 %8580
  %8582 = vrot.lane.b32.xlu0 %v8448, 127
  %v8583 = vpop.permute.xlu0 %8582
  %8584 = vrot.lane.b32.xlu0 %v8449, 127
  %v8585 = vpop.permute.xlu0 %8584
  %8586 = vrot.lane.b32.xlu0 %v8450, 127
  %v8587 = vpop.permute.xlu0 %8586
  %8588 = vrot.lane.b32.xlu0 %v8451, 127
  %v8589 = vpop.permute.xlu0 %8588
  %8590 = vrot.lane.b32.xlu0 %v8452, 127
  %v8591 = vpop.permute.xlu0 %8590
  %8592 = vrot.lane.b32.xlu0 %v8453, 127
  %v8593 = vpop.permute.xlu0 %8592
  %8594 = vrot.lane.b32.xlu0 %v8454, 127
  %v8595 = vpop.permute.xlu0 %8594
  %8596 = vrot.lane.b32.xlu0 %v8455, 127
  %v8597 = vpop.permute.xlu0 %8596
  %8598 = vrot.lane.b32.xlu0 %v8456, 127
  %v8599 = vpop.permute.xlu0 %8598
  %8600 = vrot.lane.b32.xlu0 %v8457, 127
  %v8601 = vpop.permute.xlu0 %8600
  %8602 = vrot.lane.b32.xlu0 %v8458, 127
  %v8603 = vpop.permute.xlu0 %8602
  %8604 = vrot.lane.b32.xlu0 %v8459, 127
  %v8605 = vpop.permute.xlu0 %8604
  %8606 = vrot.lane.b32.xlu0 %v8460, 127
  %v8607 = vpop.permute.xlu0 %8606
  %8608 = vrot.lane.b32.xlu0 %v8461, 127
  %v8609 = vpop.permute.xlu0 %8608
  %8610 = vrot.lane.b32.xlu0 %v8462, 127
  %v8611 = vpop.permute.xlu0 %8610
  %8612 = vrot.lane.b32.xlu0 %v8463, 127
  %v8613 = vpop.permute.xlu0 %8612
  %8614 = vrot.lane.b32.xlu0 %v8464, 127
  %v8615 = vpop.permute.xlu0 %8614
  %8616 = vrot.lane.b32.xlu0 %v8465, 127
  %v8617 = vpop.permute.xlu0 %8616
  %8618 = vrot.lane.b32.xlu0 %v8466, 127
  %v8619 = vpop.permute.xlu0 %8618
  %8620 = vrot.lane.b32.xlu0 %v8467, 127
  %v8621 = vpop.permute.xlu0 %8620
  %8622 = vrot.lane.b32.xlu0 %v8468, 127
  %v8623 = vpop.permute.xlu0 %8622
  %8624 = vrot.lane.b32.xlu0 %v8469, 127
  %v8625 = vpop.permute.xlu0 %8624
  %8626 = vrot.lane.b32.xlu0 %v8470, 127
  %v8627 = vpop.permute.xlu0 %8626
  %8628 = vrot.lane.b32.xlu0 %v8471, 127
  %v8629 = vpop.permute.xlu0 %8628
  %8630 = vrot.lane.b32.xlu0 %v8472, 127
  %v8631 = vpop.permute.xlu0 %8630
  %8632 = vrot.lane.b32.xlu0 %v8473, 127
  %v8633 = vpop.permute.xlu0 %8632
  %8634 = vrot.lane.b32.xlu0 %v8474, 127
  %v8635 = vpop.permute.xlu0 %8634
  %8636 = vrot.lane.b32.xlu0 %v8475, 127
  %v8637 = vpop.permute.xlu0 %8636
  %8638 = vrot.lane.b32.xlu0 %v8476, 127
  %v8639 = vpop.permute.xlu0 %8638
  %8640 = vrot.lane.b32.xlu0 %v8477, 127
  %v8641 = vpop.permute.xlu0 %8640
  %8642 = vrot.lane.b32.xlu0 %v8478, 127
  %v8643 = vpop.permute.xlu0 %8642
  %8644 = vrot.lane.b32.xlu0 %v8479, 127
  %v8645 = vpop.permute.xlu0 %8644
  %8646 = vrot.lane.b32.xlu0 %v8480, 127
  %v8647 = vpop.permute.xlu0 %8646
  %8648 = vrot.lane.b32.xlu0 %v8481, 127
  %v8649 = vpop.permute.xlu0 %8648
  %8650 = vrot.lane.b32.xlu0 %v8482, 127
  %v8651 = vpop.permute.xlu0 %8650
  %8652 = vrot.lane.b32.xlu0 %v8483, 127
  %v8653 = vpop.permute.xlu0 %8652
  %8654 = vrot.lane.b32.xlu0 %v8484, 127
  %v8655 = vpop.permute.xlu0 %8654
  %8656 = vrot.lane.b32.xlu0 %v8485, 127
  %v8657 = vpop.permute.xlu0 %8656
  %8658 = vrot.lane.b32.xlu0 %v8486, 127
  %v8659 = vpop.permute.xlu0 %8658
  %8660 = vrot.lane.b32.xlu0 %v8487, 127
  %v8661 = vpop.permute.xlu0 %8660
  %8662 = vrot.lane.b32.xlu0 %v8488, 127
  %v8663 = vpop.permute.xlu0 %8662
  %8664 = vrot.lane.b32.xlu0 %v8489, 127
  %v8665 = vpop.permute.xlu0 %8664
  %8666 = vrot.lane.b32.xlu0 %v8490, 127
  %v8667 = vpop.permute.xlu0 %8666
  %8668 = vrot.lane.b32.xlu0 %v8491, 127
  %v8669 = vpop.permute.xlu0 %8668
  %8670 = vrot.lane.b32.xlu0 %v8492, 127
  %v8671 = vpop.permute.xlu0 %8670
  %8672 = vrot.lane.b32.xlu0 %v8493, 127
  %v8673 = vpop.permute.xlu0 %8672
  %8674 = vrot.lane.b32.xlu0 %v8494, 127
  %v8675 = vpop.permute.xlu0 %8674
  %8676 = vrot.lane.b32.xlu0 %v8495, 127
  %v8677 = vpop.permute.xlu0 %8676
  %8678 = vrot.lane.b32.xlu0 %v8496, 127
  %v8679 = vpop.permute.xlu0 %8678
  %8680 = vrot.lane.b32.xlu0 %v8497, 127
  %v8681 = vpop.permute.xlu0 %8680
  %8682 = vrot.lane.b32.xlu0 %v8498, 127
  %v8683 = vpop.permute.xlu0 %8682
  %8684 = vrot.lane.b32.xlu0 %v8499, 127
  %v8685 = vpop.permute.xlu0 %8684
  %v8686 = vsel %vm3930, %v8563, %v8565
  %v8687 = vsel %vm3930, %v8567, %v8569
  %v8688 = vsel %vm3930, %v8571, %v8573
  %v8689 = vsel %vm3930, %v8575, %v8577
  %v8690 = vsel %vm3930, %v8579, %v8581
  %v8691 = vsel %vm3930, %v8583, %v8585
  %v8692 = vsel %vm3930, %v8587, %v8589
  %v8693 = vsel %vm3930, %v8591, %v8593
  %v8694 = vsel %vm3930, %v8595, %v8597
  %v8695 = vsel %vm3930, %v8599, %v8601
  %v8696 = vsel %vm3930, %v8603, %v8605
  %v8697 = vsel %vm3930, %v8607, %v8609
  %v8698 = vsel %vm3930, %v8611, %v8613
  %v8699 = vsel %vm3930, %v8615, %v8617
  %v8700 = vsel %vm3930, %v8619, %v8621
  %v8701 = vsel %vm3930, %v8623, %v8625
  %v8702 = vsel %vm3930, %v8627, %v8629
  %v8703 = vsel %vm3930, %v8631, %v8633
  %v8704 = vsel %vm3930, %v8635, %v8637
  %v8705 = vsel %vm3930, %v8639, %v8641
  %v8706 = vsel %vm3930, %v8643, %v8645
  %v8707 = vsel %vm3930, %v8647, %v8649
  %v8708 = vsel %vm3930, %v8651, %v8653
  %v8709 = vsel %vm3930, %v8655, %v8657
  %v8710 = vsel %vm3930, %v8659, %v8661
  %v8711 = vsel %vm3930, %v8663, %v8665
  %v8712 = vsel %vm3930, %v8667, %v8669
  %v8713 = vsel %vm3930, %v8671, %v8673
  %v8714 = vsel %vm3930, %v8675, %v8677
  %v8715 = vsel %vm3930, %v8679, %v8681
  %v8716 = vsel %vm3930, %v8683, %v8685
  %v8779 = vmax.f32 %v8438, %v8686
  %v8780 = vmax.f32 %v8439, %v8565
  %v8781 = vmax.f32 %v8440, %v8687
  %v8782 = vmax.f32 %v8441, %v8569
  %v8783 = vmax.f32 %v8442, %v8688
  %v8784 = vmax.f32 %v8443, %v8573
  %v8785 = vmax.f32 %v8444, %v8689
  %v8786 = vmax.f32 %v8445, %v8577
  %v8787 = vmax.f32 %v8446, %v8690
  %v8788 = vmax.f32 %v8447, %v8581
  %v8789 = vmax.f32 %v8448, %v8691
  %v8790 = vmax.f32 %v8449, %v8585
  %v8791 = vmax.f32 %v8450, %v8692
  %v8792 = vmax.f32 %v8451, %v8589
  %v8793 = vmax.f32 %v8452, %v8693
  %v8794 = vmax.f32 %v8453, %v8593
  %v8795 = vmax.f32 %v8454, %v8694
  %v8796 = vmax.f32 %v8455, %v8597
  %v8797 = vmax.f32 %v8456, %v8695
  %v8798 = vmax.f32 %v8457, %v8601
  %v8799 = vmax.f32 %v8458, %v8696
  %v8800 = vmax.f32 %v8459, %v8605
  %v8801 = vmax.f32 %v8460, %v8697
  %v8802 = vmax.f32 %v8461, %v8609
  %v8803 = vmax.f32 %v8462, %v8698
  %v8804 = vmax.f32 %v8463, %v8613
  %v8805 = vmax.f32 %v8464, %v8699
  %v8806 = vmax.f32 %v8465, %v8617
  %v8807 = vmax.f32 %v8466, %v8700
  %v8808 = vmax.f32 %v8467, %v8621
  %v8809 = vmax.f32 %v8468, %v8701
  %v8810 = vmax.f32 %v8469, %v8625
  %v8811 = vmax.f32 %v8470, %v8702
  %v8812 = vmax.f32 %v8471, %v8629
  %v8813 = vmax.f32 %v8472, %v8703
  %v8814 = vmax.f32 %v8473, %v8633
  %v8815 = vmax.f32 %v8474, %v8704
  %v8816 = vmax.f32 %v8475, %v8637
  %v8817 = vmax.f32 %v8476, %v8705
  %v8818 = vmax.f32 %v8477, %v8641
  %v8819 = vmax.f32 %v8478, %v8706
  %v8820 = vmax.f32 %v8479, %v8645
  %v8821 = vmax.f32 %v8480, %v8707
  %v8822 = vmax.f32 %v8481, %v8649
  %v8823 = vmax.f32 %v8482, %v8708
  %v8824 = vmax.f32 %v8483, %v8653
  %v8825 = vmax.f32 %v8484, %v8709
  %v8826 = vmax.f32 %v8485, %v8657
  %v8827 = vmax.f32 %v8486, %v8710
  %v8828 = vmax.f32 %v8487, %v8661
  %v8829 = vmax.f32 %v8488, %v8711
  %v8830 = vmax.f32 %v8489, %v8665
  %v8831 = vmax.f32 %v8490, %v8712
  %v8832 = vmax.f32 %v8491, %v8669
  %v8833 = vmax.f32 %v8492, %v8713
  %v8834 = vmax.f32 %v8493, %v8673
  %v8835 = vmax.f32 %v8494, %v8714
  %v8836 = vmax.f32 %v8495, %v8677
  %v8837 = vmax.f32 %v8496, %v8715
  %v8838 = vmax.f32 %v8497, %v8681
  %v8839 = vmax.f32 %v8498, %v8716
  %v8840 = vmax.f32 %v8499, %v8685
  %v8841 = vmax.f32 %v8779, 0.0
  %v8842 = vmax.f32 %v8780, 0.0
  %v8843 = vmax.f32 %v8781, 0.0
  %v8844 = vmax.f32 %v8782, 0.0
  %v8845 = vmax.f32 %v8783, 0.0
  %v8846 = vmax.f32 %v8784, 0.0
  %v8847 = vmax.f32 %v8785, 0.0
  %v8848 = vmax.f32 %v8786, 0.0
  %v8849 = vmax.f32 %v8787, 0.0
  %v8850 = vmax.f32 %v8788, 0.0
  %v8851 = vmax.f32 %v8789, 0.0
  %v8852 = vmax.f32 %v8790, 0.0
  %v8853 = vmax.f32 %v8791, 0.0
  %v8854 = vmax.f32 %v8792, 0.0
  %v8855 = vmax.f32 %v8793, 0.0
  %v8856 = vmax.f32 %v8794, 0.0
  %v8857 = vmax.f32 %v8795, 0.0
  %v8858 = vmax.f32 %v8796, 0.0
  %v8859 = vmax.f32 %v8797, 0.0
  %v8860 = vmax.f32 %v8798, 0.0
  %v8861 = vmax.f32 %v8799, 0.0
  %v8862 = vmax.f32 %v8800, 0.0
  %v8863 = vmax.f32 %v8801, 0.0
  %v8864 = vmax.f32 %v8802, 0.0
  %v8865 = vmax.f32 %v8803, 0.0
  %v8866 = vmax.f32 %v8804, 0.0
  %v8867 = vmax.f32 %v8805, 0.0
  %v8868 = vmax.f32 %v8806, 0.0
  %v8869 = vmax.f32 %v8807, 0.0
  %v8870 = vmax.f32 %v8808, 0.0
  %v8871 = vmax.f32 %v8809, 0.0
  %v8872 = vmax.f32 %v8810, 0.0
  %v8873 = vmax.f32 %v8811, 0.0
  %v8874 = vmax.f32 %v8812, 0.0
  %v8875 = vmax.f32 %v8813, 0.0
  %v8876 = vmax.f32 %v8814, 0.0
  %v8877 = vmax.f32 %v8815, 0.0
  %v8878 = vmax.f32 %v8816, 0.0
  %v8879 = vmax.f32 %v8817, 0.0
  %v8880 = vmax.f32 %v8818, 0.0
  %v8881 = vmax.f32 %v8819, 0.0
  %v8882 = vmax.f32 %v8820, 0.0
  %v8883 = vmax.f32 %v8821, 0.0
  %v8884 = vmax.f32 %v8822, 0.0
  %v8885 = vmax.f32 %v8823, 0.0
  %v8886 = vmax.f32 %v8824, 0.0
  %v8887 = vmax.f32 %v8825, 0.0
  %v8888 = vmax.f32 %v8826, 0.0
  %v8889 = vmax.f32 %v8827, 0.0
  %v8890 = vmax.f32 %v8828, 0.0
  %v8891 = vmax.f32 %v8829, 0.0
  %v8892 = vmax.f32 %v8830, 0.0
  %v8893 = vmax.f32 %v8831, 0.0
  %v8894 = vmax.f32 %v8832, 0.0
  %v8895 = vmax.f32 %v8833, 0.0
  %v8896 = vmax.f32 %v8834, 0.0
  %v8897 = vmax.f32 %v8835, 0.0
  %v8898 = vmax.f32 %v8836, 0.0
  %v8899 = vmax.f32 %v8837, 0.0
  %v8900 = vmax.f32 %v8838, 0.0
  %v8901 = vmax.f32 %v8839, 0.0
  %v8902 = vmax.f32 %v8840, 0.0
  %v8903 = vpack.c.bf16 %v8843, %v8841
  %v8904 = vpack.c.bf16 %v8844, %v8842
  %v8905 = vpack.c.bf16 %v8847, %v8845
  %v8906 = vpack.c.bf16 %v8848, %v8846
  %v8907 = vpack.c.bf16 %v8851, %v8849
  %v8908 = vpack.c.bf16 %v8852, %v8850
  %v8909 = vpack.c.bf16 %v8855, %v8853
  %v8910 = vpack.c.bf16 %v8856, %v8854
  %v8911 = vpack.c.bf16 %v8859, %v8857
  %v8912 = vpack.c.bf16 %v8860, %v8858
  %v8913 = vpack.c.bf16 %v8863, %v8861
  %v8914 = vpack.c.bf16 %v8864, %v8862
  %v8915 = vpack.c.bf16 %v8867, %v8865
  %v8916 = vpack.c.bf16 %v8868, %v8866
  %v8917 = vpack.c.bf16 %v8871, %v8869
  %v8918 = vpack.c.bf16 %v8872, %v8870
  %v8919 = vpack.c.bf16 %v8875, %v8873
  %v8920 = vpack.c.bf16 %v8876, %v8874
  %v8921 = vpack.c.bf16 %v8879, %v8877
  %v8922 = vpack.c.bf16 %v8880, %v8878
  %v8923 = vpack.c.bf16 %v8883, %v8881
  %v8924 = vpack.c.bf16 %v8884, %v8882
  %v8925 = vpack.c.bf16 %v8887, %v8885
  %v8926 = vpack.c.bf16 %v8888, %v8886
  %v8927 = vpack.c.bf16 %v8891, %v8889
  %v8928 = vpack.c.bf16 %v8892, %v8890
  %v8929 = vpack.c.bf16 %v8895, %v8893
  %v8930 = vpack.c.bf16 %v8896, %v8894
  %v8931 = vpack.c.bf16 %v8899, %v8897
  %v8932 = vpack.c.bf16 %v8900, %v8898
  %v8933 = vpack.c.bf16 %v8901, %v8901
  %v8934 = vpack.c.bf16 %v8902, %v8902
  %v8967 = vunpack.c.l.b16 %v8903
  %v8968 = vunpack.c.l.b16 %v8904
  %v8969 = vunpack.c.h.b16 %v8903
  %v8970 = vunpack.c.h.b16 %v8904
  %v8971 = vunpack.c.l.b16 %v8905
  %v8972 = vunpack.c.l.b16 %v8906
  %v8973 = vunpack.c.h.b16 %v8905
  %v8974 = vunpack.c.h.b16 %v8906
  %v8975 = vunpack.c.l.b16 %v8907
  %v8976 = vunpack.c.l.b16 %v8908
  %v8977 = vunpack.c.h.b16 %v8907
  %v8978 = vunpack.c.h.b16 %v8908
  %v8979 = vunpack.c.l.b16 %v8909
  %v8980 = vunpack.c.l.b16 %v8910
  %v8981 = vunpack.c.h.b16 %v8909
  %v8982 = vunpack.c.h.b16 %v8910
  %v8983 = vunpack.c.l.b16 %v8911
  %v8984 = vunpack.c.l.b16 %v8912
  %v8985 = vunpack.c.h.b16 %v8911
  %v8986 = vunpack.c.h.b16 %v8912
  %v8987 = vunpack.c.l.b16 %v8913
  %v8988 = vunpack.c.l.b16 %v8914
  %v8989 = vunpack.c.h.b16 %v8913
  %v8990 = vunpack.c.h.b16 %v8914
  %v8991 = vunpack.c.l.b16 %v8915
  %v8992 = vunpack.c.l.b16 %v8916
  %v8993 = vunpack.c.h.b16 %v8915
  %v8994 = vunpack.c.h.b16 %v8916
  %v8995 = vunpack.c.l.b16 %v8917
  %v8996 = vunpack.c.l.b16 %v8918
  %v8997 = vunpack.c.h.b16 %v8917
  %v8998 = vunpack.c.h.b16 %v8918
  %v8999 = vunpack.c.l.b16 %v8919
  %v9000 = vunpack.c.l.b16 %v8920
  %v9001 = vunpack.c.h.b16 %v8919
  %v9002 = vunpack.c.h.b16 %v8920
  %v9003 = vunpack.c.l.b16 %v8921
  %v9004 = vunpack.c.l.b16 %v8922
  %v9005 = vunpack.c.h.b16 %v8921
  %v9006 = vunpack.c.h.b16 %v8922
  %v9007 = vunpack.c.l.b16 %v8923
  %v9008 = vunpack.c.l.b16 %v8924
  %v9009 = vunpack.c.h.b16 %v8923
  %v9010 = vunpack.c.h.b16 %v8924
  %v9011 = vunpack.c.l.b16 %v8925
  %v9012 = vunpack.c.l.b16 %v8926
  %v9013 = vunpack.c.h.b16 %v8925
  %v9014 = vunpack.c.h.b16 %v8926
  %v9015 = vunpack.c.l.b16 %v8927
  %v9016 = vunpack.c.l.b16 %v8928
  %v9017 = vunpack.c.h.b16 %v8927
  %v9018 = vunpack.c.h.b16 %v8928
  %v9019 = vunpack.c.l.b16 %v8929
  %v9020 = vunpack.c.l.b16 %v8930
  %v9021 = vunpack.c.h.b16 %v8929
  %v9022 = vunpack.c.h.b16 %v8930
  %v9023 = vunpack.c.l.b16 %v8931
  %v9024 = vunpack.c.l.b16 %v8932
  %v9025 = vunpack.c.h.b16 %v8931
  %v9026 = vunpack.c.h.b16 %v8932
  %v9027 = vunpack.c.l.b16 %v8933
  %v9028 = vunpack.c.l.b16 %v8934
  %v9029 = vpack.c.b16 %v8968, %v8967
  %v9030 = vpack.c.b16 %v8970, %v8969
  %v9031 = vpack.c.b16 %v8972, %v8971
  %v9032 = vpack.c.b16 %v8974, %v8973
  %v9033 = vpack.c.b16 %v8976, %v8975
  %v9034 = vpack.c.b16 %v8978, %v8977
  %v9035 = vpack.c.b16 %v8980, %v8979
  %v9036 = vpack.c.b16 %v8982, %v8981
  %v9037 = vpack.c.b16 %v8984, %v8983
  %v9038 = vpack.c.b16 %v8986, %v8985
  %v9039 = vpack.c.b16 %v8988, %v8987
  %v9040 = vpack.c.b16 %v8990, %v8989
  %v9041 = vpack.c.b16 %v8992, %v8991
  %v9042 = vpack.c.b16 %v8994, %v8993
  %v9043 = vpack.c.b16 %v8996, %v8995
  %v9044 = vpack.c.b16 %v8998, %v8997
  %v9045 = vpack.c.b16 %v9000, %v8999
  %v9046 = vpack.c.b16 %v9002, %v9001
  %v9047 = vpack.c.b16 %v9004, %v9003
  %v9048 = vpack.c.b16 %v9006, %v9005
  %v9049 = vpack.c.b16 %v9008, %v9007
  %v9050 = vpack.c.b16 %v9010, %v9009
  %v9051 = vpack.c.b16 %v9012, %v9011
  %v9052 = vpack.c.b16 %v9014, %v9013
  %v9053 = vpack.c.b16 %v9016, %v9015
  %v9054 = vpack.c.b16 %v9018, %v9017
  %v9055 = vpack.c.b16 %v9020, %v9019
  %v9056 = vpack.c.b16 %v9022, %v9021
  %v9057 = vpack.c.b16 %v9024, %v9023
  %v9058 = vpack.c.b16 %v9026, %v9025
  %v9059 = vpack.c.b16 %v9028, %v9027
  %vm9091 = vcmask 252932
  %vm9092 = vmor %vm9091, %vm4347
  %9093 = vst.msk [vmem:[#allocation5] sm:$0xff] %vm9092, %v9029
  %9094 = vst.msk [vmem:[#allocation5 + $0x8] sm:$0xff] %vm9092, %v9030
  %9095 = vst.msk [vmem:[#allocation5 + $0x10] sm:$0xff] %vm9092, %v9031
  %9096 = vst.msk [vmem:[#allocation5 + $0x18] sm:$0xff] %vm9092, %v9032
  %9097 = vst.msk [vmem:[#allocation5 + $0x20] sm:$0xff] %vm9092, %v9033
  %9098 = vst.msk [vmem:[#allocation5 + $0x28] sm:$0xff] %vm9092, %v9034
  %9099 = vst.msk [vmem:[#allocation5 + $0x30] sm:$0xff] %vm9092, %v9035
  %9100 = vst.msk [vmem:[#allocation5 + $0x38] sm:$0xff] %vm9092, %v9036
  %9101 = vst.msk [vmem:[#allocation5 + $0x40] sm:$0xff] %vm9092, %v9037
  %9102 = vst.msk [vmem:[#allocation5 + $0x48] sm:$0xff] %vm9092, %v9038
  %9103 = vst.msk [vmem:[#allocation5 + $0x50] sm:$0xff] %vm9092, %v9039
  %9104 = vst.msk [vmem:[#allocation5 + $0x58] sm:$0xff] %vm9092, %v9040
  %9105 = vst.msk [vmem:[#allocation5 + $0x60] sm:$0xff] %vm9092, %v9041
  %9106 = vst.msk [vmem:[#allocation5 + $0x68] sm:$0xff] %vm9092, %v9042
  %9107 = vst.msk [vmem:[#allocation5 + $0x70] sm:$0xff] %vm9092, %v9043
  %9108 = vst.msk [vmem:[#allocation5 + $0x78] sm:$0xff] %vm9092, %v9044
  %9109 = vst.msk [vmem:[#allocation5 + $0x80] sm:$0xff] %vm9092, %v9045
  %9110 = vst.msk [vmem:[#allocation5 + $0x88] sm:$0xff] %vm9092, %v9046
  %9111 = vst.msk [vmem:[#allocation5 + $0x90] sm:$0xff] %vm9092, %v9047
  %9112 = vst.msk [vmem:[#allocation5 + $0x98] sm:$0xff] %vm9092, %v9048
  %9113 = vst.msk [vmem:[#allocation5 + $0xa0] sm:$0xff] %vm9092, %v9049
  %9114 = vst.msk [vmem:[#allocation5 + $0xa8] sm:$0xff] %vm9092, %v9050
  %9115 = vst.msk [vmem:[#allocation5 + $0xb0] sm:$0xff] %vm9092, %v9051
  %9116 = vst.msk [vmem:[#allocation5 + $0xb8] sm:$0xff] %vm9092, %v9052
  %9117 = vst.msk [vmem:[#allocation5 + $0xc0] sm:$0xff] %vm9092, %v9053
  %9118 = vst.msk [vmem:[#allocation5 + $0xc8] sm:$0xff] %vm9092, %v9054
  %9119 = vst.msk [vmem:[#allocation5 + $0xd0] sm:$0xff] %vm9092, %v9055
  %9120 = vst.msk [vmem:[#allocation5 + $0xd8] sm:$0xff] %vm9092, %v9056
  %9121 = vst.msk [vmem:[#allocation5 + $0xe0] sm:$0xff] %vm9092, %v9057
  %9122 = vst.msk [vmem:[#allocation5 + $0xe8] sm:$0xff] %vm9092, %v9058
  %vm9123 = vcmask 1040384
  %vm9124 = vsmask.f32 256
  %vm9125 = vmand %vm9123, %vm9124
  %vm9126 = vcmask 249860
  %vm9127 = vsmask.f32 4352
  %vm9128 = vmand %vm9126, %vm9127
  %vm9129 = vmor %vm9128, %vm9125
  %v9130 = vld [vmem:[#allocation5 + $0xf0] sm:$0x11]
  %v9131 = vsel %vm9129, %v9059, %v9130
  %9132 = vst [vmem:[#allocation5 + $0xf0] sm:$0x11] %v9131
  %v9133 = vld [vmem:[#allocation5] sm:$0xff]
  %v9134 = vld [vmem:[#allocation5 + $0x8] sm:$0xff]
  %v9135 = vld [vmem:[#allocation5 + $0x10] sm:$0xff]
  %v9136 = vld [vmem:[#allocation5 + $0x18] sm:$0xff]
  %v9137 = vld [vmem:[#allocation5 + $0x20] sm:$0xff]
  %v9138 = vld [vmem:[#allocation5 + $0x28] sm:$0xff]
  %v9139 = vld [vmem:[#allocation5 + $0x30] sm:$0xff]
  %v9140 = vld [vmem:[#allocation5 + $0x38] sm:$0xff]
  %v9141 = vld [vmem:[#allocation5 + $0x40] sm:$0xff]
  %v9142 = vld [vmem:[#allocation5 + $0x48] sm:$0xff]
  %v9143 = vld [vmem:[#allocation5 + $0x50] sm:$0xff]
  %v9144 = vld [vmem:[#allocation5 + $0x58] sm:$0xff]
  %v9145 = vld [vmem:[#allocation5 + $0x60] sm:$0xff]
  %v9146 = vld [vmem:[#allocation5 + $0x68] sm:$0xff]
  %v9147 = vld [vmem:[#allocation5 + $0x70] sm:$0xff]
  %v9148 = vld [vmem:[#allocation5 + $0x78] sm:$0xff]
  %v9149 = vld [vmem:[#allocation5 + $0x80] sm:$0xff]
  %v9150 = vld [vmem:[#allocation5 + $0x88] sm:$0xff]
  %v9151 = vld [vmem:[#allocation5 + $0x90] sm:$0xff]
  %v9152 = vld [vmem:[#allocation5 + $0x98] sm:$0xff]
  %v9153 = vld [vmem:[#allocation5 + $0xa0] sm:$0xff]
  %v9154 = vld [vmem:[#allocation5 + $0xa8] sm:$0xff]
  %v9155 = vld [vmem:[#allocation5 + $0xb0] sm:$0xff]
  %v9156 = vld [vmem:[#allocation5 + $0xb8] sm:$0xff]
  %v9157 = vld [vmem:[#allocation5 + $0xc0] sm:$0xff]
  %v9158 = vld [vmem:[#allocation5 + $0xc8] sm:$0xff]
  %v9159 = vld [vmem:[#allocation5 + $0xd0] sm:$0xff]
  %v9160 = vld [vmem:[#allocation5 + $0xd8] sm:$0xff]
  %v9161 = vld [vmem:[#allocation5 + $0xe0] sm:$0x11]
  %v9162 = vld [vmem:[%s5] sm:$0xf]
  %v9163 = vld [vmem:[%s5 + $0x4] sm:$0xf]
  %v9164 = vld [vmem:[%s5 + $0x8] sm:$0xf]
  %v9165 = vld [vmem:[%s5 + $0xc] sm:$0xf]
  %v9166 = vld [vmem:[%s5 + $0x10] sm:$0xf]
  %v9167 = vld [vmem:[%s5 + $0x14] sm:$0xf]
  %v9168 = vld [vmem:[%s5 + $0x18] sm:$0xf]
  %v9169 = vld [vmem:[%s5 + $0x1c] sm:$0xf]
  %v9170 = vld [vmem:[%s5 + $0x20] sm:$0xf]
  %v9171 = vld [vmem:[%s5 + $0x24] sm:$0xf]
  %v9172 = vld [vmem:[%s5 + $0x28] sm:$0xf]
  %v9173 = vld [vmem:[%s5 + $0x2c] sm:$0xf]
  %v9174 = vld [vmem:[%s5 + $0x30] sm:$0xf]
  %v9175 = vld [vmem:[%s5 + $0x34] sm:$0xf]
  %v9176 = vld [vmem:[%s5 + $0x38] sm:$0xf]
  %v9177 = vld [vmem:[%s5 + $0x3c] sm:$0xf]
  %v9178 = vld [vmem:[%s5 + $0x40] sm:$0xf]
  %v9179 = vld [vmem:[%s5 + $0x44] sm:$0xf]
  %v9180 = vld [vmem:[%s5 + $0x48] sm:$0xf]
  %v9181 = vld [vmem:[%s5 + $0x4c] sm:$0xf]
  %v9182 = vld [vmem:[%s6] sm:$0x1]
  %v9184 = vlaneseq
  %v9185 = vshrl.u32 %v9184, 7
  %v9186 = vsub.s32 0, %v9185
  %v9187 = vrot.slane %v9182, %v9186
  %v9218 = vunpack.c.l.b16 %v9133
  %v9219 = vunpack.c.h.b16 %v9133
  %v9220 = vunpack.c.l.b16 %v9134
  %v9221 = vunpack.c.h.b16 %v9134
  %v9222 = vunpack.c.l.b16 %v9135
  %v9223 = vunpack.c.h.b16 %v9135
  %v9224 = vunpack.c.l.b16 %v9136
  %v9225 = vunpack.c.h.b16 %v9136
  %v9226 = vunpack.c.l.b16 %v9137
  %v9227 = vunpack.c.h.b16 %v9137
  %v9228 = vunpack.c.l.b16 %v9138
  %v9229 = vunpack.c.h.b16 %v9138
  %v9230 = vunpack.c.l.b16 %v9139
  %v9231 = vunpack.c.h.b16 %v9139
  %v9232 = vunpack.c.l.b16 %v9140
  %v9233 = vunpack.c.h.b16 %v9140
  %v9234 = vunpack.c.l.b16 %v9141
  %v9235 = vunpack.c.h.b16 %v9141
  %v9236 = vunpack.c.l.b16 %v9142
  %v9237 = vunpack.c.h.b16 %v9142
  %v9238 = vunpack.c.l.b16 %v9143
  %v9239 = vunpack.c.h.b16 %v9143
  %v9240 = vunpack.c.l.b16 %v9144
  %v9241 = vunpack.c.h.b16 %v9144
  %v9242 = vunpack.c.l.b16 %v9145
  %v9243 = vunpack.c.h.b16 %v9145
  %v9244 = vunpack.c.l.b16 %v9146
  %v9245 = vunpack.c.h.b16 %v9146
  %v9246 = vunpack.c.l.b16 %v9147
  %v9247 = vunpack.c.h.b16 %v9147
  %v9248 = vunpack.c.l.b16 %v9148
  %v9249 = vunpack.c.h.b16 %v9148
  %v9250 = vunpack.c.l.b16 %v9149
  %v9251 = vunpack.c.h.b16 %v9149
  %v9252 = vunpack.c.l.b16 %v9150
  %v9253 = vunpack.c.h.b16 %v9150
  %v9254 = vunpack.c.l.b16 %v9151
  %v9255 = vunpack.c.h.b16 %v9151
  %v9256 = vunpack.c.l.b16 %v9152
  %v9257 = vunpack.c.h.b16 %v9152
  %v9258 = vunpack.c.l.b16 %v9153
  %v9259 = vunpack.c.h.b16 %v9153
  %v9260 = vunpack.c.l.b16 %v9154
  %v9261 = vunpack.c.h.b16 %v9154
  %v9262 = vunpack.c.l.b16 %v9155
  %v9263 = vunpack.c.h.b16 %v9155
  %v9264 = vunpack.c.l.b16 %v9156
  %v9265 = vunpack.c.h.b16 %v9156
  %v9266 = vunpack.c.l.b16 %v9157
  %v9267 = vunpack.c.h.b16 %v9157
  %v9268 = vunpack.c.l.b16 %v9158
  %v9269 = vunpack.c.h.b16 %v9158
  %v9270 = vunpack.c.l.b16 %v9159
  %v9271 = vunpack.c.h.b16 %v9159
  %v9272 = vunpack.c.l.b16 %v9160
  %v9273 = vunpack.c.h.b16 %v9160
  %v9274 = vunpack.c.l.b16 %v9161
  %v9275 = vunpack.c.h.b16 %v9161
  %v9276 = vpack.c.b16 %v9220, %v9218
  %v9277 = vpack.c.b16 %v9221, %v9219
  %v9278 = vpack.c.b16 %v9224, %v9222
  %v9279 = vpack.c.b16 %v9225, %v9223
  %v9280 = vpack.c.b16 %v9228, %v9226
  %v9281 = vpack.c.b16 %v9229, %v9227
  %v9282 = vpack.c.b16 %v9232, %v9230
  %v9283 = vpack.c.b16 %v9233, %v9231
  %v9284 = vpack.c.b16 %v9236, %v9234
  %v9285 = vpack.c.b16 %v9237, %v9235
  %v9286 = vpack.c.b16 %v9240, %v9238
  %v9287 = vpack.c.b16 %v9241, %v9239
  %v9288 = vpack.c.b16 %v9244, %v9242
  %v9289 = vpack.c.b16 %v9245, %v9243
  %v9290 = vpack.c.b16 %v9248, %v9246
  %v9291 = vpack.c.b16 %v9249, %v9247
  %v9292 = vpack.c.b16 %v9252, %v9250
  %v9293 = vpack.c.b16 %v9253, %v9251
  %v9294 = vpack.c.b16 %v9256, %v9254
  %v9295 = vpack.c.b16 %v9257, %v9255
  %v9296 = vpack.c.b16 %v9260, %v9258
  %v9297 = vpack.c.b16 %v9261, %v9259
  %v9298 = vpack.c.b16 %v9264, %v9262
  %v9299 = vpack.c.b16 %v9265, %v9263
  %v9300 = vpack.c.b16 %v9268, %v9266
  %v9301 = vpack.c.b16 %v9269, %v9267
  %v9302 = vpack.c.b16 %v9272, %v9270
  %v9303 = vpack.c.b16 %v9273, %v9271
  %v9304 = vpack.c.b16 %v9274, %v9274
  %v9305 = vpack.c.b16 %v9275, %v9275
  %v9341 = vunpack.c.l.b16 %v9162
  %v9342 = vunpack.c.l.b16 %v9163
  %v9343 = vunpack.c.l.b16 %v9164
  %v9344 = vunpack.c.l.b16 %v9165
  %v9345 = vunpack.c.l.b16 %v9166
  %v9346 = vunpack.c.l.b16 %v9167
  %v9347 = vunpack.c.l.b16 %v9168
  %v9348 = vunpack.c.l.b16 %v9169
  %v9349 = vunpack.c.l.b16 %v9170
  %v9350 = vunpack.c.l.b16 %v9171
  %v9351 = vunpack.c.l.b16 %v9172
  %v9352 = vunpack.c.l.b16 %v9173
  %v9353 = vunpack.c.l.b16 %v9174
  %v9354 = vunpack.c.l.b16 %v9175
  %v9355 = vunpack.c.l.b16 %v9176
  %v9356 = vunpack.c.l.b16 %v9177
  %v9357 = vunpack.c.l.b16 %v9178
  %v9358 = vunpack.c.l.b16 %v9179
  %v9359 = vunpack.c.l.b16 %v9180
  %v9360 = vunpack.c.l.b16 %v9181
  %v9361 = vpack.c.b16 %v9342, %v9341
  %v9362 = vpack.c.b16 %v9344, %v9343
  %v9363 = vpack.c.b16 %v9346, %v9345
  %v9364 = vpack.c.b16 %v9348, %v9347
  %v9365 = vpack.c.b16 %v9350, %v9349
  %v9366 = vpack.c.b16 %v9352, %v9351
  %v9367 = vpack.c.b16 %v9354, %v9353
  %v9368 = vpack.c.b16 %v9356, %v9355
  %v9369 = vpack.c.b16 %v9358, %v9357
  %v9370 = vpack.c.b16 %v9360, %v9359
  %vm9380 = vcmask 252928
  %v9382 = vsel %vm9380, %v9277, 0
  %v9385 = vsel %vm9380, %v9279, 0
  %v9388 = vsel %vm9380, %v9281, 0
  %v9391 = vsel %vm9380, %v9283, 0
  %v9394 = vsel %vm9380, %v9285, 0
  %v9397 = vsel %vm9380, %v9287, 0
  %v9400 = vsel %vm9380, %v9289, 0
  %v9403 = vsel %vm9380, %v9291, 0
  %v9406 = vsel %vm9380, %v9293, 0
  %v9409 = vsel %vm9380, %v9295, 0
  %v9412 = vsel %vm9380, %v9297, 0
  %v9415 = vsel %vm9380, %v9299, 0
  %v9418 = vsel %vm9380, %v9301, 0
  %v9421 = vsel %vm9380, %v9303, 0
  %v9424 = vsel %vm9380, %v9305, 0
  %vm9426 = vcmask 1047552
  %v9427 = vsel %vm3483, 4294967295, 65535
  %v9428 = vsel %vm9426, %v9427, 0
  %v9430 = vand.u32 %v9370, %v9428
  %9432 = vmatprep.subr.bf16.mxu0 0
  %9433 = vmatpush1.bf16.msra.mxu0 %v9368
  %9434 = vmatprep.subr.bf16.mxu0 0
  %9435 = vmatpush1.bf16.msra.mxu0 %v9367
  %9436 = vmatprep.subr.bf16.mxu0 0
  %9437 = vmatpush1.bf16.msra.mxu0 %v9366
  %9438 = vmatprep.subr.bf16.mxu0 0
  %9439 = vmatpush1.bf16.msra.mxu0 %v9365
  %9440 = vmatprep.subr.bf16.mxu0 0
  %9441 = vmatpush1.bf16.msra.mxu0 %v9364
  %9442 = vmatprep.subr.bf16.mxu0 0
  %9443 = vmatpush1.bf16.msra.mxu0 %v9363
  %9444 = vmatprep.subr.bf16.mxu0 0
  %9445 = vmatpush1.bf16.msra.mxu0 %v9362
  %9446 = vmatprep.subr.bf16.mxu0 0
  %9447 = vmatpush1.bf16.msra.mxu0 %v9361
  %9448 = vmatprep.subr.bf16.mxu0 0
  %9449 = vmatpush2.bf16.msra.mxu0 0
  %9450 = vmatprep.subr.bf16.mxu0 0
  %9451 = vmatpush2.bf16.msra.mxu0 0
  %9452 = vmatprep.subr.bf16.mxu0 0
  %9453 = vmatpush2.bf16.msra.mxu0 0
  %9454 = vmatprep.subr.bf16.mxu0 0
  %9455 = vmatpush2.bf16.msra.mxu0 0
  %9456 = vmatprep.subr.bf16.mxu0 0
  %9457 = vmatpush2.bf16.msra.mxu0 0
  %9458 = vmatprep.subr.bf16.mxu0 0
  %9459 = vmatpush2.bf16.msra.mxu0 0
  %9460 = vmatprep.subr.bf16.mxu0 0
  %9461 = vmatpush2.bf16.msra.mxu0 %v9430
  %9462 = vmatprep.subr.bf16.mxu0 0
  %9463 = vmatpush2.bf16.msra.mxu0 %v9369
  %9464 = vmatprep.mubr.bf16.mxu0 %v9382
  %9465 = vmatmul.mubr.bf16.gmra.mxu0 %v9276
  %v9466 = vpop.f32.mrf.mxu0
  %v9467 = vadd.f32 %v9187, %v9466
  %v9468 = vpop.f32.mrf.mxu0
  %v9469 = vpop.f32.mrf.mxu0
  %v9470 = vadd.f32 %v9187, %v9469
  %v9471 = vpop.f32.mrf.mxu0
  %9472 = vmatprep.mubr.bf16.mxu0 %v9385
  %9473 = vmatmul.mubr.bf16.gmra.mxu0 %v9278
  %v9474 = vpop.f32.mrf.mxu0
  %v9475 = vadd.f32 %v9187, %v9474
  %v9476 = vpop.f32.mrf.mxu0
  %v9477 = vpop.f32.mrf.mxu0
  %v9478 = vadd.f32 %v9187, %v9477
  %v9479 = vpop.f32.mrf.mxu0
  %9480 = vmatprep.mubr.bf16.mxu0 %v9388
  %9481 = vmatmul.mubr.bf16.gmra.mxu0 %v9280
  %v9482 = vpop.f32.mrf.mxu0
  %v9483 = vadd.f32 %v9187, %v9482
  %v9484 = vpop.f32.mrf.mxu0
  %v9485 = vpop.f32.mrf.mxu0
  %v9486 = vadd.f32 %v9187, %v9485
  %v9487 = vpop.f32.mrf.mxu0
  %9488 = vmatprep.mubr.bf16.mxu0 %v9391
  %9489 = vmatmul.mubr.bf16.gmra.mxu0 %v9282
  %v9490 = vpop.f32.mrf.mxu0
  %v9491 = vadd.f32 %v9187, %v9490
  %v9492 = vpop.f32.mrf.mxu0
  %v9493 = vpop.f32.mrf.mxu0
  %v9494 = vadd.f32 %v9187, %v9493
  %v9495 = vpop.f32.mrf.mxu0
  %9496 = vmatprep.mubr.bf16.mxu0 %v9394
  %9497 = vmatmul.mubr.bf16.gmra.mxu0 %v9284
  %v9498 = vpop.f32.mrf.mxu0
  %v9499 = vadd.f32 %v9187, %v9498
  %v9500 = vpop.f32.mrf.mxu0
  %v9501 = vpop.f32.mrf.mxu0
  %v9502 = vadd.f32 %v9187, %v9501
  %v9503 = vpop.f32.mrf.mxu0
  %9504 = vmatprep.mubr.bf16.mxu0 %v9397
  %9505 = vmatmul.mubr.bf16.gmra.mxu0 %v9286
  %v9506 = vpop.f32.mrf.mxu0
  %v9507 = vadd.f32 %v9187, %v9506
  %v9508 = vpop.f32.mrf.mxu0
  %v9509 = vpop.f32.mrf.mxu0
  %v9510 = vadd.f32 %v9187, %v9509
  %v9511 = vpop.f32.mrf.mxu0
  %9512 = vmatprep.mubr.bf16.mxu0 %v9400
  %9513 = vmatmul.mubr.bf16.gmra.mxu0 %v9288
  %v9514 = vpop.f32.mrf.mxu0
  %v9515 = vadd.f32 %v9187, %v9514
  %v9516 = vpop.f32.mrf.mxu0
  %v9517 = vpop.f32.mrf.mxu0
  %v9518 = vadd.f32 %v9187, %v9517
  %v9519 = vpop.f32.mrf.mxu0
  %9520 = vmatprep.mubr.bf16.mxu0 %v9403
  %9521 = vmatmul.mubr.bf16.gmra.mxu0 %v9290
  %v9522 = vpop.f32.mrf.mxu0
  %v9523 = vadd.f32 %v9187, %v9522
  %v9524 = vpop.f32.mrf.mxu0
  %v9525 = vpop.f32.mrf.mxu0
  %v9526 = vadd.f32 %v9187, %v9525
  %v9527 = vpop.f32.mrf.mxu0
  %9528 = vmatprep.mubr.bf16.mxu0 %v9406
  %9529 = vmatmul.mubr.bf16.gmra.mxu0 %v9292
  %v9530 = vpop.f32.mrf.mxu0
  %v9531 = vadd.f32 %v9187, %v9530
  %v9532 = vpop.f32.mrf.mxu0
  %v9533 = vpop.f32.mrf.mxu0
  %v9534 = vadd.f32 %v9187, %v9533
  %v9535 = vpop.f32.mrf.mxu0
  %9536 = vmatprep.mubr.bf16.mxu0 %v9409
  %9537 = vmatmul.mubr.bf16.gmra.mxu0 %v9294
  %v9538 = vpop.f32.mrf.mxu0
  %v9539 = vadd.f32 %v9187, %v9538
  %v9540 = vpop.f32.mrf.mxu0
  %v9541 = vpop.f32.mrf.mxu0
  %v9542 = vadd.f32 %v9187, %v9541
  %v9543 = vpop.f32.mrf.mxu0
  %9544 = vmatprep.mubr.bf16.mxu0 %v9412
  %9545 = vmatmul.mubr.bf16.gmra.mxu0 %v9296
  %v9546 = vpop.f32.mrf.mxu0
  %v9547 = vadd.f32 %v9187, %v9546
  %v9548 = vpop.f32.mrf.mxu0
  %v9549 = vpop.f32.mrf.mxu0
  %v9550 = vadd.f32 %v9187, %v9549
  %v9551 = vpop.f32.mrf.mxu0
  %9552 = vmatprep.mubr.bf16.mxu0 %v9415
  %9553 = vmatmul.mubr.bf16.gmra.mxu0 %v9298
  %v9554 = vpop.f32.mrf.mxu0
  %v9555 = vadd.f32 %v9187, %v9554
  %v9556 = vpop.f32.mrf.mxu0
  %v9557 = vpop.f32.mrf.mxu0
  %v9558 = vadd.f32 %v9187, %v9557
  %v9559 = vpop.f32.mrf.mxu0
  %9560 = vmatprep.mubr.bf16.mxu0 %v9418
  %9561 = vmatmul.mubr.bf16.gmra.mxu0 %v9300
  %v9562 = vpop.f32.mrf.mxu0
  %v9563 = vadd.f32 %v9187, %v9562
  %v9564 = vpop.f32.mrf.mxu0
  %v9565 = vpop.f32.mrf.mxu0
  %v9566 = vadd.f32 %v9187, %v9565
  %v9567 = vpop.f32.mrf.mxu0
  %9568 = vmatprep.mubr.bf16.mxu0 %v9421
  %9569 = vmatmul.mubr.bf16.gmra.mxu0 %v9302
  %v9570 = vpop.f32.mrf.mxu0
  %v9571 = vadd.f32 %v9187, %v9570
  %v9572 = vpop.f32.mrf.mxu0
  %v9573 = vpop.f32.mrf.mxu0
  %v9574 = vadd.f32 %v9187, %v9573
  %v9575 = vpop.f32.mrf.mxu0
  %9576 = vmatprep.mubr.bf16.mxu0 %v9424
  %9577 = vmatmul.mubr.bf16.gmra.mxu0 %v9304
  %v9578 = vpop.f32.mrf.mxu0
  %v9579 = vadd.f32 %v9187, %v9578
  %v9580 = vpop.f32.mrf.mxu0
  %v9581 = vpop.f32.mrf.mxu0
  %v9582 = vpop.f32.mrf.mxu0
  %9583 = vdwg.mxu0
  %9584 = vst [vmem:[#allocation6] sm:$0xff] %v9467
  %9585 = vst [vmem:[#allocation6 + $0x8] sm:$0xff] %v9470
  %9586 = vst [vmem:[#allocation6 + $0x10] sm:$0xff] %v9475
  %9587 = vst [vmem:[#allocation6 + $0x18] sm:$0xff] %v9478
  %9588 = vst [vmem:[#allocation6 + $0x20] sm:$0xff] %v9483
  %9589 = vst [vmem:[#allocation6 + $0x28] sm:$0xff] %v9486
  %9590 = vst [vmem:[#allocation6 + $0x30] sm:$0xff] %v9491
  %9591 = vst [vmem:[#allocation6 + $0x38] sm:$0xff] %v9494
  %9592 = vst [vmem:[#allocation6 + $0x40] sm:$0xff] %v9499
  %9593 = vst [vmem:[#allocation6 + $0x48] sm:$0xff] %v9502
  %9594 = vst [vmem:[#allocation6 + $0x50] sm:$0xff] %v9507
  %9595 = vst [vmem:[#allocation6 + $0x58] sm:$0xff] %v9510
  %9596 = vst [vmem:[#allocation6 + $0x60] sm:$0xff] %v9515
  %9597 = vst [vmem:[#allocation6 + $0x68] sm:$0xff] %v9518
  %9598 = vst [vmem:[#allocation6 + $0x70] sm:$0xff] %v9523
  %9599 = vst [vmem:[#allocation6 + $0x78] sm:$0xff] %v9526
  %9600 = vst [vmem:[#allocation6 + $0x80] sm:$0xff] %v9531
  %9601 = vst [vmem:[#allocation6 + $0x88] sm:$0xff] %v9534
  %9602 = vst [vmem:[#allocation6 + $0x90] sm:$0xff] %v9539
  %9603 = vst [vmem:[#allocation6 + $0x98] sm:$0xff] %v9542
  %9604 = vst [vmem:[#allocation6 + $0xa0] sm:$0xff] %v9547
  %9605 = vst [vmem:[#allocation6 + $0xa8] sm:$0xff] %v9550
  %9606 = vst [vmem:[#allocation6 + $0xb0] sm:$0xff] %v9555
  %9607 = vst [vmem:[#allocation6 + $0xb8] sm:$0xff] %v9558
  %9608 = vst [vmem:[#allocation6 + $0xc0] sm:$0xff] %v9563
  %9609 = vst [vmem:[#allocation6 + $0xc8] sm:$0xff] %v9566
  %9610 = vst [vmem:[#allocation6 + $0xd0] sm:$0xff] %v9571
  %9611 = vst [vmem:[#allocation6 + $0xd8] sm:$0xff] %v9574
  %9612 = vst [vmem:[#allocation6 + $0xe0] sm:$0x1] %v9579
  %v9613 = vld [vmem:[#allocation5] sm:$0xcc]
  %v9614 = vld [vmem:[#allocation5 + $0x8] sm:$0xff]
  %v9615 = vld [vmem:[#allocation5 + $0x10] sm:$0xff]
  %v9616 = vld [vmem:[#allocation5 + $0x18] sm:$0xff]
  %v9617 = vld [vmem:[#allocation5 + $0x20] sm:$0xff]
  %v9618 = vld [vmem:[#allocation5 + $0x28] sm:$0xff]
  %v9619 = vld [vmem:[#allocation5 + $0x30] sm:$0xff]
  %v9620 = vld [vmem:[#allocation5 + $0x38] sm:$0xff]
  %v9621 = vld [vmem:[#allocation5 + $0x40] sm:$0xff]
  %v9622 = vld [vmem:[#allocation5 + $0x48] sm:$0xff]
  %v9623 = vld [vmem:[#allocation5 + $0x50] sm:$0xff]
  %v9624 = vld [vmem:[#allocation5 + $0x58] sm:$0xff]
  %v9625 = vld [vmem:[#allocation5 + $0x60] sm:$0xff]
  %v9626 = vld [vmem:[#allocation5 + $0x68] sm:$0xff]
  %v9627 = vld [vmem:[#allocation5 + $0x70] sm:$0xff]
  %v9628 = vld [vmem:[#allocation5 + $0x78] sm:$0xff]
  %v9629 = vld [vmem:[#allocation5 + $0x80] sm:$0xff]
  %v9630 = vld [vmem:[#allocation5 + $0x88] sm:$0xff]
  %v9631 = vld [vmem:[#allocation5 + $0x90] sm:$0xff]
  %v9632 = vld [vmem:[#allocation5 + $0x98] sm:$0xff]
  %v9633 = vld [vmem:[#allocation5 + $0xa0] sm:$0xff]
  %v9634 = vld [vmem:[#allocation5 + $0xa8] sm:$0xff]
  %v9635 = vld [vmem:[#allocation5 + $0xb0] sm:$0xff]
  %v9636 = vld [vmem:[#allocation5 + $0xb8] sm:$0xff]
  %v9637 = vld [vmem:[#allocation5 + $0xc0] sm:$0xff]
  %v9638 = vld [vmem:[#allocation5 + $0xc8] sm:$0xff]
  %v9639 = vld [vmem:[#allocation5 + $0xd0] sm:$0xff]
  %v9640 = vld [vmem:[#allocation5 + $0xd8] sm:$0xff]
  %v9641 = vld [vmem:[#allocation5 + $0xe0] sm:$0x77]
  %s9642 = scalar_lea.vmem %s5, 80
  %v9643 = vld [vmem:[%s9642] sm:$0xf]
  %v9644 = vld [vmem:[%s9642 + $0x4] sm:$0xf]
  %v9645 = vld [vmem:[%s9642 + $0x8] sm:$0xf]
  %v9646 = vld [vmem:[%s9642 + $0xc] sm:$0xf]
  %v9647 = vld [vmem:[%s9642 + $0x10] sm:$0xf]
  %v9648 = vld [vmem:[%s9642 + $0x14] sm:$0xf]
  %v9649 = vld [vmem:[%s9642 + $0x18] sm:$0xf]
  %v9650 = vld [vmem:[%s9642 + $0x1c] sm:$0xf]
  %v9651 = vld [vmem:[%s9642 + $0x20] sm:$0xf]
  %v9652 = vld [vmem:[%s9642 + $0x24] sm:$0xf]
  %v9653 = vld [vmem:[%s9642 + $0x28] sm:$0xf]
  %v9654 = vld [vmem:[%s9642 + $0x2c] sm:$0xf]
  %v9655 = vld [vmem:[%s9642 + $0x30] sm:$0xf]
  %v9656 = vld [vmem:[%s9642 + $0x34] sm:$0xf]
  %v9657 = vld [vmem:[%s9642 + $0x38] sm:$0xf]
  %v9658 = vld [vmem:[%s9642 + $0x3c] sm:$0xf]
  %v9659 = vld [vmem:[%s9642 + $0x40] sm:$0xf]
  %v9660 = vld [vmem:[%s9642 + $0x44] sm:$0xf]
  %v9661 = vld [vmem:[%s9642 + $0x48] sm:$0xf]
  %v9662 = vld [vmem:[%s9642 + $0x4c] sm:$0xf]
  %v9692 = vunpack.c.l.b16 %v9613
  %v9693 = vunpack.c.h.b16 %v9613
  %v9694 = vunpack.c.l.b16 %v9614
  %v9695 = vunpack.c.h.b16 %v9614
  %v9696 = vunpack.c.l.b16 %v9615
  %v9697 = vunpack.c.h.b16 %v9615
  %v9698 = vunpack.c.l.b16 %v9616
  %v9699 = vunpack.c.h.b16 %v9616
  %v9700 = vunpack.c.l.b16 %v9617
  %v9701 = vunpack.c.h.b16 %v9617
  %v9702 = vunpack.c.l.b16 %v9618
  %v9703 = vunpack.c.h.b16 %v9618
  %v9704 = vunpack.c.l.b16 %v9619
  %v9705 = vunpack.c.h.b16 %v9619
  %v9706 = vunpack.c.l.b16 %v9620
  %v9707 = vunpack.c.h.b16 %v9620
  %v9708 = vunpack.c.l.b16 %v9621
  %v9709 = vunpack.c.h.b16 %v9621
  %v9710 = vunpack.c.l.b16 %v9622
  %v9711 = vunpack.c.h.b16 %v9622
  %v9712 = vunpack.c.l.b16 %v9623
  %v9713 = vunpack.c.h.b16 %v9623
  %v9714 = vunpack.c.l.b16 %v9624
  %v9715 = vunpack.c.h.b16 %v9624
  %v9716 = vunpack.c.l.b16 %v9625
  %v9717 = vunpack.c.h.b16 %v9625
  %v9718 = vunpack.c.l.b16 %v9626
  %v9719 = vunpack.c.h.b16 %v9626
  %v9720 = vunpack.c.l.b16 %v9627
  %v9721 = vunpack.c.h.b16 %v9627
  %v9722 = vunpack.c.l.b16 %v9628
  %v9723 = vunpack.c.h.b16 %v9628
  %v9724 = vunpack.c.l.b16 %v9629
  %v9725 = vunpack.c.h.b16 %v9629
  %v9726 = vunpack.c.l.b16 %v9630
  %v9727 = vunpack.c.h.b16 %v9630
  %v9728 = vunpack.c.l.b16 %v9631
  %v9729 = vunpack.c.h.b16 %v9631
  %v9730 = vunpack.c.l.b16 %v9632
  %v9731 = vunpack.c.h.b16 %v9632
  %v9732 = vunpack.c.l.b16 %v9633
  %v9733 = vunpack.c.h.b16 %v9633
  %v9734 = vunpack.c.l.b16 %v9634
  %v9735 = vunpack.c.h.b16 %v9634
  %v9736 = vunpack.c.l.b16 %v9635
  %v9737 = vunpack.c.h.b16 %v9635
  %v9738 = vunpack.c.l.b16 %v9636
  %v9739 = vunpack.c.h.b16 %v9636
  %v9740 = vunpack.c.l.b16 %v9637
  %v9741 = vunpack.c.h.b16 %v9637
  %v9742 = vunpack.c.l.b16 %v9638
  %v9743 = vunpack.c.h.b16 %v9638
  %v9744 = vunpack.c.l.b16 %v9639
  %v9745 = vunpack.c.h.b16 %v9639
  %v9746 = vunpack.c.l.b16 %v9640
  %v9747 = vunpack.c.h.b16 %v9640
  %v9748 = vunpack.c.l.b16 %v9641
  %v9749 = vunpack.c.h.b16 %v9641
  %v9750 = vpack.c.b16 %v9694, %v9692
  %v9751 = vpack.c.b16 %v9695, %v9693
  %v9752 = vpack.c.b16 %v9698, %v9696
  %v9753 = vpack.c.b16 %v9699, %v9697
  %v9754 = vpack.c.b16 %v9702, %v9700
  %v9755 = vpack.c.b16 %v9703, %v9701
  %v9756 = vpack.c.b16 %v9706, %v9704
  %v9757 = vpack.c.b16 %v9707, %v9705
  %v9758 = vpack.c.b16 %v9710, %v9708
  %v9759 = vpack.c.b16 %v9711, %v9709
  %v9760 = vpack.c.b16 %v9714, %v9712
  %v9761 = vpack.c.b16 %v9715, %v9713
  %v9762 = vpack.c.b16 %v9718, %v9716
  %v9763 = vpack.c.b16 %v9719, %v9717
  %v9764 = vpack.c.b16 %v9722, %v9720
  %v9765 = vpack.c.b16 %v9723, %v9721
  %v9766 = vpack.c.b16 %v9726, %v9724
  %v9767 = vpack.c.b16 %v9727, %v9725
  %v9768 = vpack.c.b16 %v9730, %v9728
  %v9769 = vpack.c.b16 %v9731, %v9729
  %v9770 = vpack.c.b16 %v9734, %v9732
  %v9771 = vpack.c.b16 %v9735, %v9733
  %v9772 = vpack.c.b16 %v9738, %v9736
  %v9773 = vpack.c.b16 %v9739, %v9737
  %v9774 = vpack.c.b16 %v9742, %v9740
  %v9775 = vpack.c.b16 %v9743, %v9741
  %v9776 = vpack.c.b16 %v9746, %v9744
  %v9777 = vpack.c.b16 %v9747, %v9745
  %v9778 = vpack.c.b16 %v9748, %v9748
  %v9779 = vpack.c.b16 %v9749, %v9749
  %v9780 = vrot.slane %v9750, 2
  %v9781 = vrot.slane %v9752, 2
  %v9782 = vsel %vm2826, %v9780, %v9781
  %v9783 = vrot.slane %v9751, 2
  %v9784 = vrot.slane %v9753, 2
  %v9785 = vsel %vm2826, %v9783, %v9784
  %v9786 = vrot.slane %v9754, 2
  %v9787 = vsel %vm2826, %v9781, %v9786
  %v9788 = vrot.slane %v9755, 2
  %v9789 = vsel %vm2826, %v9784, %v9788
  %v9790 = vrot.slane %v9756, 2
  %v9791 = vsel %vm2826, %v9786, %v9790
  %v9792 = vrot.slane %v9757, 2
  %v9793 = vsel %vm2826, %v9788, %v9792
  %v9794 = vrot.slane %v9758, 2
  %v9795 = vsel %vm2826, %v9790, %v9794
  %v9796 = vrot.slane %v9759, 2
  %v9797 = vsel %vm2826, %v9792, %v9796
  %v9798 = vrot.slane %v9760, 2
  %v9799 = vsel %vm2826, %v9794, %v9798
  %v9800 = vrot.slane %v9761, 2
  %v9801 = vsel %vm2826, %v9796, %v9800
  %v9802 = vrot.slane %v9762, 2
  %v9803 = vsel %vm2826, %v9798, %v9802
  %v9804 = vrot.slane %v9763, 2
  %v9805 = vsel %vm2826, %v9800, %v9804
  %v9806 = vrot.slane %v9764, 2
  %v9807 = vsel %vm2826, %v9802, %v9806
  %v9808 = vrot.slane %v9765, 2
  %v9809 = vsel %vm2826, %v9804, %v9808
  %v9810 = vrot.slane %v9766, 2
  %v9811 = vsel %vm2826, %v9806, %v9810
  %v9812 = vrot.slane %v9767, 2
  %v9813 = vsel %vm2826, %v9808, %v9812
  %v9814 = vrot.slane %v9768, 2
  %v9815 = vsel %vm2826, %v9810, %v9814
  %v9816 = vrot.slane %v9769, 2
  %v9817 = vsel %vm2826, %v9812, %v9816
  %v9818 = vrot.slane %v9770, 2
  %v9819 = vsel %vm2826, %v9814, %v9818
  %v9820 = vrot.slane %v9771, 2
  %v9821 = vsel %vm2826, %v9816, %v9820
  %v9822 = vrot.slane %v9772, 2
  %v9823 = vsel %vm2826, %v9818, %v9822
  %v9824 = vrot.slane %v9773, 2
  %v9825 = vsel %vm2826, %v9820, %v9824
  %v9826 = vrot.slane %v9774, 2
  %v9827 = vsel %vm2826, %v9822, %v9826
  %v9828 = vrot.slane %v9775, 2
  %v9829 = vsel %vm2826, %v9824, %v9828
  %v9830 = vrot.slane %v9776, 2
  %v9831 = vsel %vm2826, %v9826, %v9830
  %v9832 = vrot.slane %v9777, 2
  %v9833 = vsel %vm2826, %v9828, %v9832
  %v9834 = vrot.slane %v9778, 2
  %v9835 = vsel %vm2826, %v9830, %v9834
  %v9836 = vrot.slane %v9779, 2
  %v9837 = vsel %vm2826, %v9832, %v9836
  %v9873 = vunpack.c.l.b16 %v9643
  %v9874 = vunpack.c.l.b16 %v9644
  %v9875 = vunpack.c.l.b16 %v9645
  %v9876 = vunpack.c.l.b16 %v9646
  %v9877 = vunpack.c.l.b16 %v9647
  %v9878 = vunpack.c.l.b16 %v9648
  %v9879 = vunpack.c.l.b16 %v9649
  %v9880 = vunpack.c.l.b16 %v9650
  %v9881 = vunpack.c.l.b16 %v9651
  %v9882 = vunpack.c.l.b16 %v9652
  %v9883 = vunpack.c.l.b16 %v9653
  %v9884 = vunpack.c.l.b16 %v9654
  %v9885 = vunpack.c.l.b16 %v9655
  %v9886 = vunpack.c.l.b16 %v9656
  %v9887 = vunpack.c.l.b16 %v9657
  %v9888 = vunpack.c.l.b16 %v9658
  %v9889 = vunpack.c.l.b16 %v9659
  %v9890 = vunpack.c.l.b16 %v9660
  %v9891 = vunpack.c.l.b16 %v9661
  %v9892 = vunpack.c.l.b16 %v9662
  %v9893 = vpack.c.b16 %v9874, %v9873
  %v9894 = vpack.c.b16 %v9876, %v9875
  %v9895 = vpack.c.b16 %v9878, %v9877
  %v9896 = vpack.c.b16 %v9880, %v9879
  %v9897 = vpack.c.b16 %v9882, %v9881
  %v9898 = vpack.c.b16 %v9884, %v9883
  %v9899 = vpack.c.b16 %v9886, %v9885
  %v9900 = vpack.c.b16 %v9888, %v9887
  %v9901 = vpack.c.b16 %v9890, %v9889
  %v9902 = vpack.c.b16 %v9892, %v9891
  %v9913 = vsel %vm9380, %v9785, 0
  %v9916 = vsel %vm9380, %v9789, 0
  %v9919 = vsel %vm9380, %v9793, 0
  %v9922 = vsel %vm9380, %v9797, 0
  %v9925 = vsel %vm9380, %v9801, 0
  %v9928 = vsel %vm9380, %v9805, 0
  %v9931 = vsel %vm9380, %v9809, 0
  %v9934 = vsel %vm9380, %v9813, 0
  %v9937 = vsel %vm9380, %v9817, 0
  %v9940 = vsel %vm9380, %v9821, 0
  %v9943 = vsel %vm9380, %v9825, 0
  %v9946 = vsel %vm9380, %v9829, 0
  %v9949 = vsel %vm9380, %v9833, 0
  %v9952 = vsel %vm9380, %v9837, 0
  %v9955 = vsel %vm9380, %v9836, 0
  %v9958 = vand.u32 %v9902, %v9428
  %9960 = vmatprep.subr.bf16.mxu0 0
  %9961 = vmatpush1.bf16.msra.mxu0 %v9900
  %9962 = vmatprep.subr.bf16.mxu0 0
  %9963 = vmatpush1.bf16.msra.mxu0 %v9899
  %9964 = vmatprep.subr.bf16.mxu0 0
  %9965 = vmatpush1.bf16.msra.mxu0 %v9898
  %9966 = vmatprep.subr.bf16.mxu0 0
  %9967 = vmatpush1.bf16.msra.mxu0 %v9897
  %9968 = vmatprep.subr.bf16.mxu0 0
  %9969 = vmatpush1.bf16.msra.mxu0 %v9896
  %9970 = vmatprep.subr.bf16.mxu0 0
  %9971 = vmatpush1.bf16.msra.mxu0 %v9895
  %9972 = vmatprep.subr.bf16.mxu0 0
  %9973 = vmatpush1.bf16.msra.mxu0 %v9894
  %9974 = vmatprep.subr.bf16.mxu0 0
  %9975 = vmatpush1.bf16.msra.mxu0 %v9893
  %9976 = vmatprep.subr.bf16.mxu0 0
  %9977 = vmatpush2.bf16.msra.mxu0 0
  %9978 = vmatprep.subr.bf16.mxu0 0
  %9979 = vmatpush2.bf16.msra.mxu0 0
  %9980 = vmatprep.subr.bf16.mxu0 0
  %9981 = vmatpush2.bf16.msra.mxu0 0
  %9982 = vmatprep.subr.bf16.mxu0 0
  %9983 = vmatpush2.bf16.msra.mxu0 0
  %9984 = vmatprep.subr.bf16.mxu0 0
  %9985 = vmatpush2.bf16.msra.mxu0 0
  %9986 = vmatprep.subr.bf16.mxu0 0
  %9987 = vmatpush2.bf16.msra.mxu0 0
  %9988 = vmatprep.subr.bf16.mxu0 0
  %9989 = vmatpush2.bf16.msra.mxu0 %v9958
  %9990 = vmatprep.subr.bf16.mxu0 0
  %9991 = vmatpush2.bf16.msra.mxu0 %v9901
  %9992 = vmatprep.mubr.bf16.mxu0 %v9913
  %9993 = vmatmul.mubr.bf16.gmra.mxu0 %v9782
  %v9994 = vpop.f32.mrf.mxu0
  %v9995 = vadd.f32 0.0, %v9994
  %v9996 = vpop.f32.mrf.mxu0
  %v9997 = vpop.f32.mrf.mxu0
  %v9998 = vadd.f32 0.0, %v9997
  %v9999 = vpop.f32.mrf.mxu0
  %10000 = vmatprep.mubr.bf16.mxu0 %v9916
  %10001 = vmatmul.mubr.bf16.gmra.mxu0 %v9787
  %v10002 = vpop.f32.mrf.mxu0
  %v10003 = vadd.f32 0.0, %v10002
  %v10004 = vpop.f32.mrf.mxu0
  %v10005 = vpop.f32.mrf.mxu0
  %v10006 = vadd.f32 0.0, %v10005
  %v10007 = vpop.f32.mrf.mxu0
  %10008 = vmatprep.mubr.bf16.mxu0 %v9919
  %10009 = vmatmul.mubr.bf16.gmra.mxu0 %v9791
  %v10010 = vpop.f32.mrf.mxu0
  %v10011 = vadd.f32 0.0, %v10010
  %v10012 = vpop.f32.mrf.mxu0
  %v10013 = vpop.f32.mrf.mxu0
  %v10014 = vadd.f32 0.0, %v10013
  %v10015 = vpop.f32.mrf.mxu0
  %10016 = vmatprep.mubr.bf16.mxu0 %v9922
  %10017 = vmatmul.mubr.bf16.gmra.mxu0 %v9795
  %v10018 = vpop.f32.mrf.mxu0
  %v10019 = vadd.f32 0.0, %v10018
  %v10020 = vpop.f32.mrf.mxu0
  %v10021 = vpop.f32.mrf.mxu0
  %v10022 = vadd.f32 0.0, %v10021
  %v10023 = vpop.f32.mrf.mxu0
  %10024 = vmatprep.mubr.bf16.mxu0 %v9925
  %10025 = vmatmul.mubr.bf16.gmra.mxu0 %v9799
  %v10026 = vpop.f32.mrf.mxu0
  %v10027 = vadd.f32 0.0, %v10026
  %v10028 = vpop.f32.mrf.mxu0
  %v10029 = vpop.f32.mrf.mxu0
  %v10030 = vadd.f32 0.0, %v10029
  %v10031 = vpop.f32.mrf.mxu0
  %10032 = vmatprep.mubr.bf16.mxu0 %v9928
  %10033 = vmatmul.mubr.bf16.gmra.mxu0 %v9803
  %v10034 = vpop.f32.mrf.mxu0
  %v10035 = vadd.f32 0.0, %v10034
  %v10036 = vpop.f32.mrf.mxu0
  %v10037 = vpop.f32.mrf.mxu0
  %v10038 = vadd.f32 0.0, %v10037
  %v10039 = vpop.f32.mrf.mxu0
  %10040 = vmatprep.mubr.bf16.mxu0 %v9931
  %10041 = vmatmul.mubr.bf16.gmra.mxu0 %v9807
  %v10042 = vpop.f32.mrf.mxu0
  %v10043 = vadd.f32 0.0, %v10042
  %v10044 = vpop.f32.mrf.mxu0
  %v10045 = vpop.f32.mrf.mxu0
  %v10046 = vadd.f32 0.0, %v10045
  %v10047 = vpop.f32.mrf.mxu0
  %10048 = vmatprep.mubr.bf16.mxu0 %v9934
  %10049 = vmatmul.mubr.bf16.gmra.mxu0 %v9811
  %v10050 = vpop.f32.mrf.mxu0
  %v10051 = vadd.f32 0.0, %v10050
  %v10052 = vpop.f32.mrf.mxu0
  %v10053 = vpop.f32.mrf.mxu0
  %v10054 = vadd.f32 0.0, %v10053
  %v10055 = vpop.f32.mrf.mxu0
  %10056 = vmatprep.mubr.bf16.mxu0 %v9937
  %10057 = vmatmul.mubr.bf16.gmra.mxu0 %v9815
  %v10058 = vpop.f32.mrf.mxu0
  %v10059 = vadd.f32 0.0, %v10058
  %v10060 = vpop.f32.mrf.mxu0
  %v10061 = vpop.f32.mrf.mxu0
  %v10062 = vadd.f32 0.0, %v10061
  %v10063 = vpop.f32.mrf.mxu0
  %10064 = vmatprep.mubr.bf16.mxu0 %v9940
  %10065 = vmatmul.mubr.bf16.gmra.mxu0 %v9819
  %v10066 = vpop.f32.mrf.mxu0
  %v10067 = vadd.f32 0.0, %v10066
  %v10068 = vpop.f32.mrf.mxu0
  %v10069 = vpop.f32.mrf.mxu0
  %v10070 = vadd.f32 0.0, %v10069
  %v10071 = vpop.f32.mrf.mxu0
  %10072 = vmatprep.mubr.bf16.mxu0 %v9943
  %10073 = vmatmul.mubr.bf16.gmra.mxu0 %v9823
  %v10074 = vpop.f32.mrf.mxu0
  %v10075 = vadd.f32 0.0, %v10074
  %v10076 = vpop.f32.mrf.mxu0
  %v10077 = vpop.f32.mrf.mxu0
  %v10078 = vadd.f32 0.0, %v10077
  %v10079 = vpop.f32.mrf.mxu0
  %10080 = vmatprep.mubr.bf16.mxu0 %v9946
  %10081 = vmatmul.mubr.bf16.gmra.mxu0 %v9827
  %v10082 = vpop.f32.mrf.mxu0
  %v10083 = vadd.f32 0.0, %v10082
  %v10084 = vpop.f32.mrf.mxu0
  %v10085 = vpop.f32.mrf.mxu0
  %v10086 = vadd.f32 0.0, %v10085
  %v10087 = vpop.f32.mrf.mxu0
  %10088 = vmatprep.mubr.bf16.mxu0 %v9949
  %10089 = vmatmul.mubr.bf16.gmra.mxu0 %v9831
  %v10090 = vpop.f32.mrf.mxu0
  %v10091 = vadd.f32 0.0, %v10090
  %v10092 = vpop.f32.mrf.mxu0
  %v10093 = vpop.f32.mrf.mxu0
  %v10094 = vadd.f32 0.0, %v10093
  %v10095 = vpop.f32.mrf.mxu0
  %10096 = vmatprep.mubr.bf16.mxu0 %v9952
  %10097 = vmatmul.mubr.bf16.gmra.mxu0 %v9835
  %v10098 = vpop.f32.mrf.mxu0
  %v10099 = vadd.f32 0.0, %v10098
  %v10100 = vpop.f32.mrf.mxu0
  %v10101 = vpop.f32.mrf.mxu0
  %v10102 = vadd.f32 0.0, %v10101
  %v10103 = vpop.f32.mrf.mxu0
  %10104 = vmatprep.mubr.bf16.mxu0 %v9955
  %10105 = vmatmul.mubr.bf16.gmra.mxu0 %v9834
  %v10106 = vpop.f32.mrf.mxu0
  %v10107 = vadd.f32 0.0, %v10106
  %v10108 = vpop.f32.mrf.mxu0
  %v10109 = vpop.f32.mrf.mxu0
  %v10110 = vpop.f32.mrf.mxu0
  %10111 = vdwg.mxu0
  %v10112 = vld [vmem:[#allocation6] sm:$0xff]
  %v10113 = vld [vmem:[#allocation6 + $0x8] sm:$0xff]
  %v10114 = vld [vmem:[#allocation6 + $0x10] sm:$0xff]
  %v10115 = vld [vmem:[#allocation6 + $0x18] sm:$0xff]
  %v10116 = vld [vmem:[#allocation6 + $0x20] sm:$0xff]
  %v10117 = vld [vmem:[#allocation6 + $0x28] sm:$0xff]
  %v10118 = vld [vmem:[#allocation6 + $0x30] sm:$0xff]
  %v10119 = vld [vmem:[#allocation6 + $0x38] sm:$0xff]
  %v10120 = vld [vmem:[#allocation6 + $0x40] sm:$0xff]
  %v10121 = vld [vmem:[#allocation6 + $0x48] sm:$0xff]
  %v10122 = vld [vmem:[#allocation6 + $0x50] sm:$0xff]
  %v10123 = vld [vmem:[#allocation6 + $0x58] sm:$0xff]
  %v10124 = vld [vmem:[#allocation6 + $0x60] sm:$0xff]
  %v10125 = vld [vmem:[#allocation6 + $0x68] sm:$0xff]
  %v10126 = vld [vmem:[#allocation6 + $0x70] sm:$0xff]
  %v10127 = vld [vmem:[#allocation6 + $0x78] sm:$0xff]
  %v10128 = vld [vmem:[#allocation6 + $0x80] sm:$0xff]
  %v10129 = vld [vmem:[#allocation6 + $0x88] sm:$0xff]
  %v10130 = vld [vmem:[#allocation6 + $0x90] sm:$0xff]
  %v10131 = vld [vmem:[#allocation6 + $0x98] sm:$0xff]
  %v10132 = vld [vmem:[#allocation6 + $0xa0] sm:$0xff]
  %v10133 = vld [vmem:[#allocation6 + $0xa8] sm:$0xff]
  %v10134 = vld [vmem:[#allocation6 + $0xb0] sm:$0xff]
  %v10135 = vld [vmem:[#allocation6 + $0xb8] sm:$0xff]
  %v10136 = vld [vmem:[#allocation6 + $0xc0] sm:$0xff]
  %v10137 = vld [vmem:[#allocation6 + $0xc8] sm:$0xff]
  %v10138 = vld [vmem:[#allocation6 + $0xd0] sm:$0xff]
  %v10139 = vld [vmem:[#allocation6 + $0xd8] sm:$0xff]
  %v10140 = vld [vmem:[#allocation6 + $0xe0] sm:$0x1]
  %v10141 = vadd.f32 %v10112, %v9995
  %v10142 = vadd.f32 %v10113, %v9998
  %v10143 = vadd.f32 %v10114, %v10003
  %v10144 = vadd.f32 %v10115, %v10006
  %v10145 = vadd.f32 %v10116, %v10011
  %v10146 = vadd.f32 %v10117, %v10014
  %v10147 = vadd.f32 %v10118, %v10019
  %v10148 = vadd.f32 %v10119, %v10022
  %v10149 = vadd.f32 %v10120, %v10027
  %v10150 = vadd.f32 %v10121, %v10030
  %v10151 = vadd.f32 %v10122, %v10035
  %v10152 = vadd.f32 %v10123, %v10038
  %v10153 = vadd.f32 %v10124, %v10043
  %v10154 = vadd.f32 %v10125, %v10046
  %v10155 = vadd.f32 %v10126, %v10051
  %v10156 = vadd.f32 %v10127, %v10054
  %v10157 = vadd.f32 %v10128, %v10059
  %v10158 = vadd.f32 %v10129, %v10062
  %v10159 = vadd.f32 %v10130, %v10067
  %v10160 = vadd.f32 %v10131, %v10070
  %v10161 = vadd.f32 %v10132, %v10075
  %v10162 = vadd.f32 %v10133, %v10078
  %v10163 = vadd.f32 %v10134, %v10083
  %v10164 = vadd.f32 %v10135, %v10086
  %v10165 = vadd.f32 %v10136, %v10091
  %v10166 = vadd.f32 %v10137, %v10094
  %v10167 = vadd.f32 %v10138, %v10099
  %v10168 = vadd.f32 %v10139, %v10102
  %v10169 = vadd.f32 %v10140, %v10107
  %10170 = vst [vmem:[#allocation6] sm:$0xff] %v10141
  %10171 = vst [vmem:[#allocation6 + $0x8] sm:$0xff] %v10142
  %10172 = vst [vmem:[#allocation6 + $0x10] sm:$0xff] %v10143
  %10173 = vst [vmem:[#allocation6 + $0x18] sm:$0xff] %v10144
  %10174 = vst [vmem:[#allocation6 + $0x20] sm:$0xff] %v10145
  %10175 = vst [vmem:[#allocation6 + $0x28] sm:$0xff] %v10146
  %10176 = vst [vmem:[#allocation6 + $0x30] sm:$0xff] %v10147
  %10177 = vst [vmem:[#allocation6 + $0x38] sm:$0xff] %v10148
  %10178 = vst [vmem:[#allocation6 + $0x40] sm:$0xff] %v10149
  %10179 = vst [vmem:[#allocation6 + $0x48] sm:$0xff] %v10150
  %10180 = vst [vmem:[#allocation6 + $0x50] sm:$0xff] %v10151
  %10181 = vst [vmem:[#allocation6 + $0x58] sm:$0xff] %v10152
  %10182 = vst [vmem:[#allocation6 + $0x60] sm:$0xff] %v10153
  %10183 = vst [vmem:[#allocation6 + $0x68] sm:$0xff] %v10154
  %10184 = vst [vmem:[#allocation6 + $0x70] sm:$0xff] %v10155
  %10185 = vst [vmem:[#allocation6 + $0x78] sm:$0xff] %v10156
  %10186 = vst [vmem:[#allocation6 + $0x80] sm:$0xff] %v10157
  %10187 = vst [vmem:[#allocation6 + $0x88] sm:$0xff] %v10158
  %10188 = vst [vmem:[#allocation6 + $0x90] sm:$0xff] %v10159
  %10189 = vst [vmem:[#allocation6 + $0x98] sm:$0xff] %v10160
  %10190 = vst [vmem:[#allocation6 + $0xa0] sm:$0xff] %v10161
  %10191 = vst [vmem:[#allocation6 + $0xa8] sm:$0xff] %v10162
  %10192 = vst [vmem:[#allocation6 + $0xb0] sm:$0xff] %v10163
  %10193 = vst [vmem:[#allocation6 + $0xb8] sm:$0xff] %v10164
  %10194 = vst [vmem:[#allocation6 + $0xc0] sm:$0xff] %v10165
  %10195 = vst [vmem:[#allocation6 + $0xc8] sm:$0xff] %v10166
  %10196 = vst [vmem:[#allocation6 + $0xd0] sm:$0xff] %v10167
  %10197 = vst [vmem:[#allocation6 + $0xd8] sm:$0xff] %v10168
  %10198 = vst [vmem:[#allocation6 + $0xe0] sm:$0x1] %v10169
  %v10199 = vld [vmem:[#allocation5 + $0x8] sm:$0xff]
  %v10200 = vld [vmem:[#allocation5 + $0x10] sm:$0xff]
  %v10201 = vld [vmem:[#allocation5 + $0x18] sm:$0xff]
  %v10202 = vld [vmem:[#allocation5 + $0x20] sm:$0xff]
  %v10203 = vld [vmem:[#allocation5 + $0x28] sm:$0xff]
  %v10204 = vld [vmem:[#allocation5 + $0x30] sm:$0xff]
  %v10205 = vld [vmem:[#allocation5 + $0x38] sm:$0xff]
  %v10206 = vld [vmem:[#allocation5 + $0x40] sm:$0xff]
  %v10207 = vld [vmem:[#allocation5 + $0x48] sm:$0xff]
  %v10208 = vld [vmem:[#allocation5 + $0x50] sm:$0xff]
  %v10209 = vld [vmem:[#allocation5 + $0x58] sm:$0xff]
  %v10210 = vld [vmem:[#allocation5 + $0x60] sm:$0xff]
  %v10211 = vld [vmem:[#allocation5 + $0x68] sm:$0xff]
  %v10212 = vld [vmem:[#allocation5 + $0x70] sm:$0xff]
  %v10213 = vld [vmem:[#allocation5 + $0x78] sm:$0xff]
  %v10214 = vld [vmem:[#allocation5 + $0x80] sm:$0xff]
  %v10215 = vld [vmem:[#allocation5 + $0x88] sm:$0xff]
  %v10216 = vld [vmem:[#allocation5 + $0x90] sm:$0xff]
  %v10217 = vld [vmem:[#allocation5 + $0x98] sm:$0xff]
  %v10218 = vld [vmem:[#allocation5 + $0xa0] sm:$0xff]
  %v10219 = vld [vmem:[#allocation5 + $0xa8] sm:$0xff]
  %v10220 = vld [vmem:[#allocation5 + $0xb0] sm:$0xff]
  %v10221 = vld [vmem:[#allocation5 + $0xb8] sm:$0xff]
  %v10222 = vld [vmem:[#allocation5 + $0xc0] sm:$0xff]
  %v10223 = vld [vmem:[#allocation5 + $0xc8] sm:$0xff]
  %v10224 = vld [vmem:[#allocation5 + $0xd0] sm:$0xff]
  %v10225 = vld [vmem:[#allocation5 + $0xd8] sm:$0xff]
  %v10226 = vld [vmem:[#allocation5 + $0xe0] sm:$0xff]
  %v10227 = vld [vmem:[#allocation5 + $0xe8] sm:$0x11]
  %s10228 = scalar_lea.vmem %s5, 160
  %v10229 = vld [vmem:[%s10228] sm:$0xf]
  %v10230 = vld [vmem:[%s10228 + $0x4] sm:$0xf]
  %v10231 = vld [vmem:[%s10228 + $0x8] sm:$0xf]
  %v10232 = vld [vmem:[%s10228 + $0xc] sm:$0xf]
  %v10233 = vld [vmem:[%s10228 + $0x10] sm:$0xf]
  %v10234 = vld [vmem:[%s10228 + $0x14] sm:$0xf]
  %v10235 = vld [vmem:[%s10228 + $0x18] sm:$0xf]
  %v10236 = vld [vmem:[%s10228 + $0x1c] sm:$0xf]
  %v10237 = vld [vmem:[%s10228 + $0x20] sm:$0xf]
  %v10238 = vld [vmem:[%s10228 + $0x24] sm:$0xf]
  %v10239 = vld [vmem:[%s10228 + $0x28] sm:$0xf]
  %v10240 = vld [vmem:[%s10228 + $0x2c] sm:$0xf]
  %v10241 = vld [vmem:[%s10228 + $0x30] sm:$0xf]
  %v10242 = vld [vmem:[%s10228 + $0x34] sm:$0xf]
  %v10243 = vld [vmem:[%s10228 + $0x38] sm:$0xf]
  %v10244 = vld [vmem:[%s10228 + $0x3c] sm:$0xf]
  %v10245 = vld [vmem:[%s10228 + $0x40] sm:$0xf]
  %v10246 = vld [vmem:[%s10228 + $0x44] sm:$0xf]
  %v10247 = vld [vmem:[%s10228 + $0x48] sm:$0xf]
  %v10248 = vld [vmem:[%s10228 + $0x4c] sm:$0xf]
  %v10278 = vunpack.c.l.b16 %v10199
  %v10279 = vunpack.c.h.b16 %v10199
  %v10280 = vunpack.c.l.b16 %v10200
  %v10281 = vunpack.c.h.b16 %v10200
  %v10282 = vunpack.c.l.b16 %v10201
  %v10283 = vunpack.c.h.b16 %v10201
  %v10284 = vunpack.c.l.b16 %v10202
  %v10285 = vunpack.c.h.b16 %v10202
  %v10286 = vunpack.c.l.b16 %v10203
  %v10287 = vunpack.c.h.b16 %v10203
  %v10288 = vunpack.c.l.b16 %v10204
  %v10289 = vunpack.c.h.b16 %v10204
  %v10290 = vunpack.c.l.b16 %v10205
  %v10291 = vunpack.c.h.b16 %v10205
  %v10292 = vunpack.c.l.b16 %v10206
  %v10293 = vunpack.c.h.b16 %v10206
  %v10294 = vunpack.c.l.b16 %v10207
  %v10295 = vunpack.c.h.b16 %v10207
  %v10296 = vunpack.c.l.b16 %v10208
  %v10297 = vunpack.c.h.b16 %v10208
  %v10298 = vunpack.c.l.b16 %v10209
  %v10299 = vunpack.c.h.b16 %v10209
  %v10300 = vunpack.c.l.b16 %v10210
  %v10301 = vunpack.c.h.b16 %v10210
  %v10302 = vunpack.c.l.b16 %v10211
  %v10303 = vunpack.c.h.b16 %v10211
  %v10304 = vunpack.c.l.b16 %v10212
  %v10305 = vunpack.c.h.b16 %v10212
  %v10306 = vunpack.c.l.b16 %v10213
  %v10307 = vunpack.c.h.b16 %v10213
  %v10308 = vunpack.c.l.b16 %v10214
  %v10309 = vunpack.c.h.b16 %v10214
  %v10310 = vunpack.c.l.b16 %v10215
  %v10311 = vunpack.c.h.b16 %v10215
  %v10312 = vunpack.c.l.b16 %v10216
  %v10313 = vunpack.c.h.b16 %v10216
  %v10314 = vunpack.c.l.b16 %v10217
  %v10315 = vunpack.c.h.b16 %v10217
  %v10316 = vunpack.c.l.b16 %v10218
  %v10317 = vunpack.c.h.b16 %v10218
  %v10318 = vunpack.c.l.b16 %v10219
  %v10319 = vunpack.c.h.b16 %v10219
  %v10320 = vunpack.c.l.b16 %v10220
  %v10321 = vunpack.c.h.b16 %v10220
  %v10322 = vunpack.c.l.b16 %v10221
  %v10323 = vunpack.c.h.b16 %v10221
  %v10324 = vunpack.c.l.b16 %v10222
  %v10325 = vunpack.c.h.b16 %v10222
  %v10326 = vunpack.c.l.b16 %v10223
  %v10327 = vunpack.c.h.b16 %v10223
  %v10328 = vunpack.c.l.b16 %v10224
  %v10329 = vunpack.c.h.b16 %v10224
  %v10330 = vunpack.c.l.b16 %v10225
  %v10331 = vunpack.c.h.b16 %v10225
  %v10332 = vunpack.c.l.b16 %v10226
  %v10333 = vunpack.c.h.b16 %v10226
  %v10334 = vunpack.c.l.b16 %v10227
  %v10335 = vunpack.c.h.b16 %v10227
  %v10336 = vpack.c.b16 %v10280, %v10278
  %v10337 = vpack.c.b16 %v10281, %v10279
  %v10338 = vpack.c.b16 %v10284, %v10282
  %v10339 = vpack.c.b16 %v10285, %v10283
  %v10340 = vpack.c.b16 %v10288, %v10286
  %v10341 = vpack.c.b16 %v10289, %v10287
  %v10342 = vpack.c.b16 %v10292, %v10290
  %v10343 = vpack.c.b16 %v10293, %v10291
  %v10344 = vpack.c.b16 %v10296, %v10294
  %v10345 = vpack.c.b16 %v10297, %v10295
  %v10346 = vpack.c.b16 %v10300, %v10298
  %v10347 = vpack.c.b16 %v10301, %v10299
  %v10348 = vpack.c.b16 %v10304, %v10302
  %v10349 = vpack.c.b16 %v10305, %v10303
  %v10350 = vpack.c.b16 %v10308, %v10306
  %v10351 = vpack.c.b16 %v10309, %v10307
  %v10352 = vpack.c.b16 %v10312, %v10310
  %v10353 = vpack.c.b16 %v10313, %v10311
  %v10354 = vpack.c.b16 %v10316, %v10314
  %v10355 = vpack.c.b16 %v10317, %v10315
  %v10356 = vpack.c.b16 %v10320, %v10318
  %v10357 = vpack.c.b16 %v10321, %v10319
  %v10358 = vpack.c.b16 %v10324, %v10322
  %v10359 = vpack.c.b16 %v10325, %v10323
  %v10360 = vpack.c.b16 %v10328, %v10326
  %v10361 = vpack.c.b16 %v10329, %v10327
  %v10362 = vpack.c.b16 %v10332, %v10330
  %v10363 = vpack.c.b16 %v10333, %v10331
  %v10364 = vpack.c.b16 %v10334, %v10334
  %v10365 = vpack.c.b16 %v10335, %v10335
  %v10401 = vunpack.c.l.b16 %v10229
  %v10402 = vunpack.c.l.b16 %v10230
  %v10403 = vunpack.c.l.b16 %v10231
  %v10404 = vunpack.c.l.b16 %v10232
  %v10405 = vunpack.c.l.b16 %v10233
  %v10406 = vunpack.c.l.b16 %v10234
  %v10407 = vunpack.c.l.b16 %v10235
  %v10408 = vunpack.c.l.b16 %v10236
  %v10409 = vunpack.c.l.b16 %v10237
  %v10410 = vunpack.c.l.b16 %v10238
  %v10411 = vunpack.c.l.b16 %v10239
  %v10412 = vunpack.c.l.b16 %v10240
  %v10413 = vunpack.c.l.b16 %v10241
  %v10414 = vunpack.c.l.b16 %v10242
  %v10415 = vunpack.c.l.b16 %v10243
  %v10416 = vunpack.c.l.b16 %v10244
  %v10417 = vunpack.c.l.b16 %v10245
  %v10418 = vunpack.c.l.b16 %v10246
  %v10419 = vunpack.c.l.b16 %v10247
  %v10420 = vunpack.c.l.b16 %v10248
  %v10421 = vpack.c.b16 %v10402, %v10401
  %v10422 = vpack.c.b16 %v10404, %v10403
  %v10423 = vpack.c.b16 %v10406, %v10405
  %v10424 = vpack.c.b16 %v10408, %v10407
  %v10425 = vpack.c.b16 %v10410, %v10409
  %v10426 = vpack.c.b16 %v10412, %v10411
  %v10427 = vpack.c.b16 %v10414, %v10413
  %v10428 = vpack.c.b16 %v10416, %v10415
  %v10429 = vpack.c.b16 %v10418, %v10417
  %v10430 = vpack.c.b16 %v10420, %v10419
  %v10441 = vsel %vm9380, %v10337, 0
  %v10444 = vsel %vm9380, %v10339, 0
  %v10447 = vsel %vm9380, %v10341, 0
  %v10450 = vsel %vm9380, %v10343, 0
  %v10453 = vsel %vm9380, %v10345, 0
  %v10456 = vsel %vm9380, %v10347, 0
  %v10459 = vsel %vm9380, %v10349, 0
  %v10462 = vsel %vm9380, %v10351, 0
  %v10465 = vsel %vm9380, %v10353, 0
  %v10468 = vsel %vm9380, %v10355, 0
  %v10471 = vsel %vm9380, %v10357, 0
  %v10474 = vsel %vm9380, %v10359, 0
  %v10477 = vsel %vm9380, %v10361, 0
  %v10480 = vsel %vm9380, %v10363, 0
  %v10483 = vsel %vm9380, %v10365, 0
  %v10486 = vand.u32 %v10430, %v9428
  %10488 = vmatprep.subr.bf16.mxu0 0
  %10489 = vmatpush1.bf16.msra.mxu0 %v10428
  %10490 = vmatprep.subr.bf16.mxu0 0
  %10491 = vmatpush1.bf16.msra.mxu0 %v10427
  %10492 = vmatprep.subr.bf16.mxu0 0
  %10493 = vmatpush1.bf16.msra.mxu0 %v10426
  %10494 = vmatprep.subr.bf16.mxu0 0
  %10495 = vmatpush1.bf16.msra.mxu0 %v10425
  %10496 = vmatprep.subr.bf16.mxu0 0
  %10497 = vmatpush1.bf16.msra.mxu0 %v10424
  %10498 = vmatprep.subr.bf16.mxu0 0
  %10499 = vmatpush1.bf16.msra.mxu0 %v10423
  %10500 = vmatprep.subr.bf16.mxu0 0
  %10501 = vmatpush1.bf16.msra.mxu0 %v10422
  %10502 = vmatprep.subr.bf16.mxu0 0
  %10503 = vmatpush1.bf16.msra.mxu0 %v10421
  %10504 = vmatprep.subr.bf16.mxu0 0
  %10505 = vmatpush2.bf16.msra.mxu0 0
  %10506 = vmatprep.subr.bf16.mxu0 0
  %10507 = vmatpush2.bf16.msra.mxu0 0
  %10508 = vmatprep.subr.bf16.mxu0 0
  %10509 = vmatpush2.bf16.msra.mxu0 0
  %10510 = vmatprep.subr.bf16.mxu0 0
  %10511 = vmatpush2.bf16.msra.mxu0 0
  %10512 = vmatprep.subr.bf16.mxu0 0
  %10513 = vmatpush2.bf16.msra.mxu0 0
  %10514 = vmatprep.subr.bf16.mxu0 0
  %10515 = vmatpush2.bf16.msra.mxu0 0
  %10516 = vmatprep.subr.bf16.mxu0 0
  %10517 = vmatpush2.bf16.msra.mxu0 %v10486
  %10518 = vmatprep.subr.bf16.mxu0 0
  %10519 = vmatpush2.bf16.msra.mxu0 %v10429
  %10520 = vmatprep.mubr.bf16.mxu0 %v10441
  %10521 = vmatmul.mubr.bf16.gmra.mxu0 %v10336
  %v10522 = vpop.f32.mrf.mxu0
  %v10523 = vadd.f32 0.0, %v10522
  %v10524 = vpop.f32.mrf.mxu0
  %v10525 = vpop.f32.mrf.mxu0
  %v10526 = vadd.f32 0.0, %v10525
  %v10527 = vpop.f32.mrf.mxu0
  %10528 = vmatprep.mubr.bf16.mxu0 %v10444
  %10529 = vmatmul.mubr.bf16.gmra.mxu0 %v10338
  %v10530 = vpop.f32.mrf.mxu0
  %v10531 = vadd.f32 0.0, %v10530
  %v10532 = vpop.f32.mrf.mxu0
  %v10533 = vpop.f32.mrf.mxu0
  %v10534 = vadd.f32 0.0, %v10533
  %v10535 = vpop.f32.mrf.mxu0
  %10536 = vmatprep.mubr.bf16.mxu0 %v10447
  %10537 = vmatmul.mubr.bf16.gmra.mxu0 %v10340
  %v10538 = vpop.f32.mrf.mxu0
  %v10539 = vadd.f32 0.0, %v10538
  %v10540 = vpop.f32.mrf.mxu0
  %v10541 = vpop.f32.mrf.mxu0
  %v10542 = vadd.f32 0.0, %v10541
  %v10543 = vpop.f32.mrf.mxu0
  %10544 = vmatprep.mubr.bf16.mxu0 %v10450
  %10545 = vmatmul.mubr.bf16.gmra.mxu0 %v10342
  %v10546 = vpop.f32.mrf.mxu0
  %v10547 = vadd.f32 0.0, %v10546
  %v10548 = vpop.f32.mrf.mxu0
  %v10549 = vpop.f32.mrf.mxu0
  %v10550 = vadd.f32 0.0, %v10549
  %v10551 = vpop.f32.mrf.mxu0
  %10552 = vmatprep.mubr.bf16.mxu0 %v10453
  %10553 = vmatmul.mubr.bf16.gmra.mxu0 %v10344
  %v10554 = vpop.f32.mrf.mxu0
  %v10555 = vadd.f32 0.0, %v10554
  %v10556 = vpop.f32.mrf.mxu0
  %v10557 = vpop.f32.mrf.mxu0
  %v10558 = vadd.f32 0.0, %v10557
  %v10559 = vpop.f32.mrf.mxu0
  %10560 = vmatprep.mubr.bf16.mxu0 %v10456
  %10561 = vmatmul.mubr.bf16.gmra.mxu0 %v10346
  %v10562 = vpop.f32.mrf.mxu0
  %v10563 = vadd.f32 0.0, %v10562
  %v10564 = vpop.f32.mrf.mxu0
  %v10565 = vpop.f32.mrf.mxu0
  %v10566 = vadd.f32 0.0, %v10565
  %v10567 = vpop.f32.mrf.mxu0
  %10568 = vmatprep.mubr.bf16.mxu0 %v10459
  %10569 = vmatmul.mubr.bf16.gmra.mxu0 %v10348
  %v10570 = vpop.f32.mrf.mxu0
  %v10571 = vadd.f32 0.0, %v10570
  %v10572 = vpop.f32.mrf.mxu0
  %v10573 = vpop.f32.mrf.mxu0
  %v10574 = vadd.f32 0.0, %v10573
  %v10575 = vpop.f32.mrf.mxu0
  %10576 = vmatprep.mubr.bf16.mxu0 %v10462
  %10577 = vmatmul.mubr.bf16.gmra.mxu0 %v10350
  %v10578 = vpop.f32.mrf.mxu0
  %v10579 = vadd.f32 0.0, %v10578
  %v10580 = vpop.f32.mrf.mxu0
  %v10581 = vpop.f32.mrf.mxu0
  %v10582 = vadd.f32 0.0, %v10581
  %v10583 = vpop.f32.mrf.mxu0
  %10584 = vmatprep.mubr.bf16.mxu0 %v10465
  %10585 = vmatmul.mubr.bf16.gmra.mxu0 %v10352
  %v10586 = vpop.f32.mrf.mxu0
  %v10587 = vadd.f32 0.0, %v10586
  %v10588 = vpop.f32.mrf.mxu0
  %v10589 = vpop.f32.mrf.mxu0
  %v10590 = vadd.f32 0.0, %v10589
  %v10591 = vpop.f32.mrf.mxu0
  %10592 = vmatprep.mubr.bf16.mxu0 %v10468
  %10593 = vmatmul.mubr.bf16.gmra.mxu0 %v10354
  %v10594 = vpop.f32.mrf.mxu0
  %v10595 = vadd.f32 0.0, %v10594
  %v10596 = vpop.f32.mrf.mxu0
  %v10597 = vpop.f32.mrf.mxu0
  %v10598 = vadd.f32 0.0, %v10597
  %v10599 = vpop.f32.mrf.mxu0
  %10600 = vmatprep.mubr.bf16.mxu0 %v10471
  %10601 = vmatmul.mubr.bf16.gmra.mxu0 %v10356
  %v10602 = vpop.f32.mrf.mxu0
  %v10603 = vadd.f32 0.0, %v10602
  %v10604 = vpop.f32.mrf.mxu0
  %v10605 = vpop.f32.mrf.mxu0
  %v10606 = vadd.f32 0.0, %v10605
  %v10607 = vpop.f32.mrf.mxu0
  %10608 = vmatprep.mubr.bf16.mxu0 %v10474
  %10609 = vmatmul.mubr.bf16.gmra.mxu0 %v10358
  %v10610 = vpop.f32.mrf.mxu0
  %v10611 = vadd.f32 0.0, %v10610
  %v10612 = vpop.f32.mrf.mxu0
  %v10613 = vpop.f32.mrf.mxu0
  %v10614 = vadd.f32 0.0, %v10613
  %v10615 = vpop.f32.mrf.mxu0
  %10616 = vmatprep.mubr.bf16.mxu0 %v10477
  %10617 = vmatmul.mubr.bf16.gmra.mxu0 %v10360
  %v10618 = vpop.f32.mrf.mxu0
  %v10619 = vadd.f32 0.0, %v10618
  %v10620 = vpop.f32.mrf.mxu0
  %v10621 = vpop.f32.mrf.mxu0
  %v10622 = vadd.f32 0.0, %v10621
  %v10623 = vpop.f32.mrf.mxu0
  %10624 = vmatprep.mubr.bf16.mxu0 %v10480
  %10625 = vmatmul.mubr.bf16.gmra.mxu0 %v10362
  %v10626 = vpop.f32.mrf.mxu0
  %v10627 = vadd.f32 0.0, %v10626
  %v10628 = vpop.f32.mrf.mxu0
  %v10629 = vpop.f32.mrf.mxu0
  %v10630 = vadd.f32 0.0, %v10629
  %v10631 = vpop.f32.mrf.mxu0
  %10632 = vmatprep.mubr.bf16.mxu0 %v10483
  %10633 = vmatmul.mubr.bf16.gmra.mxu0 %v10364
  %v10634 = vpop.f32.mrf.mxu0
  %v10635 = vadd.f32 0.0, %v10634
  %v10636 = vpop.f32.mrf.mxu0
  %v10637 = vpop.f32.mrf.mxu0
  %v10638 = vpop.f32.mrf.mxu0
  %10639 = vdwg.mxu0
  %v10640 = vld [vmem:[#allocation6] sm:$0xff]
  %v10641 = vld [vmem:[#allocation6 + $0x8] sm:$0xff]
  %v10642 = vld [vmem:[#allocation6 + $0x10] sm:$0xff]
  %v10643 = vld [vmem:[#allocation6 + $0x18] sm:$0xff]
  %v10644 = vld [vmem:[#allocation6 + $0x20] sm:$0xff]
  %v10645 = vld [vmem:[#allocation6 + $0x28] sm:$0xff]
  %v10646 = vld [vmem:[#allocation6 + $0x30] sm:$0xff]
  %v10647 = vld [vmem:[#allocation6 + $0x38] sm:$0xff]
  %v10648 = vld [vmem:[#allocation6 + $0x40] sm:$0xff]
  %v10649 = vld [vmem:[#allocation6 + $0x48] sm:$0xff]
  %v10650 = vld [vmem:[#allocation6 + $0x50] sm:$0xff]
  %v10651 = vld [vmem:[#allocation6 + $0x58] sm:$0xff]
  %v10652 = vld [vmem:[#allocation6 + $0x60] sm:$0xff]
  %v10653 = vld [vmem:[#allocation6 + $0x68] sm:$0xff]
  %v10654 = vld [vmem:[#allocation6 + $0x70] sm:$0xff]
  %v10655 = vld [vmem:[#allocation6 + $0x78] sm:$0xff]
  %v10656 = vld [vmem:[#allocation6 + $0x80] sm:$0xff]
  %v10657 = vld [vmem:[#allocation6 + $0x88] sm:$0xff]
  %v10658 = vld [vmem:[#allocation6 + $0x90] sm:$0xff]
  %v10659 = vld [vmem:[#allocation6 + $0x98] sm:$0xff]
  %v10660 = vld [vmem:[#allocation6 + $0xa0] sm:$0xff]
  %v10661 = vld [vmem:[#allocation6 + $0xa8] sm:$0xff]
  %v10662 = vld [vmem:[#allocation6 + $0xb0] sm:$0xff]
  %v10663 = vld [vmem:[#allocation6 + $0xb8] sm:$0xff]
  %v10664 = vld [vmem:[#allocation6 + $0xc0] sm:$0xff]
  %v10665 = vld [vmem:[#allocation6 + $0xc8] sm:$0xff]
  %v10666 = vld [vmem:[#allocation6 + $0xd0] sm:$0xff]
  %v10667 = vld [vmem:[#allocation6 + $0xd8] sm:$0xff]
  %v10668 = vld [vmem:[#allocation6 + $0xe0] sm:$0x1]
  %v10669 = vadd.f32 %v10640, %v10523
  %v10670 = vadd.f32 %v10641, %v10526
  %v10671 = vadd.f32 %v10642, %v10531
  %v10672 = vadd.f32 %v10643, %v10534
  %v10673 = vadd.f32 %v10644, %v10539
  %v10674 = vadd.f32 %v10645, %v10542
  %v10675 = vadd.f32 %v10646, %v10547
  %v10676 = vadd.f32 %v10647, %v10550
  %v10677 = vadd.f32 %v10648, %v10555
  %v10678 = vadd.f32 %v10649, %v10558
  %v10679 = vadd.f32 %v10650, %v10563
  %v10680 = vadd.f32 %v10651, %v10566
  %v10681 = vadd.f32 %v10652, %v10571
  %v10682 = vadd.f32 %v10653, %v10574
  %v10683 = vadd.f32 %v10654, %v10579
  %v10684 = vadd.f32 %v10655, %v10582
  %v10685 = vadd.f32 %v10656, %v10587
  %v10686 = vadd.f32 %v10657, %v10590
  %v10687 = vadd.f32 %v10658, %v10595
  %v10688 = vadd.f32 %v10659, %v10598
  %v10689 = vadd.f32 %v10660, %v10603
  %v10690 = vadd.f32 %v10661, %v10606
  %v10691 = vadd.f32 %v10662, %v10611
  %v10692 = vadd.f32 %v10663, %v10614
  %v10693 = vadd.f32 %v10664, %v10619
  %v10694 = vadd.f32 %v10665, %v10622
  %v10695 = vadd.f32 %v10666, %v10627
  %v10696 = vadd.f32 %v10667, %v10630
  %v10697 = vadd.f32 %v10668, %v10635
  %10698 = vst [vmem:[#allocation6] sm:$0xff] %v10669
  %10699 = vst [vmem:[#allocation6 + $0x8] sm:$0xff] %v10670
  %10700 = vst [vmem:[#allocation6 + $0x10] sm:$0xff] %v10671
  %10701 = vst [vmem:[#allocation6 + $0x18] sm:$0xff] %v10672
  %10702 = vst [vmem:[#allocation6 + $0x20] sm:$0xff] %v10673
  %10703 = vst [vmem:[#allocation6 + $0x28] sm:$0xff] %v10674
  %10704 = vst [vmem:[#allocation6 + $0x30] sm:$0xff] %v10675
  %10705 = vst [vmem:[#allocation6 + $0x38] sm:$0xff] %v10676
  %10706 = vst [vmem:[#allocation6 + $0x40] sm:$0xff] %v10677
  %10707 = vst [vmem:[#allocation6 + $0x48] sm:$0xff] %v10678
  %10708 = vst [vmem:[#allocation6 + $0x50] sm:$0xff] %v10679
  %10709 = vst [vmem:[#allocation6 + $0x58] sm:$0xff] %v10680
  %10710 = vst [vmem:[#allocation6 + $0x60] sm:$0xff] %v10681
  %10711 = vst [vmem:[#allocation6 + $0x68] sm:$0xff] %v10682
  %10712 = vst [vmem:[#allocation6 + $0x70] sm:$0xff] %v10683
  %10713 = vst [vmem:[#allocation6 + $0x78] sm:$0xff] %v10684
  %10714 = vst [vmem:[#allocation6 + $0x80] sm:$0xff] %v10685
  %10715 = vst [vmem:[#allocation6 + $0x88] sm:$0xff] %v10686
  %10716 = vst [vmem:[#allocation6 + $0x90] sm:$0xff] %v10687
  %10717 = vst [vmem:[#allocation6 + $0x98] sm:$0xff] %v10688
  %10718 = vst [vmem:[#allocation6 + $0xa0] sm:$0xff] %v10689
  %10719 = vst [vmem:[#allocation6 + $0xa8] sm:$0xff] %v10690
  %10720 = vst [vmem:[#allocation6 + $0xb0] sm:$0xff] %v10691
  %10721 = vst [vmem:[#allocation6 + $0xb8] sm:$0xff] %v10692
  %10722 = vst [vmem:[#allocation6 + $0xc0] sm:$0xff] %v10693
  %10723 = vst [vmem:[#allocation6 + $0xc8] sm:$0xff] %v10694
  %10724 = vst [vmem:[#allocation6 + $0xd0] sm:$0xff] %v10695
  %10725 = vst [vmem:[#allocation6 + $0xd8] sm:$0xff] %v10696
  %10726 = vst [vmem:[#allocation6 + $0xe0] sm:$0x1] %v10697
  %v10727 = vld [vmem:[#allocation5 + $0x8] sm:$0xcc]
  %v10728 = vld [vmem:[#allocation5 + $0x10] sm:$0xff]
  %v10729 = vld [vmem:[#allocation5 + $0x18] sm:$0xff]
  %v10730 = vld [vmem:[#allocation5 + $0x20] sm:$0xff]
  %v10731 = vld [vmem:[#allocation5 + $0x28] sm:$0xff]
  %v10732 = vld [vmem:[#allocation5 + $0x30] sm:$0xff]
  %v10733 = vld [vmem:[#allocation5 + $0x38] sm:$0xff]
  %v10734 = vld [vmem:[#allocation5 + $0x40] sm:$0xff]
  %v10735 = vld [vmem:[#allocation5 + $0x48] sm:$0xff]
  %v10736 = vld [vmem:[#allocation5 + $0x50] sm:$0xff]
  %v10737 = vld [vmem:[#allocation5 + $0x58] sm:$0xff]
  %v10738 = vld [vmem:[#allocation5 + $0x60] sm:$0xff]
  %v10739 = vld [vmem:[#allocation5 + $0x68] sm:$0xff]
  %v10740 = vld [vmem:[#allocation5 + $0x70] sm:$0xff]
  %v10741 = vld [vmem:[#allocation5 + $0x78] sm:$0xff]
  %v10742 = vld [vmem:[#allocation5 + $0x80] sm:$0xff]
  %v10743 = vld [vmem:[#allocation5 + $0x88] sm:$0xff]
  %v10744 = vld [vmem:[#allocation5 + $0x90] sm:$0xff]
  %v10745 = vld [vmem:[#allocation5 + $0x98] sm:$0xff]
  %v10746 = vld [vmem:[#allocation5 + $0xa0] sm:$0xff]
  %v10747 = vld [vmem:[#allocation5 + $0xa8] sm:$0xff]
  %v10748 = vld [vmem:[#allocation5 + $0xb0] sm:$0xff]
  %v10749 = vld [vmem:[#allocation5 + $0xb8] sm:$0xff]
  %v10750 = vld [vmem:[#allocation5 + $0xc0] sm:$0xff]
  %v10751 = vld [vmem:[#allocation5 + $0xc8] sm:$0xff]
  %v10752 = vld [vmem:[#allocation5 + $0xd0] sm:$0xff]
  %v10753 = vld [vmem:[#allocation5 + $0xd8] sm:$0xff]
  %v10754 = vld [vmem:[#allocation5 + $0xe0] sm:$0xff]
  %v10755 = vld [vmem:[#allocation5 + $0xe8] sm:$0x77]
  %s10756 = scalar_lea.vmem %s5, 240
  %v10757 = vld [vmem:[%s10756] sm:$0xf]
  %v10758 = vld [vmem:[%s10756 + $0x4] sm:$0xf]
  %v10759 = vld [vmem:[%s10756 + $0x8] sm:$0xf]
  %v10760 = vld [vmem:[%s10756 + $0xc] sm:$0xf]
  %v10761 = vld [vmem:[%s10756 + $0x10] sm:$0xf]
  %v10762 = vld [vmem:[%s10756 + $0x14] sm:$0xf]
  %v10763 = vld [vmem:[%s10756 + $0x18] sm:$0xf]
  %v10764 = vld [vmem:[%s10756 + $0x1c] sm:$0xf]
  %v10765 = vld [vmem:[%s10756 + $0x20] sm:$0xf]
  %v10766 = vld [vmem:[%s10756 + $0x24] sm:$0xf]
  %v10767 = vld [vmem:[%s10756 + $0x28] sm:$0xf]
  %v10768 = vld [vmem:[%s10756 + $0x2c] sm:$0xf]
  %v10769 = vld [vmem:[%s10756 + $0x30] sm:$0xf]
  %v10770 = vld [vmem:[%s10756 + $0x34] sm:$0xf]
  %v10771 = vld [vmem:[%s10756 + $0x38] sm:$0xf]
  %v10772 = vld [vmem:[%s10756 + $0x3c] sm:$0xf]
  %v10773 = vld [vmem:[%s10756 + $0x40] sm:$0xf]
  %v10774 = vld [vmem:[%s10756 + $0x44] sm:$0xf]
  %v10775 = vld [vmem:[%s10756 + $0x48] sm:$0xf]
  %v10776 = vld [vmem:[%s10756 + $0x4c] sm:$0xf]
  %v10806 = vunpack.c.l.b16 %v10727
  %v10807 = vunpack.c.h.b16 %v10727
  %v10808 = vunpack.c.l.b16 %v10728
  %v10809 = vunpack.c.h.b16 %v10728
  %v10810 = vunpack.c.l.b16 %v10729
  %v10811 = vunpack.c.h.b16 %v10729
  %v10812 = vunpack.c.l.b16 %v10730
  %v10813 = vunpack.c.h.b16 %v10730
  %v10814 = vunpack.c.l.b16 %v10731
  %v10815 = vunpack.c.h.b16 %v10731
  %v10816 = vunpack.c.l.b16 %v10732
  %v10817 = vunpack.c.h.b16 %v10732
  %v10818 = vunpack.c.l.b16 %v10733
  %v10819 = vunpack.c.h.b16 %v10733
  %v10820 = vunpack.c.l.b16 %v10734
  %v10821 = vunpack.c.h.b16 %v10734
  %v10822 = vunpack.c.l.b16 %v10735
  %v10823 = vunpack.c.h.b16 %v10735
  %v10824 = vunpack.c.l.b16 %v10736
  %v10825 = vunpack.c.h.b16 %v10736
  %v10826 = vunpack.c.l.b16 %v10737
  %v10827 = vunpack.c.h.b16 %v10737
  %v10828 = vunpack.c.l.b16 %v10738
  %v10829 = vunpack.c.h.b16 %v10738
  %v10830 = vunpack.c.l.b16 %v10739
  %v10831 = vunpack.c.h.b16 %v10739
  %v10832 = vunpack.c.l.b16 %v10740
  %v10833 = vunpack.c.h.b16 %v10740
  %v10834 = vunpack.c.l.b16 %v10741
  %v10835 = vunpack.c.h.b16 %v10741
  %v10836 = vunpack.c.l.b16 %v10742
  %v10837 = vunpack.c.h.b16 %v10742
  %v10838 = vunpack.c.l.b16 %v10743
  %v10839 = vunpack.c.h.b16 %v10743
  %v10840 = vunpack.c.l.b16 %v10744
  %v10841 = vunpack.c.h.b16 %v10744
  %v10842 = vunpack.c.l.b16 %v10745
  %v10843 = vunpack.c.h.b16 %v10745
  %v10844 = vunpack.c.l.b16 %v10746
  %v10845 = vunpack.c.h.b16 %v10746
  %v10846 = vunpack.c.l.b16 %v10747
  %v10847 = vunpack.c.h.b16 %v10747
  %v10848 = vunpack.c.l.b16 %v10748
  %v10849 = vunpack.c.h.b16 %v10748
  %v10850 = vunpack.c.l.b16 %v10749
  %v10851 = vunpack.c.h.b16 %v10749
  %v10852 = vunpack.c.l.b16 %v10750
  %v10853 = vunpack.c.h.b16 %v10750
  %v10854 = vunpack.c.l.b16 %v10751
  %v10855 = vunpack.c.h.b16 %v10751
  %v10856 = vunpack.c.l.b16 %v10752
  %v10857 = vunpack.c.h.b16 %v10752
  %v10858 = vunpack.c.l.b16 %v10753
  %v10859 = vunpack.c.h.b16 %v10753
  %v10860 = vunpack.c.l.b16 %v10754
  %v10861 = vunpack.c.h.b16 %v10754
  %v10862 = vunpack.c.l.b16 %v10755
  %v10863 = vunpack.c.h.b16 %v10755
  %v10864 = vpack.c.b16 %v10808, %v10806
  %v10865 = vpack.c.b16 %v10809, %v10807
  %v10866 = vpack.c.b16 %v10812, %v10810
  %v10867 = vpack.c.b16 %v10813, %v10811
  %v10868 = vpack.c.b16 %v10816, %v10814
  %v10869 = vpack.c.b16 %v10817, %v10815
  %v10870 = vpack.c.b16 %v10820, %v10818
  %v10871 = vpack.c.b16 %v10821, %v10819
  %v10872 = vpack.c.b16 %v10824, %v10822
  %v10873 = vpack.c.b16 %v10825, %v10823
  %v10874 = vpack.c.b16 %v10828, %v10826
  %v10875 = vpack.c.b16 %v10829, %v10827
  %v10876 = vpack.c.b16 %v10832, %v10830
  %v10877 = vpack.c.b16 %v10833, %v10831
  %v10878 = vpack.c.b16 %v10836, %v10834
  %v10879 = vpack.c.b16 %v10837, %v10835
  %v10880 = vpack.c.b16 %v10840, %v10838
  %v10881 = vpack.c.b16 %v10841, %v10839
  %v10882 = vpack.c.b16 %v10844, %v10842
  %v10883 = vpack.c.b16 %v10845, %v10843
  %v10884 = vpack.c.b16 %v10848, %v10846
  %v10885 = vpack.c.b16 %v10849, %v10847
  %v10886 = vpack.c.b16 %v10852, %v10850
  %v10887 = vpack.c.b16 %v10853, %v10851
  %v10888 = vpack.c.b16 %v10856, %v10854
  %v10889 = vpack.c.b16 %v10857, %v10855
  %v10890 = vpack.c.b16 %v10860, %v10858
  %v10891 = vpack.c.b16 %v10861, %v10859
  %v10892 = vpack.c.b16 %v10862, %v10862
  %v10893 = vpack.c.b16 %v10863, %v10863
  %v10894 = vrot.slane %v10864, 2
  %v10895 = vrot.slane %v10866, 2
  %v10896 = vsel %vm2826, %v10894, %v10895
  %v10897 = vrot.slane %v10865, 2
  %v10898 = vrot.slane %v10867, 2
  %v10899 = vsel %vm2826, %v10897, %v10898
  %v10900 = vrot.slane %v10868, 2
  %v10901 = vsel %vm2826, %v10895, %v10900
  %v10902 = vrot.slane %v10869, 2
  %v10903 = vsel %vm2826, %v10898, %v10902
  %v10904 = vrot.slane %v10870, 2
  %v10905 = vsel %vm2826, %v10900, %v10904
  %v10906 = vrot.slane %v10871, 2
  %v10907 = vsel %vm2826, %v10902, %v10906
  %v10908 = vrot.slane %v10872, 2
  %v10909 = vsel %vm2826, %v10904, %v10908
  %v10910 = vrot.slane %v10873, 2
  %v10911 = vsel %vm2826, %v10906, %v10910
  %v10912 = vrot.slane %v10874, 2
  %v10913 = vsel %vm2826, %v10908, %v10912
  %v10914 = vrot.slane %v10875, 2
  %v10915 = vsel %vm2826, %v10910, %v10914
  %v10916 = vrot.slane %v10876, 2
  %v10917 = vsel %vm2826, %v10912, %v10916
  %v10918 = vrot.slane %v10877, 2
  %v10919 = vsel %vm2826, %v10914, %v10918
  %v10920 = vrot.slane %v10878, 2
  %v10921 = vsel %vm2826, %v10916, %v10920
  %v10922 = vrot.slane %v10879, 2
  %v10923 = vsel %vm2826, %v10918, %v10922
  %v10924 = vrot.slane %v10880, 2
  %v10925 = vsel %vm2826, %v10920, %v10924
  %v10926 = vrot.slane %v10881, 2
  %v10927 = vsel %vm2826, %v10922, %v10926
  %v10928 = vrot.slane %v10882, 2
  %v10929 = vsel %vm2826, %v10924, %v10928
  %v10930 = vrot.slane %v10883, 2
  %v10931 = vsel %vm2826, %v10926, %v10930
  %v10932 = vrot.slane %v10884, 2
  %v10933 = vsel %vm2826, %v10928, %v10932
  %v10934 = vrot.slane %v10885, 2
  %v10935 = vsel %vm2826, %v10930, %v10934
  %v10936 = vrot.slane %v10886, 2
  %v10937 = vsel %vm2826, %v10932, %v10936
  %v10938 = vrot.slane %v10887, 2
  %v10939 = vsel %vm2826, %v10934, %v10938
  %v10940 = vrot.slane %v10888, 2
  %v10941 = vsel %vm2826, %v10936, %v10940
  %v10942 = vrot.slane %v10889, 2
  %v10943 = vsel %vm2826, %v10938, %v10942
  %v10944 = vrot.slane %v10890, 2
  %v10945 = vsel %vm2826, %v10940, %v10944
  %v10946 = vrot.slane %v10891, 2
  %v10947 = vsel %vm2826, %v10942, %v10946
  %v10948 = vrot.slane %v10892, 2
  %v10949 = vsel %vm2826, %v10944, %v10948
  %v10950 = vrot.slane %v10893, 2
  %v10951 = vsel %vm2826, %v10946, %v10950
  %v10987 = vunpack.c.l.b16 %v10757
  %v10988 = vunpack.c.l.b16 %v10758
  %v10989 = vunpack.c.l.b16 %v10759
  %v10990 = vunpack.c.l.b16 %v10760
  %v10991 = vunpack.c.l.b16 %v10761
  %v10992 = vunpack.c.l.b16 %v10762
  %v10993 = vunpack.c.l.b16 %v10763
  %v10994 = vunpack.c.l.b16 %v10764
  %v10995 = vunpack.c.l.b16 %v10765
  %v10996 = vunpack.c.l.b16 %v10766
  %v10997 = vunpack.c.l.b16 %v10767
  %v10998 = vunpack.c.l.b16 %v10768
  %v10999 = vunpack.c.l.b16 %v10769
  %v11000 = vunpack.c.l.b16 %v10770
  %v11001 = vunpack.c.l.b16 %v10771
  %v11002 = vunpack.c.l.b16 %v10772
  %v11003 = vunpack.c.l.b16 %v10773
  %v11004 = vunpack.c.l.b16 %v10774
  %v11005 = vunpack.c.l.b16 %v10775
  %v11006 = vunpack.c.l.b16 %v10776
  %v11007 = vpack.c.b16 %v10988, %v10987
  %v11008 = vpack.c.b16 %v10990, %v10989
  %v11009 = vpack.c.b16 %v10992, %v10991
  %v11010 = vpack.c.b16 %v10994, %v10993
  %v11011 = vpack.c.b16 %v10996, %v10995
  %v11012 = vpack.c.b16 %v10998, %v10997
  %v11013 = vpack.c.b16 %v11000, %v10999
  %v11014 = vpack.c.b16 %v11002, %v11001
  %v11015 = vpack.c.b16 %v11004, %v11003
  %v11016 = vpack.c.b16 %v11006, %v11005
  %v11027 = vsel %vm9380, %v10899, 0
  %v11030 = vsel %vm9380, %v10903, 0
  %v11033 = vsel %vm9380, %v10907, 0
  %v11036 = vsel %vm9380, %v10911, 0
  %v11039 = vsel %vm9380, %v10915, 0
  %v11042 = vsel %vm9380, %v10919, 0
  %v11045 = vsel %vm9380, %v10923, 0
  %v11048 = vsel %vm9380, %v10927, 0
  %v11051 = vsel %vm9380, %v10931, 0
  %v11054 = vsel %vm9380, %v10935, 0
  %v11057 = vsel %vm9380, %v10939, 0
  %v11060 = vsel %vm9380, %v10943, 0
  %v11063 = vsel %vm9380, %v10947, 0
  %v11066 = vsel %vm9380, %v10951, 0
  %v11069 = vsel %vm9380, %v10950, 0
  %v11072 = vand.u32 %v11016, %v9428
  %11074 = vmatprep.subr.bf16.mxu0 0
  %11075 = vmatpush1.bf16.msra.mxu0 %v11014
  %11076 = vmatprep.subr.bf16.mxu0 0
  %11077 = vmatpush1.bf16.msra.mxu0 %v11013
  %11078 = vmatprep.subr.bf16.mxu0 0
  %11079 = vmatpush1.bf16.msra.mxu0 %v11012
  %11080 = vmatprep.subr.bf16.mxu0 0
  %11081 = vmatpush1.bf16.msra.mxu0 %v11011
  %11082 = vmatprep.subr.bf16.mxu0 0
  %11083 = vmatpush1.bf16.msra.mxu0 %v11010
  %11084 = vmatprep.subr.bf16.mxu0 0
  %11085 = vmatpush1.bf16.msra.mxu0 %v11009
  %11086 = vmatprep.subr.bf16.mxu0 0
  %11087 = vmatpush1.bf16.msra.mxu0 %v11008
  %11088 = vmatprep.subr.bf16.mxu0 0
  %11089 = vmatpush1.bf16.msra.mxu0 %v11007
  %11090 = vmatprep.subr.bf16.mxu0 0
  %11091 = vmatpush2.bf16.msra.mxu0 0
  %11092 = vmatprep.subr.bf16.mxu0 0
  %11093 = vmatpush2.bf16.msra.mxu0 0
  %11094 = vmatprep.subr.bf16.mxu0 0
  %11095 = vmatpush2.bf16.msra.mxu0 0
  %11096 = vmatprep.subr.bf16.mxu0 0
  %11097 = vmatpush2.bf16.msra.mxu0 0
  %11098 = vmatprep.subr.bf16.mxu0 0
  %11099 = vmatpush2.bf16.msra.mxu0 0
  %11100 = vmatprep.subr.bf16.mxu0 0
  %11101 = vmatpush2.bf16.msra.mxu0 0
  %11102 = vmatprep.subr.bf16.mxu0 0
  %11103 = vmatpush2.bf16.msra.mxu0 %v11072
  %11104 = vmatprep.subr.bf16.mxu0 0
  %11105 = vmatpush2.bf16.msra.mxu0 %v11015
  %11106 = vmatprep.mubr.bf16.mxu0 %v11027
  %11107 = vmatmul.mubr.bf16.gmra.mxu0 %v10896
  %v11108 = vpop.f32.mrf.mxu0
  %v11109 = vadd.f32 0.0, %v11108
  %v11110 = vpop.f32.mrf.mxu0
  %v11111 = vpop.f32.mrf.mxu0
  %v11112 = vadd.f32 0.0, %v11111
  %v11113 = vpop.f32.mrf.mxu0
  %11114 = vmatprep.mubr.bf16.mxu0 %v11030
  %11115 = vmatmul.mubr.bf16.gmra.mxu0 %v10901
  %v11116 = vpop.f32.mrf.mxu0
  %v11117 = vadd.f32 0.0, %v11116
  %v11118 = vpop.f32.mrf.mxu0
  %v11119 = vpop.f32.mrf.mxu0
  %v11120 = vadd.f32 0.0, %v11119
  %v11121 = vpop.f32.mrf.mxu0
  %11122 = vmatprep.mubr.bf16.mxu0 %v11033
  %11123 = vmatmul.mubr.bf16.gmra.mxu0 %v10905
  %v11124 = vpop.f32.mrf.mxu0
  %v11125 = vadd.f32 0.0, %v11124
  %v11126 = vpop.f32.mrf.mxu0
  %v11127 = vpop.f32.mrf.mxu0
  %v11128 = vadd.f32 0.0, %v11127
  %v11129 = vpop.f32.mrf.mxu0
  %11130 = vmatprep.mubr.bf16.mxu0 %v11036
  %11131 = vmatmul.mubr.bf16.gmra.mxu0 %v10909
  %v11132 = vpop.f32.mrf.mxu0
  %v11133 = vadd.f32 0.0, %v11132
  %v11134 = vpop.f32.mrf.mxu0
  %v11135 = vpop.f32.mrf.mxu0
  %v11136 = vadd.f32 0.0, %v11135
  %v11137 = vpop.f32.mrf.mxu0
  %11138 = vmatprep.mubr.bf16.mxu0 %v11039
  %11139 = vmatmul.mubr.bf16.gmra.mxu0 %v10913
  %v11140 = vpop.f32.mrf.mxu0
  %v11141 = vadd.f32 0.0, %v11140
  %v11142 = vpop.f32.mrf.mxu0
  %v11143 = vpop.f32.mrf.mxu0
  %v11144 = vadd.f32 0.0, %v11143
  %v11145 = vpop.f32.mrf.mxu0
  %11146 = vmatprep.mubr.bf16.mxu0 %v11042
  %11147 = vmatmul.mubr.bf16.gmra.mxu0 %v10917
  %v11148 = vpop.f32.mrf.mxu0
  %v11149 = vadd.f32 0.0, %v11148
  %v11150 = vpop.f32.mrf.mxu0
  %v11151 = vpop.f32.mrf.mxu0
  %v11152 = vadd.f32 0.0, %v11151
  %v11153 = vpop.f32.mrf.mxu0
  %11154 = vmatprep.mubr.bf16.mxu0 %v11045
  %11155 = vmatmul.mubr.bf16.gmra.mxu0 %v10921
  %v11156 = vpop.f32.mrf.mxu0
  %v11157 = vadd.f32 0.0, %v11156
  %v11158 = vpop.f32.mrf.mxu0
  %v11159 = vpop.f32.mrf.mxu0
  %v11160 = vadd.f32 0.0, %v11159
  %v11161 = vpop.f32.mrf.mxu0
  %11162 = vmatprep.mubr.bf16.mxu0 %v11048
  %11163 = vmatmul.mubr.bf16.gmra.mxu0 %v10925
  %v11164 = vpop.f32.mrf.mxu0
  %v11165 = vadd.f32 0.0, %v11164
  %v11166 = vpop.f32.mrf.mxu0
  %v11167 = vpop.f32.mrf.mxu0
  %v11168 = vadd.f32 0.0, %v11167
  %v11169 = vpop.f32.mrf.mxu0
  %11170 = vmatprep.mubr.bf16.mxu0 %v11051
  %11171 = vmatmul.mubr.bf16.gmra.mxu0 %v10929
  %v11172 = vpop.f32.mrf.mxu0
  %v11173 = vadd.f32 0.0, %v11172
  %v11174 = vpop.f32.mrf.mxu0
  %v11175 = vpop.f32.mrf.mxu0
  %v11176 = vadd.f32 0.0, %v11175
  %v11177 = vpop.f32.mrf.mxu0
  %11178 = vmatprep.mubr.bf16.mxu0 %v11054
  %11179 = vmatmul.mubr.bf16.gmra.mxu0 %v10933
  %v11180 = vpop.f32.mrf.mxu0
  %v11181 = vadd.f32 0.0, %v11180
  %v11182 = vpop.f32.mrf.mxu0
  %v11183 = vpop.f32.mrf.mxu0
  %v11184 = vadd.f32 0.0, %v11183
  %v11185 = vpop.f32.mrf.mxu0
  %11186 = vmatprep.mubr.bf16.mxu0 %v11057
  %11187 = vmatmul.mubr.bf16.gmra.mxu0 %v10937
  %v11188 = vpop.f32.mrf.mxu0
  %v11189 = vadd.f32 0.0, %v11188
  %v11190 = vpop.f32.mrf.mxu0
  %v11191 = vpop.f32.mrf.mxu0
  %v11192 = vadd.f32 0.0, %v11191
  %v11193 = vpop.f32.mrf.mxu0
  %11194 = vmatprep.mubr.bf16.mxu0 %v11060
  %11195 = vmatmul.mubr.bf16.gmra.mxu0 %v10941
  %v11196 = vpop.f32.mrf.mxu0
  %v11197 = vadd.f32 0.0, %v11196
  %v11198 = vpop.f32.mrf.mxu0
  %v11199 = vpop.f32.mrf.mxu0
  %v11200 = vadd.f32 0.0, %v11199
  %v11201 = vpop.f32.mrf.mxu0
  %11202 = vmatprep.mubr.bf16.mxu0 %v11063
  %11203 = vmatmul.mubr.bf16.gmra.mxu0 %v10945
  %v11204 = vpop.f32.mrf.mxu0
  %v11205 = vadd.f32 0.0, %v11204
  %v11206 = vpop.f32.mrf.mxu0
  %v11207 = vpop.f32.mrf.mxu0
  %v11208 = vadd.f32 0.0, %v11207
  %v11209 = vpop.f32.mrf.mxu0
  %11210 = vmatprep.mubr.bf16.mxu0 %v11066
  %11211 = vmatmul.mubr.bf16.gmra.mxu0 %v10949
  %v11212 = vpop.f32.mrf.mxu0
  %v11213 = vadd.f32 0.0, %v11212
  %v11214 = vpop.f32.mrf.mxu0
  %v11215 = vpop.f32.mrf.mxu0
  %v11216 = vadd.f32 0.0, %v11215
  %v11217 = vpop.f32.mrf.mxu0
  %11218 = vmatprep.mubr.bf16.mxu0 %v11069
  %11219 = vmatmul.mubr.bf16.gmra.mxu0 %v10948
  %v11220 = vpop.f32.mrf.mxu0
  %v11221 = vadd.f32 0.0, %v11220
  %v11222 = vpop.f32.mrf.mxu0
  %v11223 = vpop.f32.mrf.mxu0
  %v11224 = vpop.f32.mrf.mxu0
  %11225 = vdwg.mxu0
  %v11226 = vld [vmem:[#allocation6] sm:$0xff]
  %v11227 = vld [vmem:[#allocation6 + $0x8] sm:$0xff]
  %v11228 = vld [vmem:[#allocation6 + $0x10] sm:$0xff]
  %v11229 = vld [vmem:[#allocation6 + $0x18] sm:$0xff]
  %v11230 = vld [vmem:[#allocation6 + $0x20] sm:$0xff]
  %v11231 = vld [vmem:[#allocation6 + $0x28] sm:$0xff]
  %v11232 = vld [vmem:[#allocation6 + $0x30] sm:$0xff]
  %v11233 = vld [vmem:[#allocation6 + $0x38] sm:$0xff]
  %v11234 = vld [vmem:[#allocation6 + $0x40] sm:$0xff]
  %v11235 = vld [vmem:[#allocation6 + $0x48] sm:$0xff]
  %v11236 = vld [vmem:[#allocation6 + $0x50] sm:$0xff]
  %v11237 = vld [vmem:[#allocation6 + $0x58] sm:$0xff]
  %v11238 = vld [vmem:[#allocation6 + $0x60] sm:$0xff]
  %v11239 = vld [vmem:[#allocation6 + $0x68] sm:$0xff]
  %v11240 = vld [vmem:[#allocation6 + $0x70] sm:$0xff]
  %v11241 = vld [vmem:[#allocation6 + $0x78] sm:$0xff]
  %v11242 = vld [vmem:[#allocation6 + $0x80] sm:$0xff]
  %v11243 = vld [vmem:[#allocation6 + $0x88] sm:$0xff]
  %v11244 = vld [vmem:[#allocation6 + $0x90] sm:$0xff]
  %v11245 = vld [vmem:[#allocation6 + $0x98] sm:$0xff]
  %v11246 = vld [vmem:[#allocation6 + $0xa0] sm:$0xff]
  %v11247 = vld [vmem:[#allocation6 + $0xa8] sm:$0xff]
  %v11248 = vld [vmem:[#allocation6 + $0xb0] sm:$0xff]
  %v11249 = vld [vmem:[#allocation6 + $0xb8] sm:$0xff]
  %v11250 = vld [vmem:[#allocation6 + $0xc0] sm:$0xff]
  %v11251 = vld [vmem:[#allocation6 + $0xc8] sm:$0xff]
  %v11252 = vld [vmem:[#allocation6 + $0xd0] sm:$0xff]
  %v11253 = vld [vmem:[#allocation6 + $0xd8] sm:$0xff]
  %v11254 = vld [vmem:[#allocation6 + $0xe0] sm:$0x1]
  %v11255 = vadd.f32 %v11226, %v11109
  %v11256 = vadd.f32 %v11227, %v11112
  %v11257 = vadd.f32 %v11228, %v11117
  %v11258 = vadd.f32 %v11229, %v11120
  %v11259 = vadd.f32 %v11230, %v11125
  %v11260 = vadd.f32 %v11231, %v11128
  %v11261 = vadd.f32 %v11232, %v11133
  %v11262 = vadd.f32 %v11233, %v11136
  %v11263 = vadd.f32 %v11234, %v11141
  %v11264 = vadd.f32 %v11235, %v11144
  %v11265 = vadd.f32 %v11236, %v11149
  %v11266 = vadd.f32 %v11237, %v11152
  %v11267 = vadd.f32 %v11238, %v11157
  %v11268 = vadd.f32 %v11239, %v11160
  %v11269 = vadd.f32 %v11240, %v11165
  %v11270 = vadd.f32 %v11241, %v11168
  %v11271 = vadd.f32 %v11242, %v11173
  %v11272 = vadd.f32 %v11243, %v11176
  %v11273 = vadd.f32 %v11244, %v11181
  %v11274 = vadd.f32 %v11245, %v11184
  %v11275 = vadd.f32 %v11246, %v11189
  %v11276 = vadd.f32 %v11247, %v11192
  %v11277 = vadd.f32 %v11248, %v11197
  %v11278 = vadd.f32 %v11249, %v11200
  %v11279 = vadd.f32 %v11250, %v11205
  %v11280 = vadd.f32 %v11251, %v11208
  %v11281 = vadd.f32 %v11252, %v11213
  %v11282 = vadd.f32 %v11253, %v11216
  %v11283 = vadd.f32 %v11254, %v11221
  %11284 = vst [vmem:[#allocation6] sm:$0xff] %v11255
  %11285 = vst [vmem:[#allocation6 + $0x8] sm:$0xff] %v11256
  %11286 = vst [vmem:[#allocation6 + $0x10] sm:$0xff] %v11257
  %11287 = vst [vmem:[#allocation6 + $0x18] sm:$0xff] %v11258
  %11288 = vst [vmem:[#allocation6 + $0x20] sm:$0xff] %v11259
  %11289 = vst [vmem:[#allocation6 + $0x28] sm:$0xff] %v11260
  %11290 = vst [vmem:[#allocation6 + $0x30] sm:$0xff] %v11261
  %11291 = vst [vmem:[#allocation6 + $0x38] sm:$0xff] %v11262
  %11292 = vst [vmem:[#allocation6 + $0x40] sm:$0xff] %v11263
  %11293 = vst [vmem:[#allocation6 + $0x48] sm:$0xff] %v11264
  %11294 = vst [vmem:[#allocation6 + $0x50] sm:$0xff] %v11265
  %11295 = vst [vmem:[#allocation6 + $0x58] sm:$0xff] %v11266
  %11296 = vst [vmem:[#allocation6 + $0x60] sm:$0xff] %v11267
  %11297 = vst [vmem:[#allocation6 + $0x68] sm:$0xff] %v11268
  %11298 = vst [vmem:[#allocation6 + $0x70] sm:$0xff] %v11269
  %11299 = vst [vmem:[#allocation6 + $0x78] sm:$0xff] %v11270
  %11300 = vst [vmem:[#allocation6 + $0x80] sm:$0xff] %v11271
  %11301 = vst [vmem:[#allocation6 + $0x88] sm:$0xff] %v11272
  %11302 = vst [vmem:[#allocation6 + $0x90] sm:$0xff] %v11273
  %11303 = vst [vmem:[#allocation6 + $0x98] sm:$0xff] %v11274
  %11304 = vst [vmem:[#allocation6 + $0xa0] sm:$0xff] %v11275
  %11305 = vst [vmem:[#allocation6 + $0xa8] sm:$0xff] %v11276
  %11306 = vst [vmem:[#allocation6 + $0xb0] sm:$0xff] %v11277
  %11307 = vst [vmem:[#allocation6 + $0xb8] sm:$0xff] %v11278
  %11308 = vst [vmem:[#allocation6 + $0xc0] sm:$0xff] %v11279
  %11309 = vst [vmem:[#allocation6 + $0xc8] sm:$0xff] %v11280
  %11310 = vst [vmem:[#allocation6 + $0xd0] sm:$0xff] %v11281
  %11311 = vst [vmem:[#allocation6 + $0xd8] sm:$0xff] %v11282
  %11312 = vst [vmem:[#allocation6 + $0xe0] sm:$0x1] %v11283
  %v11313 = vld [vmem:[#allocation5 + $0x10] sm:$0xff]
  %v11314 = vld [vmem:[#allocation5 + $0x18] sm:$0xff]
  %v11315 = vld [vmem:[#allocation5 + $0x20] sm:$0xff]
  %v11316 = vld [vmem:[#allocation5 + $0x28] sm:$0xff]
  %v11317 = vld [vmem:[#allocation5 + $0x30] sm:$0xff]
  %v11318 = vld [vmem:[#allocation5 + $0x38] sm:$0xff]
  %v11319 = vld [vmem:[#allocation5 + $0x40] sm:$0xff]
  %v11320 = vld [vmem:[#allocation5 + $0x48] sm:$0xff]
  %v11321 = vld [vmem:[#allocation5 + $0x50] sm:$0xff]
  %v11322 = vld [vmem:[#allocation5 + $0x58] sm:$0xff]
  %v11323 = vld [vmem:[#allocation5 + $0x60] sm:$0xff]
  %v11324 = vld [vmem:[#allocation5 + $0x68] sm:$0xff]
  %v11325 = vld [vmem:[#allocation5 + $0x70] sm:$0xff]
  %v11326 = vld [vmem:[#allocation5 + $0x78] sm:$0xff]
  %v11327 = vld [vmem:[#allocation5 + $0x80] sm:$0xff]
  %v11328 = vld [vmem:[#allocation5 + $0x88] sm:$0xff]
  %v11329 = vld [vmem:[#allocation5 + $0x90] sm:$0xff]
  %v11330 = vld [vmem:[#allocation5 + $0x98] sm:$0xff]
  %v11331 = vld [vmem:[#allocation5 + $0xa0] sm:$0xff]
  %v11332 = vld [vmem:[#allocation5 + $0xa8] sm:$0xff]
  %v11333 = vld [vmem:[#allocation5 + $0xb0] sm:$0xff]
  %v11334 = vld [vmem:[#allocation5 + $0xb8] sm:$0xff]
  %v11335 = vld [vmem:[#allocation5 + $0xc0] sm:$0xff]
  %v11336 = vld [vmem:[#allocation5 + $0xc8] sm:$0xff]
  %v11337 = vld [vmem:[#allocation5 + $0xd0] sm:$0xff]
  %v11338 = vld [vmem:[#allocation5 + $0xd8] sm:$0xff]
  %v11339 = vld [vmem:[#allocation5 + $0xe0] sm:$0xff]
  %v11340 = vld [vmem:[#allocation5 + $0xe8] sm:$0xff]
  %v11341 = vld [vmem:[#allocation5 + $0xf0] sm:$0x11]
  %s11342 = scalar_lea.vmem %s5, 320
  %v11343 = vld [vmem:[%s11342] sm:$0xf]
  %v11344 = vld [vmem:[%s11342 + $0x4] sm:$0xf]
  %v11345 = vld [vmem:[%s11342 + $0x8] sm:$0xf]
  %v11346 = vld [vmem:[%s11342 + $0xc] sm:$0xf]
  %v11347 = vld [vmem:[%s11342 + $0x10] sm:$0xf]
  %v11348 = vld [vmem:[%s11342 + $0x14] sm:$0xf]
  %v11349 = vld [vmem:[%s11342 + $0x18] sm:$0xf]
  %v11350 = vld [vmem:[%s11342 + $0x1c] sm:$0xf]
  %v11351 = vld [vmem:[%s11342 + $0x20] sm:$0xf]
  %v11352 = vld [vmem:[%s11342 + $0x24] sm:$0xf]
  %v11353 = vld [vmem:[%s11342 + $0x28] sm:$0xf]
  %v11354 = vld [vmem:[%s11342 + $0x2c] sm:$0xf]
  %v11355 = vld [vmem:[%s11342 + $0x30] sm:$0xf]
  %v11356 = vld [vmem:[%s11342 + $0x34] sm:$0xf]
  %v11357 = vld [vmem:[%s11342 + $0x38] sm:$0xf]
  %v11358 = vld [vmem:[%s11342 + $0x3c] sm:$0xf]
  %v11359 = vld [vmem:[%s11342 + $0x40] sm:$0xf]
  %v11360 = vld [vmem:[%s11342 + $0x44] sm:$0xf]
  %v11361 = vld [vmem:[%s11342 + $0x48] sm:$0xf]
  %v11362 = vld [vmem:[%s11342 + $0x4c] sm:$0xf]
  %v11392 = vunpack.c.l.b16 %v11313
  %v11393 = vunpack.c.h.b16 %v11313
  %v11394 = vunpack.c.l.b16 %v11314
  %v11395 = vunpack.c.h.b16 %v11314
  %v11396 = vunpack.c.l.b16 %v11315
  %v11397 = vunpack.c.h.b16 %v11315
  %v11398 = vunpack.c.l.b16 %v11316
  %v11399 = vunpack.c.h.b16 %v11316
  %v11400 = vunpack.c.l.b16 %v11317
  %v11401 = vunpack.c.h.b16 %v11317
  %v11402 = vunpack.c.l.b16 %v11318
  %v11403 = vunpack.c.h.b16 %v11318
  %v11404 = vunpack.c.l.b16 %v11319
  %v11405 = vunpack.c.h.b16 %v11319
  %v11406 = vunpack.c.l.b16 %v11320
  %v11407 = vunpack.c.h.b16 %v11320
  %v11408 = vunpack.c.l.b16 %v11321
  %v11409 = vunpack.c.h.b16 %v11321
  %v11410 = vunpack.c.l.b16 %v11322
  %v11411 = vunpack.c.h.b16 %v11322
  %v11412 = vunpack.c.l.b16 %v11323
  %v11413 = vunpack.c.h.b16 %v11323
  %v11414 = vunpack.c.l.b16 %v11324
  %v11415 = vunpack.c.h.b16 %v11324
  %v11416 = vunpack.c.l.b16 %v11325
  %v11417 = vunpack.c.h.b16 %v11325
  %v11418 = vunpack.c.l.b16 %v11326
  %v11419 = vunpack.c.h.b16 %v11326
  %v11420 = vunpack.c.l.b16 %v11327
  %v11421 = vunpack.c.h.b16 %v11327
  %v11422 = vunpack.c.l.b16 %v11328
  %v11423 = vunpack.c.h.b16 %v11328
  %v11424 = vunpack.c.l.b16 %v11329
  %v11425 = vunpack.c.h.b16 %v11329
  %v11426 = vunpack.c.l.b16 %v11330
  %v11427 = vunpack.c.h.b16 %v11330
  %v11428 = vunpack.c.l.b16 %v11331
  %v11429 = vunpack.c.h.b16 %v11331
  %v11430 = vunpack.c.l.b16 %v11332
  %v11431 = vunpack.c.h.b16 %v11332
  %v11432 = vunpack.c.l.b16 %v11333
  %v11433 = vunpack.c.h.b16 %v11333
  %v11434 = vunpack.c.l.b16 %v11334
  %v11435 = vunpack.c.h.b16 %v11334
  %v11436 = vunpack.c.l.b16 %v11335
  %v11437 = vunpack.c.h.b16 %v11335
  %v11438 = vunpack.c.l.b16 %v11336
  %v11439 = vunpack.c.h.b16 %v11336
  %v11440 = vunpack.c.l.b16 %v11337
  %v11441 = vunpack.c.h.b16 %v11337
  %v11442 = vunpack.c.l.b16 %v11338
  %v11443 = vunpack.c.h.b16 %v11338
  %v11444 = vunpack.c.l.b16 %v11339
  %v11445 = vunpack.c.h.b16 %v11339
  %v11446 = vunpack.c.l.b16 %v11340
  %v11447 = vunpack.c.h.b16 %v11340
  %v11448 = vunpack.c.l.b16 %v11341
  %v11449 = vunpack.c.h.b16 %v11341
  %v11450 = vpack.c.b16 %v11394, %v11392
  %v11451 = vpack.c.b16 %v11395, %v11393
  %v11452 = vpack.c.b16 %v11398, %v11396
  %v11453 = vpack.c.b16 %v11399, %v11397
  %v11454 = vpack.c.b16 %v11402, %v11400
  %v11455 = vpack.c.b16 %v11403, %v11401
  %v11456 = vpack.c.b16 %v11406, %v11404
  %v11457 = vpack.c.b16 %v11407, %v11405
  %v11458 = vpack.c.b16 %v11410, %v11408
  %v11459 = vpack.c.b16 %v11411, %v11409
  %v11460 = vpack.c.b16 %v11414, %v11412
  %v11461 = vpack.c.b16 %v11415, %v11413
  %v11462 = vpack.c.b16 %v11418, %v11416
  %v11463 = vpack.c.b16 %v11419, %v11417
  %v11464 = vpack.c.b16 %v11422, %v11420
  %v11465 = vpack.c.b16 %v11423, %v11421
  %v11466 = vpack.c.b16 %v11426, %v11424
  %v11467 = vpack.c.b16 %v11427, %v11425
  %v11468 = vpack.c.b16 %v11430, %v11428
  %v11469 = vpack.c.b16 %v11431, %v11429
  %v11470 = vpack.c.b16 %v11434, %v11432
  %v11471 = vpack.c.b16 %v11435, %v11433
  %v11472 = vpack.c.b16 %v11438, %v11436
  %v11473 = vpack.c.b16 %v11439, %v11437
  %v11474 = vpack.c.b16 %v11442, %v11440
  %v11475 = vpack.c.b16 %v11443, %v11441
  %v11476 = vpack.c.b16 %v11446, %v11444
  %v11477 = vpack.c.b16 %v11447, %v11445
  %v11478 = vpack.c.b16 %v11448, %v11448
  %v11479 = vpack.c.b16 %v11449, %v11449
  %v11515 = vunpack.c.l.b16 %v11343
  %v11516 = vunpack.c.l.b16 %v11344
  %v11517 = vunpack.c.l.b16 %v11345
  %v11518 = vunpack.c.l.b16 %v11346
  %v11519 = vunpack.c.l.b16 %v11347
  %v11520 = vunpack.c.l.b16 %v11348
  %v11521 = vunpack.c.l.b16 %v11349
  %v11522 = vunpack.c.l.b16 %v11350
  %v11523 = vunpack.c.l.b16 %v11351
  %v11524 = vunpack.c.l.b16 %v11352
  %v11525 = vunpack.c.l.b16 %v11353
  %v11526 = vunpack.c.l.b16 %v11354
  %v11527 = vunpack.c.l.b16 %v11355
  %v11528 = vunpack.c.l.b16 %v11356
  %v11529 = vunpack.c.l.b16 %v11357
  %v11530 = vunpack.c.l.b16 %v11358
  %v11531 = vunpack.c.l.b16 %v11359
  %v11532 = vunpack.c.l.b16 %v11360
  %v11533 = vunpack.c.l.b16 %v11361
  %v11534 = vunpack.c.l.b16 %v11362
  %v11535 = vpack.c.b16 %v11516, %v11515
  %v11536 = vpack.c.b16 %v11518, %v11517
  %v11537 = vpack.c.b16 %v11520, %v11519
  %v11538 = vpack.c.b16 %v11522, %v11521
  %v11539 = vpack.c.b16 %v11524, %v11523
  %v11540 = vpack.c.b16 %v11526, %v11525
  %v11541 = vpack.c.b16 %v11528, %v11527
  %v11542 = vpack.c.b16 %v11530, %v11529
  %v11543 = vpack.c.b16 %v11532, %v11531
  %v11544 = vpack.c.b16 %v11534, %v11533
  %v11555 = vsel %vm9380, %v11451, 0
  %v11558 = vsel %vm9380, %v11453, 0
  %v11561 = vsel %vm9380, %v11455, 0
  %v11564 = vsel %vm9380, %v11457, 0
  %v11567 = vsel %vm9380, %v11459, 0
  %v11570 = vsel %vm9380, %v11461, 0
  %v11573 = vsel %vm9380, %v11463, 0
  %v11576 = vsel %vm9380, %v11465, 0
  %v11579 = vsel %vm9380, %v11467, 0
  %v11582 = vsel %vm9380, %v11469, 0
  %v11585 = vsel %vm9380, %v11471, 0
  %v11588 = vsel %vm9380, %v11473, 0
  %v11591 = vsel %vm9380, %v11475, 0
  %v11594 = vsel %vm9380, %v11477, 0
  %v11597 = vsel %vm9380, %v11479, 0
  %v11600 = vand.u32 %v11544, %v9428
  %11602 = vmatprep.subr.bf16.mxu0 0
  %11603 = vmatpush1.bf16.msra.mxu0 %v11542
  %11604 = vmatprep.subr.bf16.mxu0 0
  %11605 = vmatpush1.bf16.msra.mxu0 %v11541
  %11606 = vmatprep.subr.bf16.mxu0 0
  %11607 = vmatpush1.bf16.msra.mxu0 %v11540
  %11608 = vmatprep.subr.bf16.mxu0 0
  %11609 = vmatpush1.bf16.msra.mxu0 %v11539
  %11610 = vmatprep.subr.bf16.mxu0 0
  %11611 = vmatpush1.bf16.msra.mxu0 %v11538
  %11612 = vmatprep.subr.bf16.mxu0 0
  %11613 = vmatpush1.bf16.msra.mxu0 %v11537
  %11614 = vmatprep.subr.bf16.mxu0 0
  %11615 = vmatpush1.bf16.msra.mxu0 %v11536
  %11616 = vmatprep.subr.bf16.mxu0 0
  %11617 = vmatpush1.bf16.msra.mxu0 %v11535
  %11618 = vmatprep.subr.bf16.mxu0 0
  %11619 = vmatpush2.bf16.msra.mxu0 0
  %11620 = vmatprep.subr.bf16.mxu0 0
  %11621 = vmatpush2.bf16.msra.mxu0 0
  %11622 = vmatprep.subr.bf16.mxu0 0
  %11623 = vmatpush2.bf16.msra.mxu0 0
  %11624 = vmatprep.subr.bf16.mxu0 0
  %11625 = vmatpush2.bf16.msra.mxu0 0
  %11626 = vmatprep.subr.bf16.mxu0 0
  %11627 = vmatpush2.bf16.msra.mxu0 0
  %11628 = vmatprep.subr.bf16.mxu0 0
  %11629 = vmatpush2.bf16.msra.mxu0 0
  %11630 = vmatprep.subr.bf16.mxu0 0
  %11631 = vmatpush2.bf16.msra.mxu0 %v11600
  %11632 = vmatprep.subr.bf16.mxu0 0
  %11633 = vmatpush2.bf16.msra.mxu0 %v11543
  %11634 = vmatprep.mubr.bf16.mxu0 %v11555
  %11635 = vmatmul.mubr.bf16.gmra.mxu0 %v11450
  %v11636 = vpop.f32.mrf.mxu0
  %v11637 = vadd.f32 0.0, %v11636
  %v11638 = vpop.f32.mrf.mxu0
  %v11639 = vpop.f32.mrf.mxu0
  %v11640 = vadd.f32 0.0, %v11639
  %v11641 = vpop.f32.mrf.mxu0
  %11642 = vmatprep.mubr.bf16.mxu0 %v11558
  %11643 = vmatmul.mubr.bf16.gmra.mxu0 %v11452
  %v11644 = vpop.f32.mrf.mxu0
  %v11645 = vadd.f32 0.0, %v11644
  %v11646 = vpop.f32.mrf.mxu0
  %v11647 = vpop.f32.mrf.mxu0
  %v11648 = vadd.f32 0.0, %v11647
  %v11649 = vpop.f32.mrf.mxu0
  %11650 = vmatprep.mubr.bf16.mxu0 %v11561
  %11651 = vmatmul.mubr.bf16.gmra.mxu0 %v11454
  %v11652 = vpop.f32.mrf.mxu0
  %v11653 = vadd.f32 0.0, %v11652
  %v11654 = vpop.f32.mrf.mxu0
  %v11655 = vpop.f32.mrf.mxu0
  %v11656 = vadd.f32 0.0, %v11655
  %v11657 = vpop.f32.mrf.mxu0
  %11658 = vmatprep.mubr.bf16.mxu0 %v11564
  %11659 = vmatmul.mubr.bf16.gmra.mxu0 %v11456
  %v11660 = vpop.f32.mrf.mxu0
  %v11661 = vadd.f32 0.0, %v11660
  %v11662 = vpop.f32.mrf.mxu0
  %v11663 = vpop.f32.mrf.mxu0
  %v11664 = vadd.f32 0.0, %v11663
  %v11665 = vpop.f32.mrf.mxu0
  %11666 = vmatprep.mubr.bf16.mxu0 %v11567
  %11667 = vmatmul.mubr.bf16.gmra.mxu0 %v11458
  %v11668 = vpop.f32.mrf.mxu0
  %v11669 = vadd.f32 0.0, %v11668
  %v11670 = vpop.f32.mrf.mxu0
  %v11671 = vpop.f32.mrf.mxu0
  %v11672 = vadd.f32 0.0, %v11671
  %v11673 = vpop.f32.mrf.mxu0
  %11674 = vmatprep.mubr.bf16.mxu0 %v11570
  %11675 = vmatmul.mubr.bf16.gmra.mxu0 %v11460
  %v11676 = vpop.f32.mrf.mxu0
  %v11677 = vadd.f32 0.0, %v11676
  %v11678 = vpop.f32.mrf.mxu0
  %v11679 = vpop.f32.mrf.mxu0
  %v11680 = vadd.f32 0.0, %v11679
  %v11681 = vpop.f32.mrf.mxu0
  %11682 = vmatprep.mubr.bf16.mxu0 %v11573
  %11683 = vmatmul.mubr.bf16.gmra.mxu0 %v11462
  %v11684 = vpop.f32.mrf.mxu0
  %v11685 = vadd.f32 0.0, %v11684
  %v11686 = vpop.f32.mrf.mxu0
  %v11687 = vpop.f32.mrf.mxu0
  %v11688 = vadd.f32 0.0, %v11687
  %v11689 = vpop.f32.mrf.mxu0
  %11690 = vmatprep.mubr.bf16.mxu0 %v11576
  %11691 = vmatmul.mubr.bf16.gmra.mxu0 %v11464
  %v11692 = vpop.f32.mrf.mxu0
  %v11693 = vadd.f32 0.0, %v11692
  %v11694 = vpop.f32.mrf.mxu0
  %v11695 = vpop.f32.mrf.mxu0
  %v11696 = vadd.f32 0.0, %v11695
  %v11697 = vpop.f32.mrf.mxu0
  %11698 = vmatprep.mubr.bf16.mxu0 %v11579
  %11699 = vmatmul.mubr.bf16.gmra.mxu0 %v11466
  %v11700 = vpop.f32.mrf.mxu0
  %v11701 = vadd.f32 0.0, %v11700
  %v11702 = vpop.f32.mrf.mxu0
  %v11703 = vpop.f32.mrf.mxu0
  %v11704 = vadd.f32 0.0, %v11703
  %v11705 = vpop.f32.mrf.mxu0
  %11706 = vmatprep.mubr.bf16.mxu0 %v11582
  %11707 = vmatmul.mubr.bf16.gmra.mxu0 %v11468
  %v11708 = vpop.f32.mrf.mxu0
  %v11709 = vadd.f32 0.0, %v11708
  %v11710 = vpop.f32.mrf.mxu0
  %v11711 = vpop.f32.mrf.mxu0
  %v11712 = vadd.f32 0.0, %v11711
  %v11713 = vpop.f32.mrf.mxu0
  %11714 = vmatprep.mubr.bf16.mxu0 %v11585
  %11715 = vmatmul.mubr.bf16.gmra.mxu0 %v11470
  %v11716 = vpop.f32.mrf.mxu0
  %v11717 = vadd.f32 0.0, %v11716
  %v11718 = vpop.f32.mrf.mxu0
  %v11719 = vpop.f32.mrf.mxu0
  %v11720 = vadd.f32 0.0, %v11719
  %v11721 = vpop.f32.mrf.mxu0
  %11722 = vmatprep.mubr.bf16.mxu0 %v11588
  %11723 = vmatmul.mubr.bf16.gmra.mxu0 %v11472
  %v11724 = vpop.f32.mrf.mxu0
  %v11725 = vadd.f32 0.0, %v11724
  %v11726 = vpop.f32.mrf.mxu0
  %v11727 = vpop.f32.mrf.mxu0
  %v11728 = vadd.f32 0.0, %v11727
  %v11729 = vpop.f32.mrf.mxu0
  %11730 = vmatprep.mubr.bf16.mxu0 %v11591
  %11731 = vmatmul.mubr.bf16.gmra.mxu0 %v11474
  %v11732 = vpop.f32.mrf.mxu0
  %v11733 = vadd.f32 0.0, %v11732
  %v11734 = vpop.f32.mrf.mxu0
  %v11735 = vpop.f32.mrf.mxu0
  %v11736 = vadd.f32 0.0, %v11735
  %v11737 = vpop.f32.mrf.mxu0
  %11738 = vmatprep.mubr.bf16.mxu0 %v11594
  %11739 = vmatmul.mubr.bf16.gmra.mxu0 %v11476
  %v11740 = vpop.f32.mrf.mxu0
  %v11741 = vadd.f32 0.0, %v11740
  %v11742 = vpop.f32.mrf.mxu0
  %v11743 = vpop.f32.mrf.mxu0
  %v11744 = vadd.f32 0.0, %v11743
  %v11745 = vpop.f32.mrf.mxu0
  %11746 = vmatprep.mubr.bf16.mxu0 %v11597
  %11747 = vmatmul.mubr.bf16.gmra.mxu0 %v11478
  %v11748 = vpop.f32.mrf.mxu0
  %v11749 = vadd.f32 0.0, %v11748
  %v11750 = vpop.f32.mrf.mxu0
  %v11751 = vpop.f32.mrf.mxu0
  %v11752 = vpop.f32.mrf.mxu0
  %11753 = vdwg.mxu0
  %v11754 = vld [vmem:[#allocation6] sm:$0xff]
  %v11755 = vld [vmem:[#allocation6 + $0x8] sm:$0xff]
  %v11756 = vld [vmem:[#allocation6 + $0x10] sm:$0xff]
  %v11757 = vld [vmem:[#allocation6 + $0x18] sm:$0xff]
  %v11758 = vld [vmem:[#allocation6 + $0x20] sm:$0xff]
  %v11759 = vld [vmem:[#allocation6 + $0x28] sm:$0xff]
  %v11760 = vld [vmem:[#allocation6 + $0x30] sm:$0xff]
  %v11761 = vld [vmem:[#allocation6 + $0x38] sm:$0xff]
  %v11762 = vld [vmem:[#allocation6 + $0x40] sm:$0xff]
  %v11763 = vld [vmem:[#allocation6 + $0x48] sm:$0xff]
  %v11764 = vld [vmem:[#allocation6 + $0x50] sm:$0xff]
  %v11765 = vld [vmem:[#allocation6 + $0x58] sm:$0xff]
  %v11766 = vld [vmem:[#allocation6 + $0x60] sm:$0xff]
  %v11767 = vld [vmem:[#allocation6 + $0x68] sm:$0xff]
  %v11768 = vld [vmem:[#allocation6 + $0x70] sm:$0xff]
  %v11769 = vld [vmem:[#allocation6 + $0x78] sm:$0xff]
  %v11770 = vld [vmem:[#allocation6 + $0x80] sm:$0xff]
  %v11771 = vld [vmem:[#allocation6 + $0x88] sm:$0xff]
  %v11772 = vld [vmem:[#allocation6 + $0x90] sm:$0xff]
  %v11773 = vld [vmem:[#allocation6 + $0x98] sm:$0xff]
  %v11774 = vld [vmem:[#allocation6 + $0xa0] sm:$0xff]
  %v11775 = vld [vmem:[#allocation6 + $0xa8] sm:$0xff]
  %v11776 = vld [vmem:[#allocation6 + $0xb0] sm:$0xff]
  %v11777 = vld [vmem:[#allocation6 + $0xb8] sm:$0xff]
  %v11778 = vld [vmem:[#allocation6 + $0xc0] sm:$0xff]
  %v11779 = vld [vmem:[#allocation6 + $0xc8] sm:$0xff]
  %v11780 = vld [vmem:[#allocation6 + $0xd0] sm:$0xff]
  %v11781 = vld [vmem:[#allocation6 + $0xd8] sm:$0xff]
  %v11782 = vld [vmem:[#allocation6 + $0xe0] sm:$0x1]
  %v11783 = vadd.f32 %v11754, %v11637
  %v11784 = vadd.f32 %v11755, %v11640
  %v11785 = vadd.f32 %v11756, %v11645
  %v11786 = vadd.f32 %v11757, %v11648
  %v11787 = vadd.f32 %v11758, %v11653
  %v11788 = vadd.f32 %v11759, %v11656
  %v11789 = vadd.f32 %v11760, %v11661
  %v11790 = vadd.f32 %v11761, %v11664
  %v11791 = vadd.f32 %v11762, %v11669
  %v11792 = vadd.f32 %v11763, %v11672
  %v11793 = vadd.f32 %v11764, %v11677
  %v11794 = vadd.f32 %v11765, %v11680
  %v11795 = vadd.f32 %v11766, %v11685
  %v11796 = vadd.f32 %v11767, %v11688
  %v11797 = vadd.f32 %v11768, %v11693
  %v11798 = vadd.f32 %v11769, %v11696
  %v11799 = vadd.f32 %v11770, %v11701
  %v11800 = vadd.f32 %v11771, %v11704
  %v11801 = vadd.f32 %v11772, %v11709
  %v11802 = vadd.f32 %v11773, %v11712
  %v11803 = vadd.f32 %v11774, %v11717
  %v11804 = vadd.f32 %v11775, %v11720
  %v11805 = vadd.f32 %v11776, %v11725
  %v11806 = vadd.f32 %v11777, %v11728
  %v11807 = vadd.f32 %v11778, %v11733
  %v11808 = vadd.f32 %v11779, %v11736
  %v11809 = vadd.f32 %v11780, %v11741
  %v11810 = vadd.f32 %v11781, %v11744
  %v11811 = vadd.f32 %v11782, %v11749
  %11812 = vst [vmem:[#allocation6] sm:$0xff] %v11783
  %11813 = vst [vmem:[#allocation6 + $0x8] sm:$0xff] %v11784
  %11814 = vst [vmem:[#allocation6 + $0x10] sm:$0xff] %v11785
  %11815 = vst [vmem:[#allocation6 + $0x18] sm:$0xff] %v11786
  %11816 = vst [vmem:[#allocation6 + $0x20] sm:$0xff] %v11787
  %11817 = vst [vmem:[#allocation6 + $0x28] sm:$0xff] %v11788
  %11818 = vst [vmem:[#allocation6 + $0x30] sm:$0xff] %v11789
  %11819 = vst [vmem:[#allocation6 + $0x38] sm:$0xff] %v11790
  %11820 = vst [vmem:[#allocation6 + $0x40] sm:$0xff] %v11791
  %11821 = vst [vmem:[#allocation6 + $0x48] sm:$0xff] %v11792
  %11822 = vst [vmem:[#allocation6 + $0x50] sm:$0xff] %v11793
  %11823 = vst [vmem:[#allocation6 + $0x58] sm:$0xff] %v11794
  %11824 = vst [vmem:[#allocation6 + $0x60] sm:$0xff] %v11795
  %11825 = vst [vmem:[#allocation6 + $0x68] sm:$0xff] %v11796
  %11826 = vst [vmem:[#allocation6 + $0x70] sm:$0xff] %v11797
  %11827 = vst [vmem:[#allocation6 + $0x78] sm:$0xff] %v11798
  %11828 = vst [vmem:[#allocation6 + $0x80] sm:$0xff] %v11799
  %11829 = vst [vmem:[#allocation6 + $0x88] sm:$0xff] %v11800
  %11830 = vst [vmem:[#allocation6 + $0x90] sm:$0xff] %v11801
  %11831 = vst [vmem:[#allocation6 + $0x98] sm:$0xff] %v11802
  %11832 = vst [vmem:[#allocation6 + $0xa0] sm:$0xff] %v11803
  %11833 = vst [vmem:[#allocation6 + $0xa8] sm:$0xff] %v11804
  %11834 = vst [vmem:[#allocation6 + $0xb0] sm:$0xff] %v11805
  %11835 = vst [vmem:[#allocation6 + $0xb8] sm:$0xff] %v11806
  %11836 = vst [vmem:[#allocation6 + $0xc0] sm:$0xff] %v11807
  %11837 = vst [vmem:[#allocation6 + $0xc8] sm:$0xff] %v11808
  %11838 = vst [vmem:[#allocation6 + $0xd0] sm:$0xff] %v11809
  %11839 = vst [vmem:[#allocation6 + $0xd8] sm:$0xff] %v11810
  %11840 = vst [vmem:[#allocation6 + $0xe0] sm:$0x1] %v11811
  %v11841 = vld [vmem:[#allocation6] sm:$0x1]
  %v11842 = vld [vmem:[#allocation6 + $0x20] sm:$0x1]
  %v11843 = vld [vmem:[#allocation6 + $0x40] sm:$0x1]
  %v11844 = vld [vmem:[#allocation6 + $0x60] sm:$0x1]
  %v11845 = vld [vmem:[#allocation6 + $0x80] sm:$0x1]
  %v11846 = vld [vmem:[#allocation6 + $0xa0] sm:$0x1]
  %v11847 = vld [vmem:[#allocation6 + $0xc0] sm:$0x1]
  %v11848 = vld [vmem:[#allocation6 + $0xe0] sm:$0x1]
  %v11850 = vrot.slane %v11842, 7
  %v11853 = vrot.slane %v11843, 6
  %v11856 = vrot.slane %v11844, 5
  %v11859 = vrot.slane %v11845, 4
  %v11862 = vrot.slane %v11846, 3
  %v11865 = vrot.slane %v11847, 2
  %v11868 = vrot.slane %v11848, 1
  %vm11870 = vcmask 1040384
  %v11871 = vsel %vm11870, %v11841, %v11850
  %vm11872 = vcmask 1041408
  %v11873 = vsel %vm11872, %v11871, %v11853
  %v11874 = vsel %vm4750, %v11873, %v11856
  %v11875 = vsel %vm4347, %v11874, %v11859
  %vm11876 = vcmask 1044480
  %v11877 = vsel %vm11876, %v11875, %v11862
  %v11878 = vsel %vm8253, %v11877, %v11865
  %v11879 = vsel %vm3483, %v11878, %v11868
  %v11880 = vmax.f32 %v11879, 0.0
  %v11881 = vpack.c.bf16 %v11880, %v11880
  %v11882 = vld [vmem:[%s7] sm:$0xf]
  %v11883 = vld [vmem:[%s7 + $0x4] sm:$0xf]
  %v11884 = vld [vmem:[%s7 + $0x8] sm:$0xf]
  %v11885 = vld [vmem:[%s7 + $0xc] sm:$0xf]
  %v11886 = vld [vmem:[%s7 + $0x10] sm:$0xf]
  %v11887 = vld [vmem:[%s7 + $0x14] sm:$0xf]
  %v11888 = vld [vmem:[%s7 + $0x18] sm:$0xf]
  %v11889 = vld [vmem:[%s7 + $0x1c] sm:$0xf]
  %v11890 = vld [vmem:[%s7 + $0x20] sm:$0xf]
  %v11891 = vld [vmem:[%s7 + $0x24] sm:$0xf]
  %v11892 = vld [vmem:[%s7 + $0x28] sm:$0xf]
  %v11893 = vld [vmem:[%s7 + $0x2c] sm:$0xf]
  %v11894 = vld [vmem:[%s7 + $0x30] sm:$0xf]
  %v11895 = vld [vmem:[%s7 + $0x34] sm:$0xf]
  %v11896 = vld [vmem:[%s7 + $0x38] sm:$0xf]
  %v11897 = vld [vmem:[%s7 + $0x3c] sm:$0xf]
  %v11898 = vld [vmem:[%s8] sm:$0x1]
  %v11900 = vlaneseq
  %v11901 = vshrl.u32 %v11900, 7
  %v11902 = vsub.s32 0, %v11901
  %v11903 = vrot.slane %v11898, %v11902
  %v11921 = vunpack.c.l.b16 %v11882
  %v11922 = vunpack.c.l.b16 %v11883
  %v11923 = vunpack.c.l.b16 %v11884
  %v11924 = vunpack.c.l.b16 %v11885
  %v11925 = vunpack.c.l.b16 %v11886
  %v11926 = vunpack.c.l.b16 %v11887
  %v11927 = vunpack.c.l.b16 %v11888
  %v11928 = vunpack.c.l.b16 %v11889
  %v11929 = vunpack.c.l.b16 %v11890
  %v11930 = vunpack.c.l.b16 %v11891
  %v11931 = vunpack.c.l.b16 %v11892
  %v11932 = vunpack.c.l.b16 %v11893
  %v11933 = vunpack.c.l.b16 %v11894
  %v11934 = vunpack.c.l.b16 %v11895
  %v11935 = vunpack.c.l.b16 %v11896
  %v11936 = vunpack.c.l.b16 %v11897
  %v11937 = vpack.c.b16 %v11922, %v11921
  %v11938 = vpack.c.b16 %v11924, %v11923
  %v11939 = vpack.c.b16 %v11926, %v11925
  %v11940 = vpack.c.b16 %v11928, %v11927
  %v11941 = vpack.c.b16 %v11930, %v11929
  %v11942 = vpack.c.b16 %v11932, %v11931
  %v11943 = vpack.c.b16 %v11934, %v11933
  %v11944 = vpack.c.b16 %v11936, %v11935
  %11953 = vmatprep.subr.bf16.mxu0 0
  %11954 = vmatpush1.bf16.msra.mxu0 %v11944
  %11955 = vmatprep.subr.bf16.mxu0 0
  %11956 = vmatpush1.bf16.msra.mxu0 %v11943
  %11957 = vmatprep.subr.bf16.mxu0 0
  %11958 = vmatpush1.bf16.msra.mxu0 %v11942
  %11959 = vmatprep.subr.bf16.mxu0 0
  %11960 = vmatpush1.bf16.msra.mxu0 %v11941
  %11961 = vmatprep.subr.bf16.mxu0 0
  %11962 = vmatpush1.bf16.msra.mxu0 %v11940
  %11963 = vmatprep.subr.bf16.mxu0 0
  %11964 = vmatpush1.bf16.msra.mxu0 %v11939
  %11965 = vmatprep.subr.bf16.mxu0 0
  %11966 = vmatpush1.bf16.msra.mxu0 %v11938
  %11967 = vmatprep.subr.bf16.mxu0 0
  %11968 = vmatpush1.bf16.msra.mxu0 %v11937
  %11969 = vmatprep.subr.bf16.mxu0 0
  %11970 = vmatpush2.bf16.msra.mxu0 0
  %11971 = vmatprep.subr.bf16.mxu0 0
  %11972 = vmatpush2.bf16.msra.mxu0 0
  %11973 = vmatprep.subr.bf16.mxu0 0
  %11974 = vmatpush2.bf16.msra.mxu0 0
  %11975 = vmatprep.subr.bf16.mxu0 0
  %11976 = vmatpush2.bf16.msra.mxu0 0
  %11977 = vmatprep.subr.bf16.mxu0 0
  %11978 = vmatpush2.bf16.msra.mxu0 0
  %11979 = vmatprep.subr.bf16.mxu0 0
  %11980 = vmatpush2.bf16.msra.mxu0 0
  %11981 = vmatprep.subr.bf16.mxu0 0
  %11982 = vmatpush2.bf16.msra.mxu0 0
  %11983 = vmatprep.subr.bf16.mxu0 0
  %11984 = vmatpush2.bf16.msra.mxu0 0
  %11985 = vmatprep.mubr.bf16.mxu0 0
  %11986 = vmatmul.mubr.bf16.gmra.mxu0 %v11881
  %v11987 = vpop.f32.mrf.mxu0
  %v11988 = vadd.f32 %v11903, %v11987
  %v11989 = vpop.f32.mrf.mxu0
  %v11990 = vpop.f32.mrf.mxu0
  %v11991 = vpop.f32.mrf.mxu0
  %11992 = vdwg.mxu0
  %v11993 = vmax.f32 %v11988, 0.0
  %v11994 = vpack.c.bf16 %v11993, %v11993
  %v11995 = vld [vmem:[%s9] sm:$0xf]
  %v11996 = vld [vmem:[%s9 + $0x4] sm:$0xf]
  %v11997 = vld [vmem:[%s9 + $0x8] sm:$0xf]
  %v11998 = vld [vmem:[%s9 + $0xc] sm:$0xf]
  %v11999 = vld [vmem:[%s9 + $0x10] sm:$0xf]
  %v12000 = vld [vmem:[%s9 + $0x14] sm:$0xf]
  %v12001 = vld [vmem:[%s9 + $0x18] sm:$0xf]
  %v12002 = vld [vmem:[%s9 + $0x1c] sm:$0xf]
  %v12003 = vld [vmem:[%s9 + $0x20] sm:$0xf]
  %v12004 = vld [vmem:[%s9 + $0x24] sm:$0xf]
  %v12005 = vld [vmem:[%s9 + $0x28] sm:$0xf]
  %v12006 = vld [vmem:[%s9 + $0x2c] sm:$0xf]
  %v12007 = vld [vmem:[%s9 + $0x30] sm:$0xf]
  %v12008 = vld [vmem:[%s9 + $0x34] sm:$0xf]
  %v12009 = vld [vmem:[%s9 + $0x38] sm:$0xf]
  %v12010 = vld [vmem:[%s9 + $0x3c] sm:$0xf]
  %v12011 = vld [vmem:[%s10] sm:$0x1]
  %v12013 = vlaneseq
  %v12014 = vshrl.u32 %v12013, 7
  %v12015 = vsub.s32 0, %v12014
  %v12016 = vrot.slane %v12011, %v12015
  %v12034 = vunpack.c.l.b16 %v11995
  %v12035 = vunpack.c.l.b16 %v11996
  %v12036 = vunpack.c.l.b16 %v11997
  %v12037 = vunpack.c.l.b16 %v11998
  %v12038 = vunpack.c.l.b16 %v11999
  %v12039 = vunpack.c.l.b16 %v12000
  %v12040 = vunpack.c.l.b16 %v12001
  %v12041 = vunpack.c.l.b16 %v12002
  %v12042 = vunpack.c.l.b16 %v12003
  %v12043 = vunpack.c.l.b16 %v12004
  %v12044 = vunpack.c.l.b16 %v12005
  %v12045 = vunpack.c.l.b16 %v12006
  %v12046 = vunpack.c.l.b16 %v12007
  %v12047 = vunpack.c.l.b16 %v12008
  %v12048 = vunpack.c.l.b16 %v12009
  %v12049 = vunpack.c.l.b16 %v12010
  %v12050 = vpack.c.b16 %v12035, %v12034
  %v12051 = vpack.c.b16 %v12037, %v12036
  %v12052 = vpack.c.b16 %v12039, %v12038
  %v12053 = vpack.c.b16 %v12041, %v12040
  %v12054 = vpack.c.b16 %v12043, %v12042
  %v12055 = vpack.c.b16 %v12045, %v12044
  %v12056 = vpack.c.b16 %v12047, %v12046
  %v12057 = vpack.c.b16 %v12049, %v12048
  %12066 = vmatprep.subr.bf16.mxu0 0
  %12067 = vmatpush1.bf16.msra.mxu0 %v12057
  %12068 = vmatprep.subr.bf16.mxu0 0
  %12069 = vmatpush1.bf16.msra.mxu0 %v12056
  %12070 = vmatprep.subr.bf16.mxu0 0
  %12071 = vmatpush1.bf16.msra.mxu0 %v12055
  %12072 = vmatprep.subr.bf16.mxu0 0
  %12073 = vmatpush1.bf16.msra.mxu0 %v12054
  %12074 = vmatprep.subr.bf16.mxu0 0
  %12075 = vmatpush1.bf16.msra.mxu0 %v12053
  %12076 = vmatprep.subr.bf16.mxu0 0
  %12077 = vmatpush1.bf16.msra.mxu0 %v12052
  %12078 = vmatprep.subr.bf16.mxu0 0
  %12079 = vmatpush1.bf16.msra.mxu0 %v12051
  %12080 = vmatprep.subr.bf16.mxu0 0
  %12081 = vmatpush1.bf16.msra.mxu0 %v12050
  %12082 = vmatprep.subr.bf16.mxu0 0
  %12083 = vmatpush2.bf16.msra.mxu0 0
  %12084 = vmatprep.subr.bf16.mxu0 0
  %12085 = vmatpush2.bf16.msra.mxu0 0
  %12086 = vmatprep.subr.bf16.mxu0 0
  %12087 = vmatpush2.bf16.msra.mxu0 0
  %12088 = vmatprep.subr.bf16.mxu0 0
  %12089 = vmatpush2.bf16.msra.mxu0 0
  %12090 = vmatprep.subr.bf16.mxu0 0
  %12091 = vmatpush2.bf16.msra.mxu0 0
  %12092 = vmatprep.subr.bf16.mxu0 0
  %12093 = vmatpush2.bf16.msra.mxu0 0
  %12094 = vmatprep.subr.bf16.mxu0 0
  %12095 = vmatpush2.bf16.msra.mxu0 0
  %12096 = vmatprep.subr.bf16.mxu0 0
  %12097 = vmatpush2.bf16.msra.mxu0 0
  %12098 = vmatprep.mubr.bf16.mxu0 0
  %12099 = vmatmul.mubr.bf16.gmra.mxu0 %v11994
  %v12100 = vpop.f32.mrf.mxu0
  %v12101 = vadd.f32 %v12016, %v12100
  %v12102 = vpop.f32.mrf.mxu0
  %v12103 = vpop.f32.mrf.mxu0
  %v12104 = vpop.f32.mrf.mxu0
  %12105 = vdwg.mxu0
  %12106 = vst [vmem:[%s11] sm:$0xff] %v12101
  // Predicated region
  $region46: #{net_forward.1} parent=0 // pred_check
    _
  $region47: #{net_forward.1} parent=0 // pred_check_branch
    %12108 = sbr.rel (0) target = $region49
  $region48: #{net_forward.1} parent=0 // pred_region
    _
  $region49: #{net_forward.1} parent=0 // pred_fallthru
    _
  // Predicated region
  $region50: #{net_forward.1} parent=0 // pred_check
    _
  $region51: #{net_forward.1} parent=0 // pred_check_branch
    %12110 = sbr.rel (0) target = $region53
  $region52: #{net_forward.1} parent=0 // pred_region
    _
  $region53: #{net_forward.1} parent=0 // pred_fallthru
    _

</llo_original>
